<compile_context>
chip_gen: v7x
topology: tpu7x:2x2x1
jax: 0.10.0
libtpu: 0.0.40
codegen_flags: <defaults>
</compile_context>

<pallas_src>
import math
import functools

import jax
import jax.numpy as jnp
from jax.experimental import pallas as pl
from jax.experimental.pallas import tpu as pltpu


# ----------------------------------------------------------------------------
# Helpers
# ----------------------------------------------------------------------------
_VMEM_LIMIT_CACHE = []


def _vmem_limit_bytes():
    """~75% of per-core VMEM (48 MiB on v7x, ~96 MiB on v5e/v6e), 48 MiB fallback."""
    if not _VMEM_LIMIT_CACHE:
        limit = 48 * 1024 * 1024
        try:
            info = pltpu.get_tpu_info()
            cap = getattr(info, "vmem_capacity_bytes", None)
            if cap:
                limit = int(cap) * 3 // 4
        except Exception:
            pass
        _VMEM_LIMIT_CACHE.append(limit)
    return _VMEM_LIMIT_CACHE[0]


def _pick_tile(dim, pref):
    """Largest multiple of 128 <= pref that divides dim; else the full dim."""
    if dim <= pref:
        return dim
    t = pref - (pref % 128)
    while t >= 128:
        if dim % t == 0:
            return t
        t -= 128
    return dim


# ----------------------------------------------------------------------------
# Kernel 1: tiled linear  out = x @ w + b   (w stored (K, M): already transposed)
# Used for the QKV projection and for the final vocab decoder.
# ----------------------------------------------------------------------------
def _linear_kernel(x_ref, w_ref, b_ref, o_ref):
    x = x_ref[...].astype(jnp.bfloat16)
    acc = jnp.dot(x, w_ref[...], preferred_element_type=jnp.float32)
    o_ref[...] = (acc + b_ref[...]).astype(o_ref.dtype)


def run_linear(x, w, b, *, out_dtype=jnp.float32, tm_pref=256, tn_pref=256):
    N, K = x.shape
    Kw, M = w.shape
    assert K == Kw
    tm = _pick_tile(N, tm_pref)
    tn = _pick_tile(M, tn_pref)
    grid = (N // tm, M // tn)
    return pl.pallas_call(
        _linear_kernel,
        out_shape=jax.ShapeDtypeStruct((N, M), out_dtype),
        grid=grid,
        in_specs=[
            pl.BlockSpec((tm, K), lambda i, j: (i, 0)),
            pl.BlockSpec((K, tn), lambda i, j: (0, j)),
            pl.BlockSpec((1, tn), lambda i, j: (0, j)),
        ],
        out_specs=pl.BlockSpec((tm, tn), lambda i, j: (i, j)),
        compiler_params=pltpu.CompilerParams(
            dimension_semantics=("parallel", "parallel"),
            vmem_limit_bytes=_vmem_limit_bytes()),
    )(x, w, b)


# ----------------------------------------------------------------------------
# Kernel 2: attention core + out-projection + residual + LayerNorm1
# Grid = (batch, query-tile).  q/k/v arrive head-split (H, *, Dh), bf16.
# ----------------------------------------------------------------------------
def _attn_kernel(x_ref, q_ref, k_ref, v_ref, mask_ref,
                 wo_ref, bo_ref, g_ref, beta_ref, o_ref):
    H, Tq, Dh = q_ref.shape
    E = H * Dh
    scale = 1.0 / math.sqrt(Dh)

    q = q_ref[...]                       # (H, Tq, Dh) bf16
    k = k_ref[...]                       # (H, S,  Dh) bf16
    v = v_ref[...]                       # (H, S,  Dh) bf16

    # batched-head scores, f32 accumulation on the MXU
    s = jnp.einsum("hqd,hkd->hqk", q, k,
                   preferred_element_type=jnp.float32) * scale        # (H, Tq, S)
    mask = jnp.maximum(mask_ref[...], jnp.float32(-1e30))              # finite => no NaN
    s = s + mask[None, :, :]

    s = s - jnp.max(s, axis=-1, keepdims=True)
    p = jnp.exp(s)
    p = p * pl.reciprocal(jnp.sum(p, axis=-1, keepdims=True), approx=True)

    ctx = jnp.einsum("hqk,hkd->hqd", p.astype(jnp.bfloat16), v,
                     preferred_element_type=jnp.float32)               # (H, Tq, Dh) f32

    # output projection as a per-head contraction sum: sum_h ctx[h] @ Wo[h]
    # (mathematically identical to the (Tq,E)x(E,E) matmul, but needs no
    #  (H,Tq,Dh)->(Tq,E) relayout; all stores stay lane dense)
    wo = wo_ref[...]                                                   # (H, Dh, E) bf16
    attn = jnp.zeros((Tq, E), jnp.float32)
    for h in range(H):                                                 # static, small
        attn = attn + jnp.dot(ctx[h].astype(jnp.bfloat16), wo[h],
                              preferred_element_type=jnp.float32)
    attn = attn + bo_ref[...]

    # residual + LayerNorm1 (f32)
    y = x_ref[...] + attn
    mu = jnp.mean(y, axis=-1, keepdims=True)
    var = jnp.mean(jnp.square(y - mu), axis=-1, keepdims=True)
    o_ref[...] = ((y - mu) * jax.lax.rsqrt(var + 1e-5)) * g_ref[...] + beta_ref[...]


def run_attention(x, q, k, v, mask, wo_h, bo, ln1_w, ln1_b, *, tq_pref=256):
    """x: (B,S,E) f32; q/k/v: (B,H,S,Dh) bf16; mask: (S,S) additive. -> (B,S,E) f32."""
    B, S, E = x.shape
    _, H, _, Dh = q.shape
    Tq = _pick_tile(S, tq_pref)
    grid = (B, S // Tq)
    # TODO(synk): for very long sequences, tile K/V as well with a flash-style
    # online-softmax accumulator instead of keeping the full (H, S, Dh) K/V block resident.
    return pl.pallas_call(
        _attn_kernel,
        out_shape=jax.ShapeDtypeStruct((B, S, E), jnp.float32),
        grid=grid,
        in_specs=[
            pl.BlockSpec((None, Tq, E), lambda b, i: (b, i, 0)),        # x (residual) tile
            pl.BlockSpec((None, H, Tq, Dh), lambda b, i: (b, 0, i, 0)),  # q tile
            pl.BlockSpec((None, H, S, Dh), lambda b, i: (b, 0, 0, 0)),   # k (full seq)
            pl.BlockSpec((None, H, S, Dh), lambda b, i: (b, 0, 0, 0)),   # v (full seq)
            pl.BlockSpec((Tq, S), lambda b, i: (i, 0)),                  # mask rows
            pl.BlockSpec((H, Dh, E), lambda b, i: (0, 0, 0)),            # Wo (head-split)
            pl.BlockSpec((1, E), lambda b, i: (0, 0)),                   # bo
            pl.BlockSpec((1, E), lambda b, i: (0, 0)),                   # ln1 gamma
            pl.BlockSpec((1, E), lambda b, i: (0, 0)),                   # ln1 beta
        ],
        out_specs=pl.BlockSpec((None, Tq, E), lambda b, i: (b, i, 0)),
        compiler_params=pltpu.CompilerParams(
            dimension_semantics=("parallel", "parallel"),
            vmem_limit_bytes=_vmem_limit_bytes()),
    )(x, q, k, v, mask, wo_h, bo, ln1_w, ln1_b)


# ----------------------------------------------------------------------------
# Kernel 3: fused FFN (linear -> ReLU -> linear) + residual + LayerNorm2,
# row-tiled over the flattened (B*S) token axis.
# ----------------------------------------------------------------------------
def _ffn_kernel(y_ref, w1_ref, b1_ref, w2_ref, b2_ref, g_ref, beta_ref, o_ref):
    y = y_ref[...]                                                     # (Tm, E) f32
    h = jnp.dot(y.astype(jnp.bfloat16), w1_ref[...],
                preferred_element_type=jnp.float32) + b1_ref[...]
    h = jnp.maximum(h, 0.0)
    f = jnp.dot(h.astype(jnp.bfloat16), w2_ref[...],
                preferred_element_type=jnp.float32) + b2_ref[...]
    z = y + f
    mu = jnp.mean(z, axis=-1, keepdims=True)
    var = jnp.mean(jnp.square(z - mu), axis=-1, keepdims=True)
    o_ref[...] = ((z - mu) * jax.lax.rsqrt(var + 1e-5)) * g_ref[...] + beta_ref[...]


def run_ffn(y2d, p, *, tm_pref=256):
    N, E = y2d.shape
    F = p["lin1_w"].shape[1]
    Tm = _pick_tile(N, tm_pref)
    grid = (N // Tm,)
    return pl.pallas_call(
        _ffn_kernel,
        out_shape=jax.ShapeDtypeStruct((N, E), jnp.float32),
        grid=grid,
        in_specs=[
            pl.BlockSpec((Tm, E), lambda i: (i, 0)),
            pl.BlockSpec((E, F), lambda i: (0, 0)),
            pl.BlockSpec((1, F), lambda i: (0, 0)),
            pl.BlockSpec((F, E), lambda i: (0, 0)),
            pl.BlockSpec((1, E), lambda i: (0, 0)),
            pl.BlockSpec((1, E), lambda i: (0, 0)),
            pl.BlockSpec((1, E), lambda i: (0, 0)),
        ],
        out_specs=pl.BlockSpec((Tm, E), lambda i: (i, 0)),
        compiler_params=pltpu.CompilerParams(
            dimension_semantics=("parallel",),
            vmem_limit_bytes=_vmem_limit_bytes()),
    )(y2d, p["lin1_w"], p["lin1_b"], p["lin2_w"], p["lin2_b"],
      p["ln2_w"], p["ln2_b"])


# ----------------------------------------------------------------------------
# Encoder layer / full forward (wrapper glue)
# ----------------------------------------------------------------------------
def run_encoder_layer(x, mask, p, nhead):
    B, S, E = x.shape
    Dh = E // nhead

    # 1) QKV projection (tiled linear, bf16 output feeds the attention MXU ops)
    qkv = run_linear(x.reshape(B * S, E), p["in_w"], p["in_b"],
                     out_dtype=jnp.bfloat16)                           # (B*S, 3E)

    # head-split layout plumbing (cheap XLA transpose in the wrapper so the kernel
    # needs no in-kernel reshapes/transposes)
    qkv = qkv.reshape(B, S, 3, nhead, Dh)
    qkv = jnp.transpose(qkv, (2, 0, 3, 1, 4))                          # (3, B, H, S, Dh)
    q, k, v = qkv[0], qkv[1], qkv[2]

    # 2) attention + out-proj + residual + LayerNorm1
    y = run_attention(x, q, k, v, mask, p["out_w"], p["out_b"],
                      p["ln1_w"], p["ln1_b"])                          # (B, S, E) f32

    # 3) FFN + residual + LayerNorm2, row-tiled over B*S
    z = run_ffn(y.reshape(B * S, E), p)
    return z.reshape(B, S, E)


def make_positional_encoding(max_len, d_model):
    position = jnp.arange(max_len, dtype=jnp.float32)[:, None]
    div_term = jnp.exp(jnp.arange(0, d_model, 2, dtype=jnp.float32)
                       * (-math.log(10000.0) / d_model))
    pe = jnp.zeros((max_len, d_model), dtype=jnp.float32)
    pe = pe.at[:, 0::2].set(jnp.sin(position * div_term))
    pe = pe.at[:, 1::2].set(jnp.cos(position * div_term))
    return pe                            # (max_len, d_model)


def generate_square_subsequent_mask(sz):
    allowed = jnp.tril(jnp.ones((sz, sz), dtype=jnp.bool_))
    return jnp.where(allowed, 0.0, -jnp.inf).astype(jnp.float32)


def init_params(key, ntoken, ninp, nhead, nhid, nlayers, max_len=5000):
    assert ninp % nhead == 0
    Dh = ninp // nhead
    keys = jax.random.split(key, 2 + 6 * nlayers)
    initrange = 0.1
    wdt = jnp.bfloat16

    def u(k, shape, fan_in):
        bound = 1.0 / math.sqrt(fan_in)
        return jax.random.uniform(k, shape, jnp.float32, -bound, bound)

    params = {
        "emb": jax.random.uniform(keys[0], (ntoken, ninp), jnp.float32,
                                  -initrange, initrange),
        # decoder weight stored pre-transposed (E, V), bf16
        "dec_w": jax.random.uniform(keys[1], (ninp, ntoken), jnp.float32,
                                    -initrange, initrange).astype(wdt),
        "dec_b": jnp.zeros((1, ntoken), jnp.float32),
        "pe": make_positional_encoding(max_len, ninp),
        "layers": [],
    }
    ki = 2
    for _ in range(nlayers):
        layer = {
            # all matmul weights stored already transposed ((in, out) layout), bf16
            "in_w": u(keys[ki + 0], (ninp, 3 * ninp), ninp).astype(wdt),
            "in_b": jnp.zeros((1, 3 * ninp), jnp.float32),
            # out-proj stored head-split (H, Dh, E)
            "out_w": u(keys[ki + 1], (nhead, Dh, ninp), ninp).astype(wdt),
            "out_b": jnp.zeros((1, ninp), jnp.float32),
            "lin1_w": u(keys[ki + 2], (ninp, nhid), ninp).astype(wdt),
            "lin1_b": u(keys[ki + 3], (1, nhid), ninp),
            "lin2_w": u(keys[ki + 4], (nhid, ninp), nhid).astype(wdt),
            "lin2_b": u(keys[ki + 5], (1, ninp), nhid),
            "ln1_w": jnp.ones((1, ninp), jnp.float32),
            "ln1_b": jnp.zeros((1, ninp), jnp.float32),
            "ln2_w": jnp.ones((1, ninp), jnp.float32),
            "ln2_b": jnp.zeros((1, ninp), jnp.float32),
        }
        params["layers"].append(layer)
        ki += 6
    return params


def transformer_forward(src, mask, params, nhead):
    """src: (S, B) int32 tokens; mask: (S, S) additive float mask.
    Returns logits of shape (S, B, ntoken), matching the PyTorch module."""
    S, B = src.shape
    E = params["emb"].shape[1]
    V = params["dec_w"].shape[1]

    # embedding + sqrt(ninp) scale + positional encoding (dropout = identity in eval)
    x = jnp.take(params["emb"], src, axis=0) * math.sqrt(E)            # (S, B, E)
    x = x + params["pe"][:S][:, None, :]
    x = jnp.transpose(x, (1, 0, 2))                                    # (B, S, E)

    for layer_p in params["layers"]:
        x = run_encoder_layer(x, mask, layer_p, nhead)

    # decoder linear (tiled Pallas kernel over rows x vocab)
    logits = run_linear(x.reshape(B * S, E), params["dec_w"], params["dec_b"],
                        out_dtype=jnp.float32)                         # (B*S, V)
    return jnp.transpose(logits.reshape(B, S, V), (1, 0, 2))           # (S, B, V)


if __name__ == "__main__":
    ntoken, ninp, nhead, nhid, nlayers = 256, 128, 2, 256, 2
    S, B = 64, 2

    params = init_params(jax.random.PRNGKey(0), ntoken, ninp, nhead, nhid, nlayers)
    src = jax.random.randint(jax.random.PRNGKey(0), (S, B), 0, ntoken, dtype=jnp.int32)
    mask = generate_square_subsequent_mask(S)

    fwd = jax.jit(functools.partial(transformer_forward, nhead=nhead))
    out = fwd(src, mask, params)
    jax.block_until_ready(out)

    assert out.shape == (S, B, ntoken), out.shape
    assert bool(jnp.all(jnp.isfinite(out)))
    print("KERNEL_OK")
</pallas_src>

<mosaic_0001>
module attributes {stable_mosaic.version = 11 : i64} {
  func.func @_linear_kernel(%arg0: i32, %arg1: i32, %arg2: memref<128x128xf32, #tpu.memory_space<vmem>>, %arg3: memref<128x128xbf16, #tpu.memory_space<vmem>>, %arg4: memref<1x128xf32, #tpu.memory_space<vmem>>, %arg5: memref<128x128xbf16, #tpu.memory_space<vmem>>) attributes {dimension_semantics = [#tpu.dimension_semantics<parallel>, #tpu.dimension_semantics<parallel>], iteration_bounds = array<i64: 1, 3>, scalar_prefetch = 0 : i64, scratch_operands = 0 : i64, tpu.core_type = #tpu.core_type<tc>, window_params = [{transform_indices = @transform_0, window_bounds = array<i64: 128, 128>}, {transform_indices = @transform_1, window_bounds = array<i64: 128, 128>}, {transform_indices = @transform_2, window_bounds = array<i64: 1, 128>}, {transform_indices = @transform_3, window_bounds = array<i64: 128, 128>}]} {
    %c0 = arith.constant 0 : index
    %c0_0 = arith.constant 0 : index
    %0 = vector.load %arg2[%c0, %c0_0] : memref<128x128xf32, #tpu.memory_space<vmem>>, vector<128x128xf32>
    %1 = arith.truncf %0 : vector<128x128xf32> to vector<128x128xbf16>
    %c0_1 = arith.constant 0 : index
    %c0_2 = arith.constant 0 : index
    %2 = vector.load %arg3[%c0_1, %c0_2] : memref<128x128xbf16, #tpu.memory_space<vmem>>, vector<128x128xbf16>
    %cst = arith.constant dense<0.000000e+00> : vector<128x128xf32>
    %3 = tpu.matmul %1, %2, %cst {dimension_numbers = #tpu.dot_dimension_numbers<[1], [0], [0], [1], [0, 0, 1, 1], [], []>} : vector<128x128xbf16>, vector<128x128xbf16>, vector<128x128xf32> -> vector<128x128xf32>
    %c0_3 = arith.constant 0 : index
    %c0_4 = arith.constant 0 : index
    %4 = vector.load %arg4[%c0_3, %c0_4] : memref<1x128xf32, #tpu.memory_space<vmem>>, vector<1x128xf32>
    %5 = vector.broadcast %4 : vector<1x128xf32> to vector<128x128xf32>
    %6 = arith.addf %3, %5 : vector<128x128xf32>
    %7 = arith.truncf %6 : vector<128x128xf32> to vector<128x128xbf16>
    %c0_5 = arith.constant 0 : index
    %c0_6 = arith.constant 0 : index
    %8 = vector.load %arg5[%c0_5, %c0_6] : memref<128x128xbf16, #tpu.memory_space<vmem>>, vector<128x128xbf16>
    tpu.vector_store %arg5[%c0_5, %c0_6], %7 {strides = array<i32>} : memref<128x128xbf16, #tpu.memory_space<vmem>>, vector<128x128xbf16>,
    return
  }
  func.func @transform_0(%arg0: i32, %arg1: i32) -> (i32, i32) {
    %c0_i32 = arith.constant 0 : i32
    %c0_i32_0 = arith.constant 0 : i32
    return %arg0, %c0_i32 : i32, i32
  }
  func.func @transform_1(%arg0: i32, %arg1: i32) -> (i32, i32) {
    %c0_i32 = arith.constant 0 : i32
    %c0_i32_0 = arith.constant 0 : i32
    return %c0_i32, %arg1 : i32, i32
  }
  func.func @transform_2(%arg0: i32, %arg1: i32) -> (i32, i32) {
    %c0_i32 = arith.constant 0 : i32
    %c0_i32_0 = arith.constant 0 : i32
    return %c0_i32, %arg1 : i32, i32
  }
  func.func @transform_3(%arg0: i32, %arg1: i32) -> (i32, i32) {
    %c0_i32 = arith.constant 0 : i32
    return %arg0, %arg1 : i32, i32
  }
}

module attributes {stable_mosaic.version = 11 : i64} {
  func.func @_attn_kernel(%arg0: i32, %arg1: i32, %arg2: memref<1x64x128xf32, #tpu.memory_space<vmem>>, %arg3: memref<1x2x64x64xbf16, #tpu.memory_space<vmem>>, %arg4: memref<1x2x64x64xbf16, #tpu.memory_space<vmem>>, %arg5: memref<1x2x64x64xbf16, #tpu.memory_space<vmem>>, %arg6: memref<64x64xf32, #tpu.memory_space<vmem>>, %arg7: memref<2x64x128xbf16, #tpu.memory_space<vmem>>, %arg8: memref<1x128xf32, #tpu.memory_space<vmem>>, %arg9: memref<1x128xf32, #tpu.memory_space<vmem>>, %arg10: memref<1x128xf32, #tpu.memory_space<vmem>>, %arg11: memref<1x64x128xf32, #tpu.memory_space<vmem>>) attributes {dimension_semantics = [#tpu.dimension_semantics<parallel>, #tpu.dimension_semantics<parallel>], iteration_bounds = array<i64: 2, 1>, scalar_prefetch = 0 : i64, scratch_operands = 0 : i64, tpu.core_type = #tpu.core_type<tc>, window_params = [{transform_indices = @transform_0, window_bounds = array<i64: 1, 64, 128>}, {transform_indices = @transform_1, window_bounds = array<i64: 1, 2, 64, 64>}, {transform_indices = @transform_2, window_bounds = array<i64: 1, 2, 64, 64>}, {transform_indices = @transform_3, window_bounds = array<i64: 1, 2, 64, 64>}, {transform_indices = @transform_4, window_bounds = array<i64: 64, 64>}, {pipeline_mode = #tpu.pipeline_mode<synchronous>, transform_indices = @transform_5, window_bounds = array<i64: 2, 64, 128>}, {pipeline_mode = #tpu.pipeline_mode<synchronous>, transform_indices = @transform_6, window_bounds = array<i64: 1, 128>}, {pipeline_mode = #tpu.pipeline_mode<synchronous>, transform_indices = @transform_7, window_bounds = array<i64: 1, 128>}, {pipeline_mode = #tpu.pipeline_mode<synchronous>, transform_indices = @transform_8, window_bounds = array<i64: 1, 128>}, {transform_indices = @transform_9, window_bounds = array<i64: 1, 64, 128>}]} {
    %c0 = arith.constant 0 : index
    %c0_0 = arith.constant 0 : index
    %c0_1 = arith.constant 0 : index
    %c0_2 = arith.constant 0 : index
    %0 = vector.load %arg3[%c0, %c0_0, %c0_1, %c0_2] : memref<1x2x64x64xbf16, #tpu.memory_space<vmem>>, vector<1x2x64x64xbf16>
    %1 = vector.shape_cast %0 : vector<1x2x64x64xbf16> to vector<2x64x64xbf16>
    %c0_3 = arith.constant 0 : index
    %c0_4 = arith.constant 0 : index
    %c0_5 = arith.constant 0 : index
    %c0_6 = arith.constant 0 : index
    %2 = vector.load %arg4[%c0_3, %c0_4, %c0_5, %c0_6] : memref<1x2x64x64xbf16, #tpu.memory_space<vmem>>, vector<1x2x64x64xbf16>
    %3 = vector.shape_cast %2 : vector<1x2x64x64xbf16> to vector<2x64x64xbf16>
    %c0_7 = arith.constant 0 : index
    %c0_8 = arith.constant 0 : index
    %c0_9 = arith.constant 0 : index
    %c0_10 = arith.constant 0 : index
    %4 = vector.load %arg5[%c0_7, %c0_8, %c0_9, %c0_10] : memref<1x2x64x64xbf16, #tpu.memory_space<vmem>>, vector<1x2x64x64xbf16>
    %5 = vector.shape_cast %4 : vector<1x2x64x64xbf16> to vector<2x64x64xbf16>
    "tpu.trace_start"() <{level = 10 : i32, message = "hqd,hkd->hqk"}> : () -> ()
    %cst = arith.constant dense<0.000000e+00> : vector<2x64x64xf32>
    %6 = tpu.matmul %1, %3, %cst {dimension_numbers = #tpu.dot_dimension_numbers<[2], [2], [1], [1], [0, 0, 0, 1, 1, 1], [0], [0]>} : vector<2x64x64xbf16>, vector<2x64x64xbf16>, vector<2x64x64xf32> -> vector<2x64x64xf32>
    "tpu.trace_stop"() : () -> ()
    %cst_11 = arith.constant 1.250000e-01 : f32
    %7 = vector.broadcast %cst_11 : f32 to vector<2x64x64xf32>
    %8 = arith.mulf %6, %7 : vector<2x64x64xf32>
    %c0_12 = arith.constant 0 : index
    %c0_13 = arith.constant 0 : index
    %9 = vector.load %arg6[%c0_12, %c0_13] : memref<64x64xf32, #tpu.memory_space<vmem>>, vector<64x64xf32>
    %cst_14 = arith.constant -1.000000e+30 : f32
    %10 = vector.broadcast %cst_14 : f32 to vector<64x64xf32>
    %11 = arith.maximumf %9, %10 : vector<64x64xf32>
    %12 = vector.shape_cast %11 : vector<64x64xf32> to vector<1x64x64xf32>
    %13 = vector.broadcast %12 : vector<1x64x64xf32> to vector<2x64x64xf32>
    %14 = arith.addf %8, %13 : vector<2x64x64xf32>
    %cst_15 = arith.constant dense<0xFF800000> : vector<2x64xf32>
    %15 = vector.multi_reduction <maximumf>, %14, %cst_15 [2] : vector<2x64x64xf32> to vector<2x64xf32>
    %16 = vector.shape_cast %15 : vector<2x64xf32> to vector<2x64x1xf32>
    %17 = vector.broadcast %16 : vector<2x64x1xf32> to vector<2x64x64xf32>
    %18 = arith.subf %14, %17 : vector<2x64x64xf32>
    %19 = math.exp %18 : vector<2x64x64xf32>
    %cst_16 = arith.constant dense<0.000000e+00> : vector<2x64xf32>
    %20 = vector.multi_reduction <add>, %19, %cst_16 [2] : vector<2x64x64xf32> to vector<2x64xf32>
    %21 = vector.shape_cast %20 : vector<2x64xf32> to vector<2x64x1xf32>
    %22 = tpu.reciprocal %21 {approx = true} : vector<2x64x1xf32> -> vector<2x64x1xf32>
    %23 = vector.broadcast %22 : vector<2x64x1xf32> to vector<2x64x64xf32>
    %24 = arith.mulf %19, %23 : vector<2x64x64xf32>
    %25 = arith.truncf %24 : vector<2x64x64xf32> to vector<2x64x64xbf16>
    "tpu.trace_start"() <{level = 10 : i32, message = "hqk,hkd->hqd"}> : () -> ()
    %cst_17 = arith.constant dense<0.000000e+00> : vector<2x64x64xf32>
    %26 = tpu.matmul %25, %5, %cst_17 {dimension_numbers = #tpu.dot_dimension_numbers<[2], [1], [1], [2], [0, 0, 0, 1, 1, 2], [0], [0]>} : vector<2x64x64xbf16>, vector<2x64x64xbf16>, vector<2x64x64xf32> -> vector<2x64x64xf32>
    "tpu.trace_stop"() : () -> ()
    %c0_18 = arith.constant 0 : index
    %c0_19 = arith.constant 0 : index
    %c0_20 = arith.constant 0 : index
    %27 = vector.load %arg7[%c0_18, %c0_19, %c0_20] : memref<2x64x128xbf16, #tpu.memory_space<vmem>>, vector<2x64x128xbf16>
    %cst_21 = arith.constant 0.000000e+00 : f32
    %28 = vector.broadcast %cst_21 : f32 to vector<64x128xf32>
    %29 = vector.extract_strided_slice %26 {offsets = [0, 0, 0], sizes = [1, 64, 64], strides = [1, 1, 1]} : vector<2x64x64xf32> to vector<1x64x64xf32>
    %30 = vector.shape_cast %29 : vector<1x64x64xf32> to vector<64x64xf32>
    %31 = arith.truncf %30 : vector<64x64xf32> to vector<64x64xbf16>
    %32 = vector.extract_strided_slice %27 {offsets = [0, 0, 0], sizes = [1, 64, 128], strides = [1, 1, 1]} : vector<2x64x128xbf16> to vector<1x64x128xbf16>
    %33 = vector.shape_cast %32 : vector<1x64x128xbf16> to vector<64x128xbf16>
    %cst_22 = arith.constant dense<0.000000e+00> : vector<64x128xf32>
    %34 = tpu.matmul %31, %33, %cst_22 {dimension_numbers = #tpu.dot_dimension_numbers<[1], [0], [0], [1], [0, 0, 1, 1], [], []>} : vector<64x64xbf16>, vector<64x128xbf16>, vector<64x128xf32> -> vector<64x128xf32>
    %35 = arith.addf %28, %34 : vector<64x128xf32>
    %36 = vector.extract_strided_slice %26 {offsets = [1, 0, 0], sizes = [1, 64, 64], strides = [1, 1, 1]} : vector<2x64x64xf32> to vector<1x64x64xf32>
    %37 = vector.shape_cast %36 : vector<1x64x64xf32> to vector<64x64xf32>
    %38 = arith.truncf %37 : vector<64x64xf32> to vector<64x64xbf16>
    %39 = vector.extract_strided_slice %27 {offsets = [1, 0, 0], sizes = [1, 64, 128], strides = [1, 1, 1]} : vector<2x64x128xbf16> to vector<1x64x128xbf16>
    %40 = vector.shape_cast %39 : vector<1x64x128xbf16> to vector<64x128xbf16>
    %cst_23 = arith.constant dense<0.000000e+00> : vector<64x128xf32>
    %41 = tpu.matmul %38, %40, %cst_23 {dimension_numbers = #tpu.dot_dimension_numbers<[1], [0], [0], [1], [0, 0, 1, 1], [], []>} : vector<64x64xbf16>, vector<64x128xbf16>, vector<64x128xf32> -> vector<64x128xf32>
    %42 = arith.addf %35, %41 : vector<64x128xf32>
    %c0_24 = arith.constant 0 : index
    %c0_25 = arith.constant 0 : index
    %43 = vector.load %arg8[%c0_24, %c0_25] : memref<1x128xf32, #tpu.memory_space<vmem>>, vector<1x128xf32>
    %44 = vector.broadcast %43 : vector<1x128xf32> to vector<64x128xf32>
    %45 = arith.addf %42, %44 : vector<64x128xf32>
    %c0_26 = arith.constant 0 : index
    %c0_27 = arith.constant 0 : index
    %c0_28 = arith.constant 0 : index
    %46 = vector.load %arg2[%c0_26, %c0_27, %c0_28] : memref<1x64x128xf32, #tpu.memory_space<vmem>>, vector<1x64x128xf32>
    %47 = vector.shape_cast %46 : vector<1x64x128xf32> to vector<64x128xf32>
    %48 = arith.addf %47, %45 : vector<64x128xf32>
    %cst_29 = arith.constant dense<0.000000e+00> : vector<64xf32>
    %49 = vector.multi_reduction <add>, %48, %cst_29 [1] : vector<64x128xf32> to vector<64xf32>
    %50 = vector.shape_cast %49 : vector<64xf32> to vector<64x1xf32>
    %cst_30 = arith.constant 1.280000e+02 : f32
    %51 = vector.broadcast %cst_30 : f32 to vector<64x1xf32>
    %52 = arith.divf %50, %51 : vector<64x1xf32>
    %53 = vector.broadcast %52 : vector<64x1xf32> to vector<64x128xf32>
    %54 = arith.subf %48, %53 : vector<64x128xf32>
    %55 = arith.mulf %54, %54 : vector<64x128xf32>
    %cst_31 = arith.constant dense<0.000000e+00> : vector<64xf32>
    %56 = vector.multi_reduction <add>, %55, %cst_31 [1] : vector<64x128xf32> to vector<64xf32>
    %57 = vector.shape_cast %56 : vector<64xf32> to vector<64x1xf32>
    %cst_32 = arith.constant 1.280000e+02 : f32
    %58 = vector.broadcast %cst_32 : f32 to vector<64x1xf32>
    %59 = arith.divf %57, %58 : vector<64x1xf32>
    %60 = vector.broadcast %52 : vector<64x1xf32> to vector<64x128xf32>
    %61 = arith.subf %48, %60 : vector<64x128xf32>
    %cst_33 = arith.constant 9.99999974E-6 : f32
    %62 = vector.broadcast %cst_33 : f32 to vector<64x1xf32>
    %63 = arith.addf %59, %62 : vector<64x1xf32>
    %64 = math.rsqrt %63 : vector<64x1xf32>
    %65 = vector.broadcast %64 : vector<64x1xf32> to vector<64x128xf32>
    %66 = arith.mulf %61, %65 : vector<64x128xf32>
    %c0_34 = arith.constant 0 : index
    %c0_35 = arith.constant 0 : index
    %67 = vector.load %arg9[%c0_34, %c0_35] : memref<1x128xf32, #tpu.memory_space<vmem>>, vector<1x128xf32>
    %68 = vector.broadcast %67 : vector<1x128xf32> to vector<64x128xf32>
    %69 = arith.mulf %66, %68 : vector<64x128xf32>
    %c0_36 = arith.constant 0 : index
    %c0_37 = arith.constant 0 : index
    %70 = vector.load %arg10[%c0_36, %c0_37] : memref<1x128xf32, #tpu.memory_space<vmem>>, vector<1x128xf32>
    %71 = vector.broadcast %70 : vector<1x128xf32> to vector<64x128xf32>
    %72 = arith.addf %69, %71 : vector<64x128xf32>
    %c0_38 = arith.constant 0 : index
    %c0_39 = arith.constant 0 : index
    %c0_40 = arith.constant 0 : index
    %73 = vector.load %arg11[%c0_38, %c0_39, %c0_40] : memref<1x64x128xf32, #tpu.memory_space<vmem>>, vector<1x64x128xf32>
    %74 = vector.shape_cast %73 : vector<1x64x128xf32> to vector<64x128xf32>
    %75 = vector.shape_cast %72 : vector<64x128xf32> to vector<1x64x128xf32>
    tpu.vector_store %arg11[%c0_38, %c0_39, %c0_40], %75 {strides = array<i32>} : memref<1x64x128xf32, #tpu.memory_space<vmem>>, vector<1x64x128xf32>,
    return
  }
  func.func @transform_0(%arg0: i32, %arg1: i32) -> (i32, i32, i32) {
    %c0_i32 = arith.constant 0 : i32
    %c0_i32_0 = arith.constant 0 : i32
    return %arg0, %arg1, %c0_i32 : i32, i32, i32
  }
  func.func @transform_1(%arg0: i32, %arg1: i32) -> (i32, i32, i32, i32) {
    %c0_i32 = arith.constant 0 : i32
    %c0_i32_0 = arith.constant 0 : i32
    %c0_i32_1 = arith.constant 0 : i32
    return %arg0, %c0_i32, %arg1, %c0_i32_0 : i32, i32, i32, i32
  }
  func.func @transform_2(%arg0: i32, %arg1: i32) -> (i32, i32, i32, i32) {
    %c0_i32 = arith.constant 0 : i32
    %c0_i32_0 = arith.constant 0 : i32
    %c0_i32_1 = arith.constant 0 : i32
    %c0_i32_2 = arith.constant 0 : i32
    return %arg0, %c0_i32, %c0_i32_0, %c0_i32_1 : i32, i32, i32, i32
  }
  func.func @transform_3(%arg0: i32, %arg1: i32) -> (i32, i32, i32, i32) {
    %c0_i32 = arith.constant 0 : i32
    %c0_i32_0 = arith.constant 0 : i32
    %c0_i32_1 = arith.constant 0 : i32
    %c0_i32_2 = arith.constant 0 : i32
    return %arg0, %c0_i32, %c0_i32_0, %c0_i32_1 : i32, i32, i32, i32
  }
  func.func @transform_4(%arg0: i32, %arg1: i32) -> (i32, i32) {
    %c0_i32 = arith.constant 0 : i32
    %c0_i32_0 = arith.constant 0 : i32
    return %arg1, %c0_i32 : i32, i32
  }
  func.func @transform_5(%arg0: i32, %arg1: i32) -> (i32, i32, i32) {
    %c0_i32 = arith.constant 0 : i32
    %c0_i32_0 = arith.constant 0 : i32
    %c0_i32_1 = arith.constant 0 : i32
    %c0_i32_2 = arith.constant 0 : i32
    return %c0_i32, %c0_i32_0, %c0_i32_1 : i32, i32, i32
  }
  func.func @transform_6(%arg0: i32, %arg1: i32) -> (i32, i32) {
    %c0_i32 = arith.constant 0 : i32
    %c0_i32_0 = arith.constant 0 : i32
    %c0_i32_1 = arith.constant 0 : i32
    return %c0_i32, %c0_i32_0 : i32, i32
  }
  func.func @transform_7(%arg0: i32, %arg1: i32) -> (i32, i32) {
    %c0_i32 = arith.constant 0 : i32
    %c0_i32_0 = arith.constant 0 : i32
    %c0_i32_1 = arith.constant 0 : i32
    return %c0_i32, %c0_i32_0 : i32, i32
  }
  func.func @transform_8(%arg0: i32, %arg1: i32) -> (i32, i32) {
    %c0_i32 = arith.constant 0 : i32
    %c0_i32_0 = arith.constant 0 : i32
    %c0_i32_1 = arith.constant 0 : i32
    return %c0_i32, %c0_i32_0 : i32, i32
  }
  func.func @transform_9(%arg0: i32, %arg1: i32) -> (i32, i32, i32) {
    %c0_i32 = arith.constant 0 : i32
    %c0_i32_0 = arith.constant 0 : i32
    return %arg0, %arg1, %c0_i32 : i32, i32, i32
  }
}

module attributes {stable_mosaic.version = 11 : i64} {
  func.func @_ffn_kernel(%arg0: i32, %arg1: memref<128x128xf32, #tpu.memory_space<vmem>>, %arg2: memref<128x256xbf16, #tpu.memory_space<vmem>>, %arg3: memref<1x256xf32, #tpu.memory_space<vmem>>, %arg4: memref<256x128xbf16, #tpu.memory_space<vmem>>, %arg5: memref<1x128xf32, #tpu.memory_space<vmem>>, %arg6: memref<1x128xf32, #tpu.memory_space<vmem>>, %arg7: memref<1x128xf32, #tpu.memory_space<vmem>>, %arg8: memref<128x128xf32, #tpu.memory_space<vmem>>) attributes {dimension_semantics = [#tpu.dimension_semantics<parallel>], iteration_bounds = array<i64: 1>, scalar_prefetch = 0 : i64, scratch_operands = 0 : i64, tpu.core_type = #tpu.core_type<tc>, window_params = [{transform_indices = @transform_0, window_bounds = array<i64: 128, 128>}, {pipeline_mode = #tpu.pipeline_mode<synchronous>, transform_indices = @transform_1, window_bounds = array<i64: 128, 256>}, {pipeline_mode = #tpu.pipeline_mode<synchronous>, transform_indices = @transform_2, window_bounds = array<i64: 1, 256>}, {pipeline_mode = #tpu.pipeline_mode<synchronous>, transform_indices = @transform_3, window_bounds = array<i64: 256, 128>}, {pipeline_mode = #tpu.pipeline_mode<synchronous>, transform_indices = @transform_4, window_bounds = array<i64: 1, 128>}, {pipeline_mode = #tpu.pipeline_mode<synchronous>, transform_indices = @transform_5, window_bounds = array<i64: 1, 128>}, {pipeline_mode = #tpu.pipeline_mode<synchronous>, transform_indices = @transform_6, window_bounds = array<i64: 1, 128>}, {transform_indices = @transform_7, window_bounds = array<i64: 128, 128>}]} {
    %c0 = arith.constant 0 : index
    %c0_0 = arith.constant 0 : index
    %0 = vector.load %arg1[%c0, %c0_0] : memref<128x128xf32, #tpu.memory_space<vmem>>, vector<128x128xf32>
    %1 = arith.truncf %0 : vector<128x128xf32> to vector<128x128xbf16>
    %c0_1 = arith.constant 0 : index
    %c0_2 = arith.constant 0 : index
    %2 = vector.load %arg2[%c0_1, %c0_2] : memref<128x256xbf16, #tpu.memory_space<vmem>>, vector<128x256xbf16>
    %cst = arith.constant dense<0.000000e+00> : vector<128x256xf32>
    %3 = tpu.matmul %1, %2, %cst {dimension_numbers = #tpu.dot_dimension_numbers<[1], [0], [0], [1], [0, 0, 1, 1], [], []>} : vector<128x128xbf16>, vector<128x256xbf16>, vector<128x256xf32> -> vector<128x256xf32>
    %c0_3 = arith.constant 0 : index
    %c0_4 = arith.constant 0 : index
    %4 = vector.load %arg3[%c0_3, %c0_4] : memref<1x256xf32, #tpu.memory_space<vmem>>, vector<1x256xf32>
    %5 = vector.broadcast %4 : vector<1x256xf32> to vector<128x256xf32>
    %6 = arith.addf %3, %5 : vector<128x256xf32>
    %cst_5 = arith.constant 0.000000e+00 : f32
    %7 = vector.broadcast %cst_5 : f32 to vector<128x256xf32>
    %8 = arith.maximumf %6, %7 : vector<128x256xf32>
    %9 = arith.truncf %8 : vector<128x256xf32> to vector<128x256xbf16>
    %c0_6 = arith.constant 0 : index
    %c0_7 = arith.constant 0 : index
    %10 = vector.load %arg4[%c0_6, %c0_7] : memref<256x128xbf16, #tpu.memory_space<vmem>>, vector<256x128xbf16>
    %cst_8 = arith.constant dense<0.000000e+00> : vector<128x128xf32>
    %11 = tpu.matmul %9, %10, %cst_8 {dimension_numbers = #tpu.dot_dimension_numbers<[1], [0], [0], [1], [0, 0, 1, 1], [], []>} : vector<128x256xbf16>, vector<256x128xbf16>, vector<128x128xf32> -> vector<128x128xf32>
    %c0_9 = arith.constant 0 : index
    %c0_10 = arith.constant 0 : index
    %12 = vector.load %arg5[%c0_9, %c0_10] : memref<1x128xf32, #tpu.memory_space<vmem>>, vector<1x128xf32>
    %13 = vector.broadcast %12 : vector<1x128xf32> to vector<128x128xf32>
    %14 = arith.addf %11, %13 : vector<128x128xf32>
    %15 = arith.addf %0, %14 : vector<128x128xf32>
    %cst_11 = arith.constant dense<0.000000e+00> : vector<128xf32>
    %16 = vector.multi_reduction <add>, %15, %cst_11 [1] : vector<128x128xf32> to vector<128xf32>
    %17 = vector.shape_cast %16 : vector<128xf32> to vector<128x1xf32>
    %cst_12 = arith.constant 1.280000e+02 : f32
    %18 = vector.broadcast %cst_12 : f32 to vector<128x1xf32>
    %19 = arith.divf %17, %18 : vector<128x1xf32>
    %20 = vector.broadcast %19 : vector<128x1xf32> to vector<128x128xf32>
    %21 = arith.subf %15, %20 : vector<128x128xf32>
    %22 = arith.mulf %21, %21 : vector<128x128xf32>
    %cst_13 = arith.constant dense<0.000000e+00> : vector<128xf32>
    %23 = vector.multi_reduction <add>, %22, %cst_13 [1] : vector<128x128xf32> to vector<128xf32>
    %24 = vector.shape_cast %23 : vector<128xf32> to vector<128x1xf32>
    %cst_14 = arith.constant 1.280000e+02 : f32
    %25 = vector.broadcast %cst_14 : f32 to vector<128x1xf32>
    %26 = arith.divf %24, %25 : vector<128x1xf32>
    %27 = vector.broadcast %19 : vector<128x1xf32> to vector<128x128xf32>
    %28 = arith.subf %15, %27 : vector<128x128xf32>
    %cst_15 = arith.constant 9.99999974E-6 : f32
    %29 = vector.broadcast %cst_15 : f32 to vector<128x1xf32>
    %30 = arith.addf %26, %29 : vector<128x1xf32>
    %31 = math.rsqrt %30 : vector<128x1xf32>
    %32 = vector.broadcast %31 : vector<128x1xf32> to vector<128x128xf32>
    %33 = arith.mulf %28, %32 : vector<128x128xf32>
    %c0_16 = arith.constant 0 : index
    %c0_17 = arith.constant 0 : index
    %34 = vector.load %arg6[%c0_16, %c0_17] : memref<1x128xf32, #tpu.memory_space<vmem>>, vector<1x128xf32>
    %35 = vector.broadcast %34 : vector<1x128xf32> to vector<128x128xf32>
    %36 = arith.mulf %33, %35 : vector<128x128xf32>
    %c0_18 = arith.constant 0 : index
    %c0_19 = arith.constant 0 : index
    %37 = vector.load %arg7[%c0_18, %c0_19] : memref<1x128xf32, #tpu.memory_space<vmem>>, vector<1x128xf32>
    %38 = vector.broadcast %37 : vector<1x128xf32> to vector<128x128xf32>
    %39 = arith.addf %36, %38 : vector<128x128xf32>
    %c0_20 = arith.constant 0 : index
    %c0_21 = arith.constant 0 : index
    %40 = vector.load %arg8[%c0_20, %c0_21] : memref<128x128xf32, #tpu.memory_space<vmem>>, vector<128x128xf32>
    tpu.vector_store %arg8[%c0_20, %c0_21], %39 {strides = array<i32>} : memref<128x128xf32, #tpu.memory_space<vmem>>, vector<128x128xf32>,
    return
  }
  func.func @transform_0(%arg0: i32) -> (i32, i32) {
    %c0_i32 = arith.constant 0 : i32
    %c0_i32_0 = arith.constant 0 : i32
    return %arg0, %c0_i32 : i32, i32
  }
  func.func @transform_1(%arg0: i32) -> (i32, i32) {
    %c0_i32 = arith.constant 0 : i32
    %c0_i32_0 = arith.constant 0 : i32
    %c0_i32_1 = arith.constant 0 : i32
    return %c0_i32, %c0_i32_0 : i32, i32
  }
  func.func @transform_2(%arg0: i32) -> (i32, i32) {
    %c0_i32 = arith.constant 0 : i32
    %c0_i32_0 = arith.constant 0 : i32
    %c0_i32_1 = arith.constant 0 : i32
    return %c0_i32, %c0_i32_0 : i32, i32
  }
  func.func @transform_3(%arg0: i32) -> (i32, i32) {
    %c0_i32 = arith.constant 0 : i32
    %c0_i32_0 = arith.constant 0 : i32
    %c0_i32_1 = arith.constant 0 : i32
    return %c0_i32, %c0_i32_0 : i32, i32
  }
  func.func @transform_4(%arg0: i32) -> (i32, i32) {
    %c0_i32 = arith.constant 0 : i32
    %c0_i32_0 = arith.constant 0 : i32
    %c0_i32_1 = arith.constant 0 : i32
    return %c0_i32, %c0_i32_0 : i32, i32
  }
  func.func @transform_5(%arg0: i32) -> (i32, i32) {
    %c0_i32 = arith.constant 0 : i32
    %c0_i32_0 = arith.constant 0 : i32
    %c0_i32_1 = arith.constant 0 : i32
    return %c0_i32, %c0_i32_0 : i32, i32
  }
  func.func @transform_6(%arg0: i32) -> (i32, i32) {
    %c0_i32 = arith.constant 0 : i32
    %c0_i32_0 = arith.constant 0 : i32
    %c0_i32_1 = arith.constant 0 : i32
    return %c0_i32, %c0_i32_0 : i32, i32
  }
  func.func @transform_7(%arg0: i32) -> (i32, i32) {
    %c0_i32 = arith.constant 0 : i32
    %c0_i32_0 = arith.constant 0 : i32
    return %arg0, %c0_i32 : i32, i32
  }
}

module attributes {stable_mosaic.version = 11 : i64} {
  func.func @_linear_kernel(%arg0: i32, %arg1: i32, %arg2: memref<128x128xf32, #tpu.memory_space<vmem>>, %arg3: memref<128x128xbf16, #tpu.memory_space<vmem>>, %arg4: memref<1x128xf32, #tpu.memory_space<vmem>>, %arg5: memref<128x128xbf16, #tpu.memory_space<vmem>>) attributes {dimension_semantics = [#tpu.dimension_semantics<parallel>, #tpu.dimension_semantics<parallel>], iteration_bounds = array<i64: 1, 3>, scalar_prefetch = 0 : i64, scratch_operands = 0 : i64, tpu.core_type = #tpu.core_type<tc>, window_params = [{transform_indices = @transform_0, window_bounds = array<i64: 128, 128>}, {transform_indices = @transform_1, window_bounds = array<i64: 128, 128>}, {transform_indices = @transform_2, window_bounds = array<i64: 1, 128>}, {transform_indices = @transform_3, window_bounds = array<i64: 128, 128>}]} {
    %c0 = arith.constant 0 : index
    %c0_0 = arith.constant 0 : index
    %0 = vector.load %arg2[%c0, %c0_0] : memref<128x128xf32, #tpu.memory_space<vmem>>, vector<128x128xf32>
    %1 = arith.truncf %0 : vector<128x128xf32> to vector<128x128xbf16>
    %c0_1 = arith.constant 0 : index
    %c0_2 = arith.constant 0 : index
    %2 = vector.load %arg3[%c0_1, %c0_2] : memref<128x128xbf16, #tpu.memory_space<vmem>>, vector<128x128xbf16>
    %cst = arith.constant dense<0.000000e+00> : vector<128x128xf32>
    %3 = tpu.matmul %1, %2, %cst {dimension_numbers = #tpu.dot_dimension_numbers<[1], [0], [0], [1], [0, 0, 1, 1], [], []>} : vector<128x128xbf16>, vector<128x128xbf16>, vector<128x128xf32> -> vector<128x128xf32>
    %c0_3 = arith.constant 0 : index
    %c0_4 = arith.constant 0 : index
    %4 = vector.load %arg4[%c0_3, %c0_4] : memref<1x128xf32, #tpu.memory_space<vmem>>, vector<1x128xf32>
    %5 = vector.broadcast %4 : vector<1x128xf32> to vector<128x128xf32>
    %6 = arith.addf %3, %5 : vector<128x128xf32>
    %7 = arith.truncf %6 : vector<128x128xf32> to vector<128x128xbf16>
    %c0_5 = arith.constant 0 : index
    %c0_6 = arith.constant 0 : index
    %8 = vector.load %arg5[%c0_5, %c0_6] : memref<128x128xbf16, #tpu.memory_space<vmem>>, vector<128x128xbf16>
    tpu.vector_store %arg5[%c0_5, %c0_6], %7 {strides = array<i32>} : memref<128x128xbf16, #tpu.memory_space<vmem>>, vector<128x128xbf16>,
    return
  }
  func.func @transform_0(%arg0: i32, %arg1: i32) -> (i32, i32) {
    %c0_i32 = arith.constant 0 : i32
    %c0_i32_0 = arith.constant 0 : i32
    return %arg0, %c0_i32 : i32, i32
  }
  func.func @transform_1(%arg0: i32, %arg1: i32) -> (i32, i32) {
    %c0_i32 = arith.constant 0 : i32
    %c0_i32_0 = arith.constant 0 : i32
    return %c0_i32, %arg1 : i32, i32
  }
  func.func @transform_2(%arg0: i32, %arg1: i32) -> (i32, i32) {
    %c0_i32 = arith.constant 0 : i32
    %c0_i32_0 = arith.constant 0 : i32
    return %c0_i32, %arg1 : i32, i32
  }
  func.func @transform_3(%arg0: i32, %arg1: i32) -> (i32, i32) {
    %c0_i32 = arith.constant 0 : i32
    return %arg0, %arg1 : i32, i32
  }
}

module attributes {stable_mosaic.version = 11 : i64} {
  func.func @_attn_kernel(%arg0: i32, %arg1: i32, %arg2: memref<1x64x128xf32, #tpu.memory_space<vmem>>, %arg3: memref<1x2x64x64xbf16, #tpu.memory_space<vmem>>, %arg4: memref<1x2x64x64xbf16, #tpu.memory_space<vmem>>, %arg5: memref<1x2x64x64xbf16, #tpu.memory_space<vmem>>, %arg6: memref<64x64xf32, #tpu.memory_space<vmem>>, %arg7: memref<2x64x128xbf16, #tpu.memory_space<vmem>>, %arg8: memref<1x128xf32, #tpu.memory_space<vmem>>, %arg9: memref<1x128xf32, #tpu.memory_space<vmem>>, %arg10: memref<1x128xf32, #tpu.memory_space<vmem>>, %arg11: memref<1x64x128xf32, #tpu.memory_space<vmem>>) attributes {dimension_semantics = [#tpu.dimension_semantics<parallel>, #tpu.dimension_semantics<parallel>], iteration_bounds = array<i64: 2, 1>, scalar_prefetch = 0 : i64, scratch_operands = 0 : i64, tpu.core_type = #tpu.core_type<tc>, window_params = [{transform_indices = @transform_0, window_bounds = array<i64: 1, 64, 128>}, {transform_indices = @transform_1, window_bounds = array<i64: 1, 2, 64, 64>}, {transform_indices = @transform_2, window_bounds = array<i64: 1, 2, 64, 64>}, {transform_indices = @transform_3, window_bounds = array<i64: 1, 2, 64, 64>}, {transform_indices = @transform_4, window_bounds = array<i64: 64, 64>}, {pipeline_mode = #tpu.pipeline_mode<synchronous>, transform_indices = @transform_5, window_bounds = array<i64: 2, 64, 128>}, {pipeline_mode = #tpu.pipeline_mode<synchronous>, transform_indices = @transform_6, window_bounds = array<i64: 1, 128>}, {pipeline_mode = #tpu.pipeline_mode<synchronous>, transform_indices = @transform_7, window_bounds = array<i64: 1, 128>}, {pipeline_mode = #tpu.pipeline_mode<synchronous>, transform_indices = @transform_8, window_bounds = array<i64: 1, 128>}, {transform_indices = @transform_9, window_bounds = array<i64: 1, 64, 128>}]} {
    %c0 = arith.constant 0 : index
    %c0_0 = arith.constant 0 : index
    %c0_1 = arith.constant 0 : index
    %c0_2 = arith.constant 0 : index
    %0 = vector.load %arg3[%c0, %c0_0, %c0_1, %c0_2] : memref<1x2x64x64xbf16, #tpu.memory_space<vmem>>, vector<1x2x64x64xbf16>
    %1 = vector.shape_cast %0 : vector<1x2x64x64xbf16> to vector<2x64x64xbf16>
    %c0_3 = arith.constant 0 : index
    %c0_4 = arith.constant 0 : index
    %c0_5 = arith.constant 0 : index
    %c0_6 = arith.constant 0 : index
    %2 = vector.load %arg4[%c0_3, %c0_4, %c0_5, %c0_6] : memref<1x2x64x64xbf16, #tpu.memory_space<vmem>>, vector<1x2x64x64xbf16>
    %3 = vector.shape_cast %2 : vector<1x2x64x64xbf16> to vector<2x64x64xbf16>
    %c0_7 = arith.constant 0 : index
    %c0_8 = arith.constant 0 : index
    %c0_9 = arith.constant 0 : index
    %c0_10 = arith.constant 0 : index
    %4 = vector.load %arg5[%c0_7, %c0_8, %c0_9, %c0_10] : memref<1x2x64x64xbf16, #tpu.memory_space<vmem>>, vector<1x2x64x64xbf16>
    %5 = vector.shape_cast %4 : vector<1x2x64x64xbf16> to vector<2x64x64xbf16>
    "tpu.trace_start"() <{level = 10 : i32, message = "hqd,hkd->hqk"}> : () -> ()
    %cst = arith.constant dense<0.000000e+00> : vector<2x64x64xf32>
    %6 = tpu.matmul %1, %3, %cst {dimension_numbers = #tpu.dot_dimension_numbers<[2], [2], [1], [1], [0, 0, 0, 1, 1, 1], [0], [0]>} : vector<2x64x64xbf16>, vector<2x64x64xbf16>, vector<2x64x64xf32> -> vector<2x64x64xf32>
    "tpu.trace_stop"() : () -> ()
    %cst_11 = arith.constant 1.250000e-01 : f32
    %7 = vector.broadcast %cst_11 : f32 to vector<2x64x64xf32>
    %8 = arith.mulf %6, %7 : vector<2x64x64xf32>
    %c0_12 = arith.constant 0 : index
    %c0_13 = arith.constant 0 : index
    %9 = vector.load %arg6[%c0_12, %c0_13] : memref<64x64xf32, #tpu.memory_space<vmem>>, vector<64x64xf32>
    %cst_14 = arith.constant -1.000000e+30 : f32
    %10 = vector.broadcast %cst_14 : f32 to vector<64x64xf32>
    %11 = arith.maximumf %9, %10 : vector<64x64xf32>
    %12 = vector.shape_cast %11 : vector<64x64xf32> to vector<1x64x64xf32>
    %13 = vector.broadcast %12 : vector<1x64x64xf32> to vector<2x64x64xf32>
    %14 = arith.addf %8, %13 : vector<2x64x64xf32>
    %cst_15 = arith.constant dense<0xFF800000> : vector<2x64xf32>
    %15 = vector.multi_reduction <maximumf>, %14, %cst_15 [2] : vector<2x64x64xf32> to vector<2x64xf32>
    %16 = vector.shape_cast %15 : vector<2x64xf32> to vector<2x64x1xf32>
    %17 = vector.broadcast %16 : vector<2x64x1xf32> to vector<2x64x64xf32>
    %18 = arith.subf %14, %17 : vector<2x64x64xf32>
    %19 = math.exp %18 : vector<2x64x64xf32>
    %cst_16 = arith.constant dense<0.000000e+00> : vector<2x64xf32>
    %20 = vector.multi_reduction <add>, %19, %cst_16 [2] : vector<2x64x64xf32> to vector<2x64xf32>
    %21 = vector.shape_cast %20 : vector<2x64xf32> to vector<2x64x1xf32>
    %22 = tpu.reciprocal %21 {approx = true} : vector<2x64x1xf32> -> vector<2x64x1xf32>
    %23 = vector.broadcast %22 : vector<2x64x1xf32> to vector<2x64x64xf32>
    %24 = arith.mulf %19, %23 : vector<2x64x64xf32>
    %25 = arith.truncf %24 : vector<2x64x64xf32> to vector<2x64x64xbf16>
    "tpu.trace_start"() <{level = 10 : i32, message = "hqk,hkd->hqd"}> : () -> ()
    %cst_17 = arith.constant dense<0.000000e+00> : vector<2x64x64xf32>
    %26 = tpu.matmul %25, %5, %cst_17 {dimension_numbers = #tpu.dot_dimension_numbers<[2], [1], [1], [2], [0, 0, 0, 1, 1, 2], [0], [0]>} : vector<2x64x64xbf16>, vector<2x64x64xbf16>, vector<2x64x64xf32> -> vector<2x64x64xf32>
    "tpu.trace_stop"() : () -> ()
    %c0_18 = arith.constant 0 : index
    %c0_19 = arith.constant 0 : index
    %c0_20 = arith.constant 0 : index
    %27 = vector.load %arg7[%c0_18, %c0_19, %c0_20] : memref<2x64x128xbf16, #tpu.memory_space<vmem>>, vector<2x64x128xbf16>
    %cst_21 = arith.constant 0.000000e+00 : f32
    %28 = vector.broadcast %cst_21 : f32 to vector<64x128xf32>
    %29 = vector.extract_strided_slice %26 {offsets = [0, 0, 0], sizes = [1, 64, 64], strides = [1, 1, 1]} : vector<2x64x64xf32> to vector<1x64x64xf32>
    %30 = vector.shape_cast %29 : vector<1x64x64xf32> to vector<64x64xf32>
    %31 = arith.truncf %30 : vector<64x64xf32> to vector<64x64xbf16>
    %32 = vector.extract_strided_slice %27 {offsets = [0, 0, 0], sizes = [1, 64, 128], strides = [1, 1, 1]} : vector<2x64x128xbf16> to vector<1x64x128xbf16>
    %33 = vector.shape_cast %32 : vector<1x64x128xbf16> to vector<64x128xbf16>
    %cst_22 = arith.constant dense<0.000000e+00> : vector<64x128xf32>
    %34 = tpu.matmul %31, %33, %cst_22 {dimension_numbers = #tpu.dot_dimension_numbers<[1], [0], [0], [1], [0, 0, 1, 1], [], []>} : vector<64x64xbf16>, vector<64x128xbf16>, vector<64x128xf32> -> vector<64x128xf32>
    %35 = arith.addf %28, %34 : vector<64x128xf32>
    %36 = vector.extract_strided_slice %26 {offsets = [1, 0, 0], sizes = [1, 64, 64], strides = [1, 1, 1]} : vector<2x64x64xf32> to vector<1x64x64xf32>
    %37 = vector.shape_cast %36 : vector<1x64x64xf32> to vector<64x64xf32>
    %38 = arith.truncf %37 : vector<64x64xf32> to vector<64x64xbf16>
    %39 = vector.extract_strided_slice %27 {offsets = [1, 0, 0], sizes = [1, 64, 128], strides = [1, 1, 1]} : vector<2x64x128xbf16> to vector<1x64x128xbf16>
    %40 = vector.shape_cast %39 : vector<1x64x128xbf16> to vector<64x128xbf16>
    %cst_23 = arith.constant dense<0.000000e+00> : vector<64x128xf32>
    %41 = tpu.matmul %38, %40, %cst_23 {dimension_numbers = #tpu.dot_dimension_numbers<[1], [0], [0], [1], [0, 0, 1, 1], [], []>} : vector<64x64xbf16>, vector<64x128xbf16>, vector<64x128xf32> -> vector<64x128xf32>
    %42 = arith.addf %35, %41 : vector<64x128xf32>
    %c0_24 = arith.constant 0 : index
    %c0_25 = arith.constant 0 : index
    %43 = vector.load %arg8[%c0_24, %c0_25] : memref<1x128xf32, #tpu.memory_space<vmem>>, vector<1x128xf32>
    %44 = vector.broadcast %43 : vector<1x128xf32> to vector<64x128xf32>
    %45 = arith.addf %42, %44 : vector<64x128xf32>
    %c0_26 = arith.constant 0 : index
    %c0_27 = arith.constant 0 : index
    %c0_28 = arith.constant 0 : index
    %46 = vector.load %arg2[%c0_26, %c0_27, %c0_28] : memref<1x64x128xf32, #tpu.memory_space<vmem>>, vector<1x64x128xf32>
    %47 = vector.shape_cast %46 : vector<1x64x128xf32> to vector<64x128xf32>
    %48 = arith.addf %47, %45 : vector<64x128xf32>
    %cst_29 = arith.constant dense<0.000000e+00> : vector<64xf32>
    %49 = vector.multi_reduction <add>, %48, %cst_29 [1] : vector<64x128xf32> to vector<64xf32>
    %50 = vector.shape_cast %49 : vector<64xf32> to vector<64x1xf32>
    %cst_30 = arith.constant 1.280000e+02 : f32
    %51 = vector.broadcast %cst_30 : f32 to vector<64x1xf32>
    %52 = arith.divf %50, %51 : vector<64x1xf32>
    %53 = vector.broadcast %52 : vector<64x1xf32> to vector<64x128xf32>
    %54 = arith.subf %48, %53 : vector<64x128xf32>
    %55 = arith.mulf %54, %54 : vector<64x128xf32>
    %cst_31 = arith.constant dense<0.000000e+00> : vector<64xf32>
    %56 = vector.multi_reduction <add>, %55, %cst_31 [1] : vector<64x128xf32> to vector<64xf32>
    %57 = vector.shape_cast %56 : vector<64xf32> to vector<64x1xf32>
    %cst_32 = arith.constant 1.280000e+02 : f32
    %58 = vector.broadcast %cst_32 : f32 to vector<64x1xf32>
    %59 = arith.divf %57, %58 : vector<64x1xf32>
    %60 = vector.broadcast %52 : vector<64x1xf32> to vector<64x128xf32>
    %61 = arith.subf %48, %60 : vector<64x128xf32>
    %cst_33 = arith.constant 9.99999974E-6 : f32
    %62 = vector.broadcast %cst_33 : f32 to vector<64x1xf32>
    %63 = arith.addf %59, %62 : vector<64x1xf32>
    %64 = math.rsqrt %63 : vector<64x1xf32>
    %65 = vector.broadcast %64 : vector<64x1xf32> to vector<64x128xf32>
    %66 = arith.mulf %61, %65 : vector<64x128xf32>
    %c0_34 = arith.constant 0 : index
    %c0_35 = arith.constant 0 : index
    %67 = vector.load %arg9[%c0_34, %c0_35] : memref<1x128xf32, #tpu.memory_space<vmem>>, vector<1x128xf32>
    %68 = vector.broadcast %67 : vector<1x128xf32> to vector<64x128xf32>
    %69 = arith.mulf %66, %68 : vector<64x128xf32>
    %c0_36 = arith.constant 0 : index
    %c0_37 = arith.constant 0 : index
    %70 = vector.load %arg10[%c0_36, %c0_37] : memref<1x128xf32, #tpu.memory_space<vmem>>, vector<1x128xf32>
    %71 = vector.broadcast %70 : vector<1x128xf32> to vector<64x128xf32>
    %72 = arith.addf %69, %71 : vector<64x128xf32>
    %c0_38 = arith.constant 0 : index
    %c0_39 = arith.constant 0 : index
    %c0_40 = arith.constant 0 : index
    %73 = vector.load %arg11[%c0_38, %c0_39, %c0_40] : memref<1x64x128xf32, #tpu.memory_space<vmem>>, vector<1x64x128xf32>
    %74 = vector.shape_cast %73 : vector<1x64x128xf32> to vector<64x128xf32>
    %75 = vector.shape_cast %72 : vector<64x128xf32> to vector<1x64x128xf32>
    tpu.vector_store %arg11[%c0_38, %c0_39, %c0_40], %75 {strides = array<i32>} : memref<1x64x128xf32, #tpu.memory_space<vmem>>, vector<1x64x128xf32>,
    return
  }
  func.func @transform_0(%arg0: i32, %arg1: i32) -> (i32, i32, i32) {
    %c0_i32 = arith.constant 0 : i32
    %c0_i32_0 = arith.constant 0 : i32
    return %arg0, %arg1, %c0_i32 : i32, i32, i32
  }
  func.func @transform_1(%arg0: i32, %arg1: i32) -> (i32, i32, i32, i32) {
    %c0_i32 = arith.constant 0 : i32
    %c0_i32_0 = arith.constant 0 : i32
    %c0_i32_1 = arith.constant 0 : i32
    return %arg0, %c0_i32, %arg1, %c0_i32_0 : i32, i32, i32, i32
  }
  func.func @transform_2(%arg0: i32, %arg1: i32) -> (i32, i32, i32, i32) {
    %c0_i32 = arith.constant 0 : i32
    %c0_i32_0 = arith.constant 0 : i32
    %c0_i32_1 = arith.constant 0 : i32
    %c0_i32_2 = arith.constant 0 : i32
    return %arg0, %c0_i32, %c0_i32_0, %c0_i32_1 : i32, i32, i32, i32
  }
  func.func @transform_3(%arg0: i32, %arg1: i32) -> (i32, i32, i32, i32) {
    %c0_i32 = arith.constant 0 : i32
    %c0_i32_0 = arith.constant 0 : i32
    %c0_i32_1 = arith.constant 0 : i32
    %c0_i32_2 = arith.constant 0 : i32
    return %arg0, %c0_i32, %c0_i32_0, %c0_i32_1 : i32, i32, i32, i32
  }
  func.func @transform_4(%arg0: i32, %arg1: i32) -> (i32, i32) {
    %c0_i32 = arith.constant 0 : i32
    %c0_i32_0 = arith.constant 0 : i32
    return %arg1, %c0_i32 : i32, i32
  }
  func.func @transform_5(%arg0: i32, %arg1: i32) -> (i32, i32, i32) {
    %c0_i32 = arith.constant 0 : i32
    %c0_i32_0 = arith.constant 0 : i32
    %c0_i32_1 = arith.constant 0 : i32
    %c0_i32_2 = arith.constant 0 : i32
    return %c0_i32, %c0_i32_0, %c0_i32_1 : i32, i32, i32
  }
  func.func @transform_6(%arg0: i32, %arg1: i32) -> (i32, i32) {
    %c0_i32 = arith.constant 0 : i32
    %c0_i32_0 = arith.constant 0 : i32
    %c0_i32_1 = arith.constant 0 : i32
    return %c0_i32, %c0_i32_0 : i32, i32
  }
  func.func @transform_7(%arg0: i32, %arg1: i32) -> (i32, i32) {
    %c0_i32 = arith.constant 0 : i32
    %c0_i32_0 = arith.constant 0 : i32
    %c0_i32_1 = arith.constant 0 : i32
    return %c0_i32, %c0_i32_0 : i32, i32
  }
  func.func @transform_8(%arg0: i32, %arg1: i32) -> (i32, i32) {
    %c0_i32 = arith.constant 0 : i32
    %c0_i32_0 = arith.constant 0 : i32
    %c0_i32_1 = arith.constant 0 : i32
    return %c0_i32, %c0_i32_0 : i32, i32
  }
  func.func @transform_9(%arg0: i32, %arg1: i32) -> (i32, i32, i32) {
    %c0_i32 = arith.constant 0 : i32
    %c0_i32_0 = arith.constant 0 : i32
    return %arg0, %arg1, %c0_i32 : i32, i32, i32
  }
}

module attributes {stable_mosaic.version = 11 : i64} {
  func.func @_linear_kernel(%arg0: i32, %arg1: i32, %arg2: memref<128x128xf32, #tpu.memory_space<vmem>>, %arg3: memref<128x256xbf16, #tpu.memory_space<vmem>>, %arg4: memref<1x256xf32, #tpu.memory_space<vmem>>, %arg5: memref<128x256xf32, #tpu.memory_space<vmem>>) attributes {dimension_semantics = [#tpu.dimension_semantics<parallel>, #tpu.dimension_semantics<parallel>], iteration_bounds = array<i64: 1, 1>, scalar_prefetch = 0 : i64, scratch_operands = 0 : i64, tpu.core_type = #tpu.core_type<tc>, window_params = [{transform_indices = @transform_0, window_bounds = array<i64: 128, 128>}, {transform_indices = @transform_1, window_bounds = array<i64: 128, 256>}, {transform_indices = @transform_2, window_bounds = array<i64: 1, 256>}, {transform_indices = @transform_3, window_bounds = array<i64: 128, 256>}]} {
    %c0 = arith.constant 0 : index
    %c0_0 = arith.constant 0 : index
    %0 = vector.load %arg2[%c0, %c0_0] : memref<128x128xf32, #tpu.memory_space<vmem>>, vector<128x128xf32>
    %1 = arith.truncf %0 : vector<128x128xf32> to vector<128x128xbf16>
    %c0_1 = arith.constant 0 : index
    %c0_2 = arith.constant 0 : index
    %2 = vector.load %arg3[%c0_1, %c0_2] : memref<128x256xbf16, #tpu.memory_space<vmem>>, vector<128x256xbf16>
    %cst = arith.constant dense<0.000000e+00> : vector<128x256xf32>
    %3 = tpu.matmul %1, %2, %cst {dimension_numbers = #tpu.dot_dimension_numbers<[1], [0], [0], [1], [0, 0, 1, 1], [], []>} : vector<128x128xbf16>, vector<128x256xbf16>, vector<128x256xf32> -> vector<128x256xf32>
    %c0_3 = arith.constant 0 : index
    %c0_4 = arith.constant 0 : index
    %4 = vector.load %arg4[%c0_3, %c0_4] : memref<1x256xf32, #tpu.memory_space<vmem>>, vector<1x256xf32>
    %5 = vector.broadcast %4 : vector<1x256xf32> to vector<128x256xf32>
    %6 = arith.addf %3, %5 : vector<128x256xf32>
    %c0_5 = arith.constant 0 : index
    %c0_6 = arith.constant 0 : index
    %7 = vector.load %arg5[%c0_5, %c0_6] : memref<128x256xf32, #tpu.memory_space<vmem>>, vector<128x256xf32>
    tpu.vector_store %arg5[%c0_5, %c0_6], %6 {strides = array<i32>} : memref<128x256xf32, #tpu.memory_space<vmem>>, vector<128x256xf32>,
    return
  }
  func.func @transform_0(%arg0: i32, %arg1: i32) -> (i32, i32) {
    %c0_i32 = arith.constant 0 : i32
    %c0_i32_0 = arith.constant 0 : i32
    return %arg0, %c0_i32 : i32, i32
  }
  func.func @transform_1(%arg0: i32, %arg1: i32) -> (i32, i32) {
    %c0_i32 = arith.constant 0 : i32
    %c0_i32_0 = arith.constant 0 : i32
    return %c0_i32, %arg1 : i32, i32
  }
  func.func @transform_2(%arg0: i32, %arg1: i32) -> (i32, i32) {
    %c0_i32 = arith.constant 0 : i32
    %c0_i32_0 = arith.constant 0 : i32
    return %c0_i32, %arg1 : i32, i32
  }
  func.func @transform_3(%arg0: i32, %arg1: i32) -> (i32, i32) {
    %c0_i32 = arith.constant 0 : i32
    return %arg0, %arg1 : i32, i32
  }
}

</mosaic_0001>

<llo_original>
// kernel: transformer_forward.7
$region0: #{transformer_forward.7}
  #allocation0 [shape = 'u32[]', space=smem, size = 0x4, offset = 0x4, fixed_abs, tag = 'smem constant byte address 0x4 - core index']
  #allocation1 [shape = 'u32[144,128]{1,0:T(1,128)}', space=vmem, size = 0x12000, scoped, tag = 'internal scratch']
  %s0 = inlined_call_operand.vmem [shape: f32[128,128], index: 0, kind: input, shape index: {}]
  %s1 = inlined_call_operand.hbm [shape: bf16[128,384], index: 1, kind: input, shape index: {}]
  %s2 = inlined_call_operand.hbm [shape: f32[1,384], index: 2, kind: input, shape index: {}]
  %s3 = inlined_call_operand.vmem [shape: bf16[128,384], index: 3, kind: output, shape index: {}]
  %s4 = sld [smem:[#allocation0]]
  $region90: #{transformer_forward.7} parent=0
    _
  %s6 = ssub.s32 1, %s4
  %s7 = scalar_select 0, %s6, %s4
  $region1: #{transformer_forward.7} parent=0
    #allocation2 [shape = 'u8[65536]{0}', space=vmem, size = 0x10000, scoped, tag = 'input window, operand 1']
    #allocation3 [shape = 's32[2]{0}', space=sflag, size = 0x8, scoped, tag = 'scoped memory for transformer_forward.7']
    #allocation4 [shape = 'u8[1024]{0}', space=vmem, size = 0x400, scoped, tag = 'input window, operand 2']
    #allocation5 [shape = 's32[2]{0}', space=sflag, size = 0x8, scoped, tag = 'scoped memory for transformer_forward.7']
    #allocation6 [shape = 'u8[65536]{0}', space=vmem, size = 0x10000, scoped, tag = 'output window, operand 0']
    %8 = vsyncpa [#allocation3], 0
    %s9 = scalar_lea.sflag [#allocation3], 1
    %10 = vsyncpa %s9, 0
    %11 = vsyncpa [#allocation5], 0
    %s12 = scalar_lea.sflag [#allocation5], 1
    %13 = vsyncpa %s12, 0
    loop: start=0, step=1, limit=5
    $region2: #{transformer_forward.7} parent=1 // loop_pre_header
      _
    $region3: #{transformer_forward.7} parent=1 // loop_header
      %s15 = sphi 0, %s19
      %p16 = scmp.ge.s32.totalorder %s15, 5
      %s22 = sphi 0, %s34
      %s23 = sphi 0, %s30
      %s24 = sphi 0, %s22
      %s25 = sphi 0, %s23
      %s26 = sphi 0, %s24
      %s27 = sphi 0, %s25
      %s37 = sphi 0, %s39
      %s40 = sphi 0, %s37
      %s41 = sphi 0, %s40
      %s57 = sphi 0, %s41
      %s63 = sphi 0, %s65
      %s66 = sphi 0, %s63
      %s67 = sphi 0, %s66
      %s83 = sphi 0, %s67
      %s89 = sphi 0, %s91
      %s92 = sphi 0, %s89
      %s93 = sphi 0, %s92
      %s109 = sphi 0, %s93
      %s117 = sphi 0, %s119
      %s120 = sphi 0, %s117
      %s121 = sphi 0, %s120
      %s137 = sphi 0, %s121
    $region4: #{transformer_forward.7} parent=1 // loop_header_branch
      %18 = sbr.rel (%p16) target = $region8
    $region5: #{transformer_forward.7} parent=1 // loop_body
      %s20 = ssub.s32 %s15, 1
      %s21 = ssub.s32 %s15, 2
      %s28 = sadd.s32 1, %s23
      %p29 = scmp.ge.s32.totalorder %s28, 3
      %s30 = scalar_select %p29, 0, %s28
      %s31 = sadd.s32 1, %s22
      %s32 = scalar_select %p29, %s31, %s22
      %p33 = scmp.ge.s32.totalorder %s32, 1
      %s34 = scalar_select %p33, 0, %s32
      %s35 = ssub.s32 %s22, %s34
      %p36 = scmp.eq.s32.totalorder %s35, 0
      %s38 = sadd.s32 %s37, 1
      %s39 = scalar_select %p36, %s37, %s38
      %p42 = pneg %p36
      %p43 = scmp.eq.s32.totalorder %s15, 2
      %p44 = por %p42, %p43
      %p45 = scmp.ne.s32.totalorder %s37, %s40
      %p46 = scmp.eq.s32.totalorder %s15, 0
      %p47 = por %p45, %p46
      %p48 = scmp.ne.s32.totalorder %s37, %s40
      %p49 = scmp.eq.s32.totalorder %s20, 2
      %p50 = por %p48, %p49
      %p51 = scmp.ne.s32.totalorder %s40, %s41
      %p52 = scmp.eq.s32.totalorder %s20, 0
      %p53 = por %p51, %p52
      %p54 = scmp.ne.s32.totalorder %s40, %s41
      %p55 = scmp.eq.s32.totalorder %s21, 2
      %p56 = por %p54, %p55
      %p58 = scmp.ne.s32.totalorder %s41, %s57
      %p59 = scmp.eq.s32.totalorder %s21, 0
      %p60 = por %p58, %p59
      %s61 = ssub.s32 %s23, %s30
      %p62 = scmp.eq.s32.totalorder %s61, 0
      %s64 = sadd.s32 %s63, 1
      %s65 = scalar_select %p62, %s63, %s64
      %p68 = pneg %p62
      %p69 = scmp.eq.s32.totalorder %s15, 2
      %p70 = por %p68, %p69
      %p71 = scmp.ne.s32.totalorder %s63, %s66
      %p72 = scmp.eq.s32.totalorder %s15, 0
      %p73 = por %p71, %p72
      %p74 = scmp.ne.s32.totalorder %s63, %s66
      %p75 = scmp.eq.s32.totalorder %s20, 2
      %p76 = por %p74, %p75
      %p77 = scmp.ne.s32.totalorder %s66, %s67
      %p78 = scmp.eq.s32.totalorder %s20, 0
      %p79 = por %p77, %p78
      %p80 = scmp.ne.s32.totalorder %s66, %s67
      %p81 = scmp.eq.s32.totalorder %s21, 2
      %p82 = por %p80, %p81
      %p84 = scmp.ne.s32.totalorder %s67, %s83
      %p85 = scmp.eq.s32.totalorder %s21, 0
      %p86 = por %p84, %p85
      %s87 = ssub.s32 %s23, %s30
      %p88 = scmp.eq.s32.totalorder %s87, 0
      %s90 = sadd.s32 %s89, 1
      %s91 = scalar_select %p88, %s89, %s90
      %p94 = pneg %p88
      %p95 = scmp.eq.s32.totalorder %s15, 2
      %p96 = por %p94, %p95
      %p97 = scmp.ne.s32.totalorder %s89, %s92
      %p98 = scmp.eq.s32.totalorder %s15, 0
      %p99 = por %p97, %p98
      %p100 = scmp.ne.s32.totalorder %s89, %s92
      %p101 = scmp.eq.s32.totalorder %s20, 2
      %p102 = por %p100, %p101
      %p103 = scmp.ne.s32.totalorder %s92, %s93
      %p104 = scmp.eq.s32.totalorder %s20, 0
      %p105 = por %p103, %p104
      %p106 = scmp.ne.s32.totalorder %s92, %s93
      %p107 = scmp.eq.s32.totalorder %s21, 2
      %p108 = por %p106, %p107
      %p110 = scmp.ne.s32.totalorder %s93, %s109
      %p111 = scmp.eq.s32.totalorder %s21, 0
      %p112 = por %p110, %p111
      %s113 = ssub.s32 %s22, %s34
      %s114 = ssub.s32 %s23, %s30
      %s115 = sor.u32 %s113, %s114
      %p116 = scmp.eq.s32.totalorder %s115, 0
      %s118 = sadd.s32 %s117, 1
      %s119 = scalar_select %p116, %s117, %s118
      %p122 = pneg %p116
      %p123 = scmp.eq.s32.totalorder %s15, 2
      %p124 = por %p122, %p123
      %p125 = scmp.ne.s32.totalorder %s117, %s120
      %p126 = scmp.eq.s32.totalorder %s15, 0
      %p127 = por %p125, %p126
      %p128 = scmp.ne.s32.totalorder %s117, %s120
      %p129 = scmp.eq.s32.totalorder %s20, 2
      %p130 = por %p128, %p129
      %p131 = scmp.ne.s32.totalorder %s120, %s121
      %p132 = scmp.eq.s32.totalorder %s20, 0
      %p133 = por %p131, %p132
      %p134 = scmp.ne.s32.totalorder %s120, %s121
      %p135 = scmp.eq.s32.totalorder %s21, 2
      %p136 = por %p134, %p135
      %p138 = scmp.ne.s32.totalorder %s121, %s137
      %p139 = scmp.eq.s32.totalorder %s21, 0
      %p140 = por %p138, %p139
      %p141 = scmp.le.s32.totalorder 1, %s15
      %p142 = scmp.lt.s32.totalorder %s15, 4
      %p143 = pnand %p141, %p142
      %p144 = pneg %p143
      // Predicated region
      $region9: #{transformer_forward.7} parent=5 // pred_check
        _
      $region10: #{transformer_forward.7} parent=5 // pred_check_branch
        %146 = sbr.rel (%p143) target = $region12
      $region11: #{transformer_forward.7} parent=5 // pred_region
        %s147 = ssub.s32 %s15, 1
        // Predicated region
        $region13: #{transformer_forward.7} parent=11 // pred_check
          %p148 = pneg %p53
        $region14: #{transformer_forward.7} parent=11 // pred_check_branch
          %150 = sbr.rel (%p148) target = $region16
        $region15: #{transformer_forward.7} parent=11 // pred_region
          %s151 = smul.u32 16, %s24
          %p152 = scmp.lt.s32.totalorder %s151, 15
          %s153 = scalar_select %p152, %s151, 15
          %s154 = smul.addr %s153, 8
          %s155 = scalar_lea.vmem %s0, %s154
          %s156 = smul.u32 16, %s24
        $region16: #{transformer_forward.7} parent=11 // pred_fallthru
          _
      $region12: #{transformer_forward.7} parent=5 // pred_fallthru
        _
      %p157 = scmp.lt.s32.totalorder %s15, 3
      // Predicated region
      $region17: #{transformer_forward.7} parent=5 // pred_check
        %p158 = pneg %p157
      $region18: #{transformer_forward.7} parent=5 // pred_check_branch
        %160 = sbr.rel (%p158) target = $region20
      $region19: #{transformer_forward.7} parent=5 // pred_region
        // Predicated region
        $region21: #{transformer_forward.7} parent=19 // pred_check
          %p161 = pneg %p73
        $region22: #{transformer_forward.7} parent=19 // pred_check_branch
          %163 = sbr.rel (%p161) target = $region24
        $region23: #{transformer_forward.7} parent=19 // pred_region
          %s164 = sand.u32 %s63, 1
          %s165 = scalar_lea.sflag [#allocation3], %s164
          %s166 = sand.u32 %s63, 1
          %s167 = smul.addr %s166, 64
          %s168 = scalar_lea.vmem [#allocation2], %s167
          %s170 = ssub.s32 1024, 1024
          %171 = vsyncadd %s165, %s170
          %s172 = smul.addr %s23, 64
          %s173 = scalar_lea.hbm %s1, %s172
          %s174 = sshll.u32 %s168, 4
          %s175 = int_to_ptr.vmem [resolvable:$true] %s174
          %180 = dma.hbm_to_vmem [thread:$0]  %s173, 1024, %s175, %s165, 192, 64, 4
        $region24: #{transformer_forward.7} parent=19 // pred_fallthru
          _
        // Predicated region
        $region25: #{transformer_forward.7} parent=19 // pred_check
          %p181 = pneg %p99
        $region26: #{transformer_forward.7} parent=19 // pred_check_branch
          %183 = sbr.rel (%p181) target = $region28
        $region27: #{transformer_forward.7} parent=19 // pred_region
          %s184 = sand.u32 %s89, 1
          %s185 = scalar_lea.sflag [#allocation5], %s184
          %s186 = sand.u32 %s89, 1
          %s187 = scalar_lea.vmem [#allocation4], %s186
          %s189 = ssub.s32 16, 16
          %190 = vsyncadd %s185, %s189
          %s191 = smul.addr %s23, 16
          %s192 = scalar_lea.hbm %s2, %s191
          %s194 = sshll.u32 %s187, 4
          %s195 = int_to_ptr.vmem [resolvable:$true] %s194
          %197 = dma.hbm_to_vmem [thread:$0]  %s192, 16, %s195, %s185
        $region28: #{transformer_forward.7} parent=19 // pred_fallthru
          _
      $region20: #{transformer_forward.7} parent=5 // pred_fallthru
        _
      %p198 = scmp.le.s32.totalorder 1, %s15
      %p199 = scmp.lt.s32.totalorder %s15, 4
      %p200 = pnand %p198, %p199
      %p201 = pneg %p200
      // Predicated region
      $region29: #{transformer_forward.7} parent=5 // pred_check
        _
      $region30: #{transformer_forward.7} parent=5 // pred_check_branch
        %203 = sbr.rel (%p200) target = $region32
      $region31: #{transformer_forward.7} parent=5 // pred_region
        %s204 = ssub.s32 %s15, 1
        %s205 = sand.u32 %s66, 1
        %s206 = scalar_lea.sflag [#allocation3], %s205
        %s207 = sand.u32 %s66, 1
        %s208 = smul.addr %s207, 64
        %s209 = scalar_lea.vmem [#allocation2], %s208
        // Predicated region
        $region33: #{transformer_forward.7} parent=31 // pred_check
          %p210 = pneg %p79
        $region34: #{transformer_forward.7} parent=31 // pred_check_branch
          %212 = sbr.rel (%p210) target = $region36
        $region35: #{transformer_forward.7} parent=31 // pred_region
          %213 = dma.done %s206, 1024
        $region36: #{transformer_forward.7} parent=31 // pred_fallthru
          _
        %s214 = sand.u32 %s92, 1
        %s215 = scalar_lea.sflag [#allocation5], %s214
        %s216 = sand.u32 %s92, 1
        %s217 = scalar_lea.vmem [#allocation4], %s216
        // Predicated region
        $region37: #{transformer_forward.7} parent=31 // pred_check
          %p218 = pneg %p105
        $region38: #{transformer_forward.7} parent=31 // pred_check_branch
          %220 = sbr.rel (%p218) target = $region40
        $region39: #{transformer_forward.7} parent=31 // pred_region
          %221 = dma.done %s215, 16
        $region40: #{transformer_forward.7} parent=31 // pred_fallthru
          _
        %s222 = smul.u32 16, %s24
        %p223 = scmp.lt.s32.totalorder %s222, 15
        %s224 = scalar_select %p223, %s222, 15
        %s225 = smul.addr %s224, 8
        %s226 = scalar_lea.vmem %s0, %s225
        %p227 = pneg %p53
        %p228 = pneg %p50
        %s229 = sand.u32 %s66, 1
        %s230 = scalar_lea.sflag [#allocation3], %s229
        %s231 = sand.u32 %s66, 1
        %s232 = smul.addr %s231, 64
        %s233 = scalar_lea.vmem [#allocation2], %s232
        %p234 = pneg %p79
        %p235 = pneg %p76
        %s236 = sand.u32 %s92, 1
        %s237 = scalar_lea.sflag [#allocation5], %s236
        %s238 = sand.u32 %s92, 1
        %s239 = scalar_lea.vmem [#allocation4], %s238
        %p240 = pneg %p105
        %p241 = pneg %p102
        %p242 = pneg %p133
        %p243 = pneg %p130
        %s244 = sand.u32 %s120, 1
        %s245 = sand.u32 %s120, 1
        %s246 = smul.addr %s245, 64
        %s247 = scalar_lea.vmem [#allocation6], %s246
        %s248 = smul.u32 16, %s24
        %p249 = scmp.lt.s32.totalorder %s248, 15
        %s250 = scalar_select %p249, %s248, 15
        %s251 = smul.addr %s250, 8
        %s252 = scalar_lea.vmem %s0, %s251
        %s253 = smul.u32 16, %s24
        %s254 = smul.u32 16, %s24
        %v256 = vld [vmem:[%s252] sm:$0xff]
        %v257 = vld [vmem:[%s252 + $0x8] sm:$0xff]
        %v258 = vld [vmem:[%s252 + $0x10] sm:$0xff]
        %v259 = vld [vmem:[%s252 + $0x18] sm:$0xff]
        %v260 = vld [vmem:[%s252 + $0x20] sm:$0xff]
        %v261 = vld [vmem:[%s252 + $0x28] sm:$0xff]
        %v262 = vld [vmem:[%s252 + $0x30] sm:$0xff]
        %v263 = vld [vmem:[%s252 + $0x38] sm:$0xff]
        %v264 = vld [vmem:[%s252 + $0x40] sm:$0xff]
        %v265 = vld [vmem:[%s252 + $0x48] sm:$0xff]
        %v266 = vld [vmem:[%s252 + $0x50] sm:$0xff]
        %v267 = vld [vmem:[%s252 + $0x58] sm:$0xff]
        %v268 = vld [vmem:[%s252 + $0x60] sm:$0xff]
        %v269 = vld [vmem:[%s252 + $0x68] sm:$0xff]
        %v270 = vld [vmem:[%s252 + $0x70] sm:$0xff]
        %v271 = vld [vmem:[%s252 + $0x78] sm:$0xff]
        %v272 = vpack.c.bf16 %v257, %v256
        %v273 = vpack.c.bf16 %v259, %v258
        %v274 = vpack.c.bf16 %v261, %v260
        %v275 = vpack.c.bf16 %v263, %v262
        %v276 = vpack.c.bf16 %v265, %v264
        %v277 = vpack.c.bf16 %v267, %v266
        %v278 = vpack.c.bf16 %v269, %v268
        %v279 = vpack.c.bf16 %v271, %v270
        %v280 = vld [vmem:[%s209] sm:$0xf]
        %v281 = vld [vmem:[%s209 + $0x4] sm:$0xf]
        %v282 = vld [vmem:[%s209 + $0x8] sm:$0xf]
        %v283 = vld [vmem:[%s209 + $0xc] sm:$0xf]
        %v284 = vld [vmem:[%s209 + $0x10] sm:$0xf]
        %v285 = vld [vmem:[%s209 + $0x14] sm:$0xf]
        %v286 = vld [vmem:[%s209 + $0x18] sm:$0xf]
        %v287 = vld [vmem:[%s209 + $0x1c] sm:$0xf]
        %v288 = vld [vmem:[%s209 + $0x20] sm:$0xf]
        %v289 = vld [vmem:[%s209 + $0x24] sm:$0xf]
        %v290 = vld [vmem:[%s209 + $0x28] sm:$0xf]
        %v291 = vld [vmem:[%s209 + $0x2c] sm:$0xf]
        %v292 = vld [vmem:[%s209 + $0x30] sm:$0xf]
        %v293 = vld [vmem:[%s209 + $0x34] sm:$0xf]
        %v294 = vld [vmem:[%s209 + $0x38] sm:$0xf]
        %v295 = vld [vmem:[%s209 + $0x3c] sm:$0xf]
        %v296 = vld [vmem:[%s217] sm:$0x1]
        %v298 = vlaneseq
        %v299 = vshrl.u32 %v298, 7
        %v300 = vsub.s32 0, %v299
        %v301 = vrot.slane %v296, %v300
        %v319 = vunpack.c.l.b16 %v280
        %v320 = vunpack.c.l.b16 %v281
        %v321 = vunpack.c.l.b16 %v282
        %v322 = vunpack.c.l.b16 %v283
        %v323 = vunpack.c.l.b16 %v284
        %v324 = vunpack.c.l.b16 %v285
        %v325 = vunpack.c.l.b16 %v286
        %v326 = vunpack.c.l.b16 %v287
        %v327 = vunpack.c.l.b16 %v288
        %v328 = vunpack.c.l.b16 %v289
        %v329 = vunpack.c.l.b16 %v290
        %v330 = vunpack.c.l.b16 %v291
        %v331 = vunpack.c.l.b16 %v292
        %v332 = vunpack.c.l.b16 %v293
        %v333 = vunpack.c.l.b16 %v294
        %v334 = vunpack.c.l.b16 %v295
        %v335 = vpack.c.b16 %v320, %v319
        %v336 = vpack.c.b16 %v322, %v321
        %v337 = vpack.c.b16 %v324, %v323
        %v338 = vpack.c.b16 %v326, %v325
        %v339 = vpack.c.b16 %v328, %v327
        %v340 = vpack.c.b16 %v330, %v329
        %v341 = vpack.c.b16 %v332, %v331
        %v342 = vpack.c.b16 %v334, %v333
        %351 = vmatprep.subr.bf16.mxu0 0
        %352 = vmatpush1.bf16.msra.mxu0 %v335
        %353 = vmatprep.subr.bf16.mxu0 0
        %354 = vmatpush1.bf16.msra.mxu0 %v336
        %355 = vmatprep.subr.bf16.mxu0 0
        %356 = vmatpush1.bf16.msra.mxu0 %v337
        %357 = vmatprep.subr.bf16.mxu0 0
        %358 = vmatpush1.bf16.msra.mxu0 %v338
        %359 = vmatprep.subr.bf16.mxu0 0
        %360 = vmatpush1.bf16.msra.mxu0 %v339
        %361 = vmatprep.subr.bf16.mxu0 0
        %362 = vmatpush1.bf16.msra.mxu0 %v340
        %363 = vmatprep.subr.bf16.mxu0 0
        %364 = vmatpush1.bf16.msra.mxu0 %v341
        %365 = vmatprep.subr.bf16.mxu0 0
        %366 = vmatpush1.bf16.msra.mxu0 %v342
        %367 = vmatprep.subr.bf16.mxu0 0
        %368 = vmatpush1.bf16.msra.mxu0 0
        %369 = vmatprep.subr.bf16.mxu0 0
        %370 = vmatpush1.bf16.msra.mxu0 0
        %371 = vmatprep.subr.bf16.mxu0 0
        %372 = vmatpush1.bf16.msra.mxu0 0
        %373 = vmatprep.subr.bf16.mxu0 0
        %374 = vmatpush1.bf16.msra.mxu0 0
        %375 = vmatprep.subr.bf16.mxu0 0
        %376 = vmatpush1.bf16.msra.mxu0 0
        %377 = vmatprep.subr.bf16.mxu0 0
        %378 = vmatpush1.bf16.msra.mxu0 0
        %379 = vmatprep.subr.bf16.mxu0 0
        %380 = vmatpush1.bf16.msra.mxu0 0
        %381 = vmatprep.subr.bf16.mxu0 0
        %382 = vmatpush1.bf16.msra.mxu0 0
        %383 = vmatprep.mubr.bf16.mxu0 0
        %384 = vmatmul.mubr.bf16.gmra.mrb[0].mxu0 %v272
        %v385 = vpop.f32.mrb[0].mxu0
        %v386 = vadd.f32 %v301, %v385
        %v387 = vpop.f32.mrb[0].mxu0
        %v388 = vpop.f32.mrb[0].mxu0
        %v389 = vadd.f32 %v301, %v388
        %v390 = vpop.f32.mrb[0].mxu0
        %391 = vmatprep.mubr.bf16.mxu0 0
        %392 = vmatmul.mubr.bf16.gmra.mrb[0].mxu0 %v273
        %v393 = vpop.f32.mrb[0].mxu0
        %v394 = vadd.f32 %v301, %v393
        %v395 = vpop.f32.mrb[0].mxu0
        %v396 = vpop.f32.mrb[0].mxu0
        %v397 = vadd.f32 %v301, %v396
        %v398 = vpop.f32.mrb[0].mxu0
        %399 = vmatprep.mubr.bf16.mxu0 0
        %400 = vmatmul.mubr.bf16.gmra.mrb[0].mxu0 %v274
        %v401 = vpop.f32.mrb[0].mxu0
        %v402 = vadd.f32 %v301, %v401
        %v403 = vpop.f32.mrb[0].mxu0
        %v404 = vpop.f32.mrb[0].mxu0
        %v405 = vadd.f32 %v301, %v404
        %v406 = vpop.f32.mrb[0].mxu0
        %407 = vmatprep.mubr.bf16.mxu0 0
        %408 = vmatmul.mubr.bf16.gmra.mrb[0].mxu0 %v275
        %v409 = vpop.f32.mrb[0].mxu0
        %v410 = vadd.f32 %v301, %v409
        %v411 = vpop.f32.mrb[0].mxu0
        %v412 = vpop.f32.mrb[0].mxu0
        %v413 = vadd.f32 %v301, %v412
        %v414 = vpop.f32.mrb[0].mxu0
        %415 = vmatprep.mubr.bf16.mxu0 0
        %416 = vmatmul.mubr.bf16.gmra.mrb[0].mxu0 %v276
        %v417 = vpop.f32.mrb[0].mxu0
        %v418 = vadd.f32 %v301, %v417
        %v419 = vpop.f32.mrb[0].mxu0
        %v420 = vpop.f32.mrb[0].mxu0
        %v421 = vadd.f32 %v301, %v420
        %v422 = vpop.f32.mrb[0].mxu0
        %423 = vmatprep.mubr.bf16.mxu0 0
        %424 = vmatmul.mubr.bf16.gmra.mrb[0].mxu0 %v277
        %v425 = vpop.f32.mrb[0].mxu0
        %v426 = vadd.f32 %v301, %v425
        %v427 = vpop.f32.mrb[0].mxu0
        %v428 = vpop.f32.mrb[0].mxu0
        %v429 = vadd.f32 %v301, %v428
        %v430 = vpop.f32.mrb[0].mxu0
        %431 = vmatprep.mubr.bf16.mxu0 0
        %432 = vmatmul.mubr.bf16.gmra.mrb[0].mxu0 %v278
        %v433 = vpop.f32.mrb[0].mxu0
        %v434 = vadd.f32 %v301, %v433
        %v435 = vpop.f32.mrb[0].mxu0
        %v436 = vpop.f32.mrb[0].mxu0
        %v437 = vadd.f32 %v301, %v436
        %v438 = vpop.f32.mrb[0].mxu0
        %439 = vmatprep.mubr.bf16.mxu0 0
        %440 = vmatmul.mubr.bf16.gmra.mrb[0].mxu0 %v279
        %v441 = vpop.f32.mrb[0].mxu0
        %v442 = vadd.f32 %v301, %v441
        %v443 = vpop.f32.mrb[0].mxu0
        %v444 = vpop.f32.mrb[0].mxu0
        %v445 = vadd.f32 %v301, %v444
        %v446 = vpop.f32.mrb[0].mxu0
        %447 = vdwg.mxu0
        %v448 = vpack.c.bf16 %v389, %v386
        %v449 = vpack.c.bf16 %v397, %v394
        %v450 = vpack.c.bf16 %v405, %v402
        %v451 = vpack.c.bf16 %v413, %v410
        %v452 = vpack.c.bf16 %v421, %v418
        %v453 = vpack.c.bf16 %v429, %v426
        %v454 = vpack.c.bf16 %v437, %v434
        %v455 = vpack.c.bf16 %v445, %v442
        %v464 = vunpack.c.l.b16 %v448
        %v465 = vunpack.c.h.b16 %v448
        %v466 = vunpack.c.l.b16 %v449
        %v467 = vunpack.c.h.b16 %v449
        %v468 = vunpack.c.l.b16 %v450
        %v469 = vunpack.c.h.b16 %v450
        %v470 = vunpack.c.l.b16 %v451
        %v471 = vunpack.c.h.b16 %v451
        %v472 = vunpack.c.l.b16 %v452
        %v473 = vunpack.c.h.b16 %v452
        %v474 = vunpack.c.l.b16 %v453
        %v475 = vunpack.c.h.b16 %v453
        %v476 = vunpack.c.l.b16 %v454
        %v477 = vunpack.c.h.b16 %v454
        %v478 = vunpack.c.l.b16 %v455
        %v479 = vunpack.c.h.b16 %v455
        %v480 = vpack.c.b16 %v464, %v464
        %v481 = vpack.c.b16 %v465, %v465
        %v482 = vpack.c.b16 %v466, %v466
        %v483 = vpack.c.b16 %v467, %v467
        %v484 = vpack.c.b16 %v468, %v468
        %v485 = vpack.c.b16 %v469, %v469
        %v486 = vpack.c.b16 %v470, %v470
        %v487 = vpack.c.b16 %v471, %v471
        %v488 = vpack.c.b16 %v472, %v472
        %v489 = vpack.c.b16 %v473, %v473
        %v490 = vpack.c.b16 %v474, %v474
        %v491 = vpack.c.b16 %v475, %v475
        %v492 = vpack.c.b16 %v476, %v476
        %v493 = vpack.c.b16 %v477, %v477
        %v494 = vpack.c.b16 %v478, %v478
        %v495 = vpack.c.b16 %v479, %v479
        %512 = vst [vmem:[%s247] sm:$0xf] %v480
        %513 = vst [vmem:[%s247 + $0x4] sm:$0xf] %v481
        %514 = vst [vmem:[%s247 + $0x8] sm:$0xf] %v482
        %515 = vst [vmem:[%s247 + $0xc] sm:$0xf] %v483
        %516 = vst [vmem:[%s247 + $0x10] sm:$0xf] %v484
        %517 = vst [vmem:[%s247 + $0x14] sm:$0xf] %v485
        %518 = vst [vmem:[%s247 + $0x18] sm:$0xf] %v486
        %519 = vst [vmem:[%s247 + $0x1c] sm:$0xf] %v487
        %520 = vst [vmem:[%s247 + $0x20] sm:$0xf] %v488
        %521 = vst [vmem:[%s247 + $0x24] sm:$0xf] %v489
        %522 = vst [vmem:[%s247 + $0x28] sm:$0xf] %v490
        %523 = vst [vmem:[%s247 + $0x2c] sm:$0xf] %v491
        %524 = vst [vmem:[%s247 + $0x30] sm:$0xf] %v492
        %525 = vst [vmem:[%s247 + $0x34] sm:$0xf] %v493
        %526 = vst [vmem:[%s247 + $0x38] sm:$0xf] %v494
        %527 = vst [vmem:[%s247 + $0x3c] sm:$0xf] %v495
        %s528 = sand.u32 %s120, 1
        %s529 = sand.u32 %s120, 1
        %s530 = smul.addr %s529, 64
        %s531 = scalar_lea.vmem [#allocation6], %s530
        // Predicated region
        $region41: #{transformer_forward.7} parent=31 // pred_check
          %p532 = pneg %p130
        $region42: #{transformer_forward.7} parent=31 // pred_check_branch
          %534 = sbr.rel (%p532) target = $region44
        $region43: #{transformer_forward.7} parent=31 // pred_region
          %s535 = smul.u32 16, %s24
          %s536 = smul.addr %s535, 3
          %s537 = sadd.s32 %s25, %s536
          %s538 = smul.addr %s537, 4
          %s539 = scalar_lea.vmem %s3, %s538
          // Predicated region
          $region45: #{transformer_forward.7} parent=43 // pred_check
            _
          $region46: #{transformer_forward.7} parent=43 // pred_check_branch
            %541 = sbr.rel (0) target = $region48
          $region47: #{transformer_forward.7} parent=43 // pred_region
            // Predicated region
            $region49: #{transformer_forward.7} parent=47 // pred_check
              _
            $region50: #{transformer_forward.7} parent=47 // pred_check_branch
              %543 = sbr.rel target = $region52
            $region51: #{transformer_forward.7} parent=47 // pred_region
              // Predicated region
              $region64: #{transformer_forward.7} parent=51 // pred_check
                _
              $region65: #{transformer_forward.7} parent=51 // pred_check_branch
                %588 = sbr.rel (0) target = $region67
              $region66: #{transformer_forward.7} parent=51 // pred_region
                loop: start=0, step=1, limit=1
                $region68: #{transformer_forward.7} parent=66 // loop_pre_header
                  _
                $region69: #{transformer_forward.7} parent=66 // loop_header
                  %s590 = sphi 0, %s594
                  %p591 = scmp.ge.s32.totalorder %s590, 1
                  %s595 = sphi %s531, %s531
                  %s596 = sphi %s539, %s539
                $region70: #{transformer_forward.7} parent=66 // loop_header_branch
                  %593 = sbr.rel (%p591) target = $region74
                $region71: #{transformer_forward.7} parent=66 // loop_body
                  _
                $region72: #{transformer_forward.7} parent=66 // loop_footer
                  %s594 = sadd.s32 1, %s590
                $region73: #{transformer_forward.7} parent=66 // loop_footer_branch
                  %589 = sbr.rel target = $region69
                $region74: #{transformer_forward.7} parent=66 // loop_exit
                  _
                loop: start=0, step=1, limit=1
                $region75: #{transformer_forward.7} parent=66 // loop_pre_header
                  _
                $region76: #{transformer_forward.7} parent=66 // loop_header
                  %s599 = sphi 0, %s603
                  %p600 = scmp.ge.s32.totalorder %s599, 1
                  %s604 = sphi %s531, %s531
                  %s605 = sphi %s539, %s539
                $region77: #{transformer_forward.7} parent=66 // loop_header_branch
                  %602 = sbr.rel (%p600) target = $region81
                $region78: #{transformer_forward.7} parent=66 // loop_body
                  %v606 = vld [vmem:[%s604] sm:$0xf]
                  %607 = vst [vmem:[%s605] sm:$0xf] %v606
                  %v608 = vld [vmem:[%s604 + $0x4] sm:$0xf]
                  %609 = vst [vmem:[%s605 + $0xc] sm:$0xf] %v608
                  %v610 = vld [vmem:[%s604 + $0x8] sm:$0xf]
                  %611 = vst [vmem:[%s605 + $0x18] sm:$0xf] %v610
                  %v612 = vld [vmem:[%s604 + $0xc] sm:$0xf]
                  %613 = vst [vmem:[%s605 + $0x24] sm:$0xf] %v612
                  %v614 = vld [vmem:[%s604 + $0x10] sm:$0xf]
                  %615 = vst [vmem:[%s605 + $0x30] sm:$0xf] %v614
                  %v616 = vld [vmem:[%s604 + $0x14] sm:$0xf]
                  %617 = vst [vmem:[%s605 + $0x3c] sm:$0xf] %v616
                  %v618 = vld [vmem:[%s604 + $0x18] sm:$0xf]
                  %619 = vst [vmem:[%s605 + $0x48] sm:$0xf] %v618
                  %v620 = vld [vmem:[%s604 + $0x1c] sm:$0xf]
                  %621 = vst [vmem:[%s605 + $0x54] sm:$0xf] %v620
                  %v622 = vld [vmem:[%s604 + $0x20] sm:$0xf]
                  %623 = vst [vmem:[%s605 + $0x60] sm:$0xf] %v622
                  %v624 = vld [vmem:[%s604 + $0x24] sm:$0xf]
                  %625 = vst [vmem:[%s605 + $0x6c] sm:$0xf] %v624
                  %v626 = vld [vmem:[%s604 + $0x28] sm:$0xf]
                  %627 = vst [vmem:[%s605 + $0x78] sm:$0xf] %v626
                  %v628 = vld [vmem:[%s604 + $0x2c] sm:$0xf]
                  %629 = vst [vmem:[%s605 + $0x84] sm:$0xf] %v628
                  %v630 = vld [vmem:[%s604 + $0x30] sm:$0xf]
                  %631 = vst [vmem:[%s605 + $0x90] sm:$0xf] %v630
                  %v632 = vld [vmem:[%s604 + $0x34] sm:$0xf]
                  %633 = vst [vmem:[%s605 + $0x9c] sm:$0xf] %v632
                  %v634 = vld [vmem:[%s604 + $0x38] sm:$0xf]
                  %635 = vst [vmem:[%s605 + $0xa8] sm:$0xf] %v634
                  %v636 = vld [vmem:[%s604 + $0x3c] sm:$0xf]
                  %637 = vst [vmem:[%s605 + $0xb4] sm:$0xf] %v636
                $region79: #{transformer_forward.7} parent=66 // loop_footer
                  %s603 = sadd.s32 1, %s599
                $region80: #{transformer_forward.7} parent=66 // loop_footer_branch
                  %598 = sbr.rel target = $region76
                $region81: #{transformer_forward.7} parent=66 // loop_exit
                  _
              $region67: #{transformer_forward.7} parent=51 // pred_fallthru
                _
            $region52: #{transformer_forward.7} parent=47 // pred_fallthru
              _
            // Predicated region
            $region53: #{transformer_forward.7} parent=47 // pred_check
              _
            $region54: #{transformer_forward.7} parent=47 // pred_check_branch
              %545 = sbr.rel (0) target = $region56
            $region55: #{transformer_forward.7} parent=47 // pred_region
              loop: start=0, step=1, limit=1
              $region57: #{transformer_forward.7} parent=55 // loop_pre_header
                _
              $region58: #{transformer_forward.7} parent=55 // loop_header
                %s548 = sphi 0, %s552
                %p549 = scmp.ge.s32.totalorder %s548, 1
                %s553 = sphi %s531, %s531
                %s554 = sphi %s539, %s539
              $region59: #{transformer_forward.7} parent=55 // loop_header_branch
                %551 = sbr.rel (%p549) target = $region63
              $region60: #{transformer_forward.7} parent=55 // loop_body
                %v555 = vld [vmem:[%s553] sm:$0xf]
                %556 = vst [vmem:[%s554] sm:$0xf] %v555
                %v557 = vld [vmem:[%s553 + $0x4] sm:$0xf]
                %558 = vst [vmem:[%s554 + $0xc] sm:$0xf] %v557
                %v559 = vld [vmem:[%s553 + $0x8] sm:$0xf]
                %560 = vst [vmem:[%s554 + $0x18] sm:$0xf] %v559
                %v561 = vld [vmem:[%s553 + $0xc] sm:$0xf]
                %562 = vst [vmem:[%s554 + $0x24] sm:$0xf] %v561
                %v563 = vld [vmem:[%s553 + $0x10] sm:$0xf]
                %564 = vst [vmem:[%s554 + $0x30] sm:$0xf] %v563
                %v565 = vld [vmem:[%s553 + $0x14] sm:$0xf]
                %566 = vst [vmem:[%s554 + $0x3c] sm:$0xf] %v565
                %v567 = vld [vmem:[%s553 + $0x18] sm:$0xf]
                %568 = vst [vmem:[%s554 + $0x48] sm:$0xf] %v567
                %v569 = vld [vmem:[%s553 + $0x1c] sm:$0xf]
                %570 = vst [vmem:[%s554 + $0x54] sm:$0xf] %v569
                %v571 = vld [vmem:[%s553 + $0x20] sm:$0xf]
                %572 = vst [vmem:[%s554 + $0x60] sm:$0xf] %v571
                %v573 = vld [vmem:[%s553 + $0x24] sm:$0xf]
                %574 = vst [vmem:[%s554 + $0x6c] sm:$0xf] %v573
                %v575 = vld [vmem:[%s553 + $0x28] sm:$0xf]
                %576 = vst [vmem:[%s554 + $0x78] sm:$0xf] %v575
                %v577 = vld [vmem:[%s553 + $0x2c] sm:$0xf]
                %578 = vst [vmem:[%s554 + $0x84] sm:$0xf] %v577
                %v579 = vld [vmem:[%s553 + $0x30] sm:$0xf]
                %580 = vst [vmem:[%s554 + $0x90] sm:$0xf] %v579
                %v581 = vld [vmem:[%s553 + $0x34] sm:$0xf]
                %582 = vst [vmem:[%s554 + $0x9c] sm:$0xf] %v581
                %v583 = vld [vmem:[%s553 + $0x38] sm:$0xf]
                %584 = vst [vmem:[%s554 + $0xa8] sm:$0xf] %v583
                %v585 = vld [vmem:[%s553 + $0x3c] sm:$0xf]
                %586 = vst [vmem:[%s554 + $0xb4] sm:$0xf] %v585
              $region61: #{transformer_forward.7} parent=55 // loop_footer
                %s552 = sadd.s32 1, %s548
              $region62: #{transformer_forward.7} parent=55 // loop_footer_branch
                %547 = sbr.rel target = $region58
              $region63: #{transformer_forward.7} parent=55 // loop_exit
                _
            $region56: #{transformer_forward.7} parent=47 // pred_fallthru
              _
          $region48: #{transformer_forward.7} parent=43 // pred_fallthru
            _
          %638 = vnop
        $region44: #{transformer_forward.7} parent=31 // pred_fallthru
          _
      $region32: #{transformer_forward.7} parent=5 // pred_fallthru
        _
      %p639 = scmp.le.s32.totalorder 2, %s15
      // Predicated region
      $region82: #{transformer_forward.7} parent=5 // pred_check
        %p640 = pneg %p639
      $region83: #{transformer_forward.7} parent=5 // pred_check_branch
        %642 = sbr.rel (%p640) target = $region85
      $region84: #{transformer_forward.7} parent=5 // pred_region
        %s643 = ssub.s32 %s15, 2
        // Predicated region
        $region86: #{transformer_forward.7} parent=84 // pred_check
          %p644 = pneg %p136
        $region87: #{transformer_forward.7} parent=84 // pred_check_branch
          %646 = sbr.rel (%p644) target = $region89
        $region88: #{transformer_forward.7} parent=84 // pred_region
          %s647 = sand.u32 %s121, 1
          %s648 = sand.u32 %s121, 1
          %s649 = smul.addr %s648, 64
          %s650 = scalar_lea.vmem [#allocation6], %s649
        $region89: #{transformer_forward.7} parent=84 // pred_fallthru
          _
      $region85: #{transformer_forward.7} parent=5 // pred_fallthru
        _
    $region6: #{transformer_forward.7} parent=1 // loop_footer
      %s19 = sadd.s32 1, %s15
    $region7: #{transformer_forward.7} parent=1 // loop_footer_branch
      %14 = sbr.rel target = $region3
    $region8: #{transformer_forward.7} parent=1 // loop_exit
      _
    %651 = vsyncpa [#allocation3], 1
    %s652 = scalar_lea.sflag [#allocation3], 1
    %653 = vsyncpa %s652, 1
    %654 = vsyncpa [#allocation5], 1
    %s655 = scalar_lea.sflag [#allocation5], 1
    %656 = vsyncpa %s655, 1

// kernel: transformer_forward.9
$region0: #{transformer_forward.9}
  #allocation0 [shape = 'u32[]', space=smem, size = 0x4, offset = 0x4, fixed_abs, tag = 'smem constant byte address 0x4 - core index']
  #allocation1 [shape = 'u32[144,128]{1,0:T(1,128)}', space=vmem, size = 0x12000, scoped, tag = 'internal scratch']
  %s0 = inlined_call_operand.vmem [shape: f32[128,128], index: 0, kind: input, shape index: {}]
  %s1 = inlined_call_operand.vmem [shape: bf16[128,256], index: 1, kind: input, shape index: {}]
  %s2 = inlined_call_operand.vmem [shape: f32[1,256], index: 2, kind: input, shape index: {}]
  %s3 = inlined_call_operand.vmem [shape: bf16[256,128], index: 3, kind: input, shape index: {}]
  %s4 = inlined_call_operand.vmem [shape: f32[1,128], index: 4, kind: input, shape index: {}]
  %s5 = inlined_call_operand.vmem [shape: f32[1,128], index: 5, kind: input, shape index: {}]
  %s6 = inlined_call_operand.vmem [shape: f32[1,128], index: 6, kind: input, shape index: {}]
  %s7 = inlined_call_operand.vmem [shape: f32[128,128], index: 7, kind: output, shape index: {}]
  %s8 = sld [smem:[#allocation0]]
  $region38: #{transformer_forward.9} parent=0
    _
  %s10 = ssub.s32 1, %s8
  %s11 = scalar_select 0, %s10, %s8
  // Predicated region
  $region2: #{transformer_forward.9} parent=0 // pred_check
    _
  $region3: #{transformer_forward.9} parent=0 // pred_check_branch
    %13 = sbr.rel (0) target = $region5
  $region4: #{transformer_forward.9} parent=0 // pred_region
    _
  $region5: #{transformer_forward.9} parent=0 // pred_fallthru
    _
  // Predicated region
  $region6: #{transformer_forward.9} parent=0 // pred_check
    _
  $region7: #{transformer_forward.9} parent=0 // pred_check_branch
    %15 = sbr.rel (0) target = $region9
  $region8: #{transformer_forward.9} parent=0 // pred_region
    _
  $region9: #{transformer_forward.9} parent=0 // pred_fallthru
    _
  // Predicated region
  $region10: #{transformer_forward.9} parent=0 // pred_check
    _
  $region11: #{transformer_forward.9} parent=0 // pred_check_branch
    %17 = sbr.rel (0) target = $region13
  $region12: #{transformer_forward.9} parent=0 // pred_region
    _
  $region13: #{transformer_forward.9} parent=0 // pred_fallthru
    _
  // Predicated region
  $region14: #{transformer_forward.9} parent=0 // pred_check
    _
  $region15: #{transformer_forward.9} parent=0 // pred_check_branch
    %19 = sbr.rel (0) target = $region17
  $region16: #{transformer_forward.9} parent=0 // pred_region
    _
  $region17: #{transformer_forward.9} parent=0 // pred_fallthru
    _
  // Predicated region
  $region18: #{transformer_forward.9} parent=0 // pred_check
    _
  $region19: #{transformer_forward.9} parent=0 // pred_check_branch
    %21 = sbr.rel (0) target = $region21
  $region20: #{transformer_forward.9} parent=0 // pred_region
    _
  $region21: #{transformer_forward.9} parent=0 // pred_fallthru
    _
  // Predicated region
  $region22: #{transformer_forward.9} parent=0 // pred_check
    _
  $region23: #{transformer_forward.9} parent=0 // pred_check_branch
    %23 = sbr.rel (0) target = $region25
  $region24: #{transformer_forward.9} parent=0 // pred_region
    _
  $region25: #{transformer_forward.9} parent=0 // pred_fallthru
    _
  // Predicated region
  $region26: #{transformer_forward.9} parent=0 // pred_check
    _
  $region27: #{transformer_forward.9} parent=0 // pred_check_branch
    %25 = sbr.rel (0) target = $region29
  $region28: #{transformer_forward.9} parent=0 // pred_region
    _
  $region29: #{transformer_forward.9} parent=0 // pred_fallthru
    _
  %v27 = vld [vmem:[%s0] sm:$0xff]
  %v28 = vld [vmem:[%s0 + $0x8] sm:$0xff]
  %v29 = vld [vmem:[%s0 + $0x10] sm:$0xff]
  %v30 = vld [vmem:[%s0 + $0x18] sm:$0xff]
  %v31 = vld [vmem:[%s0 + $0x20] sm:$0xff]
  %v32 = vld [vmem:[%s0 + $0x28] sm:$0xff]
  %v33 = vld [vmem:[%s0 + $0x30] sm:$0xff]
  %v34 = vld [vmem:[%s0 + $0x38] sm:$0xff]
  %v35 = vld [vmem:[%s0 + $0x40] sm:$0xff]
  %v36 = vld [vmem:[%s0 + $0x48] sm:$0xff]
  %v37 = vld [vmem:[%s0 + $0x50] sm:$0xff]
  %v38 = vld [vmem:[%s0 + $0x58] sm:$0xff]
  %v39 = vld [vmem:[%s0 + $0x60] sm:$0xff]
  %v40 = vld [vmem:[%s0 + $0x68] sm:$0xff]
  %v41 = vld [vmem:[%s0 + $0x70] sm:$0xff]
  %v42 = vld [vmem:[%s0 + $0x78] sm:$0xff]
  %v43 = vpack.c.bf16 %v28, %v27
  %v44 = vpack.c.bf16 %v30, %v29
  %v45 = vpack.c.bf16 %v32, %v31
  %v46 = vpack.c.bf16 %v34, %v33
  %v47 = vpack.c.bf16 %v36, %v35
  %v48 = vpack.c.bf16 %v38, %v37
  %v49 = vpack.c.bf16 %v40, %v39
  %v50 = vpack.c.bf16 %v42, %v41
  %v51 = vld [vmem:[%s1] sm:$0xff]
  %v52 = vld [vmem:[%s1 + $0x8] sm:$0xff]
  %v53 = vld [vmem:[%s1 + $0x10] sm:$0xff]
  %v54 = vld [vmem:[%s1 + $0x18] sm:$0xff]
  %v55 = vld [vmem:[%s1 + $0x20] sm:$0xff]
  %v56 = vld [vmem:[%s1 + $0x28] sm:$0xff]
  %v57 = vld [vmem:[%s1 + $0x30] sm:$0xff]
  %v58 = vld [vmem:[%s1 + $0x38] sm:$0xff]
  %v59 = vld [vmem:[%s1 + $0x40] sm:$0xff]
  %v60 = vld [vmem:[%s1 + $0x48] sm:$0xff]
  %v61 = vld [vmem:[%s1 + $0x50] sm:$0xff]
  %v62 = vld [vmem:[%s1 + $0x58] sm:$0xff]
  %v63 = vld [vmem:[%s1 + $0x60] sm:$0xff]
  %v64 = vld [vmem:[%s1 + $0x68] sm:$0xff]
  %v65 = vld [vmem:[%s1 + $0x70] sm:$0xff]
  %v66 = vld [vmem:[%s1 + $0x78] sm:$0xff]
  %v67 = vld [vmem:[%s2] sm:$0x3]
  %v69 = vlaneseq
  %v70 = vshrl.u32 %v69, 7
  %v71 = vsub.s32 0, %v70
  %v72 = vrot.slane %v67, %v71
  %v73 = vlaneseq
  %v74 = vshrl.u32 %v73, 7
  %v75 = vsub.s32 1, %v74
  %v76 = vrot.slane %v67, %v75
  %v95 = vunpack.c.l.b16 %v51
  %v96 = vunpack.c.h.b16 %v51
  %v97 = vunpack.c.l.b16 %v52
  %v98 = vunpack.c.h.b16 %v52
  %v99 = vunpack.c.l.b16 %v53
  %v100 = vunpack.c.h.b16 %v53
  %v101 = vunpack.c.l.b16 %v54
  %v102 = vunpack.c.h.b16 %v54
  %v103 = vunpack.c.l.b16 %v55
  %v104 = vunpack.c.h.b16 %v55
  %v105 = vunpack.c.l.b16 %v56
  %v106 = vunpack.c.h.b16 %v56
  %v107 = vunpack.c.l.b16 %v57
  %v108 = vunpack.c.h.b16 %v57
  %v109 = vunpack.c.l.b16 %v58
  %v110 = vunpack.c.h.b16 %v58
  %v111 = vunpack.c.l.b16 %v59
  %v112 = vunpack.c.h.b16 %v59
  %v113 = vunpack.c.l.b16 %v60
  %v114 = vunpack.c.h.b16 %v60
  %v115 = vunpack.c.l.b16 %v61
  %v116 = vunpack.c.h.b16 %v61
  %v117 = vunpack.c.l.b16 %v62
  %v118 = vunpack.c.h.b16 %v62
  %v119 = vunpack.c.l.b16 %v63
  %v120 = vunpack.c.h.b16 %v63
  %v121 = vunpack.c.l.b16 %v64
  %v122 = vunpack.c.h.b16 %v64
  %v123 = vunpack.c.l.b16 %v65
  %v124 = vunpack.c.h.b16 %v65
  %v125 = vunpack.c.l.b16 %v66
  %v126 = vunpack.c.h.b16 %v66
  %v127 = vpack.c.b16 %v97, %v95
  %v128 = vpack.c.b16 %v98, %v96
  %v129 = vpack.c.b16 %v101, %v99
  %v130 = vpack.c.b16 %v102, %v100
  %v131 = vpack.c.b16 %v105, %v103
  %v132 = vpack.c.b16 %v106, %v104
  %v133 = vpack.c.b16 %v109, %v107
  %v134 = vpack.c.b16 %v110, %v108
  %v135 = vpack.c.b16 %v113, %v111
  %v136 = vpack.c.b16 %v114, %v112
  %v137 = vpack.c.b16 %v117, %v115
  %v138 = vpack.c.b16 %v118, %v116
  %v139 = vpack.c.b16 %v121, %v119
  %v140 = vpack.c.b16 %v122, %v120
  %v141 = vpack.c.b16 %v125, %v123
  %v142 = vpack.c.b16 %v126, %v124
  %159 = vmatprep.subr.bf16.mxu0 %v128
  %160 = vmatpush1.bf16.msra.mxu0 %v127
  %161 = vmatprep.subr.bf16.mxu0 %v130
  %162 = vmatpush1.bf16.msra.mxu0 %v129
  %163 = vmatprep.subr.bf16.mxu0 %v132
  %164 = vmatpush1.bf16.msra.mxu0 %v131
  %165 = vmatprep.subr.bf16.mxu0 %v134
  %166 = vmatpush1.bf16.msra.mxu0 %v133
  %167 = vmatprep.subr.bf16.mxu0 %v136
  %168 = vmatpush1.bf16.msra.mxu0 %v135
  %169 = vmatprep.subr.bf16.mxu0 %v138
  %170 = vmatpush1.bf16.msra.mxu0 %v137
  %171 = vmatprep.subr.bf16.mxu0 %v140
  %172 = vmatpush1.bf16.msra.mxu0 %v139
  %173 = vmatprep.subr.bf16.mxu0 %v142
  %174 = vmatpush1.bf16.msra.mxu0 %v141
  %175 = vmatprep.subr.bf16.mxu0 0
  %176 = vmatpush1.bf16.msra.mxu0 0
  %177 = vmatprep.subr.bf16.mxu0 0
  %178 = vmatpush1.bf16.msra.mxu0 0
  %179 = vmatprep.subr.bf16.mxu0 0
  %180 = vmatpush1.bf16.msra.mxu0 0
  %181 = vmatprep.subr.bf16.mxu0 0
  %182 = vmatpush1.bf16.msra.mxu0 0
  %183 = vmatprep.subr.bf16.mxu0 0
  %184 = vmatpush1.bf16.msra.mxu0 0
  %185 = vmatprep.subr.bf16.mxu0 0
  %186 = vmatpush1.bf16.msra.mxu0 0
  %187 = vmatprep.subr.bf16.mxu0 0
  %188 = vmatpush1.bf16.msra.mxu0 0
  %189 = vmatprep.subr.bf16.mxu0 0
  %190 = vmatpush1.bf16.msra.mxu0 0
  %191 = vmatprep.mubr.bf16.mxu0 0
  %192 = vmatmul.mubr.bf16.gmra.mrb[0].mxu0 %v43
  %v193 = vpop.f32.mrb[0].mxu0
  %v194 = vadd.f32 %v72, %v193
  %v195 = vpop.f32.mrb[0].mxu0
  %v196 = vadd.f32 %v76, %v195
  %v197 = vpop.f32.mrb[0].mxu0
  %v198 = vadd.f32 %v72, %v197
  %v199 = vpop.f32.mrb[0].mxu0
  %v200 = vadd.f32 %v76, %v199
  %201 = vmatprep.mubr.bf16.mxu0 0
  %202 = vmatmul.mubr.bf16.gmra.mrb[0].mxu0 %v44
  %v203 = vpop.f32.mrb[0].mxu0
  %v204 = vadd.f32 %v72, %v203
  %v205 = vpop.f32.mrb[0].mxu0
  %v206 = vadd.f32 %v76, %v205
  %v207 = vpop.f32.mrb[0].mxu0
  %v208 = vadd.f32 %v72, %v207
  %v209 = vpop.f32.mrb[0].mxu0
  %v210 = vadd.f32 %v76, %v209
  %211 = vmatprep.mubr.bf16.mxu0 0
  %212 = vmatmul.mubr.bf16.gmra.mrb[0].mxu0 %v45
  %v213 = vpop.f32.mrb[0].mxu0
  %v214 = vadd.f32 %v72, %v213
  %v215 = vpop.f32.mrb[0].mxu0
  %v216 = vadd.f32 %v76, %v215
  %v217 = vpop.f32.mrb[0].mxu0
  %v218 = vadd.f32 %v72, %v217
  %v219 = vpop.f32.mrb[0].mxu0
  %v220 = vadd.f32 %v76, %v219
  %221 = vmatprep.mubr.bf16.mxu0 0
  %222 = vmatmul.mubr.bf16.gmra.mrb[0].mxu0 %v46
  %v223 = vpop.f32.mrb[0].mxu0
  %v224 = vadd.f32 %v72, %v223
  %v225 = vpop.f32.mrb[0].mxu0
  %v226 = vadd.f32 %v76, %v225
  %v227 = vpop.f32.mrb[0].mxu0
  %v228 = vadd.f32 %v72, %v227
  %v229 = vpop.f32.mrb[0].mxu0
  %v230 = vadd.f32 %v76, %v229
  %231 = vmatprep.mubr.bf16.mxu0 0
  %232 = vmatmul.mubr.bf16.gmra.mrb[0].mxu0 %v47
  %v233 = vpop.f32.mrb[0].mxu0
  %v234 = vadd.f32 %v72, %v233
  %v235 = vpop.f32.mrb[0].mxu0
  %v236 = vadd.f32 %v76, %v235
  %v237 = vpop.f32.mrb[0].mxu0
  %v238 = vadd.f32 %v72, %v237
  %v239 = vpop.f32.mrb[0].mxu0
  %v240 = vadd.f32 %v76, %v239
  %241 = vmatprep.mubr.bf16.mxu0 0
  %242 = vmatmul.mubr.bf16.gmra.mrb[0].mxu0 %v48
  %v243 = vpop.f32.mrb[0].mxu0
  %v244 = vadd.f32 %v72, %v243
  %v245 = vpop.f32.mrb[0].mxu0
  %v246 = vadd.f32 %v76, %v245
  %v247 = vpop.f32.mrb[0].mxu0
  %v248 = vadd.f32 %v72, %v247
  %v249 = vpop.f32.mrb[0].mxu0
  %v250 = vadd.f32 %v76, %v249
  %251 = vmatprep.mubr.bf16.mxu0 0
  %252 = vmatmul.mubr.bf16.gmra.mrb[0].mxu0 %v49
  %v253 = vpop.f32.mrb[0].mxu0
  %v254 = vadd.f32 %v72, %v253
  %v255 = vpop.f32.mrb[0].mxu0
  %v256 = vadd.f32 %v76, %v255
  %v257 = vpop.f32.mrb[0].mxu0
  %v258 = vadd.f32 %v72, %v257
  %v259 = vpop.f32.mrb[0].mxu0
  %v260 = vadd.f32 %v76, %v259
  %261 = vmatprep.mubr.bf16.mxu0 0
  %262 = vmatmul.mubr.bf16.gmra.mrb[0].mxu0 %v50
  %v263 = vpop.f32.mrb[0].mxu0
  %v264 = vadd.f32 %v72, %v263
  %v265 = vpop.f32.mrb[0].mxu0
  %v266 = vadd.f32 %v76, %v265
  %v267 = vpop.f32.mrb[0].mxu0
  %v268 = vadd.f32 %v72, %v267
  %v269 = vpop.f32.mrb[0].mxu0
  %v270 = vadd.f32 %v76, %v269
  %271 = vdwg.mxu0
  %v272 = vmax.f32 %v194, 0.0
  %v273 = vmax.f32 %v196, 0.0
  %v274 = vmax.f32 %v198, 0.0
  %v275 = vmax.f32 %v200, 0.0
  %v276 = vmax.f32 %v204, 0.0
  %v277 = vmax.f32 %v206, 0.0
  %v278 = vmax.f32 %v208, 0.0
  %v279 = vmax.f32 %v210, 0.0
  %v280 = vmax.f32 %v214, 0.0
  %v281 = vmax.f32 %v216, 0.0
  %v282 = vmax.f32 %v218, 0.0
  %v283 = vmax.f32 %v220, 0.0
  %v284 = vmax.f32 %v224, 0.0
  %v285 = vmax.f32 %v226, 0.0
  %v286 = vmax.f32 %v228, 0.0
  %v287 = vmax.f32 %v230, 0.0
  %v288 = vmax.f32 %v234, 0.0
  %v289 = vmax.f32 %v236, 0.0
  %v290 = vmax.f32 %v238, 0.0
  %v291 = vmax.f32 %v240, 0.0
  %v292 = vmax.f32 %v244, 0.0
  %v293 = vmax.f32 %v246, 0.0
  %v294 = vmax.f32 %v248, 0.0
  %v295 = vmax.f32 %v250, 0.0
  %v296 = vmax.f32 %v254, 0.0
  %v297 = vmax.f32 %v256, 0.0
  %v298 = vmax.f32 %v258, 0.0
  %v299 = vmax.f32 %v260, 0.0
  %v300 = vmax.f32 %v264, 0.0
  %v301 = vmax.f32 %v266, 0.0
  %v302 = vmax.f32 %v268, 0.0
  %v303 = vmax.f32 %v270, 0.0
  %v304 = vpack.c.bf16 %v274, %v272
  %v305 = vpack.c.bf16 %v275, %v273
  %v306 = vpack.c.bf16 %v278, %v276
  %v307 = vpack.c.bf16 %v279, %v277
  %v308 = vpack.c.bf16 %v282, %v280
  %v309 = vpack.c.bf16 %v283, %v281
  %v310 = vpack.c.bf16 %v286, %v284
  %v311 = vpack.c.bf16 %v287, %v285
  %v312 = vpack.c.bf16 %v290, %v288
  %v313 = vpack.c.bf16 %v291, %v289
  %v314 = vpack.c.bf16 %v294, %v292
  %v315 = vpack.c.bf16 %v295, %v293
  %v316 = vpack.c.bf16 %v298, %v296
  %v317 = vpack.c.bf16 %v299, %v297
  %v318 = vpack.c.bf16 %v302, %v300
  %v319 = vpack.c.bf16 %v303, %v301
  %v320 = vld [vmem:[%s3] sm:$0xf]
  %v321 = vld [vmem:[%s3 + $0x4] sm:$0xf]
  %v322 = vld [vmem:[%s3 + $0x8] sm:$0xf]
  %v323 = vld [vmem:[%s3 + $0xc] sm:$0xf]
  %v324 = vld [vmem:[%s3 + $0x10] sm:$0xf]
  %v325 = vld [vmem:[%s3 + $0x14] sm:$0xf]
  %v326 = vld [vmem:[%s3 + $0x18] sm:$0xf]
  %v327 = vld [vmem:[%s3 + $0x1c] sm:$0xf]
  %v328 = vld [vmem:[%s3 + $0x20] sm:$0xf]
  %v329 = vld [vmem:[%s3 + $0x24] sm:$0xf]
  %v330 = vld [vmem:[%s3 + $0x28] sm:$0xf]
  %v331 = vld [vmem:[%s3 + $0x2c] sm:$0xf]
  %v332 = vld [vmem:[%s3 + $0x30] sm:$0xf]
  %v333 = vld [vmem:[%s3 + $0x34] sm:$0xf]
  %v334 = vld [vmem:[%s3 + $0x38] sm:$0xf]
  %v335 = vld [vmem:[%s3 + $0x3c] sm:$0xf]
  %v336 = vld [vmem:[%s3 + $0x40] sm:$0xf]
  %v337 = vld [vmem:[%s3 + $0x44] sm:$0xf]
  %v338 = vld [vmem:[%s3 + $0x48] sm:$0xf]
  %v339 = vld [vmem:[%s3 + $0x4c] sm:$0xf]
  %v340 = vld [vmem:[%s3 + $0x50] sm:$0xf]
  %v341 = vld [vmem:[%s3 + $0x54] sm:$0xf]
  %v342 = vld [vmem:[%s3 + $0x58] sm:$0xf]
  %v343 = vld [vmem:[%s3 + $0x5c] sm:$0xf]
  %v344 = vld [vmem:[%s3 + $0x60] sm:$0xf]
  %v345 = vld [vmem:[%s3 + $0x64] sm:$0xf]
  %v346 = vld [vmem:[%s3 + $0x68] sm:$0xf]
  %v347 = vld [vmem:[%s3 + $0x6c] sm:$0xf]
  %v348 = vld [vmem:[%s3 + $0x70] sm:$0xf]
  %v349 = vld [vmem:[%s3 + $0x74] sm:$0xf]
  %v350 = vld [vmem:[%s3 + $0x78] sm:$0xf]
  %v351 = vld [vmem:[%s3 + $0x7c] sm:$0xf]
  %v352 = vld [vmem:[%s4] sm:$0x1]
  %v354 = vlaneseq
  %v355 = vshrl.u32 %v354, 7
  %v356 = vsub.s32 0, %v355
  %v357 = vrot.slane %v352, %v356
  %v391 = vunpack.c.l.b16 %v320
  %v392 = vunpack.c.l.b16 %v321
  %v393 = vunpack.c.l.b16 %v322
  %v394 = vunpack.c.l.b16 %v323
  %v395 = vunpack.c.l.b16 %v324
  %v396 = vunpack.c.l.b16 %v325
  %v397 = vunpack.c.l.b16 %v326
  %v398 = vunpack.c.l.b16 %v327
  %v399 = vunpack.c.l.b16 %v328
  %v400 = vunpack.c.l.b16 %v329
  %v401 = vunpack.c.l.b16 %v330
  %v402 = vunpack.c.l.b16 %v331
  %v403 = vunpack.c.l.b16 %v332
  %v404 = vunpack.c.l.b16 %v333
  %v405 = vunpack.c.l.b16 %v334
  %v406 = vunpack.c.l.b16 %v335
  %v407 = vunpack.c.l.b16 %v336
  %v408 = vunpack.c.l.b16 %v337
  %v409 = vunpack.c.l.b16 %v338
  %v410 = vunpack.c.l.b16 %v339
  %v411 = vunpack.c.l.b16 %v340
  %v412 = vunpack.c.l.b16 %v341
  %v413 = vunpack.c.l.b16 %v342
  %v414 = vunpack.c.l.b16 %v343
  %v415 = vunpack.c.l.b16 %v344
  %v416 = vunpack.c.l.b16 %v345
  %v417 = vunpack.c.l.b16 %v346
  %v418 = vunpack.c.l.b16 %v347
  %v419 = vunpack.c.l.b16 %v348
  %v420 = vunpack.c.l.b16 %v349
  %v421 = vunpack.c.l.b16 %v350
  %v422 = vunpack.c.l.b16 %v351
  %v423 = vpack.c.b16 %v392, %v391
  %v424 = vpack.c.b16 %v394, %v393
  %v425 = vpack.c.b16 %v396, %v395
  %v426 = vpack.c.b16 %v398, %v397
  %v427 = vpack.c.b16 %v400, %v399
  %v428 = vpack.c.b16 %v402, %v401
  %v429 = vpack.c.b16 %v404, %v403
  %v430 = vpack.c.b16 %v406, %v405
  %v431 = vpack.c.b16 %v408, %v407
  %v432 = vpack.c.b16 %v410, %v409
  %v433 = vpack.c.b16 %v412, %v411
  %v434 = vpack.c.b16 %v414, %v413
  %v435 = vpack.c.b16 %v416, %v415
  %v436 = vpack.c.b16 %v418, %v417
  %v437 = vpack.c.b16 %v420, %v419
  %v438 = vpack.c.b16 %v422, %v421
  %455 = vmatprep.subr.bf16.mxu0 0
  %456 = vmatpush1.bf16.msra.mxu0 %v423
  %457 = vmatprep.subr.bf16.mxu0 0
  %458 = vmatpush1.bf16.msra.mxu0 %v424
  %459 = vmatprep.subr.bf16.mxu0 0
  %460 = vmatpush1.bf16.msra.mxu0 %v425
  %461 = vmatprep.subr.bf16.mxu0 0
  %462 = vmatpush1.bf16.msra.mxu0 %v426
  %463 = vmatprep.subr.bf16.mxu0 0
  %464 = vmatpush1.bf16.msra.mxu0 %v427
  %465 = vmatprep.subr.bf16.mxu0 0
  %466 = vmatpush1.bf16.msra.mxu0 %v428
  %467 = vmatprep.subr.bf16.mxu0 0
  %468 = vmatpush1.bf16.msra.mxu0 %v429
  %469 = vmatprep.subr.bf16.mxu0 0
  %470 = vmatpush1.bf16.msra.mxu0 %v430
  %471 = vmatprep.subr.bf16.mxu0 0
  %472 = vmatpush1.bf16.msra.mxu0 %v431
  %473 = vmatprep.subr.bf16.mxu0 0
  %474 = vmatpush1.bf16.msra.mxu0 %v432
  %475 = vmatprep.subr.bf16.mxu0 0
  %476 = vmatpush1.bf16.msra.mxu0 %v433
  %477 = vmatprep.subr.bf16.mxu0 0
  %478 = vmatpush1.bf16.msra.mxu0 %v434
  %479 = vmatprep.subr.bf16.mxu0 0
  %480 = vmatpush1.bf16.msra.mxu0 %v435
  %481 = vmatprep.subr.bf16.mxu0 0
  %482 = vmatpush1.bf16.msra.mxu0 %v436
  %483 = vmatprep.subr.bf16.mxu0 0
  %484 = vmatpush1.bf16.msra.mxu0 %v437
  %485 = vmatprep.subr.bf16.mxu0 0
  %486 = vmatpush1.bf16.msra.mxu0 %v438
  %487 = vmatprep.mubr.bf16.mxu0 %v305
  %488 = vmatmul.mubr.bf16.gmra.mrb[0].mxu0 %v304
  %v489 = vpop.f32.mrb[0].mxu0
  %v490 = vadd.f32 %v357, %v489
  %v491 = vpop.f32.mrb[0].mxu0
  %v492 = vpop.f32.mrb[0].mxu0
  %v493 = vadd.f32 %v357, %v492
  %v494 = vpop.f32.mrb[0].mxu0
  %495 = vmatprep.mubr.bf16.mxu0 %v307
  %496 = vmatmul.mubr.bf16.gmra.mrb[0].mxu0 %v306
  %v497 = vpop.f32.mrb[0].mxu0
  %v498 = vadd.f32 %v357, %v497
  %v499 = vpop.f32.mrb[0].mxu0
  %v500 = vpop.f32.mrb[0].mxu0
  %v501 = vadd.f32 %v357, %v500
  %v502 = vpop.f32.mrb[0].mxu0
  %503 = vmatprep.mubr.bf16.mxu0 %v309
  %504 = vmatmul.mubr.bf16.gmra.mrb[0].mxu0 %v308
  %v505 = vpop.f32.mrb[0].mxu0
  %v506 = vadd.f32 %v357, %v505
  %v507 = vpop.f32.mrb[0].mxu0
  %v508 = vpop.f32.mrb[0].mxu0
  %v509 = vadd.f32 %v357, %v508
  %v510 = vpop.f32.mrb[0].mxu0
  %511 = vmatprep.mubr.bf16.mxu0 %v311
  %512 = vmatmul.mubr.bf16.gmra.mrb[0].mxu0 %v310
  %v513 = vpop.f32.mrb[0].mxu0
  %v514 = vadd.f32 %v357, %v513
  %v515 = vpop.f32.mrb[0].mxu0
  %v516 = vpop.f32.mrb[0].mxu0
  %v517 = vadd.f32 %v357, %v516
  %v518 = vpop.f32.mrb[0].mxu0
  %519 = vmatprep.mubr.bf16.mxu0 %v313
  %520 = vmatmul.mubr.bf16.gmra.mrb[0].mxu0 %v312
  %v521 = vpop.f32.mrb[0].mxu0
  %v522 = vadd.f32 %v357, %v521
  %v523 = vpop.f32.mrb[0].mxu0
  %v524 = vpop.f32.mrb[0].mxu0
  %v525 = vadd.f32 %v357, %v524
  %v526 = vpop.f32.mrb[0].mxu0
  %527 = vmatprep.mubr.bf16.mxu0 %v315
  %528 = vmatmul.mubr.bf16.gmra.mrb[0].mxu0 %v314
  %v529 = vpop.f32.mrb[0].mxu0
  %v530 = vadd.f32 %v357, %v529
  %v531 = vpop.f32.mrb[0].mxu0
  %v532 = vpop.f32.mrb[0].mxu0
  %v533 = vadd.f32 %v357, %v532
  %v534 = vpop.f32.mrb[0].mxu0
  %535 = vmatprep.mubr.bf16.mxu0 %v317
  %536 = vmatmul.mubr.bf16.gmra.mrb[0].mxu0 %v316
  %v537 = vpop.f32.mrb[0].mxu0
  %v538 = vadd.f32 %v357, %v537
  %v539 = vpop.f32.mrb[0].mxu0
  %v540 = vpop.f32.mrb[0].mxu0
  %v541 = vadd.f32 %v357, %v540
  %v542 = vpop.f32.mrb[0].mxu0
  %543 = vmatprep.mubr.bf16.mxu0 %v319
  %544 = vmatmul.mubr.bf16.gmra.mrb[0].mxu0 %v318
  %v545 = vpop.f32.mrb[0].mxu0
  %v546 = vadd.f32 %v357, %v545
  %v547 = vpop.f32.mrb[0].mxu0
  %v548 = vpop.f32.mrb[0].mxu0
  %v549 = vadd.f32 %v357, %v548
  %v550 = vpop.f32.mrb[0].mxu0
  %551 = vdwg.mxu0
  %v552 = vadd.f32 %v27, %v490
  %v553 = vadd.f32 %v28, %v493
  %v554 = vadd.f32 %v29, %v498
  %v555 = vadd.f32 %v30, %v501
  %v556 = vadd.f32 %v31, %v506
  %v557 = vadd.f32 %v32, %v509
  %v558 = vadd.f32 %v33, %v514
  %v559 = vadd.f32 %v34, %v517
  %v560 = vadd.f32 %v35, %v522
  %v561 = vadd.f32 %v36, %v525
  %v562 = vadd.f32 %v37, %v530
  %v563 = vadd.f32 %v38, %v533
  %v564 = vadd.f32 %v39, %v538
  %v565 = vadd.f32 %v40, %v541
  %v566 = vadd.f32 %v41, %v546
  %v567 = vadd.f32 %v42, %v549
  %568 = vadd.xlane.f32.xlu0 %v552
  %v569 = vpop.xlane.xlu0 %568
  %570 = vadd.xlane.f32.xlu0 %v553
  %v571 = vpop.xlane.xlu0 %570
  %572 = vadd.xlane.f32.xlu0 %v554
  %v573 = vpop.xlane.xlu0 %572
  %574 = vadd.xlane.f32.xlu0 %v555
  %v575 = vpop.xlane.xlu0 %574
  %576 = vadd.xlane.f32.xlu0 %v556
  %v577 = vpop.xlane.xlu0 %576
  %578 = vadd.xlane.f32.xlu0 %v557
  %v579 = vpop.xlane.xlu0 %578
  %580 = vadd.xlane.f32.xlu0 %v558
  %v581 = vpop.xlane.xlu0 %580
  %582 = vadd.xlane.f32.xlu0 %v559
  %v583 = vpop.xlane.xlu0 %582
  %584 = vadd.xlane.f32.xlu0 %v560
  %v585 = vpop.xlane.xlu0 %584
  %586 = vadd.xlane.f32.xlu0 %v561
  %v587 = vpop.xlane.xlu0 %586
  %588 = vadd.xlane.f32.xlu0 %v562
  %v589 = vpop.xlane.xlu0 %588
  %590 = vadd.xlane.f32.xlu0 %v563
  %v591 = vpop.xlane.xlu0 %590
  %592 = vadd.xlane.f32.xlu0 %v564
  %v593 = vpop.xlane.xlu0 %592
  %594 = vadd.xlane.f32.xlu0 %v565
  %v595 = vpop.xlane.xlu0 %594
  %596 = vadd.xlane.f32.xlu0 %v566
  %v597 = vpop.xlane.xlu0 %596
  %598 = vadd.xlane.f32.xlu0 %v567
  %v599 = vpop.xlane.xlu0 %598
  %v600 = vrcp.pop 128.0
  %v601 = vmul.f32 %v569, %v600
  %v602 = vmul.f32 %v571, %v600
  %v603 = vmul.f32 %v573, %v600
  %v604 = vmul.f32 %v575, %v600
  %v605 = vmul.f32 %v577, %v600
  %v606 = vmul.f32 %v579, %v600
  %v607 = vmul.f32 %v581, %v600
  %v608 = vmul.f32 %v583, %v600
  %v609 = vmul.f32 %v585, %v600
  %v610 = vmul.f32 %v587, %v600
  %v611 = vmul.f32 %v589, %v600
  %v612 = vmul.f32 %v591, %v600
  %v613 = vmul.f32 %v593, %v600
  %v614 = vmul.f32 %v595, %v600
  %v615 = vmul.f32 %v597, %v600
  %v616 = vmul.f32 %v599, %v600
  %v617 = vsub.f32 %v552, %v601
  %v618 = vsub.f32 %v553, %v602
  %v619 = vsub.f32 %v554, %v603
  %v620 = vsub.f32 %v555, %v604
  %v621 = vsub.f32 %v556, %v605
  %v622 = vsub.f32 %v557, %v606
  %v623 = vsub.f32 %v558, %v607
  %v624 = vsub.f32 %v559, %v608
  %v625 = vsub.f32 %v560, %v609
  %v626 = vsub.f32 %v561, %v610
  %v627 = vsub.f32 %v562, %v611
  %v628 = vsub.f32 %v563, %v612
  %v629 = vsub.f32 %v564, %v613
  %v630 = vsub.f32 %v565, %v614
  %v631 = vsub.f32 %v566, %v615
  %v632 = vsub.f32 %v567, %v616
  %v633 = vmul.f32 %v617, %v617
  %v634 = vmul.f32 %v618, %v618
  %v635 = vmul.f32 %v619, %v619
  %v636 = vmul.f32 %v620, %v620
  %v637 = vmul.f32 %v621, %v621
  %v638 = vmul.f32 %v622, %v622
  %v639 = vmul.f32 %v623, %v623
  %v640 = vmul.f32 %v624, %v624
  %v641 = vmul.f32 %v625, %v625
  %v642 = vmul.f32 %v626, %v626
  %v643 = vmul.f32 %v627, %v627
  %v644 = vmul.f32 %v628, %v628
  %v645 = vmul.f32 %v629, %v629
  %v646 = vmul.f32 %v630, %v630
  %v647 = vmul.f32 %v631, %v631
  %v648 = vmul.f32 %v632, %v632
  %649 = vadd.xlane.f32.xlu0 %v633
  %v650 = vpop.xlane.xlu0 %649
  %651 = vadd.xlane.f32.xlu0 %v634
  %v652 = vpop.xlane.xlu0 %651
  %653 = vadd.xlane.f32.xlu0 %v635
  %v654 = vpop.xlane.xlu0 %653
  %655 = vadd.xlane.f32.xlu0 %v636
  %v656 = vpop.xlane.xlu0 %655
  %657 = vadd.xlane.f32.xlu0 %v637
  %v658 = vpop.xlane.xlu0 %657
  %659 = vadd.xlane.f32.xlu0 %v638
  %v660 = vpop.xlane.xlu0 %659
  %661 = vadd.xlane.f32.xlu0 %v639
  %v662 = vpop.xlane.xlu0 %661
  %663 = vadd.xlane.f32.xlu0 %v640
  %v664 = vpop.xlane.xlu0 %663
  %665 = vadd.xlane.f32.xlu0 %v641
  %v666 = vpop.xlane.xlu0 %665
  %667 = vadd.xlane.f32.xlu0 %v642
  %v668 = vpop.xlane.xlu0 %667
  %669 = vadd.xlane.f32.xlu0 %v643
  %v670 = vpop.xlane.xlu0 %669
  %671 = vadd.xlane.f32.xlu0 %v644
  %v672 = vpop.xlane.xlu0 %671
  %673 = vadd.xlane.f32.xlu0 %v645
  %v674 = vpop.xlane.xlu0 %673
  %675 = vadd.xlane.f32.xlu0 %v646
  %v676 = vpop.xlane.xlu0 %675
  %677 = vadd.xlane.f32.xlu0 %v647
  %v678 = vpop.xlane.xlu0 %677
  %679 = vadd.xlane.f32.xlu0 %v648
  %v680 = vpop.xlane.xlu0 %679
  %v681 = vmul.f32 %v650, %v600
  %v682 = vmul.f32 %v652, %v600
  %v683 = vmul.f32 %v654, %v600
  %v684 = vmul.f32 %v656, %v600
  %v685 = vmul.f32 %v658, %v600
  %v686 = vmul.f32 %v660, %v600
  %v687 = vmul.f32 %v662, %v600
  %v688 = vmul.f32 %v664, %v600
  %v689 = vmul.f32 %v666, %v600
  %v690 = vmul.f32 %v668, %v600
  %v691 = vmul.f32 %v670, %v600
  %v692 = vmul.f32 %v672, %v600
  %v693 = vmul.f32 %v674, %v600
  %v694 = vmul.f32 %v676, %v600
  %v695 = vmul.f32 %v678, %v600
  %v696 = vmul.f32 %v680, %v600
  %v697 = vadd.f32 %v681, 1e-05
  %v698 = vadd.f32 %v682, 1e-05
  %v699 = vadd.f32 %v683, 1e-05
  %v700 = vadd.f32 %v684, 1e-05
  %v701 = vadd.f32 %v685, 1e-05
  %v702 = vadd.f32 %v686, 1e-05
  %v703 = vadd.f32 %v687, 1e-05
  %v704 = vadd.f32 %v688, 1e-05
  %v705 = vadd.f32 %v689, 1e-05
  %v706 = vadd.f32 %v690, 1e-05
  %v707 = vadd.f32 %v691, 1e-05
  %v708 = vadd.f32 %v692, 1e-05
  %v709 = vadd.f32 %v693, 1e-05
  %v710 = vadd.f32 %v694, 1e-05
  %v711 = vadd.f32 %v695, 1e-05
  %v712 = vadd.f32 %v696, 1e-05
  %v713 = vrsqrt.pop %v697
  %v714 = vrsqrt.pop %v698
  %v715 = vrsqrt.pop %v699
  %v716 = vrsqrt.pop %v700
  %v717 = vrsqrt.pop %v701
  %v718 = vrsqrt.pop %v702
  %v719 = vrsqrt.pop %v703
  %v720 = vrsqrt.pop %v704
  %v721 = vrsqrt.pop %v705
  %v722 = vrsqrt.pop %v706
  %v723 = vrsqrt.pop %v707
  %v724 = vrsqrt.pop %v708
  %v725 = vrsqrt.pop %v709
  %v726 = vrsqrt.pop %v710
  %v727 = vrsqrt.pop %v711
  %v728 = vrsqrt.pop %v712
  %v729 = vmul.f32 %v617, %v713
  %v730 = vmul.f32 %v618, %v714
  %v731 = vmul.f32 %v619, %v715
  %v732 = vmul.f32 %v620, %v716
  %v733 = vmul.f32 %v621, %v717
  %v734 = vmul.f32 %v622, %v718
  %v735 = vmul.f32 %v623, %v719
  %v736 = vmul.f32 %v624, %v720
  %v737 = vmul.f32 %v625, %v721
  %v738 = vmul.f32 %v626, %v722
  %v739 = vmul.f32 %v627, %v723
  %v740 = vmul.f32 %v628, %v724
  %v741 = vmul.f32 %v629, %v725
  %v742 = vmul.f32 %v630, %v726
  %v743 = vmul.f32 %v631, %v727
  %v744 = vmul.f32 %v632, %v728
  %v745 = vld [vmem:[%s5] sm:$0x1]
  %v747 = vlaneseq
  %v748 = vshrl.u32 %v747, 7
  %v749 = vsub.s32 0, %v748
  %v750 = vrot.slane %v745, %v749
  %v752 = vmul.f32 %v729, %v750
  %v753 = vmul.f32 %v730, %v750
  %v754 = vmul.f32 %v731, %v750
  %v755 = vmul.f32 %v732, %v750
  %v756 = vmul.f32 %v733, %v750
  %v757 = vmul.f32 %v734, %v750
  %v758 = vmul.f32 %v735, %v750
  %v759 = vmul.f32 %v736, %v750
  %v760 = vmul.f32 %v737, %v750
  %v761 = vmul.f32 %v738, %v750
  %v762 = vmul.f32 %v739, %v750
  %v763 = vmul.f32 %v740, %v750
  %v764 = vmul.f32 %v741, %v750
  %v765 = vmul.f32 %v742, %v750
  %v766 = vmul.f32 %v743, %v750
  %v767 = vmul.f32 %v744, %v750
  %v768 = vld [vmem:[%s6] sm:$0x1]
  %v770 = vlaneseq
  %v771 = vshrl.u32 %v770, 7
  %v772 = vsub.s32 0, %v771
  %v773 = vrot.slane %v768, %v772
  %v775 = vadd.f32 %v752, %v773
  %v776 = vadd.f32 %v753, %v773
  %v777 = vadd.f32 %v754, %v773
  %v778 = vadd.f32 %v755, %v773
  %v779 = vadd.f32 %v756, %v773
  %v780 = vadd.f32 %v757, %v773
  %v781 = vadd.f32 %v758, %v773
  %v782 = vadd.f32 %v759, %v773
  %v783 = vadd.f32 %v760, %v773
  %v784 = vadd.f32 %v761, %v773
  %v785 = vadd.f32 %v762, %v773
  %v786 = vadd.f32 %v763, %v773
  %v787 = vadd.f32 %v764, %v773
  %v788 = vadd.f32 %v765, %v773
  %v789 = vadd.f32 %v766, %v773
  %v790 = vadd.f32 %v767, %v773
  %791 = vst [vmem:[%s7] sm:$0xff] %v775
  %792 = vst [vmem:[%s7 + $0x8] sm:$0xff] %v776
  %793 = vst [vmem:[%s7 + $0x10] sm:$0xff] %v777
  %794 = vst [vmem:[%s7 + $0x18] sm:$0xff] %v778
  %795 = vst [vmem:[%s7 + $0x20] sm:$0xff] %v779
  %796 = vst [vmem:[%s7 + $0x28] sm:$0xff] %v780
  %797 = vst [vmem:[%s7 + $0x30] sm:$0xff] %v781
  %798 = vst [vmem:[%s7 + $0x38] sm:$0xff] %v782
  %799 = vst [vmem:[%s7 + $0x40] sm:$0xff] %v783
  %800 = vst [vmem:[%s7 + $0x48] sm:$0xff] %v784
  %801 = vst [vmem:[%s7 + $0x50] sm:$0xff] %v785
  %802 = vst [vmem:[%s7 + $0x58] sm:$0xff] %v786
  %803 = vst [vmem:[%s7 + $0x60] sm:$0xff] %v787
  %804 = vst [vmem:[%s7 + $0x68] sm:$0xff] %v788
  %805 = vst [vmem:[%s7 + $0x70] sm:$0xff] %v789
  %806 = vst [vmem:[%s7 + $0x78] sm:$0xff] %v790
  // Predicated region
  $region30: #{transformer_forward.9} parent=0 // pred_check
    _
  $region31: #{transformer_forward.9} parent=0 // pred_check_branch
    %808 = sbr.rel (0) target = $region33
  $region32: #{transformer_forward.9} parent=0 // pred_region
    _
  $region33: #{transformer_forward.9} parent=0 // pred_fallthru
    _
  // Predicated region
  $region34: #{transformer_forward.9} parent=0 // pred_check
    _
  $region35: #{transformer_forward.9} parent=0 // pred_check_branch
    %810 = sbr.rel (0) target = $region37
  $region36: #{transformer_forward.9} parent=0 // pred_region
    _
  $region37: #{transformer_forward.9} parent=0 // pred_fallthru
    _

// kernel: transformer_forward.10
$region0: #{transformer_forward.10}
  #allocation0 [shape = 'u32[]', space=smem, size = 0x4, offset = 0x4, fixed_abs, tag = 'smem constant byte address 0x4 - core index']
  #allocation1 [shape = 'u32[144,128]{1,0:T(1,128)}', space=vmem, size = 0x12000, scoped, tag = 'internal scratch']
  %s0 = inlined_call_operand.vmem [shape: f32[128,128], index: 0, kind: input, shape index: {}]
  %s1 = inlined_call_operand.vmem [shape: bf16[128,384], index: 1, kind: input, shape index: {}]
  %s2 = inlined_call_operand.vmem [shape: f32[1,384], index: 2, kind: input, shape index: {}]
  %s3 = inlined_call_operand.vmem [shape: bf16[128,384], index: 3, kind: output, shape index: {}]
  %s4 = sld [smem:[#allocation0]]
  $region123: #{transformer_forward.10} parent=0
    _
  %s6 = ssub.s32 1, %s4
  %s7 = scalar_select 0, %s6, %s4
  $region1: #{transformer_forward.10} parent=0
    #allocation2 [shape = 'u8[65536]{0}', space=vmem, size = 0x10000, scoped, tag = 'input window, operand 1']
    #allocation3 [shape = 'u8[65536]{0}', space=vmem, size = 0x10000, scoped, tag = 'output window, operand 0']
    loop: start=0, step=1, limit=5
    $region2: #{transformer_forward.10} parent=1 // loop_pre_header
      _
    $region3: #{transformer_forward.10} parent=1 // loop_header
      %s9 = sphi 0, %s13
      %p10 = scmp.ge.s32.totalorder %s9, 5
      %s16 = sphi 0, %s28
      %s17 = sphi 0, %s24
      %s18 = sphi 0, %s16
      %s19 = sphi 0, %s17
      %s20 = sphi 0, %s18
      %s21 = sphi 0, %s19
      %s31 = sphi 0, %s33
      %s34 = sphi 0, %s31
      %s35 = sphi 0, %s34
      %s51 = sphi 0, %s35
      %s57 = sphi 0, %s59
      %s60 = sphi 0, %s57
      %s61 = sphi 0, %s60
      %s77 = sphi 0, %s61
      %s83 = sphi 0, %s85
      %s86 = sphi 0, %s83
      %s87 = sphi 0, %s86
      %s103 = sphi 0, %s87
      %s111 = sphi 0, %s113
      %s114 = sphi 0, %s111
      %s115 = sphi 0, %s114
      %s131 = sphi 0, %s115
    $region4: #{transformer_forward.10} parent=1 // loop_header_branch
      %12 = sbr.rel (%p10) target = $region8
    $region5: #{transformer_forward.10} parent=1 // loop_body
      %s14 = ssub.s32 %s9, 1
      %s15 = ssub.s32 %s9, 2
      %s22 = sadd.s32 1, %s17
      %p23 = scmp.ge.s32.totalorder %s22, 3
      %s24 = scalar_select %p23, 0, %s22
      %s25 = sadd.s32 1, %s16
      %s26 = scalar_select %p23, %s25, %s16
      %p27 = scmp.ge.s32.totalorder %s26, 1
      %s28 = scalar_select %p27, 0, %s26
      %s29 = ssub.s32 %s16, %s28
      %p30 = scmp.eq.s32.totalorder %s29, 0
      %s32 = sadd.s32 %s31, 1
      %s33 = scalar_select %p30, %s31, %s32
      %p36 = pneg %p30
      %p37 = scmp.eq.s32.totalorder %s9, 2
      %p38 = por %p36, %p37
      %p39 = scmp.ne.s32.totalorder %s31, %s34
      %p40 = scmp.eq.s32.totalorder %s9, 0
      %p41 = por %p39, %p40
      %p42 = scmp.ne.s32.totalorder %s31, %s34
      %p43 = scmp.eq.s32.totalorder %s14, 2
      %p44 = por %p42, %p43
      %p45 = scmp.ne.s32.totalorder %s34, %s35
      %p46 = scmp.eq.s32.totalorder %s14, 0
      %p47 = por %p45, %p46
      %p48 = scmp.ne.s32.totalorder %s34, %s35
      %p49 = scmp.eq.s32.totalorder %s15, 2
      %p50 = por %p48, %p49
      %p52 = scmp.ne.s32.totalorder %s35, %s51
      %p53 = scmp.eq.s32.totalorder %s15, 0
      %p54 = por %p52, %p53
      %s55 = ssub.s32 %s17, %s24
      %p56 = scmp.eq.s32.totalorder %s55, 0
      %s58 = sadd.s32 %s57, 1
      %s59 = scalar_select %p56, %s57, %s58
      %p62 = pneg %p56
      %p63 = scmp.eq.s32.totalorder %s9, 2
      %p64 = por %p62, %p63
      %p65 = scmp.ne.s32.totalorder %s57, %s60
      %p66 = scmp.eq.s32.totalorder %s9, 0
      %p67 = por %p65, %p66
      %p68 = scmp.ne.s32.totalorder %s57, %s60
      %p69 = scmp.eq.s32.totalorder %s14, 2
      %p70 = por %p68, %p69
      %p71 = scmp.ne.s32.totalorder %s60, %s61
      %p72 = scmp.eq.s32.totalorder %s14, 0
      %p73 = por %p71, %p72
      %p74 = scmp.ne.s32.totalorder %s60, %s61
      %p75 = scmp.eq.s32.totalorder %s15, 2
      %p76 = por %p74, %p75
      %p78 = scmp.ne.s32.totalorder %s61, %s77
      %p79 = scmp.eq.s32.totalorder %s15, 0
      %p80 = por %p78, %p79
      %s81 = ssub.s32 %s17, %s24
      %p82 = scmp.eq.s32.totalorder %s81, 0
      %s84 = sadd.s32 %s83, 1
      %s85 = scalar_select %p82, %s83, %s84
      %p88 = pneg %p82
      %p89 = scmp.eq.s32.totalorder %s9, 2
      %p90 = por %p88, %p89
      %p91 = scmp.ne.s32.totalorder %s83, %s86
      %p92 = scmp.eq.s32.totalorder %s9, 0
      %p93 = por %p91, %p92
      %p94 = scmp.ne.s32.totalorder %s83, %s86
      %p95 = scmp.eq.s32.totalorder %s14, 2
      %p96 = por %p94, %p95
      %p97 = scmp.ne.s32.totalorder %s86, %s87
      %p98 = scmp.eq.s32.totalorder %s14, 0
      %p99 = por %p97, %p98
      %p100 = scmp.ne.s32.totalorder %s86, %s87
      %p101 = scmp.eq.s32.totalorder %s15, 2
      %p102 = por %p100, %p101
      %p104 = scmp.ne.s32.totalorder %s87, %s103
      %p105 = scmp.eq.s32.totalorder %s15, 0
      %p106 = por %p104, %p105
      %s107 = ssub.s32 %s16, %s28
      %s108 = ssub.s32 %s17, %s24
      %s109 = sor.u32 %s107, %s108
      %p110 = scmp.eq.s32.totalorder %s109, 0
      %s112 = sadd.s32 %s111, 1
      %s113 = scalar_select %p110, %s111, %s112
      %p116 = pneg %p110
      %p117 = scmp.eq.s32.totalorder %s9, 2
      %p118 = por %p116, %p117
      %p119 = scmp.ne.s32.totalorder %s111, %s114
      %p120 = scmp.eq.s32.totalorder %s9, 0
      %p121 = por %p119, %p120
      %p122 = scmp.ne.s32.totalorder %s111, %s114
      %p123 = scmp.eq.s32.totalorder %s14, 2
      %p124 = por %p122, %p123
      %p125 = scmp.ne.s32.totalorder %s114, %s115
      %p126 = scmp.eq.s32.totalorder %s14, 0
      %p127 = por %p125, %p126
      %p128 = scmp.ne.s32.totalorder %s114, %s115
      %p129 = scmp.eq.s32.totalorder %s15, 2
      %p130 = por %p128, %p129
      %p132 = scmp.ne.s32.totalorder %s115, %s131
      %p133 = scmp.eq.s32.totalorder %s15, 0
      %p134 = por %p132, %p133
      %p135 = scmp.le.s32.totalorder 1, %s9
      %p136 = scmp.lt.s32.totalorder %s9, 4
      %p137 = pnand %p135, %p136
      %p138 = pneg %p137
      // Predicated region
      $region9: #{transformer_forward.10} parent=5 // pred_check
        _
      $region10: #{transformer_forward.10} parent=5 // pred_check_branch
        %140 = sbr.rel (%p137) target = $region12
      $region11: #{transformer_forward.10} parent=5 // pred_region
        %s141 = ssub.s32 %s9, 1
        // Predicated region
        $region13: #{transformer_forward.10} parent=11 // pred_check
          %p142 = pneg %p47
        $region14: #{transformer_forward.10} parent=11 // pred_check_branch
          %144 = sbr.rel (%p142) target = $region16
        $region15: #{transformer_forward.10} parent=11 // pred_region
          %s145 = smul.u32 16, %s18
          %p146 = scmp.lt.s32.totalorder %s145, 15
          %s147 = scalar_select %p146, %s145, 15
          %s148 = smul.addr %s147, 8
          %s149 = scalar_lea.vmem %s0, %s148
          %s150 = smul.u32 16, %s18
        $region16: #{transformer_forward.10} parent=11 // pred_fallthru
          _
      $region12: #{transformer_forward.10} parent=5 // pred_fallthru
        _
      %p151 = scmp.lt.s32.totalorder %s9, 3
      // Predicated region
      $region17: #{transformer_forward.10} parent=5 // pred_check
        %p152 = pneg %p151
      $region18: #{transformer_forward.10} parent=5 // pred_check_branch
        %154 = sbr.rel (%p152) target = $region20
      $region19: #{transformer_forward.10} parent=5 // pred_region
        // Predicated region
        $region21: #{transformer_forward.10} parent=19 // pred_check
          %p155 = pneg %p67
        $region22: #{transformer_forward.10} parent=19 // pred_check_branch
          %157 = sbr.rel (%p155) target = $region24
        $region23: #{transformer_forward.10} parent=19 // pred_region
          %s158 = sand.u32 %s57, 1
          %s159 = sand.u32 %s57, 1
          %s160 = smul.addr %s159, 64
          %s161 = scalar_lea.vmem [#allocation2], %s160
          %s162 = smul.addr %s17, 4
          %s163 = scalar_lea.vmem %s1, %s162
          // Predicated region
          $region25: #{transformer_forward.10} parent=23 // pred_check
            _
          $region26: #{transformer_forward.10} parent=23 // pred_check_branch
            %165 = sbr.rel (0) target = $region28
          $region27: #{transformer_forward.10} parent=23 // pred_region
            // Predicated region
            $region29: #{transformer_forward.10} parent=27 // pred_check
              _
            $region30: #{transformer_forward.10} parent=27 // pred_check_branch
              %167 = sbr.rel target = $region32
            $region31: #{transformer_forward.10} parent=27 // pred_region
              // Predicated region
              $region44: #{transformer_forward.10} parent=31 // pred_check
                _
              $region45: #{transformer_forward.10} parent=31 // pred_check_branch
                %212 = sbr.rel (0) target = $region47
              $region46: #{transformer_forward.10} parent=31 // pred_region
                loop: start=0, step=1, limit=1
                $region48: #{transformer_forward.10} parent=46 // loop_pre_header
                  _
                $region49: #{transformer_forward.10} parent=46 // loop_header
                  %s214 = sphi 0, %s218
                  %p215 = scmp.ge.s32.totalorder %s214, 1
                  %s219 = sphi %s163, %s163
                  %s220 = sphi %s161, %s161
                $region50: #{transformer_forward.10} parent=46 // loop_header_branch
                  %217 = sbr.rel (%p215) target = $region54
                $region51: #{transformer_forward.10} parent=46 // loop_body
                  _
                $region52: #{transformer_forward.10} parent=46 // loop_footer
                  %s218 = sadd.s32 1, %s214
                $region53: #{transformer_forward.10} parent=46 // loop_footer_branch
                  %213 = sbr.rel target = $region49
                $region54: #{transformer_forward.10} parent=46 // loop_exit
                  _
                loop: start=0, step=1, limit=1
                $region55: #{transformer_forward.10} parent=46 // loop_pre_header
                  _
                $region56: #{transformer_forward.10} parent=46 // loop_header
                  %s223 = sphi 0, %s227
                  %p224 = scmp.ge.s32.totalorder %s223, 1
                  %s228 = sphi %s163, %s163
                  %s229 = sphi %s161, %s161
                $region57: #{transformer_forward.10} parent=46 // loop_header_branch
                  %226 = sbr.rel (%p224) target = $region61
                $region58: #{transformer_forward.10} parent=46 // loop_body
                  %v230 = vld [vmem:[%s228] sm:$0xf]
                  %231 = vst [vmem:[%s229] sm:$0xf] %v230
                  %v232 = vld [vmem:[%s228 + $0xc] sm:$0xf]
                  %233 = vst [vmem:[%s229 + $0x4] sm:$0xf] %v232
                  %v234 = vld [vmem:[%s228 + $0x18] sm:$0xf]
                  %235 = vst [vmem:[%s229 + $0x8] sm:$0xf] %v234
                  %v236 = vld [vmem:[%s228 + $0x24] sm:$0xf]
                  %237 = vst [vmem:[%s229 + $0xc] sm:$0xf] %v236
                  %v238 = vld [vmem:[%s228 + $0x30] sm:$0xf]
                  %239 = vst [vmem:[%s229 + $0x10] sm:$0xf] %v238
                  %v240 = vld [vmem:[%s228 + $0x3c] sm:$0xf]
                  %241 = vst [vmem:[%s229 + $0x14] sm:$0xf] %v240
                  %v242 = vld [vmem:[%s228 + $0x48] sm:$0xf]
                  %243 = vst [vmem:[%s229 + $0x18] sm:$0xf] %v242
                  %v244 = vld [vmem:[%s228 + $0x54] sm:$0xf]
                  %245 = vst [vmem:[%s229 + $0x1c] sm:$0xf] %v244
                  %v246 = vld [vmem:[%s228 + $0x60] sm:$0xf]
                  %247 = vst [vmem:[%s229 + $0x20] sm:$0xf] %v246
                  %v248 = vld [vmem:[%s228 + $0x6c] sm:$0xf]
                  %249 = vst [vmem:[%s229 + $0x24] sm:$0xf] %v248
                  %v250 = vld [vmem:[%s228 + $0x78] sm:$0xf]
                  %251 = vst [vmem:[%s229 + $0x28] sm:$0xf] %v250
                  %v252 = vld [vmem:[%s228 + $0x84] sm:$0xf]
                  %253 = vst [vmem:[%s229 + $0x2c] sm:$0xf] %v252
                  %v254 = vld [vmem:[%s228 + $0x90] sm:$0xf]
                  %255 = vst [vmem:[%s229 + $0x30] sm:$0xf] %v254
                  %v256 = vld [vmem:[%s228 + $0x9c] sm:$0xf]
                  %257 = vst [vmem:[%s229 + $0x34] sm:$0xf] %v256
                  %v258 = vld [vmem:[%s228 + $0xa8] sm:$0xf]
                  %259 = vst [vmem:[%s229 + $0x38] sm:$0xf] %v258
                  %v260 = vld [vmem:[%s228 + $0xb4] sm:$0xf]
                  %261 = vst [vmem:[%s229 + $0x3c] sm:$0xf] %v260
                $region59: #{transformer_forward.10} parent=46 // loop_footer
                  %s227 = sadd.s32 1, %s223
                $region60: #{transformer_forward.10} parent=46 // loop_footer_branch
                  %222 = sbr.rel target = $region56
                $region61: #{transformer_forward.10} parent=46 // loop_exit
                  _
              $region47: #{transformer_forward.10} parent=31 // pred_fallthru
                _
            $region32: #{transformer_forward.10} parent=27 // pred_fallthru
              _
            // Predicated region
            $region33: #{transformer_forward.10} parent=27 // pred_check
              _
            $region34: #{transformer_forward.10} parent=27 // pred_check_branch
              %169 = sbr.rel (0) target = $region36
            $region35: #{transformer_forward.10} parent=27 // pred_region
              loop: start=0, step=1, limit=1
              $region37: #{transformer_forward.10} parent=35 // loop_pre_header
                _
              $region38: #{transformer_forward.10} parent=35 // loop_header
                %s172 = sphi 0, %s176
                %p173 = scmp.ge.s32.totalorder %s172, 1
                %s177 = sphi %s163, %s163
                %s178 = sphi %s161, %s161
              $region39: #{transformer_forward.10} parent=35 // loop_header_branch
                %175 = sbr.rel (%p173) target = $region43
              $region40: #{transformer_forward.10} parent=35 // loop_body
                %v179 = vld [vmem:[%s177] sm:$0xf]
                %180 = vst [vmem:[%s178] sm:$0xf] %v179
                %v181 = vld [vmem:[%s177 + $0xc] sm:$0xf]
                %182 = vst [vmem:[%s178 + $0x4] sm:$0xf] %v181
                %v183 = vld [vmem:[%s177 + $0x18] sm:$0xf]
                %184 = vst [vmem:[%s178 + $0x8] sm:$0xf] %v183
                %v185 = vld [vmem:[%s177 + $0x24] sm:$0xf]
                %186 = vst [vmem:[%s178 + $0xc] sm:$0xf] %v185
                %v187 = vld [vmem:[%s177 + $0x30] sm:$0xf]
                %188 = vst [vmem:[%s178 + $0x10] sm:$0xf] %v187
                %v189 = vld [vmem:[%s177 + $0x3c] sm:$0xf]
                %190 = vst [vmem:[%s178 + $0x14] sm:$0xf] %v189
                %v191 = vld [vmem:[%s177 + $0x48] sm:$0xf]
                %192 = vst [vmem:[%s178 + $0x18] sm:$0xf] %v191
                %v193 = vld [vmem:[%s177 + $0x54] sm:$0xf]
                %194 = vst [vmem:[%s178 + $0x1c] sm:$0xf] %v193
                %v195 = vld [vmem:[%s177 + $0x60] sm:$0xf]
                %196 = vst [vmem:[%s178 + $0x20] sm:$0xf] %v195
                %v197 = vld [vmem:[%s177 + $0x6c] sm:$0xf]
                %198 = vst [vmem:[%s178 + $0x24] sm:$0xf] %v197
                %v199 = vld [vmem:[%s177 + $0x78] sm:$0xf]
                %200 = vst [vmem:[%s178 + $0x28] sm:$0xf] %v199
                %v201 = vld [vmem:[%s177 + $0x84] sm:$0xf]
                %202 = vst [vmem:[%s178 + $0x2c] sm:$0xf] %v201
                %v203 = vld [vmem:[%s177 + $0x90] sm:$0xf]
                %204 = vst [vmem:[%s178 + $0x30] sm:$0xf] %v203
                %v205 = vld [vmem:[%s177 + $0x9c] sm:$0xf]
                %206 = vst [vmem:[%s178 + $0x34] sm:$0xf] %v205
                %v207 = vld [vmem:[%s177 + $0xa8] sm:$0xf]
                %208 = vst [vmem:[%s178 + $0x38] sm:$0xf] %v207
                %v209 = vld [vmem:[%s177 + $0xb4] sm:$0xf]
                %210 = vst [vmem:[%s178 + $0x3c] sm:$0xf] %v209
              $region41: #{transformer_forward.10} parent=35 // loop_footer
                %s176 = sadd.s32 1, %s172
              $region42: #{transformer_forward.10} parent=35 // loop_footer_branch
                %171 = sbr.rel target = $region38
              $region43: #{transformer_forward.10} parent=35 // loop_exit
                _
            $region36: #{transformer_forward.10} parent=27 // pred_fallthru
              _
          $region28: #{transformer_forward.10} parent=23 // pred_fallthru
            _
          %262 = vnop
        $region24: #{transformer_forward.10} parent=19 // pred_fallthru
          _
        // Predicated region
        $region62: #{transformer_forward.10} parent=19 // pred_check
          %p263 = pneg %p93
        $region63: #{transformer_forward.10} parent=19 // pred_check_branch
          %265 = sbr.rel (%p263) target = $region65
        $region64: #{transformer_forward.10} parent=19 // pred_region
          %p266 = scmp.lt.s32.totalorder %s17, 2
          %s267 = scalar_select %p266, %s17, 2
          %s268 = scalar_lea.vmem %s2, %s267
        $region65: #{transformer_forward.10} parent=19 // pred_fallthru
          _
      $region20: #{transformer_forward.10} parent=5 // pred_fallthru
        _
      %p269 = scmp.le.s32.totalorder 1, %s9
      %p270 = scmp.lt.s32.totalorder %s9, 4
      %p271 = pnand %p269, %p270
      %p272 = pneg %p271
      // Predicated region
      $region66: #{transformer_forward.10} parent=5 // pred_check
        _
      $region67: #{transformer_forward.10} parent=5 // pred_check_branch
        %274 = sbr.rel (%p271) target = $region69
      $region68: #{transformer_forward.10} parent=5 // pred_region
        %s275 = ssub.s32 %s9, 1
        %s276 = sand.u32 %s60, 1
        %s277 = sand.u32 %s60, 1
        %s278 = smul.addr %s277, 64
        %s279 = scalar_lea.vmem [#allocation2], %s278
        // Predicated region
        $region70: #{transformer_forward.10} parent=68 // pred_check
          %p280 = pneg %p73
        $region71: #{transformer_forward.10} parent=68 // pred_check_branch
          %282 = sbr.rel (%p280) target = $region73
        $region72: #{transformer_forward.10} parent=68 // pred_region
          _
        $region73: #{transformer_forward.10} parent=68 // pred_fallthru
          _
        %s283 = smul.u32 16, %s18
        %p284 = scmp.lt.s32.totalorder %s283, 15
        %s285 = scalar_select %p284, %s283, 15
        %s286 = smul.addr %s285, 8
        %s287 = scalar_lea.vmem %s0, %s286
        %p288 = pneg %p47
        %p289 = pneg %p44
        %s290 = sand.u32 %s60, 1
        %s291 = sand.u32 %s60, 1
        %s292 = smul.addr %s291, 64
        %s293 = scalar_lea.vmem [#allocation2], %s292
        %p294 = pneg %p73
        %p295 = pneg %p70
        %p296 = scmp.lt.s32.totalorder %s19, 2
        %s297 = scalar_select %p296, %s19, 2
        %s298 = scalar_lea.vmem %s2, %s297
        %p299 = pneg %p99
        %p300 = pneg %p96
        %p301 = pneg %p127
        %p302 = pneg %p124
        %s303 = sand.u32 %s114, 1
        %s304 = sand.u32 %s114, 1
        %s305 = smul.addr %s304, 64
        %s306 = scalar_lea.vmem [#allocation3], %s305
        %s307 = smul.u32 16, %s18
        %p308 = scmp.lt.s32.totalorder %s307, 15
        %s309 = scalar_select %p308, %s307, 15
        %s310 = smul.addr %s309, 8
        %s311 = scalar_lea.vmem %s0, %s310
        %s312 = smul.u32 16, %s18
        %p313 = scmp.lt.s32.totalorder %s19, 2
        %s314 = scalar_select %p313, %s19, 2
        %s315 = scalar_lea.vmem %s2, %s314
        %s316 = smul.u32 16, %s18
        %v318 = vld [vmem:[%s311] sm:$0xff]
        %v319 = vld [vmem:[%s311 + $0x8] sm:$0xff]
        %v320 = vld [vmem:[%s311 + $0x10] sm:$0xff]
        %v321 = vld [vmem:[%s311 + $0x18] sm:$0xff]
        %v322 = vld [vmem:[%s311 + $0x20] sm:$0xff]
        %v323 = vld [vmem:[%s311 + $0x28] sm:$0xff]
        %v324 = vld [vmem:[%s311 + $0x30] sm:$0xff]
        %v325 = vld [vmem:[%s311 + $0x38] sm:$0xff]
        %v326 = vld [vmem:[%s311 + $0x40] sm:$0xff]
        %v327 = vld [vmem:[%s311 + $0x48] sm:$0xff]
        %v328 = vld [vmem:[%s311 + $0x50] sm:$0xff]
        %v329 = vld [vmem:[%s311 + $0x58] sm:$0xff]
        %v330 = vld [vmem:[%s311 + $0x60] sm:$0xff]
        %v331 = vld [vmem:[%s311 + $0x68] sm:$0xff]
        %v332 = vld [vmem:[%s311 + $0x70] sm:$0xff]
        %v333 = vld [vmem:[%s311 + $0x78] sm:$0xff]
        %v334 = vpack.c.bf16 %v319, %v318
        %v335 = vpack.c.bf16 %v321, %v320
        %v336 = vpack.c.bf16 %v323, %v322
        %v337 = vpack.c.bf16 %v325, %v324
        %v338 = vpack.c.bf16 %v327, %v326
        %v339 = vpack.c.bf16 %v329, %v328
        %v340 = vpack.c.bf16 %v331, %v330
        %v341 = vpack.c.bf16 %v333, %v332
        %v342 = vld [vmem:[%s279] sm:$0xf]
        %v343 = vld [vmem:[%s279 + $0x4] sm:$0xf]
        %v344 = vld [vmem:[%s279 + $0x8] sm:$0xf]
        %v345 = vld [vmem:[%s279 + $0xc] sm:$0xf]
        %v346 = vld [vmem:[%s279 + $0x10] sm:$0xf]
        %v347 = vld [vmem:[%s279 + $0x14] sm:$0xf]
        %v348 = vld [vmem:[%s279 + $0x18] sm:$0xf]
        %v349 = vld [vmem:[%s279 + $0x1c] sm:$0xf]
        %v350 = vld [vmem:[%s279 + $0x20] sm:$0xf]
        %v351 = vld [vmem:[%s279 + $0x24] sm:$0xf]
        %v352 = vld [vmem:[%s279 + $0x28] sm:$0xf]
        %v353 = vld [vmem:[%s279 + $0x2c] sm:$0xf]
        %v354 = vld [vmem:[%s279 + $0x30] sm:$0xf]
        %v355 = vld [vmem:[%s279 + $0x34] sm:$0xf]
        %v356 = vld [vmem:[%s279 + $0x38] sm:$0xf]
        %v357 = vld [vmem:[%s279 + $0x3c] sm:$0xf]
        %v358 = vld [vmem:[%s315] sm:$0x1]
        %v360 = vlaneseq
        %v361 = vshrl.u32 %v360, 7
        %v362 = vsub.s32 0, %v361
        %v363 = vrot.slane %v358, %v362
        %v381 = vunpack.c.l.b16 %v342
        %v382 = vunpack.c.l.b16 %v343
        %v383 = vunpack.c.l.b16 %v344
        %v384 = vunpack.c.l.b16 %v345
        %v385 = vunpack.c.l.b16 %v346
        %v386 = vunpack.c.l.b16 %v347
        %v387 = vunpack.c.l.b16 %v348
        %v388 = vunpack.c.l.b16 %v349
        %v389 = vunpack.c.l.b16 %v350
        %v390 = vunpack.c.l.b16 %v351
        %v391 = vunpack.c.l.b16 %v352
        %v392 = vunpack.c.l.b16 %v353
        %v393 = vunpack.c.l.b16 %v354
        %v394 = vunpack.c.l.b16 %v355
        %v395 = vunpack.c.l.b16 %v356
        %v396 = vunpack.c.l.b16 %v357
        %v397 = vpack.c.b16 %v382, %v381
        %v398 = vpack.c.b16 %v384, %v383
        %v399 = vpack.c.b16 %v386, %v385
        %v400 = vpack.c.b16 %v388, %v387
        %v401 = vpack.c.b16 %v390, %v389
        %v402 = vpack.c.b16 %v392, %v391
        %v403 = vpack.c.b16 %v394, %v393
        %v404 = vpack.c.b16 %v396, %v395
        %413 = vmatprep.subr.bf16.mxu0 0
        %414 = vmatpush1.bf16.msra.mxu0 %v397
        %415 = vmatprep.subr.bf16.mxu0 0
        %416 = vmatpush1.bf16.msra.mxu0 %v398
        %417 = vmatprep.subr.bf16.mxu0 0
        %418 = vmatpush1.bf16.msra.mxu0 %v399
        %419 = vmatprep.subr.bf16.mxu0 0
        %420 = vmatpush1.bf16.msra.mxu0 %v400
        %421 = vmatprep.subr.bf16.mxu0 0
        %422 = vmatpush1.bf16.msra.mxu0 %v401
        %423 = vmatprep.subr.bf16.mxu0 0
        %424 = vmatpush1.bf16.msra.mxu0 %v402
        %425 = vmatprep.subr.bf16.mxu0 0
        %426 = vmatpush1.bf16.msra.mxu0 %v403
        %427 = vmatprep.subr.bf16.mxu0 0
        %428 = vmatpush1.bf16.msra.mxu0 %v404
        %429 = vmatprep.subr.bf16.mxu0 0
        %430 = vmatpush1.bf16.msra.mxu0 0
        %431 = vmatprep.subr.bf16.mxu0 0
        %432 = vmatpush1.bf16.msra.mxu0 0
        %433 = vmatprep.subr.bf16.mxu0 0
        %434 = vmatpush1.bf16.msra.mxu0 0
        %435 = vmatprep.subr.bf16.mxu0 0
        %436 = vmatpush1.bf16.msra.mxu0 0
        %437 = vmatprep.subr.bf16.mxu0 0
        %438 = vmatpush1.bf16.msra.mxu0 0
        %439 = vmatprep.subr.bf16.mxu0 0
        %440 = vmatpush1.bf16.msra.mxu0 0
        %441 = vmatprep.subr.bf16.mxu0 0
        %442 = vmatpush1.bf16.msra.mxu0 0
        %443 = vmatprep.subr.bf16.mxu0 0
        %444 = vmatpush1.bf16.msra.mxu0 0
        %445 = vmatprep.mubr.bf16.mxu0 0
        %446 = vmatmul.mubr.bf16.gmra.mrb[0].mxu0 %v334
        %v447 = vpop.f32.mrb[0].mxu0
        %v448 = vadd.f32 %v363, %v447
        %v449 = vpop.f32.mrb[0].mxu0
        %v450 = vpop.f32.mrb[0].mxu0
        %v451 = vadd.f32 %v363, %v450
        %v452 = vpop.f32.mrb[0].mxu0
        %453 = vmatprep.mubr.bf16.mxu0 0
        %454 = vmatmul.mubr.bf16.gmra.mrb[0].mxu0 %v335
        %v455 = vpop.f32.mrb[0].mxu0
        %v456 = vadd.f32 %v363, %v455
        %v457 = vpop.f32.mrb[0].mxu0
        %v458 = vpop.f32.mrb[0].mxu0
        %v459 = vadd.f32 %v363, %v458
        %v460 = vpop.f32.mrb[0].mxu0
        %461 = vmatprep.mubr.bf16.mxu0 0
        %462 = vmatmul.mubr.bf16.gmra.mrb[0].mxu0 %v336
        %v463 = vpop.f32.mrb[0].mxu0
        %v464 = vadd.f32 %v363, %v463
        %v465 = vpop.f32.mrb[0].mxu0
        %v466 = vpop.f32.mrb[0].mxu0
        %v467 = vadd.f32 %v363, %v466
        %v468 = vpop.f32.mrb[0].mxu0
        %469 = vmatprep.mubr.bf16.mxu0 0
        %470 = vmatmul.mubr.bf16.gmra.mrb[0].mxu0 %v337
        %v471 = vpop.f32.mrb[0].mxu0
        %v472 = vadd.f32 %v363, %v471
        %v473 = vpop.f32.mrb[0].mxu0
        %v474 = vpop.f32.mrb[0].mxu0
        %v475 = vadd.f32 %v363, %v474
        %v476 = vpop.f32.mrb[0].mxu0
        %477 = vmatprep.mubr.bf16.mxu0 0
        %478 = vmatmul.mubr.bf16.gmra.mrb[0].mxu0 %v338
        %v479 = vpop.f32.mrb[0].mxu0
        %v480 = vadd.f32 %v363, %v479
        %v481 = vpop.f32.mrb[0].mxu0
        %v482 = vpop.f32.mrb[0].mxu0
        %v483 = vadd.f32 %v363, %v482
        %v484 = vpop.f32.mrb[0].mxu0
        %485 = vmatprep.mubr.bf16.mxu0 0
        %486 = vmatmul.mubr.bf16.gmra.mrb[0].mxu0 %v339
        %v487 = vpop.f32.mrb[0].mxu0
        %v488 = vadd.f32 %v363, %v487
        %v489 = vpop.f32.mrb[0].mxu0
        %v490 = vpop.f32.mrb[0].mxu0
        %v491 = vadd.f32 %v363, %v490
        %v492 = vpop.f32.mrb[0].mxu0
        %493 = vmatprep.mubr.bf16.mxu0 0
        %494 = vmatmul.mubr.bf16.gmra.mrb[0].mxu0 %v340
        %v495 = vpop.f32.mrb[0].mxu0
        %v496 = vadd.f32 %v363, %v495
        %v497 = vpop.f32.mrb[0].mxu0
        %v498 = vpop.f32.mrb[0].mxu0
        %v499 = vadd.f32 %v363, %v498
        %v500 = vpop.f32.mrb[0].mxu0
        %501 = vmatprep.mubr.bf16.mxu0 0
        %502 = vmatmul.mubr.bf16.gmra.mrb[0].mxu0 %v341
        %v503 = vpop.f32.mrb[0].mxu0
        %v504 = vadd.f32 %v363, %v503
        %v505 = vpop.f32.mrb[0].mxu0
        %v506 = vpop.f32.mrb[0].mxu0
        %v507 = vadd.f32 %v363, %v506
        %v508 = vpop.f32.mrb[0].mxu0
        %509 = vdwg.mxu0
        %v510 = vpack.c.bf16 %v451, %v448
        %v511 = vpack.c.bf16 %v459, %v456
        %v512 = vpack.c.bf16 %v467, %v464
        %v513 = vpack.c.bf16 %v475, %v472
        %v514 = vpack.c.bf16 %v483, %v480
        %v515 = vpack.c.bf16 %v491, %v488
        %v516 = vpack.c.bf16 %v499, %v496
        %v517 = vpack.c.bf16 %v507, %v504
        %v526 = vunpack.c.l.b16 %v510
        %v527 = vunpack.c.h.b16 %v510
        %v528 = vunpack.c.l.b16 %v511
        %v529 = vunpack.c.h.b16 %v511
        %v530 = vunpack.c.l.b16 %v512
        %v531 = vunpack.c.h.b16 %v512
        %v532 = vunpack.c.l.b16 %v513
        %v533 = vunpack.c.h.b16 %v513
        %v534 = vunpack.c.l.b16 %v514
        %v535 = vunpack.c.h.b16 %v514
        %v536 = vunpack.c.l.b16 %v515
        %v537 = vunpack.c.h.b16 %v515
        %v538 = vunpack.c.l.b16 %v516
        %v539 = vunpack.c.h.b16 %v516
        %v540 = vunpack.c.l.b16 %v517
        %v541 = vunpack.c.h.b16 %v517
        %v542 = vpack.c.b16 %v526, %v526
        %v543 = vpack.c.b16 %v527, %v527
        %v544 = vpack.c.b16 %v528, %v528
        %v545 = vpack.c.b16 %v529, %v529
        %v546 = vpack.c.b16 %v530, %v530
        %v547 = vpack.c.b16 %v531, %v531
        %v548 = vpack.c.b16 %v532, %v532
        %v549 = vpack.c.b16 %v533, %v533
        %v550 = vpack.c.b16 %v534, %v534
        %v551 = vpack.c.b16 %v535, %v535
        %v552 = vpack.c.b16 %v536, %v536
        %v553 = vpack.c.b16 %v537, %v537
        %v554 = vpack.c.b16 %v538, %v538
        %v555 = vpack.c.b16 %v539, %v539
        %v556 = vpack.c.b16 %v540, %v540
        %v557 = vpack.c.b16 %v541, %v541
        %574 = vst [vmem:[%s306] sm:$0xf] %v542
        %575 = vst [vmem:[%s306 + $0x4] sm:$0xf] %v543
        %576 = vst [vmem:[%s306 + $0x8] sm:$0xf] %v544
        %577 = vst [vmem:[%s306 + $0xc] sm:$0xf] %v545
        %578 = vst [vmem:[%s306 + $0x10] sm:$0xf] %v546
        %579 = vst [vmem:[%s306 + $0x14] sm:$0xf] %v547
        %580 = vst [vmem:[%s306 + $0x18] sm:$0xf] %v548
        %581 = vst [vmem:[%s306 + $0x1c] sm:$0xf] %v549
        %582 = vst [vmem:[%s306 + $0x20] sm:$0xf] %v550
        %583 = vst [vmem:[%s306 + $0x24] sm:$0xf] %v551
        %584 = vst [vmem:[%s306 + $0x28] sm:$0xf] %v552
        %585 = vst [vmem:[%s306 + $0x2c] sm:$0xf] %v553
        %586 = vst [vmem:[%s306 + $0x30] sm:$0xf] %v554
        %587 = vst [vmem:[%s306 + $0x34] sm:$0xf] %v555
        %588 = vst [vmem:[%s306 + $0x38] sm:$0xf] %v556
        %589 = vst [vmem:[%s306 + $0x3c] sm:$0xf] %v557
        %s590 = sand.u32 %s114, 1
        %s591 = sand.u32 %s114, 1
        %s592 = smul.addr %s591, 64
        %s593 = scalar_lea.vmem [#allocation3], %s592
        // Predicated region
        $region74: #{transformer_forward.10} parent=68 // pred_check
          %p594 = pneg %p124
        $region75: #{transformer_forward.10} parent=68 // pred_check_branch
          %596 = sbr.rel (%p594) target = $region77
        $region76: #{transformer_forward.10} parent=68 // pred_region
          %s597 = smul.u32 16, %s18
          %s598 = smul.addr %s597, 3
          %s599 = sadd.s32 %s19, %s598
          %s600 = smul.addr %s599, 4
          %s601 = scalar_lea.vmem %s3, %s600
          // Predicated region
          $region78: #{transformer_forward.10} parent=76 // pred_check
            _
          $region79: #{transformer_forward.10} parent=76 // pred_check_branch
            %603 = sbr.rel (0) target = $region81
          $region80: #{transformer_forward.10} parent=76 // pred_region
            // Predicated region
            $region82: #{transformer_forward.10} parent=80 // pred_check
              _
            $region83: #{transformer_forward.10} parent=80 // pred_check_branch
              %605 = sbr.rel target = $region85
            $region84: #{transformer_forward.10} parent=80 // pred_region
              // Predicated region
              $region97: #{transformer_forward.10} parent=84 // pred_check
                _
              $region98: #{transformer_forward.10} parent=84 // pred_check_branch
                %650 = sbr.rel (0) target = $region100
              $region99: #{transformer_forward.10} parent=84 // pred_region
                loop: start=0, step=1, limit=1
                $region101: #{transformer_forward.10} parent=99 // loop_pre_header
                  _
                $region102: #{transformer_forward.10} parent=99 // loop_header
                  %s652 = sphi 0, %s656
                  %p653 = scmp.ge.s32.totalorder %s652, 1
                  %s657 = sphi %s593, %s593
                  %s658 = sphi %s601, %s601
                $region103: #{transformer_forward.10} parent=99 // loop_header_branch
                  %655 = sbr.rel (%p653) target = $region107
                $region104: #{transformer_forward.10} parent=99 // loop_body
                  _
                $region105: #{transformer_forward.10} parent=99 // loop_footer
                  %s656 = sadd.s32 1, %s652
                $region106: #{transformer_forward.10} parent=99 // loop_footer_branch
                  %651 = sbr.rel target = $region102
                $region107: #{transformer_forward.10} parent=99 // loop_exit
                  _
                loop: start=0, step=1, limit=1
                $region108: #{transformer_forward.10} parent=99 // loop_pre_header
                  _
                $region109: #{transformer_forward.10} parent=99 // loop_header
                  %s661 = sphi 0, %s665
                  %p662 = scmp.ge.s32.totalorder %s661, 1
                  %s666 = sphi %s593, %s593
                  %s667 = sphi %s601, %s601
                $region110: #{transformer_forward.10} parent=99 // loop_header_branch
                  %664 = sbr.rel (%p662) target = $region114
                $region111: #{transformer_forward.10} parent=99 // loop_body
                  %v668 = vld [vmem:[%s666] sm:$0xf]
                  %669 = vst [vmem:[%s667] sm:$0xf] %v668
                  %v670 = vld [vmem:[%s666 + $0x4] sm:$0xf]
                  %671 = vst [vmem:[%s667 + $0xc] sm:$0xf] %v670
                  %v672 = vld [vmem:[%s666 + $0x8] sm:$0xf]
                  %673 = vst [vmem:[%s667 + $0x18] sm:$0xf] %v672
                  %v674 = vld [vmem:[%s666 + $0xc] sm:$0xf]
                  %675 = vst [vmem:[%s667 + $0x24] sm:$0xf] %v674
                  %v676 = vld [vmem:[%s666 + $0x10] sm:$0xf]
                  %677 = vst [vmem:[%s667 + $0x30] sm:$0xf] %v676
                  %v678 = vld [vmem:[%s666 + $0x14] sm:$0xf]
                  %679 = vst [vmem:[%s667 + $0x3c] sm:$0xf] %v678
                  %v680 = vld [vmem:[%s666 + $0x18] sm:$0xf]
                  %681 = vst [vmem:[%s667 + $0x48] sm:$0xf] %v680
                  %v682 = vld [vmem:[%s666 + $0x1c] sm:$0xf]
                  %683 = vst [vmem:[%s667 + $0x54] sm:$0xf] %v682
                  %v684 = vld [vmem:[%s666 + $0x20] sm:$0xf]
                  %685 = vst [vmem:[%s667 + $0x60] sm:$0xf] %v684
                  %v686 = vld [vmem:[%s666 + $0x24] sm:$0xf]
                  %687 = vst [vmem:[%s667 + $0x6c] sm:$0xf] %v686
                  %v688 = vld [vmem:[%s666 + $0x28] sm:$0xf]
                  %689 = vst [vmem:[%s667 + $0x78] sm:$0xf] %v688
                  %v690 = vld [vmem:[%s666 + $0x2c] sm:$0xf]
                  %691 = vst [vmem:[%s667 + $0x84] sm:$0xf] %v690
                  %v692 = vld [vmem:[%s666 + $0x30] sm:$0xf]
                  %693 = vst [vmem:[%s667 + $0x90] sm:$0xf] %v692
                  %v694 = vld [vmem:[%s666 + $0x34] sm:$0xf]
                  %695 = vst [vmem:[%s667 + $0x9c] sm:$0xf] %v694
                  %v696 = vld [vmem:[%s666 + $0x38] sm:$0xf]
                  %697 = vst [vmem:[%s667 + $0xa8] sm:$0xf] %v696
                  %v698 = vld [vmem:[%s666 + $0x3c] sm:$0xf]
                  %699 = vst [vmem:[%s667 + $0xb4] sm:$0xf] %v698
                $region112: #{transformer_forward.10} parent=99 // loop_footer
                  %s665 = sadd.s32 1, %s661
                $region113: #{transformer_forward.10} parent=99 // loop_footer_branch
                  %660 = sbr.rel target = $region109
                $region114: #{transformer_forward.10} parent=99 // loop_exit
                  _
              $region100: #{transformer_forward.10} parent=84 // pred_fallthru
                _
            $region85: #{transformer_forward.10} parent=80 // pred_fallthru
              _
            // Predicated region
            $region86: #{transformer_forward.10} parent=80 // pred_check
              _
            $region87: #{transformer_forward.10} parent=80 // pred_check_branch
              %607 = sbr.rel (0) target = $region89
            $region88: #{transformer_forward.10} parent=80 // pred_region
              loop: start=0, step=1, limit=1
              $region90: #{transformer_forward.10} parent=88 // loop_pre_header
                _
              $region91: #{transformer_forward.10} parent=88 // loop_header
                %s610 = sphi 0, %s614
                %p611 = scmp.ge.s32.totalorder %s610, 1
                %s615 = sphi %s593, %s593
                %s616 = sphi %s601, %s601
              $region92: #{transformer_forward.10} parent=88 // loop_header_branch
                %613 = sbr.rel (%p611) target = $region96
              $region93: #{transformer_forward.10} parent=88 // loop_body
                %v617 = vld [vmem:[%s615] sm:$0xf]
                %618 = vst [vmem:[%s616] sm:$0xf] %v617
                %v619 = vld [vmem:[%s615 + $0x4] sm:$0xf]
                %620 = vst [vmem:[%s616 + $0xc] sm:$0xf] %v619
                %v621 = vld [vmem:[%s615 + $0x8] sm:$0xf]
                %622 = vst [vmem:[%s616 + $0x18] sm:$0xf] %v621
                %v623 = vld [vmem:[%s615 + $0xc] sm:$0xf]
                %624 = vst [vmem:[%s616 + $0x24] sm:$0xf] %v623
                %v625 = vld [vmem:[%s615 + $0x10] sm:$0xf]
                %626 = vst [vmem:[%s616 + $0x30] sm:$0xf] %v625
                %v627 = vld [vmem:[%s615 + $0x14] sm:$0xf]
                %628 = vst [vmem:[%s616 + $0x3c] sm:$0xf] %v627
                %v629 = vld [vmem:[%s615 + $0x18] sm:$0xf]
                %630 = vst [vmem:[%s616 + $0x48] sm:$0xf] %v629
                %v631 = vld [vmem:[%s615 + $0x1c] sm:$0xf]
                %632 = vst [vmem:[%s616 + $0x54] sm:$0xf] %v631
                %v633 = vld [vmem:[%s615 + $0x20] sm:$0xf]
                %634 = vst [vmem:[%s616 + $0x60] sm:$0xf] %v633
                %v635 = vld [vmem:[%s615 + $0x24] sm:$0xf]
                %636 = vst [vmem:[%s616 + $0x6c] sm:$0xf] %v635
                %v637 = vld [vmem:[%s615 + $0x28] sm:$0xf]
                %638 = vst [vmem:[%s616 + $0x78] sm:$0xf] %v637
                %v639 = vld [vmem:[%s615 + $0x2c] sm:$0xf]
                %640 = vst [vmem:[%s616 + $0x84] sm:$0xf] %v639
                %v641 = vld [vmem:[%s615 + $0x30] sm:$0xf]
                %642 = vst [vmem:[%s616 + $0x90] sm:$0xf] %v641
                %v643 = vld [vmem:[%s615 + $0x34] sm:$0xf]
                %644 = vst [vmem:[%s616 + $0x9c] sm:$0xf] %v643
                %v645 = vld [vmem:[%s615 + $0x38] sm:$0xf]
                %646 = vst [vmem:[%s616 + $0xa8] sm:$0xf] %v645
                %v647 = vld [vmem:[%s615 + $0x3c] sm:$0xf]
                %648 = vst [vmem:[%s616 + $0xb4] sm:$0xf] %v647
              $region94: #{transformer_forward.10} parent=88 // loop_footer
                %s614 = sadd.s32 1, %s610
              $region95: #{transformer_forward.10} parent=88 // loop_footer_branch
                %609 = sbr.rel target = $region91
              $region96: #{transformer_forward.10} parent=88 // loop_exit
                _
            $region89: #{transformer_forward.10} parent=80 // pred_fallthru
              _
          $region81: #{transformer_forward.10} parent=76 // pred_fallthru
            _
          %700 = vnop
        $region77: #{transformer_forward.10} parent=68 // pred_fallthru
          _
      $region69: #{transformer_forward.10} parent=5 // pred_fallthru
        _
      %p701 = scmp.le.s32.totalorder 2, %s9
      // Predicated region
      $region115: #{transformer_forward.10} parent=5 // pred_check
        %p702 = pneg %p701
      $region116: #{transformer_forward.10} parent=5 // pred_check_branch
        %704 = sbr.rel (%p702) target = $region118
      $region117: #{transformer_forward.10} parent=5 // pred_region
        %s705 = ssub.s32 %s9, 2
        // Predicated region
        $region119: #{transformer_forward.10} parent=117 // pred_check
          %p706 = pneg %p130
        $region120: #{transformer_forward.10} parent=117 // pred_check_branch
          %708 = sbr.rel (%p706) target = $region122
        $region121: #{transformer_forward.10} parent=117 // pred_region
          %s709 = sand.u32 %s115, 1
          %s710 = sand.u32 %s115, 1
          %s711 = smul.addr %s710, 64
          %s712 = scalar_lea.vmem [#allocation3], %s711
        $region122: #{transformer_forward.10} parent=117 // pred_fallthru
          _
      $region118: #{transformer_forward.10} parent=5 // pred_fallthru
        _
    $region6: #{transformer_forward.10} parent=1 // loop_footer
      %s13 = sadd.s32 1, %s9
    $region7: #{transformer_forward.10} parent=1 // loop_footer_branch
      %8 = sbr.rel target = $region3
    $region8: #{transformer_forward.10} parent=1 // loop_exit
      _

// kernel: transformer_forward.8
$region0: #{transformer_forward.8}
  #allocation0 [shape = 'u32[]', space=smem, size = 0x4, offset = 0x4, fixed_abs, tag = 'smem constant byte address 0x4 - core index']
  #allocation1 [shape = 'u32[144,128]{1,0:T(1,128)}', space=vmem, size = 0x12000, scoped, tag = 'internal scratch']
  %s0 = inlined_call_operand.vmem [shape: f32[2,64,128], index: 0, kind: input, shape index: {}]
  %s1 = inlined_call_operand.vmem [shape: bf16[2,2,64,64], index: 1, kind: input, shape index: {}]
  %s2 = inlined_call_operand.vmem [shape: bf16[2,2,64,64], index: 2, kind: input, shape index: {}]
  %s3 = inlined_call_operand.vmem [shape: bf16[2,2,64,64], index: 3, kind: input, shape index: {}]
  %s4 = inlined_call_operand.hbm [shape: f32[64,64], index: 4, kind: input, shape index: {}]
  %s5 = inlined_call_operand.hbm [shape: bf16[2,64,128], index: 5, kind: input, shape index: {}]
  %s6 = inlined_call_operand.hbm [shape: f32[1,128], index: 6, kind: input, shape index: {}]
  %s7 = inlined_call_operand.hbm [shape: f32[1,128], index: 7, kind: input, shape index: {}]
  %s8 = inlined_call_operand.hbm [shape: f32[1,128], index: 8, kind: input, shape index: {}]
  %s9 = inlined_call_operand.vmem [shape: f32[2,64,128], index: 9, kind: output, shape index: {}]
  %s10 = sld [smem:[#allocation0]]
  $region89: #{transformer_forward.8} parent=0
    _
  %s12 = ssub.s32 1, %s10
  %s13 = scalar_select 0, %s12, %s10
  $region1: #{transformer_forward.8} parent=0
    #allocation2 [shape = 'u8[32768]{0}', space=vmem, size = 0x8000, scoped, tag = 'input window, operand 4, single buffered']
    #allocation3 [shape = 's32[2]{0}', space=sflag, size = 0x8, scoped, tag = 'scoped memory for transformer_forward.8']
    #allocation4 [shape = 'u8[32768]{0}', space=vmem, size = 0x8000, scoped, tag = 'input window, operand 5, single buffered']
    #allocation5 [shape = 's32[1]{0}', space=sflag, size = 0x4, scoped, tag = 'scoped memory for transformer_forward.8']
    #allocation6 [shape = 'u8[512]{0}', space=vmem, size = 0x400, scoped, tag = 'input window, operand 6, single buffered']
    #allocation7 [shape = 'u8[512]{0}', space=vmem, size = 0x400, scoped, tag = 'input window, operand 7, single buffered']
    #allocation8 [shape = 's32[1]{0}', space=sflag, size = 0x4, scoped, tag = 'scoped memory for transformer_forward.8']
    #allocation9 [shape = 'u8[512]{0}', space=vmem, size = 0x400, scoped, tag = 'input window, operand 8, single buffered']
    %14 = vsyncpa [#allocation3], 0
    %15 = vsyncpa [#allocation5], 0
    %16 = vsyncpa [#allocation8], 0
    loop: start=0, step=1, limit=4
    $region2: #{transformer_forward.8} parent=1 // loop_pre_header
      _
    $region3: #{transformer_forward.8} parent=1 // loop_header
      %s18 = sphi 0, %s22
      %p19 = scmp.ge.s32.totalorder %s18, 4
      %s25 = sphi 0, %s37
      %s26 = sphi 0, %s33
      %s27 = sphi 0, %s25
      %s28 = sphi 0, %s26
      %s29 = sphi 0, %s27
      %s30 = sphi 0, %s28
      %s42 = sphi 0, %s44
      %s45 = sphi 0, %s42
      %s46 = sphi 0, %s45
      %s62 = sphi 0, %s46
      %s70 = sphi 0, %s72
      %s73 = sphi 0, %s70
      %s74 = sphi 0, %s73
      %s90 = sphi 0, %s74
      %s96 = sphi 0, %s98
      %s99 = sphi 0, %s96
      %s100 = sphi 0, %s99
      %s116 = sphi 0, %s100
      %s122 = sphi 0, %s124
      %s125 = sphi 0, %s122
      %s126 = sphi 0, %s125
      %s142 = sphi 0, %s126
      %s148 = sphi 0, %s150
      %s151 = sphi 0, %s148
      %s152 = sphi 0, %s151
      %s168 = sphi 0, %s152
      %s172 = sphi 0, %s172
      %s174 = sphi 0, %s172
      %s175 = sphi 0, %s174
      %s189 = sphi 0, %s175
      %s193 = sphi 0, %s193
      %s195 = sphi 0, %s193
      %s196 = sphi 0, %s195
      %s210 = sphi 0, %s196
      %s214 = sphi 0, %s214
      %s216 = sphi 0, %s214
      %s217 = sphi 0, %s216
      %s231 = sphi 0, %s217
      %s235 = sphi 0, %s235
      %s237 = sphi 0, %s235
      %s238 = sphi 0, %s237
      %s252 = sphi 0, %s238
      %s260 = sphi 0, %s262
      %s263 = sphi 0, %s260
      %s264 = sphi 0, %s263
      %s280 = sphi 0, %s264
    $region4: #{transformer_forward.8} parent=1 // loop_header_branch
      %21 = sbr.rel (%p19) target = $region8
    $region5: #{transformer_forward.8} parent=1 // loop_body
      %s23 = ssub.s32 %s18, 1
      %s24 = ssub.s32 %s18, 2
      %s31 = sadd.s32 1, %s26
      %p32 = scmp.ge.s32.totalorder %s31, 1
      %s33 = scalar_select %p32, 0, %s31
      %s34 = sadd.s32 1, %s25
      %s35 = scalar_select %p32, %s34, %s25
      %p36 = scmp.ge.s32.totalorder %s35, 2
      %s37 = scalar_select %p36, 0, %s35
      %s38 = ssub.s32 %s25, %s37
      %s39 = ssub.s32 %s26, %s33
      %s40 = sor.u32 %s38, %s39
      %p41 = scmp.eq.s32.totalorder %s40, 0
      %s43 = sadd.s32 %s42, 1
      %s44 = scalar_select %p41, %s42, %s43
      %p47 = pneg %p41
      %p48 = scmp.eq.s32.totalorder %s18, 1
      %p49 = por %p47, %p48
      %p50 = scmp.ne.s32.totalorder %s42, %s45
      %p51 = scmp.eq.s32.totalorder %s18, 0
      %p52 = por %p50, %p51
      %p53 = scmp.ne.s32.totalorder %s42, %s45
      %p54 = scmp.eq.s32.totalorder %s23, 1
      %p55 = por %p53, %p54
      %p56 = scmp.ne.s32.totalorder %s45, %s46
      %p57 = scmp.eq.s32.totalorder %s23, 0
      %p58 = por %p56, %p57
      %p59 = scmp.ne.s32.totalorder %s45, %s46
      %p60 = scmp.eq.s32.totalorder %s24, 1
      %p61 = por %p59, %p60
      %p63 = scmp.ne.s32.totalorder %s46, %s62
      %p64 = scmp.eq.s32.totalorder %s24, 0
      %p65 = por %p63, %p64
      %s66 = ssub.s32 %s25, %s37
      %s67 = ssub.s32 %s26, %s33
      %s68 = sor.u32 %s66, %s67
      %p69 = scmp.eq.s32.totalorder %s68, 0
      %s71 = sadd.s32 %s70, 1
      %s72 = scalar_select %p69, %s70, %s71
      %p75 = pneg %p69
      %p76 = scmp.eq.s32.totalorder %s18, 1
      %p77 = por %p75, %p76
      %p78 = scmp.ne.s32.totalorder %s70, %s73
      %p79 = scmp.eq.s32.totalorder %s18, 0
      %p80 = por %p78, %p79
      %p81 = scmp.ne.s32.totalorder %s70, %s73
      %p82 = scmp.eq.s32.totalorder %s23, 1
      %p83 = por %p81, %p82
      %p84 = scmp.ne.s32.totalorder %s73, %s74
      %p85 = scmp.eq.s32.totalorder %s23, 0
      %p86 = por %p84, %p85
      %p87 = scmp.ne.s32.totalorder %s73, %s74
      %p88 = scmp.eq.s32.totalorder %s24, 1
      %p89 = por %p87, %p88
      %p91 = scmp.ne.s32.totalorder %s74, %s90
      %p92 = scmp.eq.s32.totalorder %s24, 0
      %p93 = por %p91, %p92
      %s94 = ssub.s32 %s25, %s37
      %p95 = scmp.eq.s32.totalorder %s94, 0
      %s97 = sadd.s32 %s96, 1
      %s98 = scalar_select %p95, %s96, %s97
      %p101 = pneg %p95
      %p102 = scmp.eq.s32.totalorder %s18, 1
      %p103 = por %p101, %p102
      %p104 = scmp.ne.s32.totalorder %s96, %s99
      %p105 = scmp.eq.s32.totalorder %s18, 0
      %p106 = por %p104, %p105
      %p107 = scmp.ne.s32.totalorder %s96, %s99
      %p108 = scmp.eq.s32.totalorder %s23, 1
      %p109 = por %p107, %p108
      %p110 = scmp.ne.s32.totalorder %s99, %s100
      %p111 = scmp.eq.s32.totalorder %s23, 0
      %p112 = por %p110, %p111
      %p113 = scmp.ne.s32.totalorder %s99, %s100
      %p114 = scmp.eq.s32.totalorder %s24, 1
      %p115 = por %p113, %p114
      %p117 = scmp.ne.s32.totalorder %s100, %s116
      %p118 = scmp.eq.s32.totalorder %s24, 0
      %p119 = por %p117, %p118
      %s120 = ssub.s32 %s25, %s37
      %p121 = scmp.eq.s32.totalorder %s120, 0
      %s123 = sadd.s32 %s122, 1
      %s124 = scalar_select %p121, %s122, %s123
      %p127 = pneg %p121
      %p128 = scmp.eq.s32.totalorder %s18, 1
      %p129 = por %p127, %p128
      %p130 = scmp.ne.s32.totalorder %s122, %s125
      %p131 = scmp.eq.s32.totalorder %s18, 0
      %p132 = por %p130, %p131
      %p133 = scmp.ne.s32.totalorder %s122, %s125
      %p134 = scmp.eq.s32.totalorder %s23, 1
      %p135 = por %p133, %p134
      %p136 = scmp.ne.s32.totalorder %s125, %s126
      %p137 = scmp.eq.s32.totalorder %s23, 0
      %p138 = por %p136, %p137
      %p139 = scmp.ne.s32.totalorder %s125, %s126
      %p140 = scmp.eq.s32.totalorder %s24, 1
      %p141 = por %p139, %p140
      %p143 = scmp.ne.s32.totalorder %s126, %s142
      %p144 = scmp.eq.s32.totalorder %s24, 0
      %p145 = por %p143, %p144
      %s146 = ssub.s32 %s26, %s33
      %p147 = scmp.eq.s32.totalorder %s146, 0
      %s149 = sadd.s32 %s148, 1
      %s150 = scalar_select %p147, %s148, %s149
      %p153 = pneg %p147
      %p154 = scmp.eq.s32.totalorder %s18, 1
      %p155 = por %p153, %p154
      %p156 = scmp.ne.s32.totalorder %s148, %s151
      %p157 = scmp.eq.s32.totalorder %s18, 0
      %p158 = por %p156, %p157
      %p159 = scmp.ne.s32.totalorder %s148, %s151
      %p160 = scmp.eq.s32.totalorder %s23, 1
      %p161 = por %p159, %p160
      %p162 = scmp.ne.s32.totalorder %s151, %s152
      %p163 = scmp.eq.s32.totalorder %s23, 0
      %p164 = por %p162, %p163
      %p165 = scmp.ne.s32.totalorder %s151, %s152
      %p166 = scmp.eq.s32.totalorder %s24, 1
      %p167 = por %p165, %p166
      %p169 = scmp.ne.s32.totalorder %s152, %s168
      %p170 = scmp.eq.s32.totalorder %s24, 0
      %p171 = por %p169, %p170
      %s173 = sadd.s32 %s172, 1
      %p176 = scmp.eq.s32.totalorder %s18, 1
      %p177 = scmp.ne.s32.totalorder %s172, %s174
      %p178 = scmp.eq.s32.totalorder %s18, 0
      %p179 = por %p177, %p178
      %p180 = scmp.ne.s32.totalorder %s172, %s174
      %p181 = scmp.eq.s32.totalorder %s23, 1
      %p182 = por %p180, %p181
      %p183 = scmp.ne.s32.totalorder %s174, %s175
      %p184 = scmp.eq.s32.totalorder %s23, 0
      %p185 = por %p183, %p184
      %p186 = scmp.ne.s32.totalorder %s174, %s175
      %p187 = scmp.eq.s32.totalorder %s24, 1
      %p188 = por %p186, %p187
      %p190 = scmp.ne.s32.totalorder %s175, %s189
      %p191 = scmp.eq.s32.totalorder %s24, 0
      %p192 = por %p190, %p191
      %s194 = sadd.s32 %s193, 1
      %p197 = scmp.eq.s32.totalorder %s18, 1
      %p198 = scmp.ne.s32.totalorder %s193, %s195
      %p199 = scmp.eq.s32.totalorder %s18, 0
      %p200 = por %p198, %p199
      %p201 = scmp.ne.s32.totalorder %s193, %s195
      %p202 = scmp.eq.s32.totalorder %s23, 1
      %p203 = por %p201, %p202
      %p204 = scmp.ne.s32.totalorder %s195, %s196
      %p205 = scmp.eq.s32.totalorder %s23, 0
      %p206 = por %p204, %p205
      %p207 = scmp.ne.s32.totalorder %s195, %s196
      %p208 = scmp.eq.s32.totalorder %s24, 1
      %p209 = por %p207, %p208
      %p211 = scmp.ne.s32.totalorder %s196, %s210
      %p212 = scmp.eq.s32.totalorder %s24, 0
      %p213 = por %p211, %p212
      %s215 = sadd.s32 %s214, 1
      %p218 = scmp.eq.s32.totalorder %s18, 1
      %p219 = scmp.ne.s32.totalorder %s214, %s216
      %p220 = scmp.eq.s32.totalorder %s18, 0
      %p221 = por %p219, %p220
      %p222 = scmp.ne.s32.totalorder %s214, %s216
      %p223 = scmp.eq.s32.totalorder %s23, 1
      %p224 = por %p222, %p223
      %p225 = scmp.ne.s32.totalorder %s216, %s217
      %p226 = scmp.eq.s32.totalorder %s23, 0
      %p227 = por %p225, %p226
      %p228 = scmp.ne.s32.totalorder %s216, %s217
      %p229 = scmp.eq.s32.totalorder %s24, 1
      %p230 = por %p228, %p229
      %p232 = scmp.ne.s32.totalorder %s217, %s231
      %p233 = scmp.eq.s32.totalorder %s24, 0
      %p234 = por %p232, %p233
      %s236 = sadd.s32 %s235, 1
      %p239 = scmp.eq.s32.totalorder %s18, 1
      %p240 = scmp.ne.s32.totalorder %s235, %s237
      %p241 = scmp.eq.s32.totalorder %s18, 0
      %p242 = por %p240, %p241
      %p243 = scmp.ne.s32.totalorder %s235, %s237
      %p244 = scmp.eq.s32.totalorder %s23, 1
      %p245 = por %p243, %p244
      %p246 = scmp.ne.s32.totalorder %s237, %s238
      %p247 = scmp.eq.s32.totalorder %s23, 0
      %p248 = por %p246, %p247
      %p249 = scmp.ne.s32.totalorder %s237, %s238
      %p250 = scmp.eq.s32.totalorder %s24, 1
      %p251 = por %p249, %p250
      %p253 = scmp.ne.s32.totalorder %s238, %s252
      %p254 = scmp.eq.s32.totalorder %s24, 0
      %p255 = por %p253, %p254
      %s256 = ssub.s32 %s25, %s37
      %s257 = ssub.s32 %s26, %s33
      %s258 = sor.u32 %s256, %s257
      %p259 = scmp.eq.s32.totalorder %s258, 0
      %s261 = sadd.s32 %s260, 1
      %s262 = scalar_select %p259, %s260, %s261
      %p265 = pneg %p259
      %p266 = scmp.eq.s32.totalorder %s18, 1
      %p267 = por %p265, %p266
      %p268 = scmp.ne.s32.totalorder %s260, %s263
      %p269 = scmp.eq.s32.totalorder %s18, 0
      %p270 = por %p268, %p269
      %p271 = scmp.ne.s32.totalorder %s260, %s263
      %p272 = scmp.eq.s32.totalorder %s23, 1
      %p273 = por %p271, %p272
      %p274 = scmp.ne.s32.totalorder %s263, %s264
      %p275 = scmp.eq.s32.totalorder %s23, 0
      %p276 = por %p274, %p275
      %p277 = scmp.ne.s32.totalorder %s263, %s264
      %p278 = scmp.eq.s32.totalorder %s24, 1
      %p279 = por %p277, %p278
      %p281 = scmp.ne.s32.totalorder %s264, %s280
      %p282 = scmp.eq.s32.totalorder %s24, 0
      %p283 = por %p281, %p282
      %p284 = scmp.le.s32.totalorder 1, %s18
      %p285 = scmp.lt.s32.totalorder %s18, 3
      %p286 = pnand %p284, %p285
      %p287 = pneg %p286
      // Predicated region
      $region9: #{transformer_forward.8} parent=5 // pred_check
        _
      $region10: #{transformer_forward.8} parent=5 // pred_check_branch
        %289 = sbr.rel (%p286) target = $region12
      $region11: #{transformer_forward.8} parent=5 // pred_region
        %s290 = ssub.s32 %s18, 1
        // Predicated region
        $region13: #{transformer_forward.8} parent=11 // pred_check
          %p291 = pneg %p164
        $region14: #{transformer_forward.8} parent=11 // pred_check_branch
          %293 = sbr.rel (%p291) target = $region16
        $region15: #{transformer_forward.8} parent=11 // pred_region
          %s294 = smul.u32 8, %s28
          %s296 = ssub.s32 1024, 1024
          %297 = vsyncadd [#allocation3], %s296
          %s298 = smul.addr %s294, 128
          %s299 = scalar_lea.hbm %s4, %s298
          %s300 = sshll.u32 [#allocation2], 4
          %s301 = int_to_ptr.vmem [resolvable:$true] %s300
          %306 = dma.hbm_to_vmem [thread:$0]  %s299, 1024, %s301, [#allocation3], 128, 128, 8
        $region16: #{transformer_forward.8} parent=11 // pred_fallthru
          _
        // Predicated region
        $region17: #{transformer_forward.8} parent=11 // pred_check
          %p307 = pneg %p185
        $region18: #{transformer_forward.8} parent=11 // pred_check_branch
          %309 = sbr.rel (%p307) target = $region20
        $region19: #{transformer_forward.8} parent=11 // pred_region
          %s311 = ssub.s32 1024, 1024
          %312 = vsyncadd [#allocation5], %s311
          %s313 = sshll.u32 [#allocation4], 4
          %s314 = int_to_ptr.vmem [resolvable:$true] %s313
          %319 = dma.hbm_to_vmem [thread:$0]  %s5, 1024, %s314, [#allocation5], 64, 64, 4
        $region20: #{transformer_forward.8} parent=11 // pred_fallthru
          _
        // Predicated region
        $region21: #{transformer_forward.8} parent=11 // pred_check
          %p320 = pneg %p206
        $region22: #{transformer_forward.8} parent=11 // pred_check_branch
          %322 = sbr.rel (%p320) target = $region24
        $region23: #{transformer_forward.8} parent=11 // pred_region
          %s324 = ssub.s32 16, 16
          %325 = vsyncadd [#allocation5], %s324
          %s327 = sshll.u32 [#allocation6], 4
          %s328 = int_to_ptr.vmem [resolvable:$true] %s327
          %330 = dma.hbm_to_vmem [thread:$0]  %s6, 16, %s328, [#allocation5]
        $region24: #{transformer_forward.8} parent=11 // pred_fallthru
          _
        // Predicated region
        $region25: #{transformer_forward.8} parent=11 // pred_check
          %p331 = pneg %p227
        $region26: #{transformer_forward.8} parent=11 // pred_check_branch
          %333 = sbr.rel (%p331) target = $region28
        $region27: #{transformer_forward.8} parent=11 // pred_region
          %s335 = ssub.s32 16, 16
          %336 = vsyncadd [#allocation8], %s335
          %s338 = sshll.u32 [#allocation7], 4
          %s339 = int_to_ptr.vmem [resolvable:$true] %s338
          %341 = dma.hbm_to_vmem [thread:$0]  %s7, 16, %s339, [#allocation8]
        $region28: #{transformer_forward.8} parent=11 // pred_fallthru
          _
        // Predicated region
        $region29: #{transformer_forward.8} parent=11 // pred_check
          %p342 = pneg %p248
        $region30: #{transformer_forward.8} parent=11 // pred_check_branch
          %344 = sbr.rel (%p342) target = $region32
        $region31: #{transformer_forward.8} parent=11 // pred_region
          %s346 = ssub.s32 16, 16
          %347 = vsyncadd [#allocation8], %s346
          %s349 = sshll.u32 [#allocation9], 4
          %s350 = int_to_ptr.vmem [resolvable:$true] %s349
          %352 = dma.hbm_to_vmem [thread:$0]  %s8, 16, %s350, [#allocation8]
        $region32: #{transformer_forward.8} parent=11 // pred_fallthru
          _
      $region12: #{transformer_forward.8} parent=5 // pred_fallthru
        _
      %p353 = scmp.lt.s32.totalorder %s18, 2
      // Predicated region
      $region33: #{transformer_forward.8} parent=5 // pred_check
        %p354 = pneg %p353
      $region34: #{transformer_forward.8} parent=5 // pred_check_branch
        %356 = sbr.rel (%p354) target = $region36
      $region35: #{transformer_forward.8} parent=5 // pred_region
        // Predicated region
        $region37: #{transformer_forward.8} parent=35 // pred_check
          %p357 = pneg %p52
        $region38: #{transformer_forward.8} parent=35 // pred_check_branch
          %359 = sbr.rel (%p357) target = $region40
        $region39: #{transformer_forward.8} parent=35 // pred_region
          %s360 = smul.u32 8, %s26
          %p361 = scmp.lt.s32.totalorder %s25, 1
          %s362 = scalar_select %p361, %s25, 1
          %p363 = scmp.lt.s32.totalorder %s360, 7
          %s364 = scalar_select %p363, %s360, 7
          %s365 = smul.addr %s362, 8
          %s366 = sadd.s32 %s364, %s365
          %s367 = smul.addr %s366, 8
          %s368 = scalar_lea.vmem %s0, %s367
          %s369 = smul.u32 8, %s26
        $region40: #{transformer_forward.8} parent=35 // pred_fallthru
          _
        // Predicated region
        $region41: #{transformer_forward.8} parent=35 // pred_check
          %p370 = pneg %p80
        $region42: #{transformer_forward.8} parent=35 // pred_check_branch
          %372 = sbr.rel (%p370) target = $region44
        $region43: #{transformer_forward.8} parent=35 // pred_region
          %s373 = smul.u32 8, %s26
          %p374 = scmp.lt.s32.totalorder %s25, 1
          %s375 = scalar_select %p374, %s25, 1
          %p376 = scmp.lt.s32.totalorder %s373, 7
          %s377 = scalar_select %p376, %s373, 7
          %s378 = smul.addr %s375, 16
          %s379 = sadd.s32 %s377, %s378
          %s380 = smul.addr %s379, 4
          %s381 = scalar_lea.vmem %s1, %s380
          %s382 = smul.u32 8, %s26
        $region44: #{transformer_forward.8} parent=35 // pred_fallthru
          _
        // Predicated region
        $region45: #{transformer_forward.8} parent=35 // pred_check
          %p383 = pneg %p106
        $region46: #{transformer_forward.8} parent=35 // pred_check_branch
          %385 = sbr.rel (%p383) target = $region48
        $region47: #{transformer_forward.8} parent=35 // pred_region
          %p386 = scmp.lt.s32.totalorder %s25, 1
          %s387 = scalar_select %p386, %s25, 1
          %s388 = smul.addr %s387, 16
          %s389 = smul.addr %s388, 4
          %s390 = scalar_lea.vmem %s2, %s389
        $region48: #{transformer_forward.8} parent=35 // pred_fallthru
          _
        // Predicated region
        $region49: #{transformer_forward.8} parent=35 // pred_check
          %p391 = pneg %p132
        $region50: #{transformer_forward.8} parent=35 // pred_check_branch
          %393 = sbr.rel (%p391) target = $region52
        $region51: #{transformer_forward.8} parent=35 // pred_region
          %p394 = scmp.lt.s32.totalorder %s25, 1
          %s395 = scalar_select %p394, %s25, 1
          %s396 = smul.addr %s395, 16
          %s397 = smul.addr %s396, 4
          %s398 = scalar_lea.vmem %s3, %s397
        $region52: #{transformer_forward.8} parent=35 // pred_fallthru
          _
      $region36: #{transformer_forward.8} parent=5 // pred_fallthru
        _
      %p399 = scmp.le.s32.totalorder 1, %s18
      %p400 = scmp.lt.s32.totalorder %s18, 3
      %p401 = pnand %p399, %p400
      %p402 = pneg %p401
      // Predicated region
      $region53: #{transformer_forward.8} parent=5 // pred_check
        _
      $region54: #{transformer_forward.8} parent=5 // pred_check_branch
        %404 = sbr.rel (%p401) target = $region56
      $region55: #{transformer_forward.8} parent=5 // pred_region
        %s405 = ssub.s32 %s18, 1
        // Predicated region
        $region57: #{transformer_forward.8} parent=55 // pred_check
          %p406 = pneg %p164
        $region58: #{transformer_forward.8} parent=55 // pred_check_branch
          %408 = sbr.rel (%p406) target = $region60
        $region59: #{transformer_forward.8} parent=55 // pred_region
          %409 = dma.done [#allocation3], 1024
        $region60: #{transformer_forward.8} parent=55 // pred_fallthru
          _
        // Predicated region
        $region61: #{transformer_forward.8} parent=55 // pred_check
          %p410 = pneg %p185
        $region62: #{transformer_forward.8} parent=55 // pred_check_branch
          %412 = sbr.rel (%p410) target = $region64
        $region63: #{transformer_forward.8} parent=55 // pred_region
          %413 = dma.done [#allocation5], 1024
        $region64: #{transformer_forward.8} parent=55 // pred_fallthru
          _
        // Predicated region
        $region65: #{transformer_forward.8} parent=55 // pred_check
          %p414 = pneg %p206
        $region66: #{transformer_forward.8} parent=55 // pred_check_branch
          %416 = sbr.rel (%p414) target = $region68
        $region67: #{transformer_forward.8} parent=55 // pred_region
          %417 = dma.done [#allocation5], 16
        $region68: #{transformer_forward.8} parent=55 // pred_fallthru
          _
        // Predicated region
        $region69: #{transformer_forward.8} parent=55 // pred_check
          %p418 = pneg %p227
        $region70: #{transformer_forward.8} parent=55 // pred_check_branch
          %420 = sbr.rel (%p418) target = $region72
        $region71: #{transformer_forward.8} parent=55 // pred_region
          %421 = dma.done [#allocation8], 16
        $region72: #{transformer_forward.8} parent=55 // pred_fallthru
          _
        // Predicated region
        $region73: #{transformer_forward.8} parent=55 // pred_check
          %p422 = pneg %p248
        $region74: #{transformer_forward.8} parent=55 // pred_check_branch
          %424 = sbr.rel (%p422) target = $region76
        $region75: #{transformer_forward.8} parent=55 // pred_region
          %425 = dma.done [#allocation8], 16
        $region76: #{transformer_forward.8} parent=55 // pred_fallthru
          _
        %s426 = smul.u32 8, %s28
        %p427 = scmp.lt.s32.totalorder %s27, 1
        %s428 = scalar_select %p427, %s27, 1
        %p429 = scmp.lt.s32.totalorder %s426, 7
        %s430 = scalar_select %p429, %s426, 7
        %s431 = smul.addr %s428, 8
        %s432 = sadd.s32 %s430, %s431
        %s433 = smul.addr %s432, 8
        %s434 = scalar_lea.vmem %s0, %s433
        %p435 = pneg %p58
        %p436 = pneg %p55
        %s437 = smul.u32 8, %s28
        %p438 = scmp.lt.s32.totalorder %s27, 1
        %s439 = scalar_select %p438, %s27, 1
        %p440 = scmp.lt.s32.totalorder %s437, 7
        %s441 = scalar_select %p440, %s437, 7
        %s442 = smul.addr %s439, 16
        %s443 = sadd.s32 %s441, %s442
        %s444 = smul.addr %s443, 4
        %s445 = scalar_lea.vmem %s1, %s444
        %p446 = pneg %p86
        %p447 = pneg %p83
        %p448 = scmp.lt.s32.totalorder %s27, 1
        %s449 = scalar_select %p448, %s27, 1
        %s450 = smul.addr %s449, 16
        %s451 = smul.addr %s450, 4
        %s452 = scalar_lea.vmem %s2, %s451
        %p453 = pneg %p112
        %p454 = pneg %p109
        %p455 = scmp.lt.s32.totalorder %s27, 1
        %s456 = scalar_select %p455, %s27, 1
        %s457 = smul.addr %s456, 16
        %s458 = smul.addr %s457, 4
        %s459 = scalar_lea.vmem %s3, %s458
        %p460 = pneg %p138
        %p461 = pneg %p135
        %p462 = pneg %p164
        %p463 = pneg %p161
        %p464 = pneg %p185
        %p465 = pneg %p182
        %p466 = pneg %p206
        %p467 = pneg %p203
        %p468 = pneg %p227
        %p469 = pneg %p224
        %p470 = pneg %p248
        %p471 = pneg %p245
        %p472 = pneg %p276
        %p473 = pneg %p273
        %s474 = smul.u32 8, %s28
        %p475 = scmp.lt.s32.totalorder %s27, 1
        %s476 = scalar_select %p475, %s27, 1
        %p477 = scmp.lt.s32.totalorder %s474, 7
        %s478 = scalar_select %p477, %s474, 7
        %s479 = smul.addr %s476, 8
        %s480 = sadd.s32 %s478, %s479
        %s481 = smul.addr %s480, 8
        %s482 = scalar_lea.vmem %s9, %s481
        %s483 = smul.u32 8, %s28
        %p484 = scmp.lt.s32.totalorder %s27, 1
        %s485 = scalar_select %p484, %s27, 1
        %p486 = scmp.lt.s32.totalorder %s483, 7
        %s487 = scalar_select %p486, %s483, 7
        %s488 = smul.addr %s485, 8
        %s489 = sadd.s32 %s487, %s488
        %s490 = smul.addr %s489, 8
        %s491 = scalar_lea.vmem %s0, %s490
        %s492 = smul.u32 8, %s28
        %s493 = smul.u32 8, %s28
        %p494 = scmp.lt.s32.totalorder %s27, 1
        %s495 = scalar_select %p494, %s27, 1
        %p496 = scmp.lt.s32.totalorder %s493, 7
        %s497 = scalar_select %p496, %s493, 7
        %s498 = smul.addr %s495, 16
        %s499 = sadd.s32 %s497, %s498
        %s500 = smul.addr %s499, 4
        %s501 = scalar_lea.vmem %s1, %s500
        %s502 = smul.u32 8, %s28
        %p503 = scmp.lt.s32.totalorder %s27, 1
        %s504 = scalar_select %p503, %s27, 1
        %s505 = smul.addr %s504, 16
        %s506 = smul.addr %s505, 4
        %s507 = scalar_lea.vmem %s2, %s506
        %p508 = scmp.lt.s32.totalorder %s27, 1
        %s509 = scalar_select %p508, %s27, 1
        %s510 = smul.addr %s509, 16
        %s511 = smul.addr %s510, 4
        %s512 = scalar_lea.vmem %s3, %s511
        %s513 = smul.u32 8, %s28
        %s514 = smul.u32 8, %s28
        %p515 = scmp.lt.s32.totalorder %s27, 1
        %s516 = scalar_select %p515, %s27, 1
        %p517 = scmp.lt.s32.totalorder %s514, 7
        %s518 = scalar_select %p517, %s514, 7
        %s519 = smul.addr %s516, 8
        %s520 = sadd.s32 %s518, %s519
        %s521 = smul.addr %s520, 8
        %s522 = scalar_lea.vmem %s9, %s521
        %s523 = smul.u32 8, %s28
        %v525 = vld [vmem:[%s501] sm:$0xf]
        %v526 = vld [vmem:[%s501 + $0x4] sm:$0xf]
        %v527 = vld [vmem:[%s501 + $0x8] sm:$0xf]
        %v528 = vld [vmem:[%s501 + $0xc] sm:$0xf]
        %v529 = vld [vmem:[%s501 + $0x10] sm:$0xf]
        %v530 = vld [vmem:[%s501 + $0x14] sm:$0xf]
        %v531 = vld [vmem:[%s501 + $0x18] sm:$0xf]
        %v532 = vld [vmem:[%s501 + $0x1c] sm:$0xf]
        %v533 = vld [vmem:[%s501 + $0x20] sm:$0xf]
        %v534 = vld [vmem:[%s501 + $0x24] sm:$0xf]
        %v535 = vld [vmem:[%s501 + $0x28] sm:$0xf]
        %v536 = vld [vmem:[%s501 + $0x2c] sm:$0xf]
        %v537 = vld [vmem:[%s501 + $0x30] sm:$0xf]
        %v538 = vld [vmem:[%s501 + $0x34] sm:$0xf]
        %v539 = vld [vmem:[%s501 + $0x38] sm:$0xf]
        %v540 = vld [vmem:[%s501 + $0x3c] sm:$0xf]
        %v541 = vld [vmem:[%s507] sm:$0xf]
        %v542 = vld [vmem:[%s507 + $0x4] sm:$0xf]
        %v543 = vld [vmem:[%s507 + $0x8] sm:$0xf]
        %v544 = vld [vmem:[%s507 + $0xc] sm:$0xf]
        %v545 = vld [vmem:[%s507 + $0x10] sm:$0xf]
        %v546 = vld [vmem:[%s507 + $0x14] sm:$0xf]
        %v547 = vld [vmem:[%s507 + $0x18] sm:$0xf]
        %v548 = vld [vmem:[%s507 + $0x1c] sm:$0xf]
        %v549 = vld [vmem:[%s507 + $0x20] sm:$0xf]
        %v550 = vld [vmem:[%s507 + $0x24] sm:$0xf]
        %v551 = vld [vmem:[%s507 + $0x28] sm:$0xf]
        %v552 = vld [vmem:[%s507 + $0x2c] sm:$0xf]
        %v553 = vld [vmem:[%s507 + $0x30] sm:$0xf]
        %v554 = vld [vmem:[%s507 + $0x34] sm:$0xf]
        %v555 = vld [vmem:[%s507 + $0x38] sm:$0xf]
        %v556 = vld [vmem:[%s507 + $0x3c] sm:$0xf]
        %v557 = vld [vmem:[%s512] sm:$0xf]
        %v558 = vld [vmem:[%s512 + $0x4] sm:$0xf]
        %v559 = vld [vmem:[%s512 + $0x8] sm:$0xf]
        %v560 = vld [vmem:[%s512 + $0xc] sm:$0xf]
        %v561 = vld [vmem:[%s512 + $0x10] sm:$0xf]
        %v562 = vld [vmem:[%s512 + $0x14] sm:$0xf]
        %v563 = vld [vmem:[%s512 + $0x18] sm:$0xf]
        %v564 = vld [vmem:[%s512 + $0x1c] sm:$0xf]
        %v565 = vld [vmem:[%s512 + $0x20] sm:$0xf]
        %v566 = vld [vmem:[%s512 + $0x24] sm:$0xf]
        %v567 = vld [vmem:[%s512 + $0x28] sm:$0xf]
        %v568 = vld [vmem:[%s512 + $0x2c] sm:$0xf]
        %v569 = vld [vmem:[%s512 + $0x30] sm:$0xf]
        %v570 = vld [vmem:[%s512 + $0x34] sm:$0xf]
        %v571 = vld [vmem:[%s512 + $0x38] sm:$0xf]
        %v572 = vld [vmem:[%s512 + $0x3c] sm:$0xf]
        %v581 = vunpack.c.l.b16 %v525
        %v582 = vunpack.c.l.b16 %v526
        %v583 = vunpack.c.l.b16 %v527
        %v584 = vunpack.c.l.b16 %v528
        %v585 = vunpack.c.l.b16 %v529
        %v586 = vunpack.c.l.b16 %v530
        %v587 = vunpack.c.l.b16 %v531
        %v588 = vunpack.c.l.b16 %v532
        %v589 = vpack.c.b16 %v582, %v581
        %v590 = vpack.c.b16 %v584, %v583
        %v591 = vpack.c.b16 %v586, %v585
        %v592 = vpack.c.b16 %v588, %v587
        %v601 = vunpack.c.l.b16 %v541
        %v602 = vunpack.c.l.b16 %v542
        %v603 = vunpack.c.l.b16 %v543
        %v604 = vunpack.c.l.b16 %v544
        %v605 = vunpack.c.l.b16 %v545
        %v606 = vunpack.c.l.b16 %v546
        %v607 = vunpack.c.l.b16 %v547
        %v608 = vunpack.c.l.b16 %v548
        %v609 = vpack.c.b16 %v602, %v601
        %v610 = vpack.c.b16 %v604, %v603
        %v611 = vpack.c.b16 %v606, %v605
        %v612 = vpack.c.b16 %v608, %v607
        %vm613 = vcmask 523264
        %v615 = vsel %vm613, %v589, 0
        %v618 = vsel %vm613, %v590, 0
        %v621 = vsel %vm613, %v591, 0
        %v624 = vsel %vm613, %v592, 0
        %v627 = vsel %vm613, %v609, 0
        %v630 = vsel %vm613, %v610, 0
        %v633 = vsel %vm613, %v611, 0
        %v636 = vsel %vm613, %v612, 0
        %638 = vmatprep.subr.bf16.mxu0 0
        %639 = vmatpush1.bf16.xpose.msra.mxu0 %v627
        %640 = vmatprep.subr.bf16.mxu0 0
        %641 = vmatpush1.bf16.xpose.msra.mxu0 %v630
        %642 = vmatprep.subr.bf16.mxu0 0
        %643 = vmatpush1.bf16.xpose.msra.mxu0 %v633
        %644 = vmatprep.subr.bf16.mxu0 0
        %645 = vmatpush1.bf16.xpose.msra.mxu0 %v636
        %646 = vmatprep.subr.bf16.mxu0 0
        %647 = vmatpush1.bf16.xpose.msra.mxu0 0
        %648 = vmatprep.subr.bf16.mxu0 0
        %649 = vmatpush1.bf16.xpose.msra.mxu0 0
        %650 = vmatprep.subr.bf16.mxu0 0
        %651 = vmatpush1.bf16.xpose.msra.mxu0 0
        %652 = vmatprep.subr.bf16.mxu0 0
        %653 = vmatpush1.bf16.xpose.msra.mxu0 0
        %654 = vmatprep.subr.bf16.mxu0 0
        %655 = vmatpush1.bf16.xpose.msra.mxu0 0
        %656 = vmatprep.subr.bf16.mxu0 0
        %657 = vmatpush1.bf16.xpose.msra.mxu0 0
        %658 = vmatprep.subr.bf16.mxu0 0
        %659 = vmatpush1.bf16.xpose.msra.mxu0 0
        %660 = vmatprep.subr.bf16.mxu0 0
        %661 = vmatpush1.bf16.xpose.msra.mxu0 0
        %662 = vmatprep.subr.bf16.mxu0 0
        %663 = vmatpush1.bf16.xpose.msra.mxu0 0
        %664 = vmatprep.subr.bf16.mxu0 0
        %665 = vmatpush1.bf16.xpose.msra.mxu0 0
        %666 = vmatprep.subr.bf16.mxu0 0
        %667 = vmatpush1.bf16.xpose.msra.mxu0 0
        %668 = vmatprep.subr.bf16.mxu0 0
        %669 = vmatpush1.bf16.xpose.msra.mxu0 0
        %670 = vmatprep.mubr.bf16.mxu0 0
        %671 = vmatmul.mubr.bf16.gmra.mrb[0].mxu0 %v615
        %v672 = vpop.f32.mrb[0].mxu0
        %v673 = vadd.f32 0.0, %v672
        %v674 = vpop.f32.mrb[0].mxu0
        %v675 = vpop.f32.mrb[0].mxu0
        %v676 = vadd.f32 0.0, %v675
        %v677 = vpop.f32.mrb[0].mxu0
        %678 = vmatprep.mubr.bf16.mxu0 0
        %679 = vmatmul.mubr.bf16.gmra.mrb[0].mxu0 %v618
        %v680 = vpop.f32.mrb[0].mxu0
        %v681 = vadd.f32 0.0, %v680
        %v682 = vpop.f32.mrb[0].mxu0
        %v683 = vpop.f32.mrb[0].mxu0
        %v684 = vadd.f32 0.0, %v683
        %v685 = vpop.f32.mrb[0].mxu0
        %686 = vmatprep.mubr.bf16.mxu0 0
        %687 = vmatmul.mubr.bf16.gmra.mrb[0].mxu0 %v621
        %v688 = vpop.f32.mrb[0].mxu0
        %v689 = vadd.f32 0.0, %v688
        %v690 = vpop.f32.mrb[0].mxu0
        %v691 = vpop.f32.mrb[0].mxu0
        %v692 = vadd.f32 0.0, %v691
        %v693 = vpop.f32.mrb[0].mxu0
        %694 = vmatprep.mubr.bf16.mxu0 0
        %695 = vmatmul.mubr.bf16.gmra.mrb[0].mxu0 %v624
        %v696 = vpop.f32.mrb[0].mxu0
        %v697 = vadd.f32 0.0, %v696
        %v698 = vpop.f32.mrb[0].mxu0
        %v699 = vpop.f32.mrb[0].mxu0
        %v700 = vadd.f32 0.0, %v699
        %v701 = vpop.f32.mrb[0].mxu0
        %702 = vdwg.mxu0
        %v711 = vunpack.c.l.b16 %v533
        %v712 = vunpack.c.l.b16 %v534
        %v713 = vunpack.c.l.b16 %v535
        %v714 = vunpack.c.l.b16 %v536
        %v715 = vunpack.c.l.b16 %v537
        %v716 = vunpack.c.l.b16 %v538
        %v717 = vunpack.c.l.b16 %v539
        %v718 = vunpack.c.l.b16 %v540
        %v719 = vpack.c.b16 %v712, %v711
        %v720 = vpack.c.b16 %v714, %v713
        %v721 = vpack.c.b16 %v716, %v715
        %v722 = vpack.c.b16 %v718, %v717
        %v731 = vunpack.c.l.b16 %v549
        %v732 = vunpack.c.l.b16 %v550
        %v733 = vunpack.c.l.b16 %v551
        %v734 = vunpack.c.l.b16 %v552
        %v735 = vunpack.c.l.b16 %v553
        %v736 = vunpack.c.l.b16 %v554
        %v737 = vunpack.c.l.b16 %v555
        %v738 = vunpack.c.l.b16 %v556
        %v739 = vpack.c.b16 %v732, %v731
        %v740 = vpack.c.b16 %v734, %v733
        %v741 = vpack.c.b16 %v736, %v735
        %v742 = vpack.c.b16 %v738, %v737
        %v744 = vsel %vm613, %v719, 0
        %v747 = vsel %vm613, %v720, 0
        %v750 = vsel %vm613, %v721, 0
        %v753 = vsel %vm613, %v722, 0
        %v756 = vsel %vm613, %v739, 0
        %v759 = vsel %vm613, %v740, 0
        %v762 = vsel %vm613, %v741, 0
        %v765 = vsel %vm613, %v742, 0
        %767 = vmatprep.subr.bf16.mxu0 0
        %768 = vmatpush1.bf16.xpose.msra.mxu0 %v756
        %769 = vmatprep.subr.bf16.mxu0 0
        %770 = vmatpush1.bf16.xpose.msra.mxu0 %v759
        %771 = vmatprep.subr.bf16.mxu0 0
        %772 = vmatpush1.bf16.xpose.msra.mxu0 %v762
        %773 = vmatprep.subr.bf16.mxu0 0
        %774 = vmatpush1.bf16.xpose.msra.mxu0 %v765
        %775 = vmatprep.subr.bf16.mxu0 0
        %776 = vmatpush1.bf16.xpose.msra.mxu0 0
        %777 = vmatprep.subr.bf16.mxu0 0
        %778 = vmatpush1.bf16.xpose.msra.mxu0 0
        %779 = vmatprep.subr.bf16.mxu0 0
        %780 = vmatpush1.bf16.xpose.msra.mxu0 0
        %781 = vmatprep.subr.bf16.mxu0 0
        %782 = vmatpush1.bf16.xpose.msra.mxu0 0
        %783 = vmatprep.subr.bf16.mxu0 0
        %784 = vmatpush1.bf16.xpose.msra.mxu0 0
        %785 = vmatprep.subr.bf16.mxu0 0
        %786 = vmatpush1.bf16.xpose.msra.mxu0 0
        %787 = vmatprep.subr.bf16.mxu0 0
        %788 = vmatpush1.bf16.xpose.msra.mxu0 0
        %789 = vmatprep.subr.bf16.mxu0 0
        %790 = vmatpush1.bf16.xpose.msra.mxu0 0
        %791 = vmatprep.subr.bf16.mxu0 0
        %792 = vmatpush1.bf16.xpose.msra.mxu0 0
        %793 = vmatprep.subr.bf16.mxu0 0
        %794 = vmatpush1.bf16.xpose.msra.mxu0 0
        %795 = vmatprep.subr.bf16.mxu0 0
        %796 = vmatpush1.bf16.xpose.msra.mxu0 0
        %797 = vmatprep.subr.bf16.mxu0 0
        %798 = vmatpush1.bf16.xpose.msra.mxu0 0
        %799 = vmatprep.mubr.bf16.mxu0 0
        %800 = vmatmul.mubr.bf16.gmra.mrb[0].mxu0 %v744
        %v801 = vpop.f32.mrb[0].mxu0
        %v802 = vadd.f32 0.0, %v801
        %v803 = vpop.f32.mrb[0].mxu0
        %v804 = vpop.f32.mrb[0].mxu0
        %v805 = vadd.f32 0.0, %v804
        %v806 = vpop.f32.mrb[0].mxu0
        %807 = vmatprep.mubr.bf16.mxu0 0
        %808 = vmatmul.mubr.bf16.gmra.mrb[0].mxu0 %v747
        %v809 = vpop.f32.mrb[0].mxu0
        %v810 = vadd.f32 0.0, %v809
        %v811 = vpop.f32.mrb[0].mxu0
        %v812 = vpop.f32.mrb[0].mxu0
        %v813 = vadd.f32 0.0, %v812
        %v814 = vpop.f32.mrb[0].mxu0
        %815 = vmatprep.mubr.bf16.mxu0 0
        %816 = vmatmul.mubr.bf16.gmra.mrb[0].mxu0 %v750
        %v817 = vpop.f32.mrb[0].mxu0
        %v818 = vadd.f32 0.0, %v817
        %v819 = vpop.f32.mrb[0].mxu0
        %v820 = vpop.f32.mrb[0].mxu0
        %v821 = vadd.f32 0.0, %v820
        %v822 = vpop.f32.mrb[0].mxu0
        %823 = vmatprep.mubr.bf16.mxu0 0
        %824 = vmatmul.mubr.bf16.gmra.mrb[0].mxu0 %v753
        %v825 = vpop.f32.mrb[0].mxu0
        %v826 = vadd.f32 0.0, %v825
        %v827 = vpop.f32.mrb[0].mxu0
        %v828 = vpop.f32.mrb[0].mxu0
        %v829 = vadd.f32 0.0, %v828
        %v830 = vpop.f32.mrb[0].mxu0
        %831 = vdwg.mxu0
        %v832 = vmul.f32 %v673, 0.125
        %v833 = vmul.f32 %v676, 0.125
        %v834 = vmul.f32 %v681, 0.125
        %v835 = vmul.f32 %v684, 0.125
        %v836 = vmul.f32 %v689, 0.125
        %v837 = vmul.f32 %v692, 0.125
        %v838 = vmul.f32 %v697, 0.125
        %v839 = vmul.f32 %v700, 0.125
        %v840 = vmul.f32 %v802, 0.125
        %v841 = vmul.f32 %v805, 0.125
        %v842 = vmul.f32 %v810, 0.125
        %v843 = vmul.f32 %v813, 0.125
        %v844 = vmul.f32 %v818, 0.125
        %v845 = vmul.f32 %v821, 0.125
        %v846 = vmul.f32 %v826, 0.125
        %v847 = vmul.f32 %v829, 0.125
        %v848 = vld [vmem:[#allocation2] sm:$0xff]
        %v849 = vld [vmem:[#allocation2 + $0x8] sm:$0xff]
        %v850 = vld [vmem:[#allocation2 + $0x10] sm:$0xff]
        %v851 = vld [vmem:[#allocation2 + $0x18] sm:$0xff]
        %v852 = vld [vmem:[#allocation2 + $0x20] sm:$0xff]
        %v853 = vld [vmem:[#allocation2 + $0x28] sm:$0xff]
        %v854 = vld [vmem:[#allocation2 + $0x30] sm:$0xff]
        %v855 = vld [vmem:[#allocation2 + $0x38] sm:$0xff]
        %v856 = vmax.f32 %v848, -1e+30
        %v857 = vmax.f32 %v849, -1e+30
        %v858 = vmax.f32 %v850, -1e+30
        %v859 = vmax.f32 %v851, -1e+30
        %v860 = vmax.f32 %v852, -1e+30
        %v861 = vmax.f32 %v853, -1e+30
        %v862 = vmax.f32 %v854, -1e+30
        %v863 = vmax.f32 %v855, -1e+30
        %v864 = vadd.f32 %v832, %v856
        %v865 = vadd.f32 %v833, %v857
        %v866 = vadd.f32 %v834, %v858
        %v867 = vadd.f32 %v835, %v859
        %v868 = vadd.f32 %v836, %v860
        %v869 = vadd.f32 %v837, %v861
        %v870 = vadd.f32 %v838, %v862
        %v871 = vadd.f32 %v839, %v863
        %v872 = vadd.f32 %v840, %v856
        %v873 = vadd.f32 %v841, %v857
        %v874 = vadd.f32 %v842, %v858
        %v875 = vadd.f32 %v843, %v859
        %v876 = vadd.f32 %v844, %v860
        %v877 = vadd.f32 %v845, %v861
        %v878 = vadd.f32 %v846, %v862
        %v879 = vadd.f32 %v847, %v863
        %v880 = vsel %vm613, %v864, -inf
        %881 = vmax.xlane.f32.xlu0 %v880
        %v882 = vpop.xlane.xlu0 %881
        %v883 = vsel %vm613, %v865, -inf
        %884 = vmax.xlane.f32.xlu0 %v883
        %v885 = vpop.xlane.xlu0 %884
        %v886 = vsel %vm613, %v866, -inf
        %887 = vmax.xlane.f32.xlu0 %v886
        %v888 = vpop.xlane.xlu0 %887
        %v889 = vsel %vm613, %v867, -inf
        %890 = vmax.xlane.f32.xlu0 %v889
        %v891 = vpop.xlane.xlu0 %890
        %v892 = vsel %vm613, %v868, -inf
        %893 = vmax.xlane.f32.xlu0 %v892
        %v894 = vpop.xlane.xlu0 %893
        %v895 = vsel %vm613, %v869, -inf
        %896 = vmax.xlane.f32.xlu0 %v895
        %v897 = vpop.xlane.xlu0 %896
        %v898 = vsel %vm613, %v870, -inf
        %899 = vmax.xlane.f32.xlu0 %v898
        %v900 = vpop.xlane.xlu0 %899
        %v901 = vsel %vm613, %v871, -inf
        %902 = vmax.xlane.f32.xlu0 %v901
        %v903 = vpop.xlane.xlu0 %902
        %v904 = vsel %vm613, %v872, -inf
        %905 = vmax.xlane.f32.xlu0 %v904
        %v906 = vpop.xlane.xlu0 %905
        %v907 = vsel %vm613, %v873, -inf
        %908 = vmax.xlane.f32.xlu0 %v907
        %v909 = vpop.xlane.xlu0 %908
        %v910 = vsel %vm613, %v874, -inf
        %911 = vmax.xlane.f32.xlu0 %v910
        %v912 = vpop.xlane.xlu0 %911
        %v913 = vsel %vm613, %v875, -inf
        %914 = vmax.xlane.f32.xlu0 %v913
        %v915 = vpop.xlane.xlu0 %914
        %v916 = vsel %vm613, %v876, -inf
        %917 = vmax.xlane.f32.xlu0 %v916
        %v918 = vpop.xlane.xlu0 %917
        %v919 = vsel %vm613, %v877, -inf
        %920 = vmax.xlane.f32.xlu0 %v919
        %v921 = vpop.xlane.xlu0 %920
        %v922 = vsel %vm613, %v878, -inf
        %923 = vmax.xlane.f32.xlu0 %v922
        %v924 = vpop.xlane.xlu0 %923
        %v925 = vsel %vm613, %v879, -inf
        %926 = vmax.xlane.f32.xlu0 %v925
        %v927 = vpop.xlane.xlu0 %926
        %v928 = vsub.f32 %v864, %v882
        %v929 = vsub.f32 %v865, %v885
        %v930 = vsub.f32 %v866, %v888
        %v931 = vsub.f32 %v867, %v891
        %v932 = vsub.f32 %v868, %v894
        %v933 = vsub.f32 %v869, %v897
        %v934 = vsub.f32 %v870, %v900
        %v935 = vsub.f32 %v871, %v903
        %v936 = vsub.f32 %v872, %v906
        %v937 = vsub.f32 %v873, %v909
        %v938 = vsub.f32 %v874, %v912
        %v939 = vsub.f32 %v875, %v915
        %v940 = vsub.f32 %v876, %v918
        %v941 = vsub.f32 %v877, %v921
        %v942 = vsub.f32 %v878, %v924
        %v943 = vsub.f32 %v879, %v927
        %v944 = vmul.f32 %v928, 1.442695
        %v945 = vpow.pop %v944
        %v946 = vmul.f32 %v929, 1.442695
        %v947 = vpow.pop %v946
        %v948 = vmul.f32 %v930, 1.442695
        %v949 = vpow.pop %v948
        %v950 = vmul.f32 %v931, 1.442695
        %v951 = vpow.pop %v950
        %v952 = vmul.f32 %v932, 1.442695
        %v953 = vpow.pop %v952
        %v954 = vmul.f32 %v933, 1.442695
        %v955 = vpow.pop %v954
        %v956 = vmul.f32 %v934, 1.442695
        %v957 = vpow.pop %v956
        %v958 = vmul.f32 %v935, 1.442695
        %v959 = vpow.pop %v958
        %v960 = vmul.f32 %v936, 1.442695
        %v961 = vpow.pop %v960
        %v962 = vmul.f32 %v937, 1.442695
        %v963 = vpow.pop %v962
        %v964 = vmul.f32 %v938, 1.442695
        %v965 = vpow.pop %v964
        %v966 = vmul.f32 %v939, 1.442695
        %v967 = vpow.pop %v966
        %v968 = vmul.f32 %v940, 1.442695
        %v969 = vpow.pop %v968
        %v970 = vmul.f32 %v941, 1.442695
        %v971 = vpow.pop %v970
        %v972 = vmul.f32 %v942, 1.442695
        %v973 = vpow.pop %v972
        %v974 = vmul.f32 %v943, 1.442695
        %v975 = vpow.pop %v974
        %v976 = vsel %vm613, %v945, 0.0
        %977 = vadd.xlane.f32.xlu0 %v976
        %v978 = vpop.xlane.xlu0 %977
        %v979 = vsel %vm613, %v947, 0.0
        %980 = vadd.xlane.f32.xlu0 %v979
        %v981 = vpop.xlane.xlu0 %980
        %v982 = vsel %vm613, %v949, 0.0
        %983 = vadd.xlane.f32.xlu0 %v982
        %v984 = vpop.xlane.xlu0 %983
        %v985 = vsel %vm613, %v951, 0.0
        %986 = vadd.xlane.f32.xlu0 %v985
        %v987 = vpop.xlane.xlu0 %986
        %v988 = vsel %vm613, %v953, 0.0
        %989 = vadd.xlane.f32.xlu0 %v988
        %v990 = vpop.xlane.xlu0 %989
        %v991 = vsel %vm613, %v955, 0.0
        %992 = vadd.xlane.f32.xlu0 %v991
        %v993 = vpop.xlane.xlu0 %992
        %v994 = vsel %vm613, %v957, 0.0
        %995 = vadd.xlane.f32.xlu0 %v994
        %v996 = vpop.xlane.xlu0 %995
        %v997 = vsel %vm613, %v959, 0.0
        %998 = vadd.xlane.f32.xlu0 %v997
        %v999 = vpop.xlane.xlu0 %998
        %v1000 = vsel %vm613, %v961, 0.0
        %1001 = vadd.xlane.f32.xlu0 %v1000
        %v1002 = vpop.xlane.xlu0 %1001
        %v1003 = vsel %vm613, %v963, 0.0
        %1004 = vadd.xlane.f32.xlu0 %v1003
        %v1005 = vpop.xlane.xlu0 %1004
        %v1006 = vsel %vm613, %v965, 0.0
        %1007 = vadd.xlane.f32.xlu0 %v1006
        %v1008 = vpop.xlane.xlu0 %1007
        %v1009 = vsel %vm613, %v967, 0.0
        %1010 = vadd.xlane.f32.xlu0 %v1009
        %v1011 = vpop.xlane.xlu0 %1010
        %v1012 = vsel %vm613, %v969, 0.0
        %1013 = vadd.xlane.f32.xlu0 %v1012
        %v1014 = vpop.xlane.xlu0 %1013
        %v1015 = vsel %vm613, %v971, 0.0
        %1016 = vadd.xlane.f32.xlu0 %v1015
        %v1017 = vpop.xlane.xlu0 %1016
        %v1018 = vsel %vm613, %v973, 0.0
        %1019 = vadd.xlane.f32.xlu0 %v1018
        %v1020 = vpop.xlane.xlu0 %1019
        %v1021 = vsel %vm613, %v975, 0.0
        %1022 = vadd.xlane.f32.xlu0 %v1021
        %v1023 = vpop.xlane.xlu0 %1022
        %v1024 = vrcp.pop %v978
        %v1025 = vrcp.pop %v981
        %v1026 = vrcp.pop %v984
        %v1027 = vrcp.pop %v987
        %v1028 = vrcp.pop %v990
        %v1029 = vrcp.pop %v993
        %v1030 = vrcp.pop %v996
        %v1031 = vrcp.pop %v999
        %v1032 = vrcp.pop %v1002
        %v1033 = vrcp.pop %v1005
        %v1034 = vrcp.pop %v1008
        %v1035 = vrcp.pop %v1011
        %v1036 = vrcp.pop %v1014
        %v1037 = vrcp.pop %v1017
        %v1038 = vrcp.pop %v1020
        %v1039 = vrcp.pop %v1023
        %v1040 = vmul.f32 %v945, %v1024
        %v1041 = vmul.f32 %v947, %v1025
        %v1042 = vmul.f32 %v949, %v1026
        %v1043 = vmul.f32 %v951, %v1027
        %v1044 = vmul.f32 %v953, %v1028
        %v1045 = vmul.f32 %v955, %v1029
        %v1046 = vmul.f32 %v957, %v1030
        %v1047 = vmul.f32 %v959, %v1031
        %v1048 = vmul.f32 %v961, %v1032
        %v1049 = vmul.f32 %v963, %v1033
        %v1050 = vmul.f32 %v965, %v1034
        %v1051 = vmul.f32 %v967, %v1035
        %v1052 = vmul.f32 %v969, %v1036
        %v1053 = vmul.f32 %v971, %v1037
        %v1054 = vmul.f32 %v973, %v1038
        %v1055 = vmul.f32 %v975, %v1039
        %v1056 = vpack.c.bf16 %v1041, %v1040
        %v1057 = vpack.c.bf16 %v1043, %v1042
        %v1058 = vpack.c.bf16 %v1045, %v1044
        %v1059 = vpack.c.bf16 %v1047, %v1046
        %v1060 = vpack.c.bf16 %v1049, %v1048
        %v1061 = vpack.c.bf16 %v1051, %v1050
        %v1062 = vpack.c.bf16 %v1053, %v1052
        %v1063 = vpack.c.bf16 %v1055, %v1054
        %v1072 = vunpack.c.l.b16 %v557
        %v1073 = vunpack.c.l.b16 %v558
        %v1074 = vunpack.c.l.b16 %v559
        %v1075 = vunpack.c.l.b16 %v560
        %v1076 = vunpack.c.l.b16 %v561
        %v1077 = vunpack.c.l.b16 %v562
        %v1078 = vunpack.c.l.b16 %v563
        %v1079 = vunpack.c.l.b16 %v564
        %v1080 = vpack.c.b16 %v1073, %v1072
        %v1081 = vpack.c.b16 %v1075, %v1074
        %v1082 = vpack.c.b16 %v1077, %v1076
        %v1083 = vpack.c.b16 %v1079, %v1078
        %v1089 = vsel %vm613, %v1056, 0
        %v1092 = vsel %vm613, %v1057, 0
        %v1095 = vsel %vm613, %v1058, 0
        %v1098 = vsel %vm613, %v1059, 0
        %1100 = vmatprep.subr.bf16.mxu0 0
        %1101 = vmatpush1.bf16.msra.mxu0 %v1080
        %1102 = vmatprep.subr.bf16.mxu0 0
        %1103 = vmatpush1.bf16.msra.mxu0 %v1081
        %1104 = vmatprep.subr.bf16.mxu0 0
        %1105 = vmatpush1.bf16.msra.mxu0 %v1082
        %1106 = vmatprep.subr.bf16.mxu0 0
        %1107 = vmatpush1.bf16.msra.mxu0 %v1083
        %1108 = vmatprep.subr.bf16.mxu0 0
        %1109 = vmatpush1.bf16.msra.mxu0 0
        %1110 = vmatprep.subr.bf16.mxu0 0
        %1111 = vmatpush1.bf16.msra.mxu0 0
        %1112 = vmatprep.subr.bf16.mxu0 0
        %1113 = vmatpush1.bf16.msra.mxu0 0
        %1114 = vmatprep.subr.bf16.mxu0 0
        %1115 = vmatpush1.bf16.msra.mxu0 0
        %1116 = vmatprep.subr.bf16.mxu0 0
        %1117 = vmatpush1.bf16.msra.mxu0 0
        %1118 = vmatprep.subr.bf16.mxu0 0
        %1119 = vmatpush1.bf16.msra.mxu0 0
        %1120 = vmatprep.subr.bf16.mxu0 0
        %1121 = vmatpush1.bf16.msra.mxu0 0
        %1122 = vmatprep.subr.bf16.mxu0 0
        %1123 = vmatpush1.bf16.msra.mxu0 0
        %1124 = vmatprep.subr.bf16.mxu0 0
        %1125 = vmatpush1.bf16.msra.mxu0 0
        %1126 = vmatprep.subr.bf16.mxu0 0
        %1127 = vmatpush1.bf16.msra.mxu0 0
        %1128 = vmatprep.subr.bf16.mxu0 0
        %1129 = vmatpush1.bf16.msra.mxu0 0
        %1130 = vmatprep.subr.bf16.mxu0 0
        %1131 = vmatpush1.bf16.msra.mxu0 0
        %1132 = vmatprep.mubr.bf16.mxu0 0
        %1133 = vmatmul.mubr.bf16.gmra.mrb[0].mxu0 %v1089
        %v1134 = vpop.f32.mrb[0].mxu0
        %v1135 = vadd.f32 0.0, %v1134
        %v1136 = vpop.f32.mrb[0].mxu0
        %v1137 = vpop.f32.mrb[0].mxu0
        %v1138 = vadd.f32 0.0, %v1137
        %v1139 = vpop.f32.mrb[0].mxu0
        %1140 = vmatprep.mubr.bf16.mxu0 0
        %1141 = vmatmul.mubr.bf16.gmra.mrb[0].mxu0 %v1092
        %v1142 = vpop.f32.mrb[0].mxu0
        %v1143 = vadd.f32 0.0, %v1142
        %v1144 = vpop.f32.mrb[0].mxu0
        %v1145 = vpop.f32.mrb[0].mxu0
        %v1146 = vadd.f32 0.0, %v1145
        %v1147 = vpop.f32.mrb[0].mxu0
        %1148 = vmatprep.mubr.bf16.mxu0 0
        %1149 = vmatmul.mubr.bf16.gmra.mrb[0].mxu0 %v1095
        %v1150 = vpop.f32.mrb[0].mxu0
        %v1151 = vadd.f32 0.0, %v1150
        %v1152 = vpop.f32.mrb[0].mxu0
        %v1153 = vpop.f32.mrb[0].mxu0
        %v1154 = vadd.f32 0.0, %v1153
        %v1155 = vpop.f32.mrb[0].mxu0
        %1156 = vmatprep.mubr.bf16.mxu0 0
        %1157 = vmatmul.mubr.bf16.gmra.mrb[0].mxu0 %v1098
        %v1158 = vpop.f32.mrb[0].mxu0
        %v1159 = vadd.f32 0.0, %v1158
        %v1160 = vpop.f32.mrb[0].mxu0
        %v1161 = vpop.f32.mrb[0].mxu0
        %v1162 = vadd.f32 0.0, %v1161
        %v1163 = vpop.f32.mrb[0].mxu0
        %1164 = vdwg.mxu0
        %v1173 = vunpack.c.l.b16 %v565
        %v1174 = vunpack.c.l.b16 %v566
        %v1175 = vunpack.c.l.b16 %v567
        %v1176 = vunpack.c.l.b16 %v568
        %v1177 = vunpack.c.l.b16 %v569
        %v1178 = vunpack.c.l.b16 %v570
        %v1179 = vunpack.c.l.b16 %v571
        %v1180 = vunpack.c.l.b16 %v572
        %v1181 = vpack.c.b16 %v1174, %v1173
        %v1182 = vpack.c.b16 %v1176, %v1175
        %v1183 = vpack.c.b16 %v1178, %v1177
        %v1184 = vpack.c.b16 %v1180, %v1179
        %v1190 = vsel %vm613, %v1060, 0
        %v1193 = vsel %vm613, %v1061, 0
        %v1196 = vsel %vm613, %v1062, 0
        %v1199 = vsel %vm613, %v1063, 0
        %1201 = vmatprep.subr.bf16.mxu0 0
        %1202 = vmatpush1.bf16.msra.mxu0 %v1181
        %1203 = vmatprep.subr.bf16.mxu0 0
        %1204 = vmatpush1.bf16.msra.mxu0 %v1182
        %1205 = vmatprep.subr.bf16.mxu0 0
        %1206 = vmatpush1.bf16.msra.mxu0 %v1183
        %1207 = vmatprep.subr.bf16.mxu0 0
        %1208 = vmatpush1.bf16.msra.mxu0 %v1184
        %1209 = vmatprep.subr.bf16.mxu0 0
        %1210 = vmatpush1.bf16.msra.mxu0 0
        %1211 = vmatprep.subr.bf16.mxu0 0
        %1212 = vmatpush1.bf16.msra.mxu0 0
        %1213 = vmatprep.subr.bf16.mxu0 0
        %1214 = vmatpush1.bf16.msra.mxu0 0
        %1215 = vmatprep.subr.bf16.mxu0 0
        %1216 = vmatpush1.bf16.msra.mxu0 0
        %1217 = vmatprep.subr.bf16.mxu0 0
        %1218 = vmatpush1.bf16.msra.mxu0 0
        %1219 = vmatprep.subr.bf16.mxu0 0
        %1220 = vmatpush1.bf16.msra.mxu0 0
        %1221 = vmatprep.subr.bf16.mxu0 0
        %1222 = vmatpush1.bf16.msra.mxu0 0
        %1223 = vmatprep.subr.bf16.mxu0 0
        %1224 = vmatpush1.bf16.msra.mxu0 0
        %1225 = vmatprep.subr.bf16.mxu0 0
        %1226 = vmatpush1.bf16.msra.mxu0 0
        %1227 = vmatprep.subr.bf16.mxu0 0
        %1228 = vmatpush1.bf16.msra.mxu0 0
        %1229 = vmatprep.subr.bf16.mxu0 0
        %1230 = vmatpush1.bf16.msra.mxu0 0
        %1231 = vmatprep.subr.bf16.mxu0 0
        %1232 = vmatpush1.bf16.msra.mxu0 0
        %1233 = vmatprep.mubr.bf16.mxu0 0
        %1234 = vmatmul.mubr.bf16.gmra.mrb[0].mxu0 %v1190
        %v1235 = vpop.f32.mrb[0].mxu0
        %v1236 = vadd.f32 0.0, %v1235
        %v1237 = vpop.f32.mrb[0].mxu0
        %v1238 = vpop.f32.mrb[0].mxu0
        %v1239 = vadd.f32 0.0, %v1238
        %v1240 = vpop.f32.mrb[0].mxu0
        %1241 = vmatprep.mubr.bf16.mxu0 0
        %1242 = vmatmul.mubr.bf16.gmra.mrb[0].mxu0 %v1193
        %v1243 = vpop.f32.mrb[0].mxu0
        %v1244 = vadd.f32 0.0, %v1243
        %v1245 = vpop.f32.mrb[0].mxu0
        %v1246 = vpop.f32.mrb[0].mxu0
        %v1247 = vadd.f32 0.0, %v1246
        %v1248 = vpop.f32.mrb[0].mxu0
        %1249 = vmatprep.mubr.bf16.mxu0 0
        %1250 = vmatmul.mubr.bf16.gmra.mrb[0].mxu0 %v1196
        %v1251 = vpop.f32.mrb[0].mxu0
        %v1252 = vadd.f32 0.0, %v1251
        %v1253 = vpop.f32.mrb[0].mxu0
        %v1254 = vpop.f32.mrb[0].mxu0
        %v1255 = vadd.f32 0.0, %v1254
        %v1256 = vpop.f32.mrb[0].mxu0
        %1257 = vmatprep.mubr.bf16.mxu0 0
        %1258 = vmatmul.mubr.bf16.gmra.mrb[0].mxu0 %v1199
        %v1259 = vpop.f32.mrb[0].mxu0
        %v1260 = vadd.f32 0.0, %v1259
        %v1261 = vpop.f32.mrb[0].mxu0
        %v1262 = vpop.f32.mrb[0].mxu0
        %v1263 = vadd.f32 0.0, %v1262
        %v1264 = vpop.f32.mrb[0].mxu0
        %1265 = vdwg.mxu0
        %v1266 = vld [vmem:[#allocation4] sm:$0xf]
        %v1267 = vld [vmem:[#allocation4 + $0x4] sm:$0xf]
        %v1268 = vld [vmem:[#allocation4 + $0x8] sm:$0xf]
        %v1269 = vld [vmem:[#allocation4 + $0xc] sm:$0xf]
        %v1270 = vld [vmem:[#allocation4 + $0x10] sm:$0xf]
        %v1271 = vld [vmem:[#allocation4 + $0x14] sm:$0xf]
        %v1272 = vld [vmem:[#allocation4 + $0x18] sm:$0xf]
        %v1273 = vld [vmem:[#allocation4 + $0x1c] sm:$0xf]
        %v1274 = vld [vmem:[#allocation4 + $0x20] sm:$0xf]
        %v1275 = vld [vmem:[#allocation4 + $0x24] sm:$0xf]
        %v1276 = vld [vmem:[#allocation4 + $0x28] sm:$0xf]
        %v1277 = vld [vmem:[#allocation4 + $0x2c] sm:$0xf]
        %v1278 = vld [vmem:[#allocation4 + $0x30] sm:$0xf]
        %v1279 = vld [vmem:[#allocation4 + $0x34] sm:$0xf]
        %v1280 = vld [vmem:[#allocation4 + $0x38] sm:$0xf]
        %v1281 = vld [vmem:[#allocation4 + $0x3c] sm:$0xf]
        %v1282 = vpack.c.bf16 %v1138, %v1135
        %v1283 = vpack.c.bf16 %v1146, %v1143
        %v1284 = vpack.c.bf16 %v1154, %v1151
        %v1285 = vpack.c.bf16 %v1162, %v1159
        %v1286 = vpack.c.bf16 %v1239, %v1236
        %v1287 = vpack.c.bf16 %v1247, %v1244
        %v1288 = vpack.c.bf16 %v1255, %v1252
        %v1289 = vpack.c.bf16 %v1263, %v1260
        %v1298 = vunpack.c.l.b16 %v1274
        %v1299 = vunpack.c.l.b16 %v1275
        %v1300 = vunpack.c.l.b16 %v1276
        %v1301 = vunpack.c.l.b16 %v1277
        %v1302 = vunpack.c.l.b16 %v1278
        %v1303 = vunpack.c.l.b16 %v1279
        %v1304 = vunpack.c.l.b16 %v1280
        %v1305 = vunpack.c.l.b16 %v1281
        %v1306 = vpack.c.b16 %v1299, %v1298
        %v1307 = vpack.c.b16 %v1301, %v1300
        %v1308 = vpack.c.b16 %v1303, %v1302
        %v1309 = vpack.c.b16 %v1305, %v1304
        %v1315 = vsel %vm613, %v1286, 0
        %v1318 = vsel %vm613, %v1287, 0
        %v1321 = vsel %vm613, %v1288, 0
        %v1324 = vsel %vm613, %v1289, 0
        %1326 = vmatprep.subr.bf16.mxu0 0
        %1327 = vmatpush1.bf16.msra.mxu0 %v1306
        %1328 = vmatprep.subr.bf16.mxu0 0
        %1329 = vmatpush1.bf16.msra.mxu0 %v1307
        %1330 = vmatprep.subr.bf16.mxu0 0
        %1331 = vmatpush1.bf16.msra.mxu0 %v1308
        %1332 = vmatprep.subr.bf16.mxu0 0
        %1333 = vmatpush1.bf16.msra.mxu0 %v1309
        %1334 = vmatprep.subr.bf16.mxu0 0
        %1335 = vmatpush1.bf16.msra.mxu0 0
        %1336 = vmatprep.subr.bf16.mxu0 0
        %1337 = vmatpush1.bf16.msra.mxu0 0
        %1338 = vmatprep.subr.bf16.mxu0 0
        %1339 = vmatpush1.bf16.msra.mxu0 0
        %1340 = vmatprep.subr.bf16.mxu0 0
        %1341 = vmatpush1.bf16.msra.mxu0 0
        %1342 = vmatprep.subr.bf16.mxu0 0
        %1343 = vmatpush1.bf16.msra.mxu0 0
        %1344 = vmatprep.subr.bf16.mxu0 0
        %1345 = vmatpush1.bf16.msra.mxu0 0
        %1346 = vmatprep.subr.bf16.mxu0 0
        %1347 = vmatpush1.bf16.msra.mxu0 0
        %1348 = vmatprep.subr.bf16.mxu0 0
        %1349 = vmatpush1.bf16.msra.mxu0 0
        %1350 = vmatprep.subr.bf16.mxu0 0
        %1351 = vmatpush1.bf16.msra.mxu0 0
        %1352 = vmatprep.subr.bf16.mxu0 0
        %1353 = vmatpush1.bf16.msra.mxu0 0
        %1354 = vmatprep.subr.bf16.mxu0 0
        %1355 = vmatpush1.bf16.msra.mxu0 0
        %1356 = vmatprep.subr.bf16.mxu0 0
        %1357 = vmatpush1.bf16.msra.mxu0 0
        %1358 = vmatprep.mubr.bf16.mxu0 0
        %1359 = vmatmul.mubr.bf16.gmra.mrb[0].mxu0 %v1315
        %v1360 = vpop.f32.mrb[0].mxu0
        %v1361 = vadd.f32 0.0, %v1360
        %v1362 = vpop.f32.mrb[0].mxu0
        %v1363 = vpop.f32.mrb[0].mxu0
        %v1364 = vadd.f32 0.0, %v1363
        %v1365 = vpop.f32.mrb[0].mxu0
        %1366 = vmatprep.mubr.bf16.mxu0 0
        %1367 = vmatmul.mubr.bf16.gmra.mrb[0].mxu0 %v1318
        %v1368 = vpop.f32.mrb[0].mxu0
        %v1369 = vadd.f32 0.0, %v1368
        %v1370 = vpop.f32.mrb[0].mxu0
        %v1371 = vpop.f32.mrb[0].mxu0
        %v1372 = vadd.f32 0.0, %v1371
        %v1373 = vpop.f32.mrb[0].mxu0
        %1374 = vmatprep.mubr.bf16.mxu0 0
        %1375 = vmatmul.mubr.bf16.gmra.mrb[0].mxu0 %v1321
        %v1376 = vpop.f32.mrb[0].mxu0
        %v1377 = vadd.f32 0.0, %v1376
        %v1378 = vpop.f32.mrb[0].mxu0
        %v1379 = vpop.f32.mrb[0].mxu0
        %v1380 = vadd.f32 0.0, %v1379
        %v1381 = vpop.f32.mrb[0].mxu0
        %1382 = vmatprep.mubr.bf16.mxu0 0
        %1383 = vmatmul.mubr.bf16.gmra.mrb[0].mxu0 %v1324
        %v1384 = vpop.f32.mrb[0].mxu0
        %v1385 = vadd.f32 0.0, %v1384
        %v1386 = vpop.f32.mrb[0].mxu0
        %v1387 = vpop.f32.mrb[0].mxu0
        %v1388 = vadd.f32 0.0, %v1387
        %v1389 = vpop.f32.mrb[0].mxu0
        %1390 = vdwg.mxu0
        %v1399 = vunpack.c.l.b16 %v1266
        %v1400 = vunpack.c.l.b16 %v1267
        %v1401 = vunpack.c.l.b16 %v1268
        %v1402 = vunpack.c.l.b16 %v1269
        %v1403 = vunpack.c.l.b16 %v1270
        %v1404 = vunpack.c.l.b16 %v1271
        %v1405 = vunpack.c.l.b16 %v1272
        %v1406 = vunpack.c.l.b16 %v1273
        %v1407 = vpack.c.b16 %v1400, %v1399
        %v1408 = vpack.c.b16 %v1402, %v1401
        %v1409 = vpack.c.b16 %v1404, %v1403
        %v1410 = vpack.c.b16 %v1406, %v1405
        %v1416 = vsel %vm613, %v1282, 0
        %v1419 = vsel %vm613, %v1283, 0
        %v1422 = vsel %vm613, %v1284, 0
        %v1425 = vsel %vm613, %v1285, 0
        %1427 = vmatprep.subr.bf16.mxu0 0
        %1428 = vmatpush1.bf16.msra.mxu0 %v1407
        %1429 = vmatprep.subr.bf16.mxu0 0
        %1430 = vmatpush1.bf16.msra.mxu0 %v1408
        %1431 = vmatprep.subr.bf16.mxu0 0
        %1432 = vmatpush1.bf16.msra.mxu0 %v1409
        %1433 = vmatprep.subr.bf16.mxu0 0
        %1434 = vmatpush1.bf16.msra.mxu0 %v1410
        %1435 = vmatprep.subr.bf16.mxu0 0
        %1436 = vmatpush1.bf16.msra.mxu0 0
        %1437 = vmatprep.subr.bf16.mxu0 0
        %1438 = vmatpush1.bf16.msra.mxu0 0
        %1439 = vmatprep.subr.bf16.mxu0 0
        %1440 = vmatpush1.bf16.msra.mxu0 0
        %1441 = vmatprep.subr.bf16.mxu0 0
        %1442 = vmatpush1.bf16.msra.mxu0 0
        %1443 = vmatprep.subr.bf16.mxu0 0
        %1444 = vmatpush1.bf16.msra.mxu0 0
        %1445 = vmatprep.subr.bf16.mxu0 0
        %1446 = vmatpush1.bf16.msra.mxu0 0
        %1447 = vmatprep.subr.bf16.mxu0 0
        %1448 = vmatpush1.bf16.msra.mxu0 0
        %1449 = vmatprep.subr.bf16.mxu0 0
        %1450 = vmatpush1.bf16.msra.mxu0 0
        %1451 = vmatprep.subr.bf16.mxu0 0
        %1452 = vmatpush1.bf16.msra.mxu0 0
        %1453 = vmatprep.subr.bf16.mxu0 0
        %1454 = vmatpush1.bf16.msra.mxu0 0
        %1455 = vmatprep.subr.bf16.mxu0 0
        %1456 = vmatpush1.bf16.msra.mxu0 0
        %1457 = vmatprep.subr.bf16.mxu0 0
        %1458 = vmatpush1.bf16.msra.mxu0 0
        %1459 = vmatprep.mubr.bf16.mxu0 0
        %1460 = vmatmul.mubr.bf16.gmra.mrb[0].mxu0 %v1416
        %v1461 = vpop.f32.mrb[0].mxu0
        %v1462 = vadd.f32 %v1361, %v1461
        %v1463 = vpop.f32.mrb[0].mxu0
        %v1464 = vpop.f32.mrb[0].mxu0
        %v1465 = vadd.f32 %v1364, %v1464
        %v1466 = vpop.f32.mrb[0].mxu0
        %1467 = vmatprep.mubr.bf16.mxu0 0
        %1468 = vmatmul.mubr.bf16.gmra.mrb[0].mxu0 %v1419
        %v1469 = vpop.f32.mrb[0].mxu0
        %v1470 = vadd.f32 %v1369, %v1469
        %v1471 = vpop.f32.mrb[0].mxu0
        %v1472 = vpop.f32.mrb[0].mxu0
        %v1473 = vadd.f32 %v1372, %v1472
        %v1474 = vpop.f32.mrb[0].mxu0
        %1475 = vmatprep.mubr.bf16.mxu0 0
        %1476 = vmatmul.mubr.bf16.gmra.mrb[0].mxu0 %v1422
        %v1477 = vpop.f32.mrb[0].mxu0
        %v1478 = vadd.f32 %v1377, %v1477
        %v1479 = vpop.f32.mrb[0].mxu0
        %v1480 = vpop.f32.mrb[0].mxu0
        %v1481 = vadd.f32 %v1380, %v1480
        %v1482 = vpop.f32.mrb[0].mxu0
        %1483 = vmatprep.mubr.bf16.mxu0 0
        %1484 = vmatmul.mubr.bf16.gmra.mrb[0].mxu0 %v1425
        %v1485 = vpop.f32.mrb[0].mxu0
        %v1486 = vadd.f32 %v1385, %v1485
        %v1487 = vpop.f32.mrb[0].mxu0
        %v1488 = vpop.f32.mrb[0].mxu0
        %v1489 = vadd.f32 %v1388, %v1488
        %v1490 = vpop.f32.mrb[0].mxu0
        %1491 = vdwg.mxu0
        %v1492 = vld [vmem:[#allocation6] sm:$0x1]
        %v1494 = vlaneseq
        %v1495 = vshrl.u32 %v1494, 7
        %v1496 = vsub.s32 0, %v1495
        %v1497 = vrot.slane %v1492, %v1496
        %v1499 = vadd.f32 %v1462, %v1497
        %v1500 = vadd.f32 %v1465, %v1497
        %v1501 = vadd.f32 %v1470, %v1497
        %v1502 = vadd.f32 %v1473, %v1497
        %v1503 = vadd.f32 %v1478, %v1497
        %v1504 = vadd.f32 %v1481, %v1497
        %v1505 = vadd.f32 %v1486, %v1497
        %v1506 = vadd.f32 %v1489, %v1497
        %v1507 = vld [vmem:[%s491] sm:$0xff]
        %v1508 = vld [vmem:[%s491 + $0x8] sm:$0xff]
        %v1509 = vld [vmem:[%s491 + $0x10] sm:$0xff]
        %v1510 = vld [vmem:[%s491 + $0x18] sm:$0xff]
        %v1511 = vld [vmem:[%s491 + $0x20] sm:$0xff]
        %v1512 = vld [vmem:[%s491 + $0x28] sm:$0xff]
        %v1513 = vld [vmem:[%s491 + $0x30] sm:$0xff]
        %v1514 = vld [vmem:[%s491 + $0x38] sm:$0xff]
        %v1515 = vadd.f32 %v1507, %v1499
        %v1516 = vadd.f32 %v1508, %v1500
        %v1517 = vadd.f32 %v1509, %v1501
        %v1518 = vadd.f32 %v1510, %v1502
        %v1519 = vadd.f32 %v1511, %v1503
        %v1520 = vadd.f32 %v1512, %v1504
        %v1521 = vadd.f32 %v1513, %v1505
        %v1522 = vadd.f32 %v1514, %v1506
        %1523 = vadd.xlane.f32.xlu0 %v1515
        %v1524 = vpop.xlane.xlu0 %1523
        %1525 = vadd.xlane.f32.xlu0 %v1516
        %v1526 = vpop.xlane.xlu0 %1525
        %1527 = vadd.xlane.f32.xlu0 %v1517
        %v1528 = vpop.xlane.xlu0 %1527
        %1529 = vadd.xlane.f32.xlu0 %v1518
        %v1530 = vpop.xlane.xlu0 %1529
        %1531 = vadd.xlane.f32.xlu0 %v1519
        %v1532 = vpop.xlane.xlu0 %1531
        %1533 = vadd.xlane.f32.xlu0 %v1520
        %v1534 = vpop.xlane.xlu0 %1533
        %1535 = vadd.xlane.f32.xlu0 %v1521
        %v1536 = vpop.xlane.xlu0 %1535
        %1537 = vadd.xlane.f32.xlu0 %v1522
        %v1538 = vpop.xlane.xlu0 %1537
        %v1539 = vrcp.pop 128.0
        %v1540 = vmul.f32 %v1524, %v1539
        %v1541 = vmul.f32 %v1526, %v1539
        %v1542 = vmul.f32 %v1528, %v1539
        %v1543 = vmul.f32 %v1530, %v1539
        %v1544 = vmul.f32 %v1532, %v1539
        %v1545 = vmul.f32 %v1534, %v1539
        %v1546 = vmul.f32 %v1536, %v1539
        %v1547 = vmul.f32 %v1538, %v1539
        %v1548 = vsub.f32 %v1515, %v1540
        %v1549 = vsub.f32 %v1516, %v1541
        %v1550 = vsub.f32 %v1517, %v1542
        %v1551 = vsub.f32 %v1518, %v1543
        %v1552 = vsub.f32 %v1519, %v1544
        %v1553 = vsub.f32 %v1520, %v1545
        %v1554 = vsub.f32 %v1521, %v1546
        %v1555 = vsub.f32 %v1522, %v1547
        %v1556 = vmul.f32 %v1548, %v1548
        %v1557 = vmul.f32 %v1549, %v1549
        %v1558 = vmul.f32 %v1550, %v1550
        %v1559 = vmul.f32 %v1551, %v1551
        %v1560 = vmul.f32 %v1552, %v1552
        %v1561 = vmul.f32 %v1553, %v1553
        %v1562 = vmul.f32 %v1554, %v1554
        %v1563 = vmul.f32 %v1555, %v1555
        %1564 = vadd.xlane.f32.xlu0 %v1556
        %v1565 = vpop.xlane.xlu0 %1564
        %1566 = vadd.xlane.f32.xlu0 %v1557
        %v1567 = vpop.xlane.xlu0 %1566
        %1568 = vadd.xlane.f32.xlu0 %v1558
        %v1569 = vpop.xlane.xlu0 %1568
        %1570 = vadd.xlane.f32.xlu0 %v1559
        %v1571 = vpop.xlane.xlu0 %1570
        %1572 = vadd.xlane.f32.xlu0 %v1560
        %v1573 = vpop.xlane.xlu0 %1572
        %1574 = vadd.xlane.f32.xlu0 %v1561
        %v1575 = vpop.xlane.xlu0 %1574
        %1576 = vadd.xlane.f32.xlu0 %v1562
        %v1577 = vpop.xlane.xlu0 %1576
        %1578 = vadd.xlane.f32.xlu0 %v1563
        %v1579 = vpop.xlane.xlu0 %1578
        %v1580 = vmul.f32 %v1565, %v1539
        %v1581 = vmul.f32 %v1567, %v1539
        %v1582 = vmul.f32 %v1569, %v1539
        %v1583 = vmul.f32 %v1571, %v1539
        %v1584 = vmul.f32 %v1573, %v1539
        %v1585 = vmul.f32 %v1575, %v1539
        %v1586 = vmul.f32 %v1577, %v1539
        %v1587 = vmul.f32 %v1579, %v1539
        %v1588 = vadd.f32 %v1580, 1e-05
        %v1589 = vadd.f32 %v1581, 1e-05
        %v1590 = vadd.f32 %v1582, 1e-05
        %v1591 = vadd.f32 %v1583, 1e-05
        %v1592 = vadd.f32 %v1584, 1e-05
        %v1593 = vadd.f32 %v1585, 1e-05
        %v1594 = vadd.f32 %v1586, 1e-05
        %v1595 = vadd.f32 %v1587, 1e-05
        %v1596 = vrsqrt.pop %v1588
        %v1597 = vrsqrt.pop %v1589
        %v1598 = vrsqrt.pop %v1590
        %v1599 = vrsqrt.pop %v1591
        %v1600 = vrsqrt.pop %v1592
        %v1601 = vrsqrt.pop %v1593
        %v1602 = vrsqrt.pop %v1594
        %v1603 = vrsqrt.pop %v1595
        %v1604 = vmul.f32 %v1548, %v1596
        %v1605 = vmul.f32 %v1549, %v1597
        %v1606 = vmul.f32 %v1550, %v1598
        %v1607 = vmul.f32 %v1551, %v1599
        %v1608 = vmul.f32 %v1552, %v1600
        %v1609 = vmul.f32 %v1553, %v1601
        %v1610 = vmul.f32 %v1554, %v1602
        %v1611 = vmul.f32 %v1555, %v1603
        %v1612 = vld [vmem:[#allocation7] sm:$0x1]
        %v1614 = vlaneseq
        %v1615 = vshrl.u32 %v1614, 7
        %v1616 = vsub.s32 0, %v1615
        %v1617 = vrot.slane %v1612, %v1616
        %v1619 = vmul.f32 %v1604, %v1617
        %v1620 = vmul.f32 %v1605, %v1617
        %v1621 = vmul.f32 %v1606, %v1617
        %v1622 = vmul.f32 %v1607, %v1617
        %v1623 = vmul.f32 %v1608, %v1617
        %v1624 = vmul.f32 %v1609, %v1617
        %v1625 = vmul.f32 %v1610, %v1617
        %v1626 = vmul.f32 %v1611, %v1617
        %v1627 = vld [vmem:[#allocation9] sm:$0x1]
        %v1629 = vlaneseq
        %v1630 = vshrl.u32 %v1629, 7
        %v1631 = vsub.s32 0, %v1630
        %v1632 = vrot.slane %v1627, %v1631
        %v1634 = vadd.f32 %v1619, %v1632
        %v1635 = vadd.f32 %v1620, %v1632
        %v1636 = vadd.f32 %v1621, %v1632
        %v1637 = vadd.f32 %v1622, %v1632
        %v1638 = vadd.f32 %v1623, %v1632
        %v1639 = vadd.f32 %v1624, %v1632
        %v1640 = vadd.f32 %v1625, %v1632
        %v1641 = vadd.f32 %v1626, %v1632
        %1642 = vst [vmem:[%s522] sm:$0xff] %v1634
        %1643 = vst [vmem:[%s522 + $0x8] sm:$0xff] %v1635
        %1644 = vst [vmem:[%s522 + $0x10] sm:$0xff] %v1636
        %1645 = vst [vmem:[%s522 + $0x18] sm:$0xff] %v1637
        %1646 = vst [vmem:[%s522 + $0x20] sm:$0xff] %v1638
        %1647 = vst [vmem:[%s522 + $0x28] sm:$0xff] %v1639
        %1648 = vst [vmem:[%s522 + $0x30] sm:$0xff] %v1640
        %1649 = vst [vmem:[%s522 + $0x38] sm:$0xff] %v1641
        %s1650 = smul.u32 8, %s28
        %p1651 = scmp.lt.s32.totalorder %s27, 1
        %s1652 = scalar_select %p1651, %s27, 1
        %p1653 = scmp.lt.s32.totalorder %s1650, 7
        %s1654 = scalar_select %p1653, %s1650, 7
        %s1655 = smul.addr %s1652, 8
        %s1656 = sadd.s32 %s1654, %s1655
        %s1657 = smul.addr %s1656, 8
        %s1658 = scalar_lea.vmem %s9, %s1657
        // Predicated region
        $region77: #{transformer_forward.8} parent=55 // pred_check
          %p1659 = pneg %p273
        $region78: #{transformer_forward.8} parent=55 // pred_check_branch
          %1661 = sbr.rel (%p1659) target = $region80
        $region79: #{transformer_forward.8} parent=55 // pred_region
          %s1662 = smul.u32 8, %s28
        $region80: #{transformer_forward.8} parent=55 // pred_fallthru
          _
      $region56: #{transformer_forward.8} parent=5 // pred_fallthru
        _
      %p1663 = scmp.le.s32.totalorder 2, %s18
      // Predicated region
      $region81: #{transformer_forward.8} parent=5 // pred_check
        %p1664 = pneg %p1663
      $region82: #{transformer_forward.8} parent=5 // pred_check_branch
        %1666 = sbr.rel (%p1664) target = $region84
      $region83: #{transformer_forward.8} parent=5 // pred_region
        %s1667 = ssub.s32 %s18, 2
        // Predicated region
        $region85: #{transformer_forward.8} parent=83 // pred_check
          %p1668 = pneg %p279
        $region86: #{transformer_forward.8} parent=83 // pred_check_branch
          %1670 = sbr.rel (%p1668) target = $region88
        $region87: #{transformer_forward.8} parent=83 // pred_region
          %s1671 = smul.u32 8, %s30
          %p1672 = scmp.lt.s32.totalorder %s29, 1
          %s1673 = scalar_select %p1672, %s29, 1
          %p1674 = scmp.lt.s32.totalorder %s1671, 7
          %s1675 = scalar_select %p1674, %s1671, 7
          %s1676 = smul.addr %s1673, 8
          %s1677 = sadd.s32 %s1675, %s1676
          %s1678 = smul.addr %s1677, 8
          %s1679 = scalar_lea.vmem %s9, %s1678
        $region88: #{transformer_forward.8} parent=83 // pred_fallthru
          _
      $region84: #{transformer_forward.8} parent=5 // pred_fallthru
        _
    $region6: #{transformer_forward.8} parent=1 // loop_footer
      %s22 = sadd.s32 1, %s18
    $region7: #{transformer_forward.8} parent=1 // loop_footer_branch
      %17 = sbr.rel target = $region3
    $region8: #{transformer_forward.8} parent=1 // loop_exit
      _
    %1680 = vsyncpa [#allocation3], 1
    %s1681 = scalar_lea.sflag [#allocation3], 1
    %1682 = vsyncpa %s1681, 1
    %1683 = vsyncpa [#allocation5], 1
    %1684 = vsyncpa [#allocation8], 1

// kernel: transformer_forward.13
$region0: #{transformer_forward.13}
  #allocation0 [shape = 'u32[]', space=smem, size = 0x4, offset = 0x4, fixed_abs, tag = 'smem constant byte address 0x4 - core index']
  #allocation1 [shape = 'u32[144,128]{1,0:T(1,128)}', space=vmem, size = 0x12000, scoped, tag = 'internal scratch']
  %s0 = inlined_call_operand.vmem [shape: f32[128,128], index: 0, kind: input, shape index: {}]
  %s1 = inlined_call_operand.vmem [shape: bf16[128,256], index: 1, kind: input, shape index: {}]
  %s2 = inlined_call_operand.vmem [shape: f32[1,256], index: 2, kind: input, shape index: {}]
  %s3 = inlined_call_operand.vmem [shape: f32[128,256], index: 3, kind: output, shape index: {}]
  %s4 = sld [smem:[#allocation0]]
  $region22: #{transformer_forward.13} parent=0
    _
  %s6 = ssub.s32 1, %s4
  %s7 = scalar_select 0, %s6, %s4
  // Predicated region
  $region2: #{transformer_forward.13} parent=0 // pred_check
    _
  $region3: #{transformer_forward.13} parent=0 // pred_check_branch
    %9 = sbr.rel (0) target = $region5
  $region4: #{transformer_forward.13} parent=0 // pred_region
    _
  $region5: #{transformer_forward.13} parent=0 // pred_fallthru
    _
  // Predicated region
  $region6: #{transformer_forward.13} parent=0 // pred_check
    _
  $region7: #{transformer_forward.13} parent=0 // pred_check_branch
    %11 = sbr.rel (0) target = $region9
  $region8: #{transformer_forward.13} parent=0 // pred_region
    _
  $region9: #{transformer_forward.13} parent=0 // pred_fallthru
    _
  // Predicated region
  $region10: #{transformer_forward.13} parent=0 // pred_check
    _
  $region11: #{transformer_forward.13} parent=0 // pred_check_branch
    %13 = sbr.rel (0) target = $region13
  $region12: #{transformer_forward.13} parent=0 // pred_region
    _
  $region13: #{transformer_forward.13} parent=0 // pred_fallthru
    _
  %v15 = vld [vmem:[%s0] sm:$0xff]
  %v16 = vld [vmem:[%s0 + $0x8] sm:$0xff]
  %v17 = vld [vmem:[%s0 + $0x10] sm:$0xff]
  %v18 = vld [vmem:[%s0 + $0x18] sm:$0xff]
  %v19 = vld [vmem:[%s0 + $0x20] sm:$0xff]
  %v20 = vld [vmem:[%s0 + $0x28] sm:$0xff]
  %v21 = vld [vmem:[%s0 + $0x30] sm:$0xff]
  %v22 = vld [vmem:[%s0 + $0x38] sm:$0xff]
  %v23 = vld [vmem:[%s0 + $0x40] sm:$0xff]
  %v24 = vld [vmem:[%s0 + $0x48] sm:$0xff]
  %v25 = vld [vmem:[%s0 + $0x50] sm:$0xff]
  %v26 = vld [vmem:[%s0 + $0x58] sm:$0xff]
  %v27 = vld [vmem:[%s0 + $0x60] sm:$0xff]
  %v28 = vld [vmem:[%s0 + $0x68] sm:$0xff]
  %v29 = vld [vmem:[%s0 + $0x70] sm:$0xff]
  %v30 = vld [vmem:[%s0 + $0x78] sm:$0xff]
  %v31 = vpack.c.bf16 %v16, %v15
  %v32 = vpack.c.bf16 %v18, %v17
  %v33 = vpack.c.bf16 %v20, %v19
  %v34 = vpack.c.bf16 %v22, %v21
  %v35 = vpack.c.bf16 %v24, %v23
  %v36 = vpack.c.bf16 %v26, %v25
  %v37 = vpack.c.bf16 %v28, %v27
  %v38 = vpack.c.bf16 %v30, %v29
  %v39 = vld [vmem:[%s1] sm:$0xff]
  %v40 = vld [vmem:[%s1 + $0x8] sm:$0xff]
  %v41 = vld [vmem:[%s1 + $0x10] sm:$0xff]
  %v42 = vld [vmem:[%s1 + $0x18] sm:$0xff]
  %v43 = vld [vmem:[%s1 + $0x20] sm:$0xff]
  %v44 = vld [vmem:[%s1 + $0x28] sm:$0xff]
  %v45 = vld [vmem:[%s1 + $0x30] sm:$0xff]
  %v46 = vld [vmem:[%s1 + $0x38] sm:$0xff]
  %v47 = vld [vmem:[%s1 + $0x40] sm:$0xff]
  %v48 = vld [vmem:[%s1 + $0x48] sm:$0xff]
  %v49 = vld [vmem:[%s1 + $0x50] sm:$0xff]
  %v50 = vld [vmem:[%s1 + $0x58] sm:$0xff]
  %v51 = vld [vmem:[%s1 + $0x60] sm:$0xff]
  %v52 = vld [vmem:[%s1 + $0x68] sm:$0xff]
  %v53 = vld [vmem:[%s1 + $0x70] sm:$0xff]
  %v54 = vld [vmem:[%s1 + $0x78] sm:$0xff]
  %v55 = vld [vmem:[%s2] sm:$0x3]
  %v57 = vlaneseq
  %v58 = vshrl.u32 %v57, 7
  %v59 = vsub.s32 0, %v58
  %v60 = vrot.slane %v55, %v59
  %v61 = vlaneseq
  %v62 = vshrl.u32 %v61, 7
  %v63 = vsub.s32 1, %v62
  %v64 = vrot.slane %v55, %v63
  %v83 = vunpack.c.l.b16 %v39
  %v84 = vunpack.c.h.b16 %v39
  %v85 = vunpack.c.l.b16 %v40
  %v86 = vunpack.c.h.b16 %v40
  %v87 = vunpack.c.l.b16 %v41
  %v88 = vunpack.c.h.b16 %v41
  %v89 = vunpack.c.l.b16 %v42
  %v90 = vunpack.c.h.b16 %v42
  %v91 = vunpack.c.l.b16 %v43
  %v92 = vunpack.c.h.b16 %v43
  %v93 = vunpack.c.l.b16 %v44
  %v94 = vunpack.c.h.b16 %v44
  %v95 = vunpack.c.l.b16 %v45
  %v96 = vunpack.c.h.b16 %v45
  %v97 = vunpack.c.l.b16 %v46
  %v98 = vunpack.c.h.b16 %v46
  %v99 = vunpack.c.l.b16 %v47
  %v100 = vunpack.c.h.b16 %v47
  %v101 = vunpack.c.l.b16 %v48
  %v102 = vunpack.c.h.b16 %v48
  %v103 = vunpack.c.l.b16 %v49
  %v104 = vunpack.c.h.b16 %v49
  %v105 = vunpack.c.l.b16 %v50
  %v106 = vunpack.c.h.b16 %v50
  %v107 = vunpack.c.l.b16 %v51
  %v108 = vunpack.c.h.b16 %v51
  %v109 = vunpack.c.l.b16 %v52
  %v110 = vunpack.c.h.b16 %v52
  %v111 = vunpack.c.l.b16 %v53
  %v112 = vunpack.c.h.b16 %v53
  %v113 = vunpack.c.l.b16 %v54
  %v114 = vunpack.c.h.b16 %v54
  %v115 = vpack.c.b16 %v85, %v83
  %v116 = vpack.c.b16 %v86, %v84
  %v117 = vpack.c.b16 %v89, %v87
  %v118 = vpack.c.b16 %v90, %v88
  %v119 = vpack.c.b16 %v93, %v91
  %v120 = vpack.c.b16 %v94, %v92
  %v121 = vpack.c.b16 %v97, %v95
  %v122 = vpack.c.b16 %v98, %v96
  %v123 = vpack.c.b16 %v101, %v99
  %v124 = vpack.c.b16 %v102, %v100
  %v125 = vpack.c.b16 %v105, %v103
  %v126 = vpack.c.b16 %v106, %v104
  %v127 = vpack.c.b16 %v109, %v107
  %v128 = vpack.c.b16 %v110, %v108
  %v129 = vpack.c.b16 %v113, %v111
  %v130 = vpack.c.b16 %v114, %v112
  %147 = vmatprep.subr.bf16.mxu0 %v116
  %148 = vmatpush1.bf16.msra.mxu0 %v115
  %149 = vmatprep.subr.bf16.mxu0 %v118
  %150 = vmatpush1.bf16.msra.mxu0 %v117
  %151 = vmatprep.subr.bf16.mxu0 %v120
  %152 = vmatpush1.bf16.msra.mxu0 %v119
  %153 = vmatprep.subr.bf16.mxu0 %v122
  %154 = vmatpush1.bf16.msra.mxu0 %v121
  %155 = vmatprep.subr.bf16.mxu0 %v124
  %156 = vmatpush1.bf16.msra.mxu0 %v123
  %157 = vmatprep.subr.bf16.mxu0 %v126
  %158 = vmatpush1.bf16.msra.mxu0 %v125
  %159 = vmatprep.subr.bf16.mxu0 %v128
  %160 = vmatpush1.bf16.msra.mxu0 %v127
  %161 = vmatprep.subr.bf16.mxu0 %v130
  %162 = vmatpush1.bf16.msra.mxu0 %v129
  %163 = vmatprep.subr.bf16.mxu0 0
  %164 = vmatpush1.bf16.msra.mxu0 0
  %165 = vmatprep.subr.bf16.mxu0 0
  %166 = vmatpush1.bf16.msra.mxu0 0
  %167 = vmatprep.subr.bf16.mxu0 0
  %168 = vmatpush1.bf16.msra.mxu0 0
  %169 = vmatprep.subr.bf16.mxu0 0
  %170 = vmatpush1.bf16.msra.mxu0 0
  %171 = vmatprep.subr.bf16.mxu0 0
  %172 = vmatpush1.bf16.msra.mxu0 0
  %173 = vmatprep.subr.bf16.mxu0 0
  %174 = vmatpush1.bf16.msra.mxu0 0
  %175 = vmatprep.subr.bf16.mxu0 0
  %176 = vmatpush1.bf16.msra.mxu0 0
  %177 = vmatprep.subr.bf16.mxu0 0
  %178 = vmatpush1.bf16.msra.mxu0 0
  %179 = vmatprep.mubr.bf16.mxu0 0
  %180 = vmatmul.mubr.bf16.gmra.mrb[0].mxu0 %v31
  %v181 = vpop.f32.mrb[0].mxu0
  %v182 = vadd.f32 %v60, %v181
  %v183 = vpop.f32.mrb[0].mxu0
  %v184 = vadd.f32 %v64, %v183
  %v185 = vpop.f32.mrb[0].mxu0
  %v186 = vadd.f32 %v60, %v185
  %v187 = vpop.f32.mrb[0].mxu0
  %v188 = vadd.f32 %v64, %v187
  %189 = vmatprep.mubr.bf16.mxu0 0
  %190 = vmatmul.mubr.bf16.gmra.mrb[0].mxu0 %v32
  %v191 = vpop.f32.mrb[0].mxu0
  %v192 = vadd.f32 %v60, %v191
  %v193 = vpop.f32.mrb[0].mxu0
  %v194 = vadd.f32 %v64, %v193
  %v195 = vpop.f32.mrb[0].mxu0
  %v196 = vadd.f32 %v60, %v195
  %v197 = vpop.f32.mrb[0].mxu0
  %v198 = vadd.f32 %v64, %v197
  %199 = vmatprep.mubr.bf16.mxu0 0
  %200 = vmatmul.mubr.bf16.gmra.mrb[0].mxu0 %v33
  %v201 = vpop.f32.mrb[0].mxu0
  %v202 = vadd.f32 %v60, %v201
  %v203 = vpop.f32.mrb[0].mxu0
  %v204 = vadd.f32 %v64, %v203
  %v205 = vpop.f32.mrb[0].mxu0
  %v206 = vadd.f32 %v60, %v205
  %v207 = vpop.f32.mrb[0].mxu0
  %v208 = vadd.f32 %v64, %v207
  %209 = vmatprep.mubr.bf16.mxu0 0
  %210 = vmatmul.mubr.bf16.gmra.mrb[0].mxu0 %v34
  %v211 = vpop.f32.mrb[0].mxu0
  %v212 = vadd.f32 %v60, %v211
  %v213 = vpop.f32.mrb[0].mxu0
  %v214 = vadd.f32 %v64, %v213
  %v215 = vpop.f32.mrb[0].mxu0
  %v216 = vadd.f32 %v60, %v215
  %v217 = vpop.f32.mrb[0].mxu0
  %v218 = vadd.f32 %v64, %v217
  %219 = vmatprep.mubr.bf16.mxu0 0
  %220 = vmatmul.mubr.bf16.gmra.mrb[0].mxu0 %v35
  %v221 = vpop.f32.mrb[0].mxu0
  %v222 = vadd.f32 %v60, %v221
  %v223 = vpop.f32.mrb[0].mxu0
  %v224 = vadd.f32 %v64, %v223
  %v225 = vpop.f32.mrb[0].mxu0
  %v226 = vadd.f32 %v60, %v225
  %v227 = vpop.f32.mrb[0].mxu0
  %v228 = vadd.f32 %v64, %v227
  %229 = vmatprep.mubr.bf16.mxu0 0
  %230 = vmatmul.mubr.bf16.gmra.mrb[0].mxu0 %v36
  %v231 = vpop.f32.mrb[0].mxu0
  %v232 = vadd.f32 %v60, %v231
  %v233 = vpop.f32.mrb[0].mxu0
  %v234 = vadd.f32 %v64, %v233
  %v235 = vpop.f32.mrb[0].mxu0
  %v236 = vadd.f32 %v60, %v235
  %v237 = vpop.f32.mrb[0].mxu0
  %v238 = vadd.f32 %v64, %v237
  %239 = vmatprep.mubr.bf16.mxu0 0
  %240 = vmatmul.mubr.bf16.gmra.mrb[0].mxu0 %v37
  %v241 = vpop.f32.mrb[0].mxu0
  %v242 = vadd.f32 %v60, %v241
  %v243 = vpop.f32.mrb[0].mxu0
  %v244 = vadd.f32 %v64, %v243
  %v245 = vpop.f32.mrb[0].mxu0
  %v246 = vadd.f32 %v60, %v245
  %v247 = vpop.f32.mrb[0].mxu0
  %v248 = vadd.f32 %v64, %v247
  %249 = vmatprep.mubr.bf16.mxu0 0
  %250 = vmatmul.mubr.bf16.gmra.mrb[0].mxu0 %v38
  %v251 = vpop.f32.mrb[0].mxu0
  %v252 = vadd.f32 %v60, %v251
  %v253 = vpop.f32.mrb[0].mxu0
  %v254 = vadd.f32 %v64, %v253
  %v255 = vpop.f32.mrb[0].mxu0
  %v256 = vadd.f32 %v60, %v255
  %v257 = vpop.f32.mrb[0].mxu0
  %v258 = vadd.f32 %v64, %v257
  %259 = vdwg.mxu0
  %260 = vst [vmem:[%s3] sm:$0xff] %v182
  %261 = vst [vmem:[%s3 + $0x8] sm:$0xff] %v184
  %262 = vst [vmem:[%s3 + $0x10] sm:$0xff] %v186
  %263 = vst [vmem:[%s3 + $0x18] sm:$0xff] %v188
  %264 = vst [vmem:[%s3 + $0x20] sm:$0xff] %v192
  %265 = vst [vmem:[%s3 + $0x28] sm:$0xff] %v194
  %266 = vst [vmem:[%s3 + $0x30] sm:$0xff] %v196
  %267 = vst [vmem:[%s3 + $0x38] sm:$0xff] %v198
  %268 = vst [vmem:[%s3 + $0x40] sm:$0xff] %v202
  %269 = vst [vmem:[%s3 + $0x48] sm:$0xff] %v204
  %270 = vst [vmem:[%s3 + $0x50] sm:$0xff] %v206
  %271 = vst [vmem:[%s3 + $0x58] sm:$0xff] %v208
  %272 = vst [vmem:[%s3 + $0x60] sm:$0xff] %v212
  %273 = vst [vmem:[%s3 + $0x68] sm:$0xff] %v214
  %274 = vst [vmem:[%s3 + $0x70] sm:$0xff] %v216
  %275 = vst [vmem:[%s3 + $0x78] sm:$0xff] %v218
  %276 = vst [vmem:[%s3 + $0x80] sm:$0xff] %v222
  %277 = vst [vmem:[%s3 + $0x88] sm:$0xff] %v224
  %278 = vst [vmem:[%s3 + $0x90] sm:$0xff] %v226
  %279 = vst [vmem:[%s3 + $0x98] sm:$0xff] %v228
  %280 = vst [vmem:[%s3 + $0xa0] sm:$0xff] %v232
  %281 = vst [vmem:[%s3 + $0xa8] sm:$0xff] %v234
  %282 = vst [vmem:[%s3 + $0xb0] sm:$0xff] %v236
  %283 = vst [vmem:[%s3 + $0xb8] sm:$0xff] %v238
  %284 = vst [vmem:[%s3 + $0xc0] sm:$0xff] %v242
  %285 = vst [vmem:[%s3 + $0xc8] sm:$0xff] %v244
  %286 = vst [vmem:[%s3 + $0xd0] sm:$0xff] %v246
  %287 = vst [vmem:[%s3 + $0xd8] sm:$0xff] %v248
  %288 = vst [vmem:[%s3 + $0xe0] sm:$0xff] %v252
  %289 = vst [vmem:[%s3 + $0xe8] sm:$0xff] %v254
  %290 = vst [vmem:[%s3 + $0xf0] sm:$0xff] %v256
  %291 = vst [vmem:[%s3 + $0xf8] sm:$0xff] %v258
  // Predicated region
  $region14: #{transformer_forward.13} parent=0 // pred_check
    _
  $region15: #{transformer_forward.13} parent=0 // pred_check_branch
    %293 = sbr.rel (0) target = $region17
  $region16: #{transformer_forward.13} parent=0 // pred_region
    _
  $region17: #{transformer_forward.13} parent=0 // pred_fallthru
    _
  // Predicated region
  $region18: #{transformer_forward.13} parent=0 // pred_check
    _
  $region19: #{transformer_forward.13} parent=0 // pred_check_branch
    %295 = sbr.rel (0) target = $region21
  $region20: #{transformer_forward.13} parent=0 // pred_region
    _
  $region21: #{transformer_forward.13} parent=0 // pred_fallthru
    _

// kernel: transformer_forward.11
$region0: #{transformer_forward.11}
  #allocation0 [shape = 'u32[]', space=smem, size = 0x4, offset = 0x4, fixed_abs, tag = 'smem constant byte address 0x4 - core index']
  #allocation1 [shape = 'u32[144,128]{1,0:T(1,128)}', space=vmem, size = 0x12000, scoped, tag = 'internal scratch']
  %s0 = inlined_call_operand.vmem [shape: f32[2,64,128], index: 0, kind: input, shape index: {}]
  %s1 = inlined_call_operand.vmem [shape: bf16[2,2,64,64], index: 1, kind: input, shape index: {}]
  %s2 = inlined_call_operand.vmem [shape: bf16[2,2,64,64], index: 2, kind: input, shape index: {}]
  %s3 = inlined_call_operand.vmem [shape: bf16[2,2,64,64], index: 3, kind: input, shape index: {}]
  %s4 = inlined_call_operand.vmem [shape: f32[64,64], index: 4, kind: input, shape index: {}]
  %s5 = inlined_call_operand.vmem [shape: bf16[2,64,128], index: 5, kind: input, shape index: {}]
  %s6 = inlined_call_operand.vmem [shape: f32[1,128], index: 6, kind: input, shape index: {}]
  %s7 = inlined_call_operand.vmem [shape: f32[1,128], index: 7, kind: input, shape index: {}]
  %s8 = inlined_call_operand.vmem [shape: f32[1,128], index: 8, kind: input, shape index: {}]
  %s9 = inlined_call_operand.vmem [shape: f32[2,64,128], index: 9, kind: output, shape index: {}]
  %s10 = sld [smem:[#allocation0]]
  $region69: #{transformer_forward.11} parent=0
    _
  %s12 = ssub.s32 1, %s10
  %s13 = scalar_select 0, %s12, %s10
  loop: start=0, step=1, limit=4
  $region2: #{transformer_forward.11} parent=0 // loop_pre_header
    _
  $region3: #{transformer_forward.11} parent=0 // loop_header
    %s15 = sphi 0, %s19
    %p16 = scmp.ge.s32.totalorder %s15, 4
    %s22 = sphi 0, %s34
    %s23 = sphi 0, %s30
    %s24 = sphi 0, %s22
    %s25 = sphi 0, %s23
    %s26 = sphi 0, %s24
    %s27 = sphi 0, %s25
    %s39 = sphi 0, %s41
    %s42 = sphi 0, %s39
    %s43 = sphi 0, %s42
    %s59 = sphi 0, %s43
    %s67 = sphi 0, %s69
    %s70 = sphi 0, %s67
    %s71 = sphi 0, %s70
    %s87 = sphi 0, %s71
    %s93 = sphi 0, %s95
    %s96 = sphi 0, %s93
    %s97 = sphi 0, %s96
    %s113 = sphi 0, %s97
    %s119 = sphi 0, %s121
    %s122 = sphi 0, %s119
    %s123 = sphi 0, %s122
    %s139 = sphi 0, %s123
    %s145 = sphi 0, %s147
    %s148 = sphi 0, %s145
    %s149 = sphi 0, %s148
    %s165 = sphi 0, %s149
    %s169 = sphi 0, %s169
    %s171 = sphi 0, %s169
    %s172 = sphi 0, %s171
    %s186 = sphi 0, %s172
    %s190 = sphi 0, %s190
    %s192 = sphi 0, %s190
    %s193 = sphi 0, %s192
    %s207 = sphi 0, %s193
    %s211 = sphi 0, %s211
    %s213 = sphi 0, %s211
    %s214 = sphi 0, %s213
    %s228 = sphi 0, %s214
    %s232 = sphi 0, %s232
    %s234 = sphi 0, %s232
    %s235 = sphi 0, %s234
    %s249 = sphi 0, %s235
    %s257 = sphi 0, %s259
    %s260 = sphi 0, %s257
    %s261 = sphi 0, %s260
    %s277 = sphi 0, %s261
  $region4: #{transformer_forward.11} parent=0 // loop_header_branch
    %18 = sbr.rel (%p16) target = $region8
  $region5: #{transformer_forward.11} parent=0 // loop_body
    %s20 = ssub.s32 %s15, 1
    %s21 = ssub.s32 %s15, 2
    %s28 = sadd.s32 1, %s23
    %p29 = scmp.ge.s32.totalorder %s28, 1
    %s30 = scalar_select %p29, 0, %s28
    %s31 = sadd.s32 1, %s22
    %s32 = scalar_select %p29, %s31, %s22
    %p33 = scmp.ge.s32.totalorder %s32, 2
    %s34 = scalar_select %p33, 0, %s32
    %s35 = ssub.s32 %s22, %s34
    %s36 = ssub.s32 %s23, %s30
    %s37 = sor.u32 %s35, %s36
    %p38 = scmp.eq.s32.totalorder %s37, 0
    %s40 = sadd.s32 %s39, 1
    %s41 = scalar_select %p38, %s39, %s40
    %p44 = pneg %p38
    %p45 = scmp.eq.s32.totalorder %s15, 1
    %p46 = por %p44, %p45
    %p47 = scmp.ne.s32.totalorder %s39, %s42
    %p48 = scmp.eq.s32.totalorder %s15, 0
    %p49 = por %p47, %p48
    %p50 = scmp.ne.s32.totalorder %s39, %s42
    %p51 = scmp.eq.s32.totalorder %s20, 1
    %p52 = por %p50, %p51
    %p53 = scmp.ne.s32.totalorder %s42, %s43
    %p54 = scmp.eq.s32.totalorder %s20, 0
    %p55 = por %p53, %p54
    %p56 = scmp.ne.s32.totalorder %s42, %s43
    %p57 = scmp.eq.s32.totalorder %s21, 1
    %p58 = por %p56, %p57
    %p60 = scmp.ne.s32.totalorder %s43, %s59
    %p61 = scmp.eq.s32.totalorder %s21, 0
    %p62 = por %p60, %p61
    %s63 = ssub.s32 %s22, %s34
    %s64 = ssub.s32 %s23, %s30
    %s65 = sor.u32 %s63, %s64
    %p66 = scmp.eq.s32.totalorder %s65, 0
    %s68 = sadd.s32 %s67, 1
    %s69 = scalar_select %p66, %s67, %s68
    %p72 = pneg %p66
    %p73 = scmp.eq.s32.totalorder %s15, 1
    %p74 = por %p72, %p73
    %p75 = scmp.ne.s32.totalorder %s67, %s70
    %p76 = scmp.eq.s32.totalorder %s15, 0
    %p77 = por %p75, %p76
    %p78 = scmp.ne.s32.totalorder %s67, %s70
    %p79 = scmp.eq.s32.totalorder %s20, 1
    %p80 = por %p78, %p79
    %p81 = scmp.ne.s32.totalorder %s70, %s71
    %p82 = scmp.eq.s32.totalorder %s20, 0
    %p83 = por %p81, %p82
    %p84 = scmp.ne.s32.totalorder %s70, %s71
    %p85 = scmp.eq.s32.totalorder %s21, 1
    %p86 = por %p84, %p85
    %p88 = scmp.ne.s32.totalorder %s71, %s87
    %p89 = scmp.eq.s32.totalorder %s21, 0
    %p90 = por %p88, %p89
    %s91 = ssub.s32 %s22, %s34
    %p92 = scmp.eq.s32.totalorder %s91, 0
    %s94 = sadd.s32 %s93, 1
    %s95 = scalar_select %p92, %s93, %s94
    %p98 = pneg %p92
    %p99 = scmp.eq.s32.totalorder %s15, 1
    %p100 = por %p98, %p99
    %p101 = scmp.ne.s32.totalorder %s93, %s96
    %p102 = scmp.eq.s32.totalorder %s15, 0
    %p103 = por %p101, %p102
    %p104 = scmp.ne.s32.totalorder %s93, %s96
    %p105 = scmp.eq.s32.totalorder %s20, 1
    %p106 = por %p104, %p105
    %p107 = scmp.ne.s32.totalorder %s96, %s97
    %p108 = scmp.eq.s32.totalorder %s20, 0
    %p109 = por %p107, %p108
    %p110 = scmp.ne.s32.totalorder %s96, %s97
    %p111 = scmp.eq.s32.totalorder %s21, 1
    %p112 = por %p110, %p111
    %p114 = scmp.ne.s32.totalorder %s97, %s113
    %p115 = scmp.eq.s32.totalorder %s21, 0
    %p116 = por %p114, %p115
    %s117 = ssub.s32 %s22, %s34
    %p118 = scmp.eq.s32.totalorder %s117, 0
    %s120 = sadd.s32 %s119, 1
    %s121 = scalar_select %p118, %s119, %s120
    %p124 = pneg %p118
    %p125 = scmp.eq.s32.totalorder %s15, 1
    %p126 = por %p124, %p125
    %p127 = scmp.ne.s32.totalorder %s119, %s122
    %p128 = scmp.eq.s32.totalorder %s15, 0
    %p129 = por %p127, %p128
    %p130 = scmp.ne.s32.totalorder %s119, %s122
    %p131 = scmp.eq.s32.totalorder %s20, 1
    %p132 = por %p130, %p131
    %p133 = scmp.ne.s32.totalorder %s122, %s123
    %p134 = scmp.eq.s32.totalorder %s20, 0
    %p135 = por %p133, %p134
    %p136 = scmp.ne.s32.totalorder %s122, %s123
    %p137 = scmp.eq.s32.totalorder %s21, 1
    %p138 = por %p136, %p137
    %p140 = scmp.ne.s32.totalorder %s123, %s139
    %p141 = scmp.eq.s32.totalorder %s21, 0
    %p142 = por %p140, %p141
    %s143 = ssub.s32 %s23, %s30
    %p144 = scmp.eq.s32.totalorder %s143, 0
    %s146 = sadd.s32 %s145, 1
    %s147 = scalar_select %p144, %s145, %s146
    %p150 = pneg %p144
    %p151 = scmp.eq.s32.totalorder %s15, 1
    %p152 = por %p150, %p151
    %p153 = scmp.ne.s32.totalorder %s145, %s148
    %p154 = scmp.eq.s32.totalorder %s15, 0
    %p155 = por %p153, %p154
    %p156 = scmp.ne.s32.totalorder %s145, %s148
    %p157 = scmp.eq.s32.totalorder %s20, 1
    %p158 = por %p156, %p157
    %p159 = scmp.ne.s32.totalorder %s148, %s149
    %p160 = scmp.eq.s32.totalorder %s20, 0
    %p161 = por %p159, %p160
    %p162 = scmp.ne.s32.totalorder %s148, %s149
    %p163 = scmp.eq.s32.totalorder %s21, 1
    %p164 = por %p162, %p163
    %p166 = scmp.ne.s32.totalorder %s149, %s165
    %p167 = scmp.eq.s32.totalorder %s21, 0
    %p168 = por %p166, %p167
    %s170 = sadd.s32 %s169, 1
    %p173 = scmp.eq.s32.totalorder %s15, 1
    %p174 = scmp.ne.s32.totalorder %s169, %s171
    %p175 = scmp.eq.s32.totalorder %s15, 0
    %p176 = por %p174, %p175
    %p177 = scmp.ne.s32.totalorder %s169, %s171
    %p178 = scmp.eq.s32.totalorder %s20, 1
    %p179 = por %p177, %p178
    %p180 = scmp.ne.s32.totalorder %s171, %s172
    %p181 = scmp.eq.s32.totalorder %s20, 0
    %p182 = por %p180, %p181
    %p183 = scmp.ne.s32.totalorder %s171, %s172
    %p184 = scmp.eq.s32.totalorder %s21, 1
    %p185 = por %p183, %p184
    %p187 = scmp.ne.s32.totalorder %s172, %s186
    %p188 = scmp.eq.s32.totalorder %s21, 0
    %p189 = por %p187, %p188
    %s191 = sadd.s32 %s190, 1
    %p194 = scmp.eq.s32.totalorder %s15, 1
    %p195 = scmp.ne.s32.totalorder %s190, %s192
    %p196 = scmp.eq.s32.totalorder %s15, 0
    %p197 = por %p195, %p196
    %p198 = scmp.ne.s32.totalorder %s190, %s192
    %p199 = scmp.eq.s32.totalorder %s20, 1
    %p200 = por %p198, %p199
    %p201 = scmp.ne.s32.totalorder %s192, %s193
    %p202 = scmp.eq.s32.totalorder %s20, 0
    %p203 = por %p201, %p202
    %p204 = scmp.ne.s32.totalorder %s192, %s193
    %p205 = scmp.eq.s32.totalorder %s21, 1
    %p206 = por %p204, %p205
    %p208 = scmp.ne.s32.totalorder %s193, %s207
    %p209 = scmp.eq.s32.totalorder %s21, 0
    %p210 = por %p208, %p209
    %s212 = sadd.s32 %s211, 1
    %p215 = scmp.eq.s32.totalorder %s15, 1
    %p216 = scmp.ne.s32.totalorder %s211, %s213
    %p217 = scmp.eq.s32.totalorder %s15, 0
    %p218 = por %p216, %p217
    %p219 = scmp.ne.s32.totalorder %s211, %s213
    %p220 = scmp.eq.s32.totalorder %s20, 1
    %p221 = por %p219, %p220
    %p222 = scmp.ne.s32.totalorder %s213, %s214
    %p223 = scmp.eq.s32.totalorder %s20, 0
    %p224 = por %p222, %p223
    %p225 = scmp.ne.s32.totalorder %s213, %s214
    %p226 = scmp.eq.s32.totalorder %s21, 1
    %p227 = por %p225, %p226
    %p229 = scmp.ne.s32.totalorder %s214, %s228
    %p230 = scmp.eq.s32.totalorder %s21, 0
    %p231 = por %p229, %p230
    %s233 = sadd.s32 %s232, 1
    %p236 = scmp.eq.s32.totalorder %s15, 1
    %p237 = scmp.ne.s32.totalorder %s232, %s234
    %p238 = scmp.eq.s32.totalorder %s15, 0
    %p239 = por %p237, %p238
    %p240 = scmp.ne.s32.totalorder %s232, %s234
    %p241 = scmp.eq.s32.totalorder %s20, 1
    %p242 = por %p240, %p241
    %p243 = scmp.ne.s32.totalorder %s234, %s235
    %p244 = scmp.eq.s32.totalorder %s20, 0
    %p245 = por %p243, %p244
    %p246 = scmp.ne.s32.totalorder %s234, %s235
    %p247 = scmp.eq.s32.totalorder %s21, 1
    %p248 = por %p246, %p247
    %p250 = scmp.ne.s32.totalorder %s235, %s249
    %p251 = scmp.eq.s32.totalorder %s21, 0
    %p252 = por %p250, %p251
    %s253 = ssub.s32 %s22, %s34
    %s254 = ssub.s32 %s23, %s30
    %s255 = sor.u32 %s253, %s254
    %p256 = scmp.eq.s32.totalorder %s255, 0
    %s258 = sadd.s32 %s257, 1
    %s259 = scalar_select %p256, %s257, %s258
    %p262 = pneg %p256
    %p263 = scmp.eq.s32.totalorder %s15, 1
    %p264 = por %p262, %p263
    %p265 = scmp.ne.s32.totalorder %s257, %s260
    %p266 = scmp.eq.s32.totalorder %s15, 0
    %p267 = por %p265, %p266
    %p268 = scmp.ne.s32.totalorder %s257, %s260
    %p269 = scmp.eq.s32.totalorder %s20, 1
    %p270 = por %p268, %p269
    %p271 = scmp.ne.s32.totalorder %s260, %s261
    %p272 = scmp.eq.s32.totalorder %s20, 0
    %p273 = por %p271, %p272
    %p274 = scmp.ne.s32.totalorder %s260, %s261
    %p275 = scmp.eq.s32.totalorder %s21, 1
    %p276 = por %p274, %p275
    %p278 = scmp.ne.s32.totalorder %s261, %s277
    %p279 = scmp.eq.s32.totalorder %s21, 0
    %p280 = por %p278, %p279
    %p281 = scmp.le.s32.totalorder 1, %s15
    %p282 = scmp.lt.s32.totalorder %s15, 3
    %p283 = pnand %p281, %p282
    %p284 = pneg %p283
    // Predicated region
    $region9: #{transformer_forward.11} parent=5 // pred_check
      _
    $region10: #{transformer_forward.11} parent=5 // pred_check_branch
      %286 = sbr.rel (%p283) target = $region12
    $region11: #{transformer_forward.11} parent=5 // pred_region
      %s287 = ssub.s32 %s15, 1
      // Predicated region
      $region13: #{transformer_forward.11} parent=11 // pred_check
        %p288 = pneg %p161
      $region14: #{transformer_forward.11} parent=11 // pred_check_branch
        %290 = sbr.rel (%p288) target = $region16
      $region15: #{transformer_forward.11} parent=11 // pred_region
        %s291 = smul.u32 8, %s25
        %p292 = scmp.lt.s32.totalorder %s291, 7
        %s293 = scalar_select %p292, %s291, 7
        %s294 = smul.addr %s293, 8
        %s295 = scalar_lea.vmem %s4, %s294
        %s296 = smul.u32 8, %s25
      $region16: #{transformer_forward.11} parent=11 // pred_fallthru
        _
      // Predicated region
      $region17: #{transformer_forward.11} parent=11 // pred_check
        %p297 = pneg %p182
      $region18: #{transformer_forward.11} parent=11 // pred_check_branch
        %299 = sbr.rel (%p297) target = $region20
      $region19: #{transformer_forward.11} parent=11 // pred_region
        _
      $region20: #{transformer_forward.11} parent=11 // pred_fallthru
        _
      // Predicated region
      $region21: #{transformer_forward.11} parent=11 // pred_check
        %p300 = pneg %p203
      $region22: #{transformer_forward.11} parent=11 // pred_check_branch
        %302 = sbr.rel (%p300) target = $region24
      $region23: #{transformer_forward.11} parent=11 // pred_region
        _
      $region24: #{transformer_forward.11} parent=11 // pred_fallthru
        _
      // Predicated region
      $region25: #{transformer_forward.11} parent=11 // pred_check
        %p303 = pneg %p224
      $region26: #{transformer_forward.11} parent=11 // pred_check_branch
        %305 = sbr.rel (%p303) target = $region28
      $region27: #{transformer_forward.11} parent=11 // pred_region
        _
      $region28: #{transformer_forward.11} parent=11 // pred_fallthru
        _
      // Predicated region
      $region29: #{transformer_forward.11} parent=11 // pred_check
        %p306 = pneg %p245
      $region30: #{transformer_forward.11} parent=11 // pred_check_branch
        %308 = sbr.rel (%p306) target = $region32
      $region31: #{transformer_forward.11} parent=11 // pred_region
        _
      $region32: #{transformer_forward.11} parent=11 // pred_fallthru
        _
    $region12: #{transformer_forward.11} parent=5 // pred_fallthru
      _
    %p309 = scmp.lt.s32.totalorder %s15, 2
    // Predicated region
    $region33: #{transformer_forward.11} parent=5 // pred_check
      %p310 = pneg %p309
    $region34: #{transformer_forward.11} parent=5 // pred_check_branch
      %312 = sbr.rel (%p310) target = $region36
    $region35: #{transformer_forward.11} parent=5 // pred_region
      // Predicated region
      $region37: #{transformer_forward.11} parent=35 // pred_check
        %p313 = pneg %p49
      $region38: #{transformer_forward.11} parent=35 // pred_check_branch
        %315 = sbr.rel (%p313) target = $region40
      $region39: #{transformer_forward.11} parent=35 // pred_region
        %s316 = smul.u32 8, %s23
        %p317 = scmp.lt.s32.totalorder %s22, 1
        %s318 = scalar_select %p317, %s22, 1
        %p319 = scmp.lt.s32.totalorder %s316, 7
        %s320 = scalar_select %p319, %s316, 7
        %s321 = smul.addr %s318, 8
        %s322 = sadd.s32 %s320, %s321
        %s323 = smul.addr %s322, 8
        %s324 = scalar_lea.vmem %s0, %s323
        %s325 = smul.u32 8, %s23
      $region40: #{transformer_forward.11} parent=35 // pred_fallthru
        _
      // Predicated region
      $region41: #{transformer_forward.11} parent=35 // pred_check
        %p326 = pneg %p77
      $region42: #{transformer_forward.11} parent=35 // pred_check_branch
        %328 = sbr.rel (%p326) target = $region44
      $region43: #{transformer_forward.11} parent=35 // pred_region
        %s329 = smul.u32 8, %s23
        %p330 = scmp.lt.s32.totalorder %s22, 1
        %s331 = scalar_select %p330, %s22, 1
        %p332 = scmp.lt.s32.totalorder %s329, 7
        %s333 = scalar_select %p332, %s329, 7
        %s334 = smul.addr %s331, 16
        %s335 = sadd.s32 %s333, %s334
        %s336 = smul.addr %s335, 4
        %s337 = scalar_lea.vmem %s1, %s336
        %s338 = smul.u32 8, %s23
      $region44: #{transformer_forward.11} parent=35 // pred_fallthru
        _
      // Predicated region
      $region45: #{transformer_forward.11} parent=35 // pred_check
        %p339 = pneg %p103
      $region46: #{transformer_forward.11} parent=35 // pred_check_branch
        %341 = sbr.rel (%p339) target = $region48
      $region47: #{transformer_forward.11} parent=35 // pred_region
        %p342 = scmp.lt.s32.totalorder %s22, 1
        %s343 = scalar_select %p342, %s22, 1
        %s344 = smul.addr %s343, 16
        %s345 = smul.addr %s344, 4
        %s346 = scalar_lea.vmem %s2, %s345
      $region48: #{transformer_forward.11} parent=35 // pred_fallthru
        _
      // Predicated region
      $region49: #{transformer_forward.11} parent=35 // pred_check
        %p347 = pneg %p129
      $region50: #{transformer_forward.11} parent=35 // pred_check_branch
        %349 = sbr.rel (%p347) target = $region52
      $region51: #{transformer_forward.11} parent=35 // pred_region
        %p350 = scmp.lt.s32.totalorder %s22, 1
        %s351 = scalar_select %p350, %s22, 1
        %s352 = smul.addr %s351, 16
        %s353 = smul.addr %s352, 4
        %s354 = scalar_lea.vmem %s3, %s353
      $region52: #{transformer_forward.11} parent=35 // pred_fallthru
        _
    $region36: #{transformer_forward.11} parent=5 // pred_fallthru
      _
    %p355 = scmp.le.s32.totalorder 1, %s15
    %p356 = scmp.lt.s32.totalorder %s15, 3
    %p357 = pnand %p355, %p356
    %p358 = pneg %p357
    // Predicated region
    $region53: #{transformer_forward.11} parent=5 // pred_check
      _
    $region54: #{transformer_forward.11} parent=5 // pred_check_branch
      %360 = sbr.rel (%p357) target = $region56
    $region55: #{transformer_forward.11} parent=5 // pred_region
      %s361 = ssub.s32 %s15, 1
      %s362 = smul.u32 8, %s25
      %p363 = scmp.lt.s32.totalorder %s24, 1
      %s364 = scalar_select %p363, %s24, 1
      %p365 = scmp.lt.s32.totalorder %s362, 7
      %s366 = scalar_select %p365, %s362, 7
      %s367 = smul.addr %s364, 8
      %s368 = sadd.s32 %s366, %s367
      %s369 = smul.addr %s368, 8
      %s370 = scalar_lea.vmem %s0, %s369
      %p371 = pneg %p55
      %p372 = pneg %p52
      %s373 = smul.u32 8, %s25
      %p374 = scmp.lt.s32.totalorder %s24, 1
      %s375 = scalar_select %p374, %s24, 1
      %p376 = scmp.lt.s32.totalorder %s373, 7
      %s377 = scalar_select %p376, %s373, 7
      %s378 = smul.addr %s375, 16
      %s379 = sadd.s32 %s377, %s378
      %s380 = smul.addr %s379, 4
      %s381 = scalar_lea.vmem %s1, %s380
      %p382 = pneg %p83
      %p383 = pneg %p80
      %p384 = scmp.lt.s32.totalorder %s24, 1
      %s385 = scalar_select %p384, %s24, 1
      %s386 = smul.addr %s385, 16
      %s387 = smul.addr %s386, 4
      %s388 = scalar_lea.vmem %s2, %s387
      %p389 = pneg %p109
      %p390 = pneg %p106
      %p391 = scmp.lt.s32.totalorder %s24, 1
      %s392 = scalar_select %p391, %s24, 1
      %s393 = smul.addr %s392, 16
      %s394 = smul.addr %s393, 4
      %s395 = scalar_lea.vmem %s3, %s394
      %p396 = pneg %p135
      %p397 = pneg %p132
      %s398 = smul.u32 8, %s25
      %p399 = scmp.lt.s32.totalorder %s398, 7
      %s400 = scalar_select %p399, %s398, 7
      %s401 = smul.addr %s400, 8
      %s402 = scalar_lea.vmem %s4, %s401
      %p403 = pneg %p161
      %p404 = pneg %p158
      %p405 = pneg %p182
      %p406 = pneg %p179
      %p407 = pneg %p203
      %p408 = pneg %p200
      %p409 = pneg %p224
      %p410 = pneg %p221
      %p411 = pneg %p245
      %p412 = pneg %p242
      %p413 = pneg %p273
      %p414 = pneg %p270
      %s415 = smul.u32 8, %s25
      %p416 = scmp.lt.s32.totalorder %s24, 1
      %s417 = scalar_select %p416, %s24, 1
      %p418 = scmp.lt.s32.totalorder %s415, 7
      %s419 = scalar_select %p418, %s415, 7
      %s420 = smul.addr %s417, 8
      %s421 = sadd.s32 %s419, %s420
      %s422 = smul.addr %s421, 8
      %s423 = scalar_lea.vmem %s9, %s422
      %s424 = smul.u32 8, %s25
      %p425 = scmp.lt.s32.totalorder %s24, 1
      %s426 = scalar_select %p425, %s24, 1
      %p427 = scmp.lt.s32.totalorder %s424, 7
      %s428 = scalar_select %p427, %s424, 7
      %s429 = smul.addr %s426, 8
      %s430 = sadd.s32 %s428, %s429
      %s431 = smul.addr %s430, 8
      %s432 = scalar_lea.vmem %s0, %s431
      %s433 = smul.u32 8, %s25
      %s434 = smul.u32 8, %s25
      %p435 = scmp.lt.s32.totalorder %s24, 1
      %s436 = scalar_select %p435, %s24, 1
      %p437 = scmp.lt.s32.totalorder %s434, 7
      %s438 = scalar_select %p437, %s434, 7
      %s439 = smul.addr %s436, 16
      %s440 = sadd.s32 %s438, %s439
      %s441 = smul.addr %s440, 4
      %s442 = scalar_lea.vmem %s1, %s441
      %s443 = smul.u32 8, %s25
      %p444 = scmp.lt.s32.totalorder %s24, 1
      %s445 = scalar_select %p444, %s24, 1
      %s446 = smul.addr %s445, 16
      %s447 = smul.addr %s446, 4
      %s448 = scalar_lea.vmem %s2, %s447
      %p449 = scmp.lt.s32.totalorder %s24, 1
      %s450 = scalar_select %p449, %s24, 1
      %s451 = smul.addr %s450, 16
      %s452 = smul.addr %s451, 4
      %s453 = scalar_lea.vmem %s3, %s452
      %s454 = smul.u32 8, %s25
      %p455 = scmp.lt.s32.totalorder %s454, 7
      %s456 = scalar_select %p455, %s454, 7
      %s457 = smul.addr %s456, 8
      %s458 = scalar_lea.vmem %s4, %s457
      %s459 = smul.u32 8, %s25
      %s460 = smul.u32 8, %s25
      %p461 = scmp.lt.s32.totalorder %s24, 1
      %s462 = scalar_select %p461, %s24, 1
      %p463 = scmp.lt.s32.totalorder %s460, 7
      %s464 = scalar_select %p463, %s460, 7
      %s465 = smul.addr %s462, 8
      %s466 = sadd.s32 %s464, %s465
      %s467 = smul.addr %s466, 8
      %s468 = scalar_lea.vmem %s9, %s467
      %s469 = smul.u32 8, %s25
      %v471 = vld [vmem:[%s442] sm:$0xf]
      %v472 = vld [vmem:[%s442 + $0x4] sm:$0xf]
      %v473 = vld [vmem:[%s442 + $0x8] sm:$0xf]
      %v474 = vld [vmem:[%s442 + $0xc] sm:$0xf]
      %v475 = vld [vmem:[%s442 + $0x10] sm:$0xf]
      %v476 = vld [vmem:[%s442 + $0x14] sm:$0xf]
      %v477 = vld [vmem:[%s442 + $0x18] sm:$0xf]
      %v478 = vld [vmem:[%s442 + $0x1c] sm:$0xf]
      %v479 = vld [vmem:[%s442 + $0x20] sm:$0xf]
      %v480 = vld [vmem:[%s442 + $0x24] sm:$0xf]
      %v481 = vld [vmem:[%s442 + $0x28] sm:$0xf]
      %v482 = vld [vmem:[%s442 + $0x2c] sm:$0xf]
      %v483 = vld [vmem:[%s442 + $0x30] sm:$0xf]
      %v484 = vld [vmem:[%s442 + $0x34] sm:$0xf]
      %v485 = vld [vmem:[%s442 + $0x38] sm:$0xf]
      %v486 = vld [vmem:[%s442 + $0x3c] sm:$0xf]
      %v487 = vld [vmem:[%s448] sm:$0xf]
      %v488 = vld [vmem:[%s448 + $0x4] sm:$0xf]
      %v489 = vld [vmem:[%s448 + $0x8] sm:$0xf]
      %v490 = vld [vmem:[%s448 + $0xc] sm:$0xf]
      %v491 = vld [vmem:[%s448 + $0x10] sm:$0xf]
      %v492 = vld [vmem:[%s448 + $0x14] sm:$0xf]
      %v493 = vld [vmem:[%s448 + $0x18] sm:$0xf]
      %v494 = vld [vmem:[%s448 + $0x1c] sm:$0xf]
      %v495 = vld [vmem:[%s448 + $0x20] sm:$0xf]
      %v496 = vld [vmem:[%s448 + $0x24] sm:$0xf]
      %v497 = vld [vmem:[%s448 + $0x28] sm:$0xf]
      %v498 = vld [vmem:[%s448 + $0x2c] sm:$0xf]
      %v499 = vld [vmem:[%s448 + $0x30] sm:$0xf]
      %v500 = vld [vmem:[%s448 + $0x34] sm:$0xf]
      %v501 = vld [vmem:[%s448 + $0x38] sm:$0xf]
      %v502 = vld [vmem:[%s448 + $0x3c] sm:$0xf]
      %v503 = vld [vmem:[%s453] sm:$0xf]
      %v504 = vld [vmem:[%s453 + $0x4] sm:$0xf]
      %v505 = vld [vmem:[%s453 + $0x8] sm:$0xf]
      %v506 = vld [vmem:[%s453 + $0xc] sm:$0xf]
      %v507 = vld [vmem:[%s453 + $0x10] sm:$0xf]
      %v508 = vld [vmem:[%s453 + $0x14] sm:$0xf]
      %v509 = vld [vmem:[%s453 + $0x18] sm:$0xf]
      %v510 = vld [vmem:[%s453 + $0x1c] sm:$0xf]
      %v511 = vld [vmem:[%s453 + $0x20] sm:$0xf]
      %v512 = vld [vmem:[%s453 + $0x24] sm:$0xf]
      %v513 = vld [vmem:[%s453 + $0x28] sm:$0xf]
      %v514 = vld [vmem:[%s453 + $0x2c] sm:$0xf]
      %v515 = vld [vmem:[%s453 + $0x30] sm:$0xf]
      %v516 = vld [vmem:[%s453 + $0x34] sm:$0xf]
      %v517 = vld [vmem:[%s453 + $0x38] sm:$0xf]
      %v518 = vld [vmem:[%s453 + $0x3c] sm:$0xf]
      %v527 = vunpack.c.l.b16 %v471
      %v528 = vunpack.c.l.b16 %v472
      %v529 = vunpack.c.l.b16 %v473
      %v530 = vunpack.c.l.b16 %v474
      %v531 = vunpack.c.l.b16 %v475
      %v532 = vunpack.c.l.b16 %v476
      %v533 = vunpack.c.l.b16 %v477
      %v534 = vunpack.c.l.b16 %v478
      %v535 = vpack.c.b16 %v528, %v527
      %v536 = vpack.c.b16 %v530, %v529
      %v537 = vpack.c.b16 %v532, %v531
      %v538 = vpack.c.b16 %v534, %v533
      %v547 = vunpack.c.l.b16 %v487
      %v548 = vunpack.c.l.b16 %v488
      %v549 = vunpack.c.l.b16 %v489
      %v550 = vunpack.c.l.b16 %v490
      %v551 = vunpack.c.l.b16 %v491
      %v552 = vunpack.c.l.b16 %v492
      %v553 = vunpack.c.l.b16 %v493
      %v554 = vunpack.c.l.b16 %v494
      %v555 = vpack.c.b16 %v548, %v547
      %v556 = vpack.c.b16 %v550, %v549
      %v557 = vpack.c.b16 %v552, %v551
      %v558 = vpack.c.b16 %v554, %v553
      %vm559 = vcmask 523264
      %v561 = vsel %vm559, %v535, 0
      %v564 = vsel %vm559, %v536, 0
      %v567 = vsel %vm559, %v537, 0
      %v570 = vsel %vm559, %v538, 0
      %v573 = vsel %vm559, %v555, 0
      %v576 = vsel %vm559, %v556, 0
      %v579 = vsel %vm559, %v557, 0
      %v582 = vsel %vm559, %v558, 0
      %584 = vmatprep.subr.bf16.mxu0 0
      %585 = vmatpush1.bf16.xpose.msra.mxu0 %v573
      %586 = vmatprep.subr.bf16.mxu0 0
      %587 = vmatpush1.bf16.xpose.msra.mxu0 %v576
      %588 = vmatprep.subr.bf16.mxu0 0
      %589 = vmatpush1.bf16.xpose.msra.mxu0 %v579
      %590 = vmatprep.subr.bf16.mxu0 0
      %591 = vmatpush1.bf16.xpose.msra.mxu0 %v582
      %592 = vmatprep.subr.bf16.mxu0 0
      %593 = vmatpush1.bf16.xpose.msra.mxu0 0
      %594 = vmatprep.subr.bf16.mxu0 0
      %595 = vmatpush1.bf16.xpose.msra.mxu0 0
      %596 = vmatprep.subr.bf16.mxu0 0
      %597 = vmatpush1.bf16.xpose.msra.mxu0 0
      %598 = vmatprep.subr.bf16.mxu0 0
      %599 = vmatpush1.bf16.xpose.msra.mxu0 0
      %600 = vmatprep.subr.bf16.mxu0 0
      %601 = vmatpush1.bf16.xpose.msra.mxu0 0
      %602 = vmatprep.subr.bf16.mxu0 0
      %603 = vmatpush1.bf16.xpose.msra.mxu0 0
      %604 = vmatprep.subr.bf16.mxu0 0
      %605 = vmatpush1.bf16.xpose.msra.mxu0 0
      %606 = vmatprep.subr.bf16.mxu0 0
      %607 = vmatpush1.bf16.xpose.msra.mxu0 0
      %608 = vmatprep.subr.bf16.mxu0 0
      %609 = vmatpush1.bf16.xpose.msra.mxu0 0
      %610 = vmatprep.subr.bf16.mxu0 0
      %611 = vmatpush1.bf16.xpose.msra.mxu0 0
      %612 = vmatprep.subr.bf16.mxu0 0
      %613 = vmatpush1.bf16.xpose.msra.mxu0 0
      %614 = vmatprep.subr.bf16.mxu0 0
      %615 = vmatpush1.bf16.xpose.msra.mxu0 0
      %616 = vmatprep.mubr.bf16.mxu0 0
      %617 = vmatmul.mubr.bf16.gmra.mrb[0].mxu0 %v561
      %v618 = vpop.f32.mrb[0].mxu0
      %v619 = vadd.f32 0.0, %v618
      %v620 = vpop.f32.mrb[0].mxu0
      %v621 = vpop.f32.mrb[0].mxu0
      %v622 = vadd.f32 0.0, %v621
      %v623 = vpop.f32.mrb[0].mxu0
      %624 = vmatprep.mubr.bf16.mxu0 0
      %625 = vmatmul.mubr.bf16.gmra.mrb[0].mxu0 %v564
      %v626 = vpop.f32.mrb[0].mxu0
      %v627 = vadd.f32 0.0, %v626
      %v628 = vpop.f32.mrb[0].mxu0
      %v629 = vpop.f32.mrb[0].mxu0
      %v630 = vadd.f32 0.0, %v629
      %v631 = vpop.f32.mrb[0].mxu0
      %632 = vmatprep.mubr.bf16.mxu0 0
      %633 = vmatmul.mubr.bf16.gmra.mrb[0].mxu0 %v567
      %v634 = vpop.f32.mrb[0].mxu0
      %v635 = vadd.f32 0.0, %v634
      %v636 = vpop.f32.mrb[0].mxu0
      %v637 = vpop.f32.mrb[0].mxu0
      %v638 = vadd.f32 0.0, %v637
      %v639 = vpop.f32.mrb[0].mxu0
      %640 = vmatprep.mubr.bf16.mxu0 0
      %641 = vmatmul.mubr.bf16.gmra.mrb[0].mxu0 %v570
      %v642 = vpop.f32.mrb[0].mxu0
      %v643 = vadd.f32 0.0, %v642
      %v644 = vpop.f32.mrb[0].mxu0
      %v645 = vpop.f32.mrb[0].mxu0
      %v646 = vadd.f32 0.0, %v645
      %v647 = vpop.f32.mrb[0].mxu0
      %648 = vdwg.mxu0
      %v657 = vunpack.c.l.b16 %v479
      %v658 = vunpack.c.l.b16 %v480
      %v659 = vunpack.c.l.b16 %v481
      %v660 = vunpack.c.l.b16 %v482
      %v661 = vunpack.c.l.b16 %v483
      %v662 = vunpack.c.l.b16 %v484
      %v663 = vunpack.c.l.b16 %v485
      %v664 = vunpack.c.l.b16 %v486
      %v665 = vpack.c.b16 %v658, %v657
      %v666 = vpack.c.b16 %v660, %v659
      %v667 = vpack.c.b16 %v662, %v661
      %v668 = vpack.c.b16 %v664, %v663
      %v677 = vunpack.c.l.b16 %v495
      %v678 = vunpack.c.l.b16 %v496
      %v679 = vunpack.c.l.b16 %v497
      %v680 = vunpack.c.l.b16 %v498
      %v681 = vunpack.c.l.b16 %v499
      %v682 = vunpack.c.l.b16 %v500
      %v683 = vunpack.c.l.b16 %v501
      %v684 = vunpack.c.l.b16 %v502
      %v685 = vpack.c.b16 %v678, %v677
      %v686 = vpack.c.b16 %v680, %v679
      %v687 = vpack.c.b16 %v682, %v681
      %v688 = vpack.c.b16 %v684, %v683
      %v690 = vsel %vm559, %v665, 0
      %v693 = vsel %vm559, %v666, 0
      %v696 = vsel %vm559, %v667, 0
      %v699 = vsel %vm559, %v668, 0
      %v702 = vsel %vm559, %v685, 0
      %v705 = vsel %vm559, %v686, 0
      %v708 = vsel %vm559, %v687, 0
      %v711 = vsel %vm559, %v688, 0
      %713 = vmatprep.subr.bf16.mxu0 0
      %714 = vmatpush1.bf16.xpose.msra.mxu0 %v702
      %715 = vmatprep.subr.bf16.mxu0 0
      %716 = vmatpush1.bf16.xpose.msra.mxu0 %v705
      %717 = vmatprep.subr.bf16.mxu0 0
      %718 = vmatpush1.bf16.xpose.msra.mxu0 %v708
      %719 = vmatprep.subr.bf16.mxu0 0
      %720 = vmatpush1.bf16.xpose.msra.mxu0 %v711
      %721 = vmatprep.subr.bf16.mxu0 0
      %722 = vmatpush1.bf16.xpose.msra.mxu0 0
      %723 = vmatprep.subr.bf16.mxu0 0
      %724 = vmatpush1.bf16.xpose.msra.mxu0 0
      %725 = vmatprep.subr.bf16.mxu0 0
      %726 = vmatpush1.bf16.xpose.msra.mxu0 0
      %727 = vmatprep.subr.bf16.mxu0 0
      %728 = vmatpush1.bf16.xpose.msra.mxu0 0
      %729 = vmatprep.subr.bf16.mxu0 0
      %730 = vmatpush1.bf16.xpose.msra.mxu0 0
      %731 = vmatprep.subr.bf16.mxu0 0
      %732 = vmatpush1.bf16.xpose.msra.mxu0 0
      %733 = vmatprep.subr.bf16.mxu0 0
      %734 = vmatpush1.bf16.xpose.msra.mxu0 0
      %735 = vmatprep.subr.bf16.mxu0 0
      %736 = vmatpush1.bf16.xpose.msra.mxu0 0
      %737 = vmatprep.subr.bf16.mxu0 0
      %738 = vmatpush1.bf16.xpose.msra.mxu0 0
      %739 = vmatprep.subr.bf16.mxu0 0
      %740 = vmatpush1.bf16.xpose.msra.mxu0 0
      %741 = vmatprep.subr.bf16.mxu0 0
      %742 = vmatpush1.bf16.xpose.msra.mxu0 0
      %743 = vmatprep.subr.bf16.mxu0 0
      %744 = vmatpush1.bf16.xpose.msra.mxu0 0
      %745 = vmatprep.mubr.bf16.mxu0 0
      %746 = vmatmul.mubr.bf16.gmra.mrb[0].mxu0 %v690
      %v747 = vpop.f32.mrb[0].mxu0
      %v748 = vadd.f32 0.0, %v747
      %v749 = vpop.f32.mrb[0].mxu0
      %v750 = vpop.f32.mrb[0].mxu0
      %v751 = vadd.f32 0.0, %v750
      %v752 = vpop.f32.mrb[0].mxu0
      %753 = vmatprep.mubr.bf16.mxu0 0
      %754 = vmatmul.mubr.bf16.gmra.mrb[0].mxu0 %v693
      %v755 = vpop.f32.mrb[0].mxu0
      %v756 = vadd.f32 0.0, %v755
      %v757 = vpop.f32.mrb[0].mxu0
      %v758 = vpop.f32.mrb[0].mxu0
      %v759 = vadd.f32 0.0, %v758
      %v760 = vpop.f32.mrb[0].mxu0
      %761 = vmatprep.mubr.bf16.mxu0 0
      %762 = vmatmul.mubr.bf16.gmra.mrb[0].mxu0 %v696
      %v763 = vpop.f32.mrb[0].mxu0
      %v764 = vadd.f32 0.0, %v763
      %v765 = vpop.f32.mrb[0].mxu0
      %v766 = vpop.f32.mrb[0].mxu0
      %v767 = vadd.f32 0.0, %v766
      %v768 = vpop.f32.mrb[0].mxu0
      %769 = vmatprep.mubr.bf16.mxu0 0
      %770 = vmatmul.mubr.bf16.gmra.mrb[0].mxu0 %v699
      %v771 = vpop.f32.mrb[0].mxu0
      %v772 = vadd.f32 0.0, %v771
      %v773 = vpop.f32.mrb[0].mxu0
      %v774 = vpop.f32.mrb[0].mxu0
      %v775 = vadd.f32 0.0, %v774
      %v776 = vpop.f32.mrb[0].mxu0
      %777 = vdwg.mxu0
      %v778 = vmul.f32 %v619, 0.125
      %v779 = vmul.f32 %v622, 0.125
      %v780 = vmul.f32 %v627, 0.125
      %v781 = vmul.f32 %v630, 0.125
      %v782 = vmul.f32 %v635, 0.125
      %v783 = vmul.f32 %v638, 0.125
      %v784 = vmul.f32 %v643, 0.125
      %v785 = vmul.f32 %v646, 0.125
      %v786 = vmul.f32 %v748, 0.125
      %v787 = vmul.f32 %v751, 0.125
      %v788 = vmul.f32 %v756, 0.125
      %v789 = vmul.f32 %v759, 0.125
      %v790 = vmul.f32 %v764, 0.125
      %v791 = vmul.f32 %v767, 0.125
      %v792 = vmul.f32 %v772, 0.125
      %v793 = vmul.f32 %v775, 0.125
      %v794 = vld [vmem:[%s458] sm:$0xff]
      %v795 = vld [vmem:[%s458 + $0x8] sm:$0xff]
      %v796 = vld [vmem:[%s458 + $0x10] sm:$0xff]
      %v797 = vld [vmem:[%s458 + $0x18] sm:$0xff]
      %v798 = vld [vmem:[%s458 + $0x20] sm:$0xff]
      %v799 = vld [vmem:[%s458 + $0x28] sm:$0xff]
      %v800 = vld [vmem:[%s458 + $0x30] sm:$0xff]
      %v801 = vld [vmem:[%s458 + $0x38] sm:$0xff]
      %v802 = vmax.f32 %v794, -1e+30
      %v803 = vmax.f32 %v795, -1e+30
      %v804 = vmax.f32 %v796, -1e+30
      %v805 = vmax.f32 %v797, -1e+30
      %v806 = vmax.f32 %v798, -1e+30
      %v807 = vmax.f32 %v799, -1e+30
      %v808 = vmax.f32 %v800, -1e+30
      %v809 = vmax.f32 %v801, -1e+30
      %v810 = vadd.f32 %v778, %v802
      %v811 = vadd.f32 %v779, %v803
      %v812 = vadd.f32 %v780, %v804
      %v813 = vadd.f32 %v781, %v805
      %v814 = vadd.f32 %v782, %v806
      %v815 = vadd.f32 %v783, %v807
      %v816 = vadd.f32 %v784, %v808
      %v817 = vadd.f32 %v785, %v809
      %v818 = vadd.f32 %v786, %v802
      %v819 = vadd.f32 %v787, %v803
      %v820 = vadd.f32 %v788, %v804
      %v821 = vadd.f32 %v789, %v805
      %v822 = vadd.f32 %v790, %v806
      %v823 = vadd.f32 %v791, %v807
      %v824 = vadd.f32 %v792, %v808
      %v825 = vadd.f32 %v793, %v809
      %v826 = vsel %vm559, %v810, -inf
      %827 = vmax.xlane.f32.xlu0 %v826
      %v828 = vpop.xlane.xlu0 %827
      %v829 = vsel %vm559, %v811, -inf
      %830 = vmax.xlane.f32.xlu0 %v829
      %v831 = vpop.xlane.xlu0 %830
      %v832 = vsel %vm559, %v812, -inf
      %833 = vmax.xlane.f32.xlu0 %v832
      %v834 = vpop.xlane.xlu0 %833
      %v835 = vsel %vm559, %v813, -inf
      %836 = vmax.xlane.f32.xlu0 %v835
      %v837 = vpop.xlane.xlu0 %836
      %v838 = vsel %vm559, %v814, -inf
      %839 = vmax.xlane.f32.xlu0 %v838
      %v840 = vpop.xlane.xlu0 %839
      %v841 = vsel %vm559, %v815, -inf
      %842 = vmax.xlane.f32.xlu0 %v841
      %v843 = vpop.xlane.xlu0 %842
      %v844 = vsel %vm559, %v816, -inf
      %845 = vmax.xlane.f32.xlu0 %v844
      %v846 = vpop.xlane.xlu0 %845
      %v847 = vsel %vm559, %v817, -inf
      %848 = vmax.xlane.f32.xlu0 %v847
      %v849 = vpop.xlane.xlu0 %848
      %v850 = vsel %vm559, %v818, -inf
      %851 = vmax.xlane.f32.xlu0 %v850
      %v852 = vpop.xlane.xlu0 %851
      %v853 = vsel %vm559, %v819, -inf
      %854 = vmax.xlane.f32.xlu0 %v853
      %v855 = vpop.xlane.xlu0 %854
      %v856 = vsel %vm559, %v820, -inf
      %857 = vmax.xlane.f32.xlu0 %v856
      %v858 = vpop.xlane.xlu0 %857
      %v859 = vsel %vm559, %v821, -inf
      %860 = vmax.xlane.f32.xlu0 %v859
      %v861 = vpop.xlane.xlu0 %860
      %v862 = vsel %vm559, %v822, -inf
      %863 = vmax.xlane.f32.xlu0 %v862
      %v864 = vpop.xlane.xlu0 %863
      %v865 = vsel %vm559, %v823, -inf
      %866 = vmax.xlane.f32.xlu0 %v865
      %v867 = vpop.xlane.xlu0 %866
      %v868 = vsel %vm559, %v824, -inf
      %869 = vmax.xlane.f32.xlu0 %v868
      %v870 = vpop.xlane.xlu0 %869
      %v871 = vsel %vm559, %v825, -inf
      %872 = vmax.xlane.f32.xlu0 %v871
      %v873 = vpop.xlane.xlu0 %872
      %v874 = vsub.f32 %v810, %v828
      %v875 = vsub.f32 %v811, %v831
      %v876 = vsub.f32 %v812, %v834
      %v877 = vsub.f32 %v813, %v837
      %v878 = vsub.f32 %v814, %v840
      %v879 = vsub.f32 %v815, %v843
      %v880 = vsub.f32 %v816, %v846
      %v881 = vsub.f32 %v817, %v849
      %v882 = vsub.f32 %v818, %v852
      %v883 = vsub.f32 %v819, %v855
      %v884 = vsub.f32 %v820, %v858
      %v885 = vsub.f32 %v821, %v861
      %v886 = vsub.f32 %v822, %v864
      %v887 = vsub.f32 %v823, %v867
      %v888 = vsub.f32 %v824, %v870
      %v889 = vsub.f32 %v825, %v873
      %v890 = vmul.f32 %v874, 1.442695
      %v891 = vpow.pop %v890
      %v892 = vmul.f32 %v875, 1.442695
      %v893 = vpow.pop %v892
      %v894 = vmul.f32 %v876, 1.442695
      %v895 = vpow.pop %v894
      %v896 = vmul.f32 %v877, 1.442695
      %v897 = vpow.pop %v896
      %v898 = vmul.f32 %v878, 1.442695
      %v899 = vpow.pop %v898
      %v900 = vmul.f32 %v879, 1.442695
      %v901 = vpow.pop %v900
      %v902 = vmul.f32 %v880, 1.442695
      %v903 = vpow.pop %v902
      %v904 = vmul.f32 %v881, 1.442695
      %v905 = vpow.pop %v904
      %v906 = vmul.f32 %v882, 1.442695
      %v907 = vpow.pop %v906
      %v908 = vmul.f32 %v883, 1.442695
      %v909 = vpow.pop %v908
      %v910 = vmul.f32 %v884, 1.442695
      %v911 = vpow.pop %v910
      %v912 = vmul.f32 %v885, 1.442695
      %v913 = vpow.pop %v912
      %v914 = vmul.f32 %v886, 1.442695
      %v915 = vpow.pop %v914
      %v916 = vmul.f32 %v887, 1.442695
      %v917 = vpow.pop %v916
      %v918 = vmul.f32 %v888, 1.442695
      %v919 = vpow.pop %v918
      %v920 = vmul.f32 %v889, 1.442695
      %v921 = vpow.pop %v920
      %v922 = vsel %vm559, %v891, 0.0
      %923 = vadd.xlane.f32.xlu0 %v922
      %v924 = vpop.xlane.xlu0 %923
      %v925 = vsel %vm559, %v893, 0.0
      %926 = vadd.xlane.f32.xlu0 %v925
      %v927 = vpop.xlane.xlu0 %926
      %v928 = vsel %vm559, %v895, 0.0
      %929 = vadd.xlane.f32.xlu0 %v928
      %v930 = vpop.xlane.xlu0 %929
      %v931 = vsel %vm559, %v897, 0.0
      %932 = vadd.xlane.f32.xlu0 %v931
      %v933 = vpop.xlane.xlu0 %932
      %v934 = vsel %vm559, %v899, 0.0
      %935 = vadd.xlane.f32.xlu0 %v934
      %v936 = vpop.xlane.xlu0 %935
      %v937 = vsel %vm559, %v901, 0.0
      %938 = vadd.xlane.f32.xlu0 %v937
      %v939 = vpop.xlane.xlu0 %938
      %v940 = vsel %vm559, %v903, 0.0
      %941 = vadd.xlane.f32.xlu0 %v940
      %v942 = vpop.xlane.xlu0 %941
      %v943 = vsel %vm559, %v905, 0.0
      %944 = vadd.xlane.f32.xlu0 %v943
      %v945 = vpop.xlane.xlu0 %944
      %v946 = vsel %vm559, %v907, 0.0
      %947 = vadd.xlane.f32.xlu0 %v946
      %v948 = vpop.xlane.xlu0 %947
      %v949 = vsel %vm559, %v909, 0.0
      %950 = vadd.xlane.f32.xlu0 %v949
      %v951 = vpop.xlane.xlu0 %950
      %v952 = vsel %vm559, %v911, 0.0
      %953 = vadd.xlane.f32.xlu0 %v952
      %v954 = vpop.xlane.xlu0 %953
      %v955 = vsel %vm559, %v913, 0.0
      %956 = vadd.xlane.f32.xlu0 %v955
      %v957 = vpop.xlane.xlu0 %956
      %v958 = vsel %vm559, %v915, 0.0
      %959 = vadd.xlane.f32.xlu0 %v958
      %v960 = vpop.xlane.xlu0 %959
      %v961 = vsel %vm559, %v917, 0.0
      %962 = vadd.xlane.f32.xlu0 %v961
      %v963 = vpop.xlane.xlu0 %962
      %v964 = vsel %vm559, %v919, 0.0
      %965 = vadd.xlane.f32.xlu0 %v964
      %v966 = vpop.xlane.xlu0 %965
      %v967 = vsel %vm559, %v921, 0.0
      %968 = vadd.xlane.f32.xlu0 %v967
      %v969 = vpop.xlane.xlu0 %968
      %v970 = vrcp.pop %v924
      %v971 = vrcp.pop %v927
      %v972 = vrcp.pop %v930
      %v973 = vrcp.pop %v933
      %v974 = vrcp.pop %v936
      %v975 = vrcp.pop %v939
      %v976 = vrcp.pop %v942
      %v977 = vrcp.pop %v945
      %v978 = vrcp.pop %v948
      %v979 = vrcp.pop %v951
      %v980 = vrcp.pop %v954
      %v981 = vrcp.pop %v957
      %v982 = vrcp.pop %v960
      %v983 = vrcp.pop %v963
      %v984 = vrcp.pop %v966
      %v985 = vrcp.pop %v969
      %v986 = vmul.f32 %v891, %v970
      %v987 = vmul.f32 %v893, %v971
      %v988 = vmul.f32 %v895, %v972
      %v989 = vmul.f32 %v897, %v973
      %v990 = vmul.f32 %v899, %v974
      %v991 = vmul.f32 %v901, %v975
      %v992 = vmul.f32 %v903, %v976
      %v993 = vmul.f32 %v905, %v977
      %v994 = vmul.f32 %v907, %v978
      %v995 = vmul.f32 %v909, %v979
      %v996 = vmul.f32 %v911, %v980
      %v997 = vmul.f32 %v913, %v981
      %v998 = vmul.f32 %v915, %v982
      %v999 = vmul.f32 %v917, %v983
      %v1000 = vmul.f32 %v919, %v984
      %v1001 = vmul.f32 %v921, %v985
      %v1002 = vpack.c.bf16 %v987, %v986
      %v1003 = vpack.c.bf16 %v989, %v988
      %v1004 = vpack.c.bf16 %v991, %v990
      %v1005 = vpack.c.bf16 %v993, %v992
      %v1006 = vpack.c.bf16 %v995, %v994
      %v1007 = vpack.c.bf16 %v997, %v996
      %v1008 = vpack.c.bf16 %v999, %v998
      %v1009 = vpack.c.bf16 %v1001, %v1000
      %v1018 = vunpack.c.l.b16 %v503
      %v1019 = vunpack.c.l.b16 %v504
      %v1020 = vunpack.c.l.b16 %v505
      %v1021 = vunpack.c.l.b16 %v506
      %v1022 = vunpack.c.l.b16 %v507
      %v1023 = vunpack.c.l.b16 %v508
      %v1024 = vunpack.c.l.b16 %v509
      %v1025 = vunpack.c.l.b16 %v510
      %v1026 = vpack.c.b16 %v1019, %v1018
      %v1027 = vpack.c.b16 %v1021, %v1020
      %v1028 = vpack.c.b16 %v1023, %v1022
      %v1029 = vpack.c.b16 %v1025, %v1024
      %v1035 = vsel %vm559, %v1002, 0
      %v1038 = vsel %vm559, %v1003, 0
      %v1041 = vsel %vm559, %v1004, 0
      %v1044 = vsel %vm559, %v1005, 0
      %1046 = vmatprep.subr.bf16.mxu0 0
      %1047 = vmatpush1.bf16.msra.mxu0 %v1026
      %1048 = vmatprep.subr.bf16.mxu0 0
      %1049 = vmatpush1.bf16.msra.mxu0 %v1027
      %1050 = vmatprep.subr.bf16.mxu0 0
      %1051 = vmatpush1.bf16.msra.mxu0 %v1028
      %1052 = vmatprep.subr.bf16.mxu0 0
      %1053 = vmatpush1.bf16.msra.mxu0 %v1029
      %1054 = vmatprep.subr.bf16.mxu0 0
      %1055 = vmatpush1.bf16.msra.mxu0 0
      %1056 = vmatprep.subr.bf16.mxu0 0
      %1057 = vmatpush1.bf16.msra.mxu0 0
      %1058 = vmatprep.subr.bf16.mxu0 0
      %1059 = vmatpush1.bf16.msra.mxu0 0
      %1060 = vmatprep.subr.bf16.mxu0 0
      %1061 = vmatpush1.bf16.msra.mxu0 0
      %1062 = vmatprep.subr.bf16.mxu0 0
      %1063 = vmatpush1.bf16.msra.mxu0 0
      %1064 = vmatprep.subr.bf16.mxu0 0
      %1065 = vmatpush1.bf16.msra.mxu0 0
      %1066 = vmatprep.subr.bf16.mxu0 0
      %1067 = vmatpush1.bf16.msra.mxu0 0
      %1068 = vmatprep.subr.bf16.mxu0 0
      %1069 = vmatpush1.bf16.msra.mxu0 0
      %1070 = vmatprep.subr.bf16.mxu0 0
      %1071 = vmatpush1.bf16.msra.mxu0 0
      %1072 = vmatprep.subr.bf16.mxu0 0
      %1073 = vmatpush1.bf16.msra.mxu0 0
      %1074 = vmatprep.subr.bf16.mxu0 0
      %1075 = vmatpush1.bf16.msra.mxu0 0
      %1076 = vmatprep.subr.bf16.mxu0 0
      %1077 = vmatpush1.bf16.msra.mxu0 0
      %1078 = vmatprep.mubr.bf16.mxu0 0
      %1079 = vmatmul.mubr.bf16.gmra.mrb[0].mxu0 %v1035
      %v1080 = vpop.f32.mrb[0].mxu0
      %v1081 = vadd.f32 0.0, %v1080
      %v1082 = vpop.f32.mrb[0].mxu0
      %v1083 = vpop.f32.mrb[0].mxu0
      %v1084 = vadd.f32 0.0, %v1083
      %v1085 = vpop.f32.mrb[0].mxu0
      %1086 = vmatprep.mubr.bf16.mxu0 0
      %1087 = vmatmul.mubr.bf16.gmra.mrb[0].mxu0 %v1038
      %v1088 = vpop.f32.mrb[0].mxu0
      %v1089 = vadd.f32 0.0, %v1088
      %v1090 = vpop.f32.mrb[0].mxu0
      %v1091 = vpop.f32.mrb[0].mxu0
      %v1092 = vadd.f32 0.0, %v1091
      %v1093 = vpop.f32.mrb[0].mxu0
      %1094 = vmatprep.mubr.bf16.mxu0 0
      %1095 = vmatmul.mubr.bf16.gmra.mrb[0].mxu0 %v1041
      %v1096 = vpop.f32.mrb[0].mxu0
      %v1097 = vadd.f32 0.0, %v1096
      %v1098 = vpop.f32.mrb[0].mxu0
      %v1099 = vpop.f32.mrb[0].mxu0
      %v1100 = vadd.f32 0.0, %v1099
      %v1101 = vpop.f32.mrb[0].mxu0
      %1102 = vmatprep.mubr.bf16.mxu0 0
      %1103 = vmatmul.mubr.bf16.gmra.mrb[0].mxu0 %v1044
      %v1104 = vpop.f32.mrb[0].mxu0
      %v1105 = vadd.f32 0.0, %v1104
      %v1106 = vpop.f32.mrb[0].mxu0
      %v1107 = vpop.f32.mrb[0].mxu0
      %v1108 = vadd.f32 0.0, %v1107
      %v1109 = vpop.f32.mrb[0].mxu0
      %1110 = vdwg.mxu0
      %v1119 = vunpack.c.l.b16 %v511
      %v1120 = vunpack.c.l.b16 %v512
      %v1121 = vunpack.c.l.b16 %v513
      %v1122 = vunpack.c.l.b16 %v514
      %v1123 = vunpack.c.l.b16 %v515
      %v1124 = vunpack.c.l.b16 %v516
      %v1125 = vunpack.c.l.b16 %v517
      %v1126 = vunpack.c.l.b16 %v518
      %v1127 = vpack.c.b16 %v1120, %v1119
      %v1128 = vpack.c.b16 %v1122, %v1121
      %v1129 = vpack.c.b16 %v1124, %v1123
      %v1130 = vpack.c.b16 %v1126, %v1125
      %v1136 = vsel %vm559, %v1006, 0
      %v1139 = vsel %vm559, %v1007, 0
      %v1142 = vsel %vm559, %v1008, 0
      %v1145 = vsel %vm559, %v1009, 0
      %1147 = vmatprep.subr.bf16.mxu0 0
      %1148 = vmatpush1.bf16.msra.mxu0 %v1127
      %1149 = vmatprep.subr.bf16.mxu0 0
      %1150 = vmatpush1.bf16.msra.mxu0 %v1128
      %1151 = vmatprep.subr.bf16.mxu0 0
      %1152 = vmatpush1.bf16.msra.mxu0 %v1129
      %1153 = vmatprep.subr.bf16.mxu0 0
      %1154 = vmatpush1.bf16.msra.mxu0 %v1130
      %1155 = vmatprep.subr.bf16.mxu0 0
      %1156 = vmatpush1.bf16.msra.mxu0 0
      %1157 = vmatprep.subr.bf16.mxu0 0
      %1158 = vmatpush1.bf16.msra.mxu0 0
      %1159 = vmatprep.subr.bf16.mxu0 0
      %1160 = vmatpush1.bf16.msra.mxu0 0
      %1161 = vmatprep.subr.bf16.mxu0 0
      %1162 = vmatpush1.bf16.msra.mxu0 0
      %1163 = vmatprep.subr.bf16.mxu0 0
      %1164 = vmatpush1.bf16.msra.mxu0 0
      %1165 = vmatprep.subr.bf16.mxu0 0
      %1166 = vmatpush1.bf16.msra.mxu0 0
      %1167 = vmatprep.subr.bf16.mxu0 0
      %1168 = vmatpush1.bf16.msra.mxu0 0
      %1169 = vmatprep.subr.bf16.mxu0 0
      %1170 = vmatpush1.bf16.msra.mxu0 0
      %1171 = vmatprep.subr.bf16.mxu0 0
      %1172 = vmatpush1.bf16.msra.mxu0 0
      %1173 = vmatprep.subr.bf16.mxu0 0
      %1174 = vmatpush1.bf16.msra.mxu0 0
      %1175 = vmatprep.subr.bf16.mxu0 0
      %1176 = vmatpush1.bf16.msra.mxu0 0
      %1177 = vmatprep.subr.bf16.mxu0 0
      %1178 = vmatpush1.bf16.msra.mxu0 0
      %1179 = vmatprep.mubr.bf16.mxu0 0
      %1180 = vmatmul.mubr.bf16.gmra.mrb[0].mxu0 %v1136
      %v1181 = vpop.f32.mrb[0].mxu0
      %v1182 = vadd.f32 0.0, %v1181
      %v1183 = vpop.f32.mrb[0].mxu0
      %v1184 = vpop.f32.mrb[0].mxu0
      %v1185 = vadd.f32 0.0, %v1184
      %v1186 = vpop.f32.mrb[0].mxu0
      %1187 = vmatprep.mubr.bf16.mxu0 0
      %1188 = vmatmul.mubr.bf16.gmra.mrb[0].mxu0 %v1139
      %v1189 = vpop.f32.mrb[0].mxu0
      %v1190 = vadd.f32 0.0, %v1189
      %v1191 = vpop.f32.mrb[0].mxu0
      %v1192 = vpop.f32.mrb[0].mxu0
      %v1193 = vadd.f32 0.0, %v1192
      %v1194 = vpop.f32.mrb[0].mxu0
      %1195 = vmatprep.mubr.bf16.mxu0 0
      %1196 = vmatmul.mubr.bf16.gmra.mrb[0].mxu0 %v1142
      %v1197 = vpop.f32.mrb[0].mxu0
      %v1198 = vadd.f32 0.0, %v1197
      %v1199 = vpop.f32.mrb[0].mxu0
      %v1200 = vpop.f32.mrb[0].mxu0
      %v1201 = vadd.f32 0.0, %v1200
      %v1202 = vpop.f32.mrb[0].mxu0
      %1203 = vmatprep.mubr.bf16.mxu0 0
      %1204 = vmatmul.mubr.bf16.gmra.mrb[0].mxu0 %v1145
      %v1205 = vpop.f32.mrb[0].mxu0
      %v1206 = vadd.f32 0.0, %v1205
      %v1207 = vpop.f32.mrb[0].mxu0
      %v1208 = vpop.f32.mrb[0].mxu0
      %v1209 = vadd.f32 0.0, %v1208
      %v1210 = vpop.f32.mrb[0].mxu0
      %1211 = vdwg.mxu0
      %v1212 = vld [vmem:[%s5] sm:$0xf]
      %v1213 = vld [vmem:[%s5 + $0x4] sm:$0xf]
      %v1214 = vld [vmem:[%s5 + $0x8] sm:$0xf]
      %v1215 = vld [vmem:[%s5 + $0xc] sm:$0xf]
      %v1216 = vld [vmem:[%s5 + $0x10] sm:$0xf]
      %v1217 = vld [vmem:[%s5 + $0x14] sm:$0xf]
      %v1218 = vld [vmem:[%s5 + $0x18] sm:$0xf]
      %v1219 = vld [vmem:[%s5 + $0x1c] sm:$0xf]
      %v1220 = vld [vmem:[%s5 + $0x20] sm:$0xf]
      %v1221 = vld [vmem:[%s5 + $0x24] sm:$0xf]
      %v1222 = vld [vmem:[%s5 + $0x28] sm:$0xf]
      %v1223 = vld [vmem:[%s5 + $0x2c] sm:$0xf]
      %v1224 = vld [vmem:[%s5 + $0x30] sm:$0xf]
      %v1225 = vld [vmem:[%s5 + $0x34] sm:$0xf]
      %v1226 = vld [vmem:[%s5 + $0x38] sm:$0xf]
      %v1227 = vld [vmem:[%s5 + $0x3c] sm:$0xf]
      %v1228 = vpack.c.bf16 %v1084, %v1081
      %v1229 = vpack.c.bf16 %v1092, %v1089
      %v1230 = vpack.c.bf16 %v1100, %v1097
      %v1231 = vpack.c.bf16 %v1108, %v1105
      %v1232 = vpack.c.bf16 %v1185, %v1182
      %v1233 = vpack.c.bf16 %v1193, %v1190
      %v1234 = vpack.c.bf16 %v1201, %v1198
      %v1235 = vpack.c.bf16 %v1209, %v1206
      %v1244 = vunpack.c.l.b16 %v1220
      %v1245 = vunpack.c.l.b16 %v1221
      %v1246 = vunpack.c.l.b16 %v1222
      %v1247 = vunpack.c.l.b16 %v1223
      %v1248 = vunpack.c.l.b16 %v1224
      %v1249 = vunpack.c.l.b16 %v1225
      %v1250 = vunpack.c.l.b16 %v1226
      %v1251 = vunpack.c.l.b16 %v1227
      %v1252 = vpack.c.b16 %v1245, %v1244
      %v1253 = vpack.c.b16 %v1247, %v1246
      %v1254 = vpack.c.b16 %v1249, %v1248
      %v1255 = vpack.c.b16 %v1251, %v1250
      %v1261 = vsel %vm559, %v1232, 0
      %v1264 = vsel %vm559, %v1233, 0
      %v1267 = vsel %vm559, %v1234, 0
      %v1270 = vsel %vm559, %v1235, 0
      %1272 = vmatprep.subr.bf16.mxu0 0
      %1273 = vmatpush1.bf16.msra.mxu0 %v1252
      %1274 = vmatprep.subr.bf16.mxu0 0
      %1275 = vmatpush1.bf16.msra.mxu0 %v1253
      %1276 = vmatprep.subr.bf16.mxu0 0
      %1277 = vmatpush1.bf16.msra.mxu0 %v1254
      %1278 = vmatprep.subr.bf16.mxu0 0
      %1279 = vmatpush1.bf16.msra.mxu0 %v1255
      %1280 = vmatprep.subr.bf16.mxu0 0
      %1281 = vmatpush1.bf16.msra.mxu0 0
      %1282 = vmatprep.subr.bf16.mxu0 0
      %1283 = vmatpush1.bf16.msra.mxu0 0
      %1284 = vmatprep.subr.bf16.mxu0 0
      %1285 = vmatpush1.bf16.msra.mxu0 0
      %1286 = vmatprep.subr.bf16.mxu0 0
      %1287 = vmatpush1.bf16.msra.mxu0 0
      %1288 = vmatprep.subr.bf16.mxu0 0
      %1289 = vmatpush1.bf16.msra.mxu0 0
      %1290 = vmatprep.subr.bf16.mxu0 0
      %1291 = vmatpush1.bf16.msra.mxu0 0
      %1292 = vmatprep.subr.bf16.mxu0 0
      %1293 = vmatpush1.bf16.msra.mxu0 0
      %1294 = vmatprep.subr.bf16.mxu0 0
      %1295 = vmatpush1.bf16.msra.mxu0 0
      %1296 = vmatprep.subr.bf16.mxu0 0
      %1297 = vmatpush1.bf16.msra.mxu0 0
      %1298 = vmatprep.subr.bf16.mxu0 0
      %1299 = vmatpush1.bf16.msra.mxu0 0
      %1300 = vmatprep.subr.bf16.mxu0 0
      %1301 = vmatpush1.bf16.msra.mxu0 0
      %1302 = vmatprep.subr.bf16.mxu0 0
      %1303 = vmatpush1.bf16.msra.mxu0 0
      %1304 = vmatprep.mubr.bf16.mxu0 0
      %1305 = vmatmul.mubr.bf16.gmra.mrb[0].mxu0 %v1261
      %v1306 = vpop.f32.mrb[0].mxu0
      %v1307 = vadd.f32 0.0, %v1306
      %v1308 = vpop.f32.mrb[0].mxu0
      %v1309 = vpop.f32.mrb[0].mxu0
      %v1310 = vadd.f32 0.0, %v1309
      %v1311 = vpop.f32.mrb[0].mxu0
      %1312 = vmatprep.mubr.bf16.mxu0 0
      %1313 = vmatmul.mubr.bf16.gmra.mrb[0].mxu0 %v1264
      %v1314 = vpop.f32.mrb[0].mxu0
      %v1315 = vadd.f32 0.0, %v1314
      %v1316 = vpop.f32.mrb[0].mxu0
      %v1317 = vpop.f32.mrb[0].mxu0
      %v1318 = vadd.f32 0.0, %v1317
      %v1319 = vpop.f32.mrb[0].mxu0
      %1320 = vmatprep.mubr.bf16.mxu0 0
      %1321 = vmatmul.mubr.bf16.gmra.mrb[0].mxu0 %v1267
      %v1322 = vpop.f32.mrb[0].mxu0
      %v1323 = vadd.f32 0.0, %v1322
      %v1324 = vpop.f32.mrb[0].mxu0
      %v1325 = vpop.f32.mrb[0].mxu0
      %v1326 = vadd.f32 0.0, %v1325
      %v1327 = vpop.f32.mrb[0].mxu0
      %1328 = vmatprep.mubr.bf16.mxu0 0
      %1329 = vmatmul.mubr.bf16.gmra.mrb[0].mxu0 %v1270
      %v1330 = vpop.f32.mrb[0].mxu0
      %v1331 = vadd.f32 0.0, %v1330
      %v1332 = vpop.f32.mrb[0].mxu0
      %v1333 = vpop.f32.mrb[0].mxu0
      %v1334 = vadd.f32 0.0, %v1333
      %v1335 = vpop.f32.mrb[0].mxu0
      %1336 = vdwg.mxu0
      %v1345 = vunpack.c.l.b16 %v1212
      %v1346 = vunpack.c.l.b16 %v1213
      %v1347 = vunpack.c.l.b16 %v1214
      %v1348 = vunpack.c.l.b16 %v1215
      %v1349 = vunpack.c.l.b16 %v1216
      %v1350 = vunpack.c.l.b16 %v1217
      %v1351 = vunpack.c.l.b16 %v1218
      %v1352 = vunpack.c.l.b16 %v1219
      %v1353 = vpack.c.b16 %v1346, %v1345
      %v1354 = vpack.c.b16 %v1348, %v1347
      %v1355 = vpack.c.b16 %v1350, %v1349
      %v1356 = vpack.c.b16 %v1352, %v1351
      %v1362 = vsel %vm559, %v1228, 0
      %v1365 = vsel %vm559, %v1229, 0
      %v1368 = vsel %vm559, %v1230, 0
      %v1371 = vsel %vm559, %v1231, 0
      %1373 = vmatprep.subr.bf16.mxu0 0
      %1374 = vmatpush1.bf16.msra.mxu0 %v1353
      %1375 = vmatprep.subr.bf16.mxu0 0
      %1376 = vmatpush1.bf16.msra.mxu0 %v1354
      %1377 = vmatprep.subr.bf16.mxu0 0
      %1378 = vmatpush1.bf16.msra.mxu0 %v1355
      %1379 = vmatprep.subr.bf16.mxu0 0
      %1380 = vmatpush1.bf16.msra.mxu0 %v1356
      %1381 = vmatprep.subr.bf16.mxu0 0
      %1382 = vmatpush1.bf16.msra.mxu0 0
      %1383 = vmatprep.subr.bf16.mxu0 0
      %1384 = vmatpush1.bf16.msra.mxu0 0
      %1385 = vmatprep.subr.bf16.mxu0 0
      %1386 = vmatpush1.bf16.msra.mxu0 0
      %1387 = vmatprep.subr.bf16.mxu0 0
      %1388 = vmatpush1.bf16.msra.mxu0 0
      %1389 = vmatprep.subr.bf16.mxu0 0
      %1390 = vmatpush1.bf16.msra.mxu0 0
      %1391 = vmatprep.subr.bf16.mxu0 0
      %1392 = vmatpush1.bf16.msra.mxu0 0
      %1393 = vmatprep.subr.bf16.mxu0 0
      %1394 = vmatpush1.bf16.msra.mxu0 0
      %1395 = vmatprep.subr.bf16.mxu0 0
      %1396 = vmatpush1.bf16.msra.mxu0 0
      %1397 = vmatprep.subr.bf16.mxu0 0
      %1398 = vmatpush1.bf16.msra.mxu0 0
      %1399 = vmatprep.subr.bf16.mxu0 0
      %1400 = vmatpush1.bf16.msra.mxu0 0
      %1401 = vmatprep.subr.bf16.mxu0 0
      %1402 = vmatpush1.bf16.msra.mxu0 0
      %1403 = vmatprep.subr.bf16.mxu0 0
      %1404 = vmatpush1.bf16.msra.mxu0 0
      %1405 = vmatprep.mubr.bf16.mxu0 0
      %1406 = vmatmul.mubr.bf16.gmra.mrb[0].mxu0 %v1362
      %v1407 = vpop.f32.mrb[0].mxu0
      %v1408 = vadd.f32 %v1307, %v1407
      %v1409 = vpop.f32.mrb[0].mxu0
      %v1410 = vpop.f32.mrb[0].mxu0
      %v1411 = vadd.f32 %v1310, %v1410
      %v1412 = vpop.f32.mrb[0].mxu0
      %1413 = vmatprep.mubr.bf16.mxu0 0
      %1414 = vmatmul.mubr.bf16.gmra.mrb[0].mxu0 %v1365
      %v1415 = vpop.f32.mrb[0].mxu0
      %v1416 = vadd.f32 %v1315, %v1415
      %v1417 = vpop.f32.mrb[0].mxu0
      %v1418 = vpop.f32.mrb[0].mxu0
      %v1419 = vadd.f32 %v1318, %v1418
      %v1420 = vpop.f32.mrb[0].mxu0
      %1421 = vmatprep.mubr.bf16.mxu0 0
      %1422 = vmatmul.mubr.bf16.gmra.mrb[0].mxu0 %v1368
      %v1423 = vpop.f32.mrb[0].mxu0
      %v1424 = vadd.f32 %v1323, %v1423
      %v1425 = vpop.f32.mrb[0].mxu0
      %v1426 = vpop.f32.mrb[0].mxu0
      %v1427 = vadd.f32 %v1326, %v1426
      %v1428 = vpop.f32.mrb[0].mxu0
      %1429 = vmatprep.mubr.bf16.mxu0 0
      %1430 = vmatmul.mubr.bf16.gmra.mrb[0].mxu0 %v1371
      %v1431 = vpop.f32.mrb[0].mxu0
      %v1432 = vadd.f32 %v1331, %v1431
      %v1433 = vpop.f32.mrb[0].mxu0
      %v1434 = vpop.f32.mrb[0].mxu0
      %v1435 = vadd.f32 %v1334, %v1434
      %v1436 = vpop.f32.mrb[0].mxu0
      %1437 = vdwg.mxu0
      %v1438 = vld [vmem:[%s6] sm:$0x1]
      %v1440 = vlaneseq
      %v1441 = vshrl.u32 %v1440, 7
      %v1442 = vsub.s32 0, %v1441
      %v1443 = vrot.slane %v1438, %v1442
      %v1445 = vadd.f32 %v1408, %v1443
      %v1446 = vadd.f32 %v1411, %v1443
      %v1447 = vadd.f32 %v1416, %v1443
      %v1448 = vadd.f32 %v1419, %v1443
      %v1449 = vadd.f32 %v1424, %v1443
      %v1450 = vadd.f32 %v1427, %v1443
      %v1451 = vadd.f32 %v1432, %v1443
      %v1452 = vadd.f32 %v1435, %v1443
      %v1453 = vld [vmem:[%s432] sm:$0xff]
      %v1454 = vld [vmem:[%s432 + $0x8] sm:$0xff]
      %v1455 = vld [vmem:[%s432 + $0x10] sm:$0xff]
      %v1456 = vld [vmem:[%s432 + $0x18] sm:$0xff]
      %v1457 = vld [vmem:[%s432 + $0x20] sm:$0xff]
      %v1458 = vld [vmem:[%s432 + $0x28] sm:$0xff]
      %v1459 = vld [vmem:[%s432 + $0x30] sm:$0xff]
      %v1460 = vld [vmem:[%s432 + $0x38] sm:$0xff]
      %v1461 = vadd.f32 %v1453, %v1445
      %v1462 = vadd.f32 %v1454, %v1446
      %v1463 = vadd.f32 %v1455, %v1447
      %v1464 = vadd.f32 %v1456, %v1448
      %v1465 = vadd.f32 %v1457, %v1449
      %v1466 = vadd.f32 %v1458, %v1450
      %v1467 = vadd.f32 %v1459, %v1451
      %v1468 = vadd.f32 %v1460, %v1452
      %1469 = vadd.xlane.f32.xlu0 %v1461
      %v1470 = vpop.xlane.xlu0 %1469
      %1471 = vadd.xlane.f32.xlu0 %v1462
      %v1472 = vpop.xlane.xlu0 %1471
      %1473 = vadd.xlane.f32.xlu0 %v1463
      %v1474 = vpop.xlane.xlu0 %1473
      %1475 = vadd.xlane.f32.xlu0 %v1464
      %v1476 = vpop.xlane.xlu0 %1475
      %1477 = vadd.xlane.f32.xlu0 %v1465
      %v1478 = vpop.xlane.xlu0 %1477
      %1479 = vadd.xlane.f32.xlu0 %v1466
      %v1480 = vpop.xlane.xlu0 %1479
      %1481 = vadd.xlane.f32.xlu0 %v1467
      %v1482 = vpop.xlane.xlu0 %1481
      %1483 = vadd.xlane.f32.xlu0 %v1468
      %v1484 = vpop.xlane.xlu0 %1483
      %v1485 = vrcp.pop 128.0
      %v1486 = vmul.f32 %v1470, %v1485
      %v1487 = vmul.f32 %v1472, %v1485
      %v1488 = vmul.f32 %v1474, %v1485
      %v1489 = vmul.f32 %v1476, %v1485
      %v1490 = vmul.f32 %v1478, %v1485
      %v1491 = vmul.f32 %v1480, %v1485
      %v1492 = vmul.f32 %v1482, %v1485
      %v1493 = vmul.f32 %v1484, %v1485
      %v1494 = vsub.f32 %v1461, %v1486
      %v1495 = vsub.f32 %v1462, %v1487
      %v1496 = vsub.f32 %v1463, %v1488
      %v1497 = vsub.f32 %v1464, %v1489
      %v1498 = vsub.f32 %v1465, %v1490
      %v1499 = vsub.f32 %v1466, %v1491
      %v1500 = vsub.f32 %v1467, %v1492
      %v1501 = vsub.f32 %v1468, %v1493
      %v1502 = vmul.f32 %v1494, %v1494
      %v1503 = vmul.f32 %v1495, %v1495
      %v1504 = vmul.f32 %v1496, %v1496
      %v1505 = vmul.f32 %v1497, %v1497
      %v1506 = vmul.f32 %v1498, %v1498
      %v1507 = vmul.f32 %v1499, %v1499
      %v1508 = vmul.f32 %v1500, %v1500
      %v1509 = vmul.f32 %v1501, %v1501
      %1510 = vadd.xlane.f32.xlu0 %v1502
      %v1511 = vpop.xlane.xlu0 %1510
      %1512 = vadd.xlane.f32.xlu0 %v1503
      %v1513 = vpop.xlane.xlu0 %1512
      %1514 = vadd.xlane.f32.xlu0 %v1504
      %v1515 = vpop.xlane.xlu0 %1514
      %1516 = vadd.xlane.f32.xlu0 %v1505
      %v1517 = vpop.xlane.xlu0 %1516
      %1518 = vadd.xlane.f32.xlu0 %v1506
      %v1519 = vpop.xlane.xlu0 %1518
      %1520 = vadd.xlane.f32.xlu0 %v1507
      %v1521 = vpop.xlane.xlu0 %1520
      %1522 = vadd.xlane.f32.xlu0 %v1508
      %v1523 = vpop.xlane.xlu0 %1522
      %1524 = vadd.xlane.f32.xlu0 %v1509
      %v1525 = vpop.xlane.xlu0 %1524
      %v1526 = vmul.f32 %v1511, %v1485
      %v1527 = vmul.f32 %v1513, %v1485
      %v1528 = vmul.f32 %v1515, %v1485
      %v1529 = vmul.f32 %v1517, %v1485
      %v1530 = vmul.f32 %v1519, %v1485
      %v1531 = vmul.f32 %v1521, %v1485
      %v1532 = vmul.f32 %v1523, %v1485
      %v1533 = vmul.f32 %v1525, %v1485
      %v1534 = vadd.f32 %v1526, 1e-05
      %v1535 = vadd.f32 %v1527, 1e-05
      %v1536 = vadd.f32 %v1528, 1e-05
      %v1537 = vadd.f32 %v1529, 1e-05
      %v1538 = vadd.f32 %v1530, 1e-05
      %v1539 = vadd.f32 %v1531, 1e-05
      %v1540 = vadd.f32 %v1532, 1e-05
      %v1541 = vadd.f32 %v1533, 1e-05
      %v1542 = vrsqrt.pop %v1534
      %v1543 = vrsqrt.pop %v1535
      %v1544 = vrsqrt.pop %v1536
      %v1545 = vrsqrt.pop %v1537
      %v1546 = vrsqrt.pop %v1538
      %v1547 = vrsqrt.pop %v1539
      %v1548 = vrsqrt.pop %v1540
      %v1549 = vrsqrt.pop %v1541
      %v1550 = vmul.f32 %v1494, %v1542
      %v1551 = vmul.f32 %v1495, %v1543
      %v1552 = vmul.f32 %v1496, %v1544
      %v1553 = vmul.f32 %v1497, %v1545
      %v1554 = vmul.f32 %v1498, %v1546
      %v1555 = vmul.f32 %v1499, %v1547
      %v1556 = vmul.f32 %v1500, %v1548
      %v1557 = vmul.f32 %v1501, %v1549
      %v1558 = vld [vmem:[%s7] sm:$0x1]
      %v1560 = vlaneseq
      %v1561 = vshrl.u32 %v1560, 7
      %v1562 = vsub.s32 0, %v1561
      %v1563 = vrot.slane %v1558, %v1562
      %v1565 = vmul.f32 %v1550, %v1563
      %v1566 = vmul.f32 %v1551, %v1563
      %v1567 = vmul.f32 %v1552, %v1563
      %v1568 = vmul.f32 %v1553, %v1563
      %v1569 = vmul.f32 %v1554, %v1563
      %v1570 = vmul.f32 %v1555, %v1563
      %v1571 = vmul.f32 %v1556, %v1563
      %v1572 = vmul.f32 %v1557, %v1563
      %v1573 = vld [vmem:[%s8] sm:$0x1]
      %v1575 = vlaneseq
      %v1576 = vshrl.u32 %v1575, 7
      %v1577 = vsub.s32 0, %v1576
      %v1578 = vrot.slane %v1573, %v1577
      %v1580 = vadd.f32 %v1565, %v1578
      %v1581 = vadd.f32 %v1566, %v1578
      %v1582 = vadd.f32 %v1567, %v1578
      %v1583 = vadd.f32 %v1568, %v1578
      %v1584 = vadd.f32 %v1569, %v1578
      %v1585 = vadd.f32 %v1570, %v1578
      %v1586 = vadd.f32 %v1571, %v1578
      %v1587 = vadd.f32 %v1572, %v1578
      %1588 = vst [vmem:[%s468] sm:$0xff] %v1580
      %1589 = vst [vmem:[%s468 + $0x8] sm:$0xff] %v1581
      %1590 = vst [vmem:[%s468 + $0x10] sm:$0xff] %v1582
      %1591 = vst [vmem:[%s468 + $0x18] sm:$0xff] %v1583
      %1592 = vst [vmem:[%s468 + $0x20] sm:$0xff] %v1584
      %1593 = vst [vmem:[%s468 + $0x28] sm:$0xff] %v1585
      %1594 = vst [vmem:[%s468 + $0x30] sm:$0xff] %v1586
      %1595 = vst [vmem:[%s468 + $0x38] sm:$0xff] %v1587
      %s1596 = smul.u32 8, %s25
      %p1597 = scmp.lt.s32.totalorder %s24, 1
      %s1598 = scalar_select %p1597, %s24, 1
      %p1599 = scmp.lt.s32.totalorder %s1596, 7
      %s1600 = scalar_select %p1599, %s1596, 7
      %s1601 = smul.addr %s1598, 8
      %s1602 = sadd.s32 %s1600, %s1601
      %s1603 = smul.addr %s1602, 8
      %s1604 = scalar_lea.vmem %s9, %s1603
      // Predicated region
      $region57: #{transformer_forward.11} parent=55 // pred_check
        %p1605 = pneg %p270
      $region58: #{transformer_forward.11} parent=55 // pred_check_branch
        %1607 = sbr.rel (%p1605) target = $region60
      $region59: #{transformer_forward.11} parent=55 // pred_region
        %s1608 = smul.u32 8, %s25
      $region60: #{transformer_forward.11} parent=55 // pred_fallthru
        _
    $region56: #{transformer_forward.11} parent=5 // pred_fallthru
      _
    %p1609 = scmp.le.s32.totalorder 2, %s15
    // Predicated region
    $region61: #{transformer_forward.11} parent=5 // pred_check
      %p1610 = pneg %p1609
    $region62: #{transformer_forward.11} parent=5 // pred_check_branch
      %1612 = sbr.rel (%p1610) target = $region64
    $region63: #{transformer_forward.11} parent=5 // pred_region
      %s1613 = ssub.s32 %s15, 2
      // Predicated region
      $region65: #{transformer_forward.11} parent=63 // pred_check
        %p1614 = pneg %p276
      $region66: #{transformer_forward.11} parent=63 // pred_check_branch
        %1616 = sbr.rel (%p1614) target = $region68
      $region67: #{transformer_forward.11} parent=63 // pred_region
        %s1617 = smul.u32 8, %s27
        %p1618 = scmp.lt.s32.totalorder %s26, 1
        %s1619 = scalar_select %p1618, %s26, 1
        %p1620 = scmp.lt.s32.totalorder %s1617, 7
        %s1621 = scalar_select %p1620, %s1617, 7
        %s1622 = smul.addr %s1619, 8
        %s1623 = sadd.s32 %s1621, %s1622
        %s1624 = smul.addr %s1623, 8
        %s1625 = scalar_lea.vmem %s9, %s1624
      $region68: #{transformer_forward.11} parent=63 // pred_fallthru
        _
    $region64: #{transformer_forward.11} parent=5 // pred_fallthru
      _
  $region6: #{transformer_forward.11} parent=0 // loop_footer
    %s19 = sadd.s32 1, %s15
  $region7: #{transformer_forward.11} parent=0 // loop_footer_branch
    %14 = sbr.rel target = $region3
  $region8: #{transformer_forward.11} parent=0 // loop_exit
    _

</llo_original>
